<compile_context>
chip_gen: v7x
topology: tpu7x:2x2x1
jax: 0.10.0
libtpu: 0.0.40
codegen_flags: <defaults>
</compile_context>

<pallas_src>
import math
from functools import partial

import jax
import jax.numpy as jnp
from jax.experimental import pallas as pl
from jax.experimental.pallas import tpu as pltpu


def _round_up(x, m):
    return (x + m - 1) // m * m


# ----------------------------------------------------------------------------
# Pallas kernels
# ----------------------------------------------------------------------------
def matmul_bn_relu_kernel(p_ref, w_ref, scale_ref, shift_ref, o_ref):
    """out = relu((patches @ w) * scale + shift); bf16 operands, f32 acc, bf16 out."""
    acc = jnp.dot(p_ref[...], w_ref[...], preferred_element_type=jnp.float32)
    o_ref[...] = jnp.maximum(acc * scale_ref[...] + shift_ref[...], 0.0
                             ).astype(o_ref.dtype)


def make_maxpool_kernel(n_slices):
    """Elementwise max over `n_slices` strided views (kernel == stride max-pool)."""
    def kernel(*refs):
        o_ref = refs[-1]
        acc = refs[0][...]
        for r in refs[1:-1]:
            acc = jnp.maximum(acc, r[...])
        o_ref[...] = acc
    return kernel


def make_fused_decoder_kernel(blank):
    """Whole greedy decode in one kernel (weights + state resident in VMEM)."""
    def kernel(enc_ref, eenc_ref,
               wh_ref, bhh_ref, ba_ref, v_ref,
               wtok_ref, wctx_ref, bgi_ref,
               wout_ref, bout_ref,
               pred_ref,
               h_sc, oh_sc, done_sm):
        B, T, He = enc_ref.shape
        Hd = h_sc.shape[1]
        nr = oh_sc.shape[1]
        max_size = pred_ref.shape[1]
        H3 = 3 * Hd

        # ---- init: hidden = 0, token = BOS(=blank) one-hot, done = 0, pred = blank
        h_sc[...] = jnp.zeros_like(h_sc)
        ids = jax.lax.broadcasted_iota(jnp.int32, (B, nr), 1)
        oh_sc[...] = jnp.where(ids == blank, 1.0, 0.0).astype(oh_sc.dtype)
        done_sm[0] = jnp.int32(0)
        pred_ref[...] = jnp.full(pred_ref.shape, blank, dtype=pred_ref.dtype)

        # ---- loop-invariant loads / broadcasts, hoisted out of the step loop ----
        enc_f = enc_ref[...].astype(jnp.float32)           # (B, T, He)
        eenc_f = eenc_ref[...].astype(jnp.float32)         # (B, T, Hd) pre-projection
        v_b = v_ref[...].astype(jnp.float32)[None, :, :]   # (1, 1, Hd)
        wh = wh_ref[...]                                   # (Hd, 4Hd) bf16: [Whh | Wa_h]
        wtok = wtok_ref[...]                               # (nr, 3Hd) bf16
        wctx = wctx_ref[...]                               # (He, 3Hd) bf16
        wout = wout_ref[...]                               # (Hd, nr)  bf16
        bhh = bhh_ref[...]
        ba = ba_ref[...]
        bgi = bgi_ref[...]
        bout = bout_ref[...]
        cols = jax.lax.broadcasted_iota(jnp.int32, (B, max_size), 1)

        def step(t, carry):
            # Whole step is skipped once every sequence has emitted blank
            # (emulates the PyTorch early `break`, which is global over the batch).
            @pl.when(done_sm[0] == 0)
            def _body():
                h = h_sc[...]                               # (B, Hd) f32
                onehot = oh_sc[...]                         # (B, nr) f32 (exact 0/1)

                # --- single h-side matmul: [GRU hh gates | attn hidden proj] ---
                hx = jnp.dot(h.astype(jnp.bfloat16), wh,
                             preferred_element_type=jnp.float32)     # (B, 4Hd)
                gh = hx[:, :H3] + bhh                                 # (B, 3Hd)
                e_hid = hx[:, H3:] + ba                               # (B, Hd)

                # --- attention: v . tanh(Wa [h ; enc] + ba); enc part hoisted ---
                energy = jnp.tanh(eenc_f + e_hid[:, None, :])         # (B, T, Hd)
                scores = jnp.sum(energy * v_b, axis=-1)               # (B, T)
                m = jnp.max(scores, axis=-1, keepdims=True)
                ex = jnp.exp(scores - m)
                attn = ex / jnp.sum(ex, axis=-1, keepdims=True)       # exact softmax

                # --- context: VPU weighted sum over T (avoids q=1 bmm) ---
                ctx = jnp.sum(attn[:, :, None] * enc_f, axis=1)       # (B, He)

                # --- GRUCell; word_linear folded into wtok; both gi terms on MXU ---
                gi = (jnp.dot(onehot.astype(jnp.bfloat16), wtok,
                              preferred_element_type=jnp.float32)
                      + jnp.dot(ctx.astype(jnp.bfloat16), wctx,
                                preferred_element_type=jnp.float32)
                      + bgi)                                          # (B, 3Hd)
                r = jax.nn.sigmoid(gi[:, :Hd] + gh[:, :Hd])
                z = jax.nn.sigmoid(gi[:, Hd:2 * Hd] + gh[:, Hd:2 * Hd])
                n = jnp.tanh(gi[:, 2 * Hd:] + r * gh[:, 2 * Hd:])
                h_new = (1.0 - z) * n + z * h

                # --- output projection; argmax(softmax(x)) == argmax(x) ---
                logits = (jnp.dot(h_new.astype(jnp.bfloat16), wout,
                                  preferred_element_type=jnp.float32) + bout)
                lmax = jnp.max(logits, axis=-1, keepdims=True)
                i_tok = jnp.min(jnp.where(logits == lmax, ids, nr), axis=-1,
                                keepdims=True).astype(jnp.int32)      # first-max idx

                # --- prediction write (single-vreg masked update in VMEM) ---
                pred_ref[...] = jnp.where(cols == t, i_tok, pred_ref[...])

                # --- early-stop flag + state update ---
                non_blank = jnp.sum(jnp.where(i_tok == blank, 0.0, 1.0))  # scalar
                done_sm[0] = (non_blank == 0.0).astype(jnp.int32)
                h_sc[...] = h_new
                oh_sc[...] = jnp.where(ids == i_tok, 1.0, 0.0).astype(oh_sc.dtype)
            return carry

        # Short fixed trip count -> fully unroll for LLO scheduler visibility.
        jax.lax.fori_loop(0, max_size, step, None, unroll=True)

    return kernel


# ----------------------------------------------------------------------------
# Wrappers around pallas_call
# ----------------------------------------------------------------------------
def conv_bn_relu(x_nhwc, w, b, gamma, beta, mean, var,
                 stride=(1, 1), padding=(1, 1), eps=1e-5):
    """Conv2d(+bias) + BatchNorm(eval) + ReLU.  x is NHWC, w is PyTorch (Cout,Cin,kh,kw)."""
    B, H, W, Cin = x_nhwc.shape
    Cout, _, kh, kw = w.shape
    sh, sw = stride
    ph, pw = padding
    xp = jnp.pad(x_nhwc, ((0, 0), (ph, ph), (pw, pw), (0, 0)))
    Ho = (H + 2 * ph - kh) // sh + 1
    Wo = (W + 2 * pw - kw) // sw + 1

    # im2col (wrapper glue, fused by XLA under jit); bf16 operands halve DMA
    # bytes and use the native MXU dtype; accumulation stays f32 in the kernel.
    cols = [xp[:, i:i + sh * Ho:sh, j:j + sw * Wo:sw, :]
            for i in range(kh) for j in range(kw)]
    patches = jnp.stack(cols, axis=3).reshape(B * Ho * Wo, kh * kw * Cin)
    patches = patches.astype(jnp.bfloat16)
    wmat = jnp.transpose(w, (2, 3, 1, 0)).reshape(kh * kw * Cin, Cout).astype(jnp.bfloat16)

    scale = (gamma / jnp.sqrt(var + eps)).astype(jnp.float32)
    shift = ((b - mean) * scale + beta).astype(jnp.float32)

    M, K = patches.shape
    N = Cout
    # Large single tile (working set << VMEM); pad M so any shape works.
    tm = min(1024, _round_up(M, 16))
    Mp = _round_up(M, tm)
    if Mp != M:
        patches = jnp.pad(patches, ((0, Mp - M), (0, 0)))

    out = pl.pallas_call(
        matmul_bn_relu_kernel,
        out_shape=jax.ShapeDtypeStruct((Mp, N), jnp.bfloat16),
        grid=(Mp // tm,),
        in_specs=[
            pl.BlockSpec((tm, K), lambda i: (i, 0)),
            pl.BlockSpec((K, N), lambda i: (0, 0)),
            pl.BlockSpec((1, N), lambda i: (0, 0)),
            pl.BlockSpec((1, N), lambda i: (0, 0)),
        ],
        out_specs=pl.BlockSpec((tm, N), lambda i: (i, 0)),
        compiler_params=pltpu.CompilerParams(dimension_semantics=("parallel",)),
    )(patches, wmat, scale.reshape(1, N), shift.reshape(1, N))
    return out[:M].reshape(B, Ho, Wo, Cout)


def maxpool(x_nhwc, kh, kw):
    """MaxPool2d with kernel == stride, no padding (as used by the encoder)."""
    slices = [x_nhwc[:, di::kh, dj::kw, :] for di in range(kh) for dj in range(kw)]
    n = len(slices)
    vmem = lambda: pl.BlockSpec(memory_space=pltpu.MemorySpace.VMEM)
    return pl.pallas_call(
        make_maxpool_kernel(n),
        out_shape=jax.ShapeDtypeStruct(slices[0].shape, x_nhwc.dtype),
        in_specs=[vmem() for _ in range(n)],
        out_specs=vmem(),
    )(*slices)


def fused_greedy_decode(enc, e_enc, dp, max_size, blank):
    """One pallas_call for all decode timesteps; returns pred (B, max_size) int32."""
    B, T, He = enc.shape
    Hd = dp['ba'].shape[1]
    nr = dp['bout'].shape[1]
    vmem = lambda: pl.BlockSpec(memory_space=pltpu.MemorySpace.VMEM)
    args = (enc, e_enc,
            dp['wh'], dp['bhh'], dp['ba'], dp['v'],
            dp['wtok'], dp['wctx'], dp['bgi'],
            dp['wout'], dp['bout'])
    # NOTE: no batch grid on purpose -- the PyTorch early `break` is global over
    # the batch, so splitting the batch across TensorCores would change outputs.
    return pl.pallas_call(
        make_fused_decoder_kernel(blank),
        out_shape=jax.ShapeDtypeStruct((B, max_size), jnp.int32),
        in_specs=[vmem() for _ in args],
        out_specs=vmem(),
        scratch_shapes=[pltpu.VMEM((B, Hd), jnp.float32),   # hidden state (f32 recurrence)
                        pltpu.VMEM((B, nr), jnp.float32),   # current token one-hot
                        pltpu.SMEM((1,), jnp.int32)],       # done flag (early break)
        compiler_params=pltpu.CompilerParams(
            vmem_limit_bytes=32 * 1024 * 1024),             # safe on v7x's 64 MiB VMEM
    )(*args)


# ----------------------------------------------------------------------------
# Model glue (encoder stack, decoder input assembly, jitted forward)
# ----------------------------------------------------------------------------
def encoder_forward(feature_nchw, conv_params):
    x = jnp.transpose(feature_nchw, (0, 2, 3, 1))          # NCHW -> NHWC
    x = conv_bn_relu(x, *conv_params[0])
    x = conv_bn_relu(x, *conv_params[1])
    x = maxpool(x, 2, 2)
    x = conv_bn_relu(x, *conv_params[2])
    x = conv_bn_relu(x, *conv_params[3])
    x = maxpool(x, 2, 1)
    x = conv_bn_relu(x, *conv_params[4])
    x = conv_bn_relu(x, *conv_params[5])
    x = maxpool(x, 2, 1)
    x = conv_bn_relu(x, *conv_params[6], stride=(2, 1), padding=(0, 1))
    return jnp.transpose(x, (0, 3, 1, 2))                  # (B, C, height, max_size) bf16


def build_decoder_input(seq_nchw, max_size, height):
    B, C, Hh, Ww = seq_nchw.shape
    dt = seq_nchw.dtype
    eye_x = jnp.eye(max_size, dtype=dt)
    eye_y = jnp.eye(height, dtype=dt)
    idx_x = jnp.broadcast_to(jnp.arange(max_size)[None, :], (height, max_size))
    idx_y = jnp.broadcast_to(jnp.arange(height)[:, None], (height, max_size))
    ohx = jnp.transpose(eye_x[idx_x], (2, 0, 1))           # (max_size, height, max_size)
    ohy = jnp.transpose(eye_y[idx_y], (2, 0, 1))           # (height,   height, max_size)
    ohx = jnp.broadcast_to(ohx[None], (B,) + ohx.shape)
    ohy = jnp.broadcast_to(ohy[None], (B,) + ohy.shape)
    dec_in = jnp.concatenate([seq_nchw, ohy, ohx], axis=1)  # (B, C+height+max_size, h, w)
    T = Hh * Ww
    return jnp.transpose(dec_in.reshape(B, dec_in.shape[1], T), (0, 2, 1))  # (B, T, He)


@partial(jax.jit, static_argnames=("max_size", "height", "blank"))
def attention_decoder_forward(feature, conv_params, dec_params, *,
                              max_size, height, blank):
    seq = encoder_forward(feature, conv_params)
    enc = build_decoder_input(seq, max_size, height)        # (B, T, He) bf16
    # Bahdanau pre-projection: t-invariant -> computed once per sequence (bf16 MXU, f32 acc).
    e_enc = jnp.einsum('bte,eh->bth', enc, dec_params['wa2'],
                       preferred_element_type=jnp.float32).astype(jnp.bfloat16)
    return fused_greedy_decode(enc, e_enc, dec_params, max_size, blank)


# ----------------------------------------------------------------------------
# Deterministic parameter construction (PyTorch layouts -> fused kernel layouts)
# ----------------------------------------------------------------------------
def init_params(key, in_channels, C, max_size, height, nr):
    Hd = C
    emb = max_size + height
    He = Hd + emb
    keys = iter(jax.random.split(key, 64))

    def nrm(shape, s):
        return jax.random.normal(next(keys), shape, jnp.float32) * s

    conv_defs = [(in_channels, C, 3, 3), (C, C, 3, 3), (C, C, 3, 3), (C, C, 3, 3),
                 (C, C, 3, 3), (C, C, 3, 3), (C, C, 2, 3)]
    conv_params = []
    for (cin, cout, kh, kw) in conv_defs:
        w = nrm((cout, cin, kh, kw), 0.08)
        b = nrm((cout,), 0.01)
        gamma = 1.0 + nrm((cout,), 0.05)
        beta = nrm((cout,), 0.05)
        mean = nrm((cout,), 0.01)
        var = 1.0 + jnp.abs(nrm((cout,), 0.1))
        conv_params.append((w, b, gamma, beta, mean, var))

    # PyTorch-layout raw parameters:
    Wa = nrm((Hd, Hd + He), 0.1)            # Attn linear (Hd, 2Hd+emb)
    ba = nrm((Hd,), 0.1)
    v = nrm((Hd,), 1.0 / math.sqrt(Hd))
    Ww = nrm((Hd, nr), 0.1)                 # word_linear weight
    bw = nrm((Hd,), 0.1)
    Wih = nrm((3 * Hd, Hd + He), 0.1)       # GRUCell weight_ih (gate order r,z,n)
    bih = nrm((3 * Hd,), 0.1)
    Whh = nrm((3 * Hd, Hd), 0.1)
    bhh = nrm((3 * Hd,), 0.1)
    Wo = nrm((nr, Hd), 0.1)                 # out linear
    bo = nrm((nr,), 0.1)

    # Fused-kernel layouts:
    wa1 = Wa[:, :Hd].T                      # (Hd, Hd)  hidden part of attn linear
    wa2 = Wa[:, Hd:].T                      # (He, Hd)  encoder part (pre-projected)
    wih_we = Wih[:, :Hd].T                  # (Hd, 3Hd) word-embedding part of gate input
    wih_ctx = Wih[:, Hd:].T                 # (He, 3Hd) context part of gate input
    wtok = Ww.T @ wih_we                    # (nr, 3Hd) word_linear folded into gates
    bgi = (bih + bw @ wih_we).reshape(1, 3 * Hd)
    wh = jnp.concatenate([Whh.T, wa1], axis=1)   # (Hd, 4Hd) = [GRU hh | attn hidden]

    dec_params = dict(
        wa2=wa2.astype(jnp.bfloat16),
        wh=wh.astype(jnp.bfloat16),
        bhh=bhh.reshape(1, 3 * Hd),
        ba=ba.reshape(1, Hd),
        v=v.reshape(1, Hd),
        wtok=wtok.astype(jnp.bfloat16),
        wctx=wih_ctx.astype(jnp.bfloat16),
        bgi=bgi,
        wout=Wo.T.astype(jnp.bfloat16),
        bout=bo.reshape(1, nr),
    )
    return conv_params, dec_params


# ----------------------------------------------------------------------------
if __name__ == "__main__":
    # Small configuration consistent with the module:
    #   inner_channels=32, max_size=8, height=1, charset of 12 classes (blank=0).
    #   Encoder reduces (H, W) = (16, 16) -> (height, max_size) = (1, 8).
    B, Cin, H, W = 2, 4, 16, 16
    inner_channels, max_size, height = 32, 8, 1
    nr_classes, blank = 12, 0

    key = jax.random.PRNGKey(0)
    k_feat, k_par = jax.random.split(key)
    feature = jax.random.normal(k_feat, (B, Cin, H, W), jnp.float32)   # NCHW input

    conv_params, dec_params = init_params(k_par, Cin, inner_channels,
                                          max_size, height, nr_classes)

    pred = attention_decoder_forward(feature, conv_params, dec_params,
                                     max_size=max_size, height=height, blank=blank)
    pred = jax.block_until_ready(pred)
    assert pred.shape == (B, max_size) and pred.dtype == jnp.int32
    print("KERNEL_OK")
</pallas_src>

<mosaic_0001>
module attributes {stable_mosaic.version = 11 : i64} {
  func.func @matmul_bn_relu_kernel(%arg0: i32, %arg1: memref<512x36xbf16, #tpu.memory_space<vmem>>, %arg2: memref<36x32xbf16, #tpu.memory_space<vmem>>, %arg3: memref<1x32xf32, #tpu.memory_space<vmem>>, %arg4: memref<1x32xf32, #tpu.memory_space<vmem>>, %arg5: memref<512x32xbf16, #tpu.memory_space<vmem>>) attributes {dimension_semantics = [#tpu.dimension_semantics<parallel>], iteration_bounds = array<i64: 1>, scalar_prefetch = 0 : i64, scratch_operands = 0 : i64, tpu.core_type = #tpu.core_type<tc>, window_params = [{transform_indices = @transform_0, window_bounds = array<i64: 512, 36>}, {pipeline_mode = #tpu.pipeline_mode<synchronous>, transform_indices = @transform_1, window_bounds = array<i64: 36, 32>}, {pipeline_mode = #tpu.pipeline_mode<synchronous>, transform_indices = @transform_2, window_bounds = array<i64: 1, 32>}, {pipeline_mode = #tpu.pipeline_mode<synchronous>, transform_indices = @transform_3, window_bounds = array<i64: 1, 32>}, {transform_indices = @transform_4, window_bounds = array<i64: 512, 32>}]} {
    %c0 = arith.constant 0 : index
    %c0_0 = arith.constant 0 : index
    %0 = vector.load %arg1[%c0, %c0_0] : memref<512x36xbf16, #tpu.memory_space<vmem>>, vector<512x36xbf16>
    %c0_1 = arith.constant 0 : index
    %c0_2 = arith.constant 0 : index
    %1 = vector.load %arg2[%c0_1, %c0_2] : memref<36x32xbf16, #tpu.memory_space<vmem>>, vector<36x32xbf16>
    %cst = arith.constant dense<0.000000e+00> : vector<512x32xf32>
    %2 = tpu.matmul %0, %1, %cst {dimension_numbers = #tpu.dot_dimension_numbers<[1], [0], [0], [1], [0, 0, 1, 1], [], []>} : vector<512x36xbf16>, vector<36x32xbf16>, vector<512x32xf32> -> vector<512x32xf32>
    %c0_3 = arith.constant 0 : index
    %c0_4 = arith.constant 0 : index
    %3 = vector.load %arg3[%c0_3, %c0_4] : memref<1x32xf32, #tpu.memory_space<vmem>>, vector<1x32xf32>
    %4 = vector.broadcast %3 : vector<1x32xf32> to vector<512x32xf32>
    %5 = arith.mulf %2, %4 : vector<512x32xf32>
    %c0_5 = arith.constant 0 : index
    %c0_6 = arith.constant 0 : index
    %6 = vector.load %arg4[%c0_5, %c0_6] : memref<1x32xf32, #tpu.memory_space<vmem>>, vector<1x32xf32>
    %7 = vector.broadcast %6 : vector<1x32xf32> to vector<512x32xf32>
    %8 = arith.addf %5, %7 : vector<512x32xf32>
    %cst_7 = arith.constant 0.000000e+00 : f32
    %9 = vector.broadcast %cst_7 : f32 to vector<512x32xf32>
    %10 = arith.maximumf %8, %9 : vector<512x32xf32>
    %11 = arith.truncf %10 : vector<512x32xf32> to vector<512x32xbf16>
    %c0_8 = arith.constant 0 : index
    %c0_9 = arith.constant 0 : index
    %12 = vector.load %arg5[%c0_8, %c0_9] : memref<512x32xbf16, #tpu.memory_space<vmem>>, vector<512x32xbf16>
    tpu.vector_store %arg5[%c0_8, %c0_9], %11 {strides = array<i32>} : memref<512x32xbf16, #tpu.memory_space<vmem>>, vector<512x32xbf16>,
    return
  }
  func.func @transform_0(%arg0: i32) -> (i32, i32) {
    %c0_i32 = arith.constant 0 : i32
    %c0_i32_0 = arith.constant 0 : i32
    return %arg0, %c0_i32 : i32, i32
  }
  func.func @transform_1(%arg0: i32) -> (i32, i32) {
    %c0_i32 = arith.constant 0 : i32
    %c0_i32_0 = arith.constant 0 : i32
    %c0_i32_1 = arith.constant 0 : i32
    return %c0_i32, %c0_i32_0 : i32, i32
  }
  func.func @transform_2(%arg0: i32) -> (i32, i32) {
    %c0_i32 = arith.constant 0 : i32
    %c0_i32_0 = arith.constant 0 : i32
    %c0_i32_1 = arith.constant 0 : i32
    return %c0_i32, %c0_i32_0 : i32, i32
  }
  func.func @transform_3(%arg0: i32) -> (i32, i32) {
    %c0_i32 = arith.constant 0 : i32
    %c0_i32_0 = arith.constant 0 : i32
    %c0_i32_1 = arith.constant 0 : i32
    return %c0_i32, %c0_i32_0 : i32, i32
  }
  func.func @transform_4(%arg0: i32) -> (i32, i32) {
    %c0_i32 = arith.constant 0 : i32
    %c0_i32_0 = arith.constant 0 : i32
    return %arg0, %c0_i32 : i32, i32
  }
}

module attributes {stable_mosaic.version = 11 : i64} {
  func.func @matmul_bn_relu_kernel(%arg0: i32, %arg1: memref<512x288xbf16, #tpu.memory_space<vmem>>, %arg2: memref<288x32xbf16, #tpu.memory_space<vmem>>, %arg3: memref<1x32xf32, #tpu.memory_space<vmem>>, %arg4: memref<1x32xf32, #tpu.memory_space<vmem>>, %arg5: memref<512x32xbf16, #tpu.memory_space<vmem>>) attributes {dimension_semantics = [#tpu.dimension_semantics<parallel>], iteration_bounds = array<i64: 1>, scalar_prefetch = 0 : i64, scratch_operands = 0 : i64, tpu.core_type = #tpu.core_type<tc>, window_params = [{transform_indices = @transform_0, window_bounds = array<i64: 512, 288>}, {pipeline_mode = #tpu.pipeline_mode<synchronous>, transform_indices = @transform_1, window_bounds = array<i64: 288, 32>}, {pipeline_mode = #tpu.pipeline_mode<synchronous>, transform_indices = @transform_2, window_bounds = array<i64: 1, 32>}, {pipeline_mode = #tpu.pipeline_mode<synchronous>, transform_indices = @transform_3, window_bounds = array<i64: 1, 32>}, {transform_indices = @transform_4, window_bounds = array<i64: 512, 32>}]} {
    %c0 = arith.constant 0 : index
    %c0_0 = arith.constant 0 : index
    %0 = vector.load %arg1[%c0, %c0_0] : memref<512x288xbf16, #tpu.memory_space<vmem>>, vector<512x288xbf16>
    %c0_1 = arith.constant 0 : index
    %c0_2 = arith.constant 0 : index
    %1 = vector.load %arg2[%c0_1, %c0_2] : memref<288x32xbf16, #tpu.memory_space<vmem>>, vector<288x32xbf16>
    %cst = arith.constant dense<0.000000e+00> : vector<512x32xf32>
    %2 = tpu.matmul %0, %1, %cst {dimension_numbers = #tpu.dot_dimension_numbers<[1], [0], [0], [1], [0, 0, 1, 1], [], []>} : vector<512x288xbf16>, vector<288x32xbf16>, vector<512x32xf32> -> vector<512x32xf32>
    %c0_3 = arith.constant 0 : index
    %c0_4 = arith.constant 0 : index
    %3 = vector.load %arg3[%c0_3, %c0_4] : memref<1x32xf32, #tpu.memory_space<vmem>>, vector<1x32xf32>
    %4 = vector.broadcast %3 : vector<1x32xf32> to vector<512x32xf32>
    %5 = arith.mulf %2, %4 : vector<512x32xf32>
    %c0_5 = arith.constant 0 : index
    %c0_6 = arith.constant 0 : index
    %6 = vector.load %arg4[%c0_5, %c0_6] : memref<1x32xf32, #tpu.memory_space<vmem>>, vector<1x32xf32>
    %7 = vector.broadcast %6 : vector<1x32xf32> to vector<512x32xf32>
    %8 = arith.addf %5, %7 : vector<512x32xf32>
    %cst_7 = arith.constant 0.000000e+00 : f32
    %9 = vector.broadcast %cst_7 : f32 to vector<512x32xf32>
    %10 = arith.maximumf %8, %9 : vector<512x32xf32>
    %11 = arith.truncf %10 : vector<512x32xf32> to vector<512x32xbf16>
    %c0_8 = arith.constant 0 : index
    %c0_9 = arith.constant 0 : index
    %12 = vector.load %arg5[%c0_8, %c0_9] : memref<512x32xbf16, #tpu.memory_space<vmem>>, vector<512x32xbf16>
    tpu.vector_store %arg5[%c0_8, %c0_9], %11 {strides = array<i32>} : memref<512x32xbf16, #tpu.memory_space<vmem>>, vector<512x32xbf16>,
    return
  }
  func.func @transform_0(%arg0: i32) -> (i32, i32) {
    %c0_i32 = arith.constant 0 : i32
    %c0_i32_0 = arith.constant 0 : i32
    return %arg0, %c0_i32 : i32, i32
  }
  func.func @transform_1(%arg0: i32) -> (i32, i32) {
    %c0_i32 = arith.constant 0 : i32
    %c0_i32_0 = arith.constant 0 : i32
    %c0_i32_1 = arith.constant 0 : i32
    return %c0_i32, %c0_i32_0 : i32, i32
  }
  func.func @transform_2(%arg0: i32) -> (i32, i32) {
    %c0_i32 = arith.constant 0 : i32
    %c0_i32_0 = arith.constant 0 : i32
    %c0_i32_1 = arith.constant 0 : i32
    return %c0_i32, %c0_i32_0 : i32, i32
  }
  func.func @transform_3(%arg0: i32) -> (i32, i32) {
    %c0_i32 = arith.constant 0 : i32
    %c0_i32_0 = arith.constant 0 : i32
    %c0_i32_1 = arith.constant 0 : i32
    return %c0_i32, %c0_i32_0 : i32, i32
  }
  func.func @transform_4(%arg0: i32) -> (i32, i32) {
    %c0_i32 = arith.constant 0 : i32
    %c0_i32_0 = arith.constant 0 : i32
    return %arg0, %c0_i32 : i32, i32
  }
}

module attributes {stable_mosaic.version = 11 : i64} {
  func.func @kernel(%arg0: memref<2x8x8x32xbf16, #tpu.memory_space<vmem>>, %arg1: memref<2x8x8x32xbf16, #tpu.memory_space<vmem>>, %arg2: memref<2x8x8x32xbf16, #tpu.memory_space<vmem>>, %arg3: memref<2x8x8x32xbf16, #tpu.memory_space<vmem>>, %arg4: memref<2x8x8x32xbf16, #tpu.memory_space<vmem>>) attributes {dimension_semantics = [], scalar_prefetch = 0 : i64, scratch_operands = 0 : i64, tpu.core_type = #tpu.core_type<tc>} {
    %c0 = arith.constant 0 : index
    %c0_0 = arith.constant 0 : index
    %c0_1 = arith.constant 0 : index
    %c0_2 = arith.constant 0 : index
    %0 = vector.load %arg0[%c0, %c0_0, %c0_1, %c0_2] : memref<2x8x8x32xbf16, #tpu.memory_space<vmem>>, vector<2x8x8x32xbf16>
    %c0_3 = arith.constant 0 : index
    %c0_4 = arith.constant 0 : index
    %c0_5 = arith.constant 0 : index
    %c0_6 = arith.constant 0 : index
    %1 = vector.load %arg1[%c0_3, %c0_4, %c0_5, %c0_6] : memref<2x8x8x32xbf16, #tpu.memory_space<vmem>>, vector<2x8x8x32xbf16>
    %2 = arith.maximumf %0, %1 : vector<2x8x8x32xbf16>
    %c0_7 = arith.constant 0 : index
    %c0_8 = arith.constant 0 : index
    %c0_9 = arith.constant 0 : index
    %c0_10 = arith.constant 0 : index
    %3 = vector.load %arg2[%c0_7, %c0_8, %c0_9, %c0_10] : memref<2x8x8x32xbf16, #tpu.memory_space<vmem>>, vector<2x8x8x32xbf16>
    %4 = arith.maximumf %2, %3 : vector<2x8x8x32xbf16>
    %c0_11 = arith.constant 0 : index
    %c0_12 = arith.constant 0 : index
    %c0_13 = arith.constant 0 : index
    %c0_14 = arith.constant 0 : index
    %5 = vector.load %arg3[%c0_11, %c0_12, %c0_13, %c0_14] : memref<2x8x8x32xbf16, #tpu.memory_space<vmem>>, vector<2x8x8x32xbf16>
    %6 = arith.maximumf %4, %5 : vector<2x8x8x32xbf16>
    %c0_15 = arith.constant 0 : index
    %c0_16 = arith.constant 0 : index
    %c0_17 = arith.constant 0 : index
    %c0_18 = arith.constant 0 : index
    %7 = vector.load %arg4[%c0_15, %c0_16, %c0_17, %c0_18] : memref<2x8x8x32xbf16, #tpu.memory_space<vmem>>, vector<2x8x8x32xbf16>
    tpu.vector_store %arg4[%c0_15, %c0_16, %c0_17, %c0_18], %6 {strides = array<i32>} : memref<2x8x8x32xbf16, #tpu.memory_space<vmem>>, vector<2x8x8x32xbf16>,
    return
  }
}

module attributes {stable_mosaic.version = 11 : i64} {
  func.func @matmul_bn_relu_kernel(%arg0: i32, %arg1: memref<128x288xbf16, #tpu.memory_space<vmem>>, %arg2: memref<288x32xbf16, #tpu.memory_space<vmem>>, %arg3: memref<1x32xf32, #tpu.memory_space<vmem>>, %arg4: memref<1x32xf32, #tpu.memory_space<vmem>>, %arg5: memref<128x32xbf16, #tpu.memory_space<vmem>>) attributes {dimension_semantics = [#tpu.dimension_semantics<parallel>], iteration_bounds = array<i64: 1>, scalar_prefetch = 0 : i64, scratch_operands = 0 : i64, tpu.core_type = #tpu.core_type<tc>, window_params = [{transform_indices = @transform_0, window_bounds = array<i64: 128, 288>}, {pipeline_mode = #tpu.pipeline_mode<synchronous>, transform_indices = @transform_1, window_bounds = array<i64: 288, 32>}, {pipeline_mode = #tpu.pipeline_mode<synchronous>, transform_indices = @transform_2, window_bounds = array<i64: 1, 32>}, {pipeline_mode = #tpu.pipeline_mode<synchronous>, transform_indices = @transform_3, window_bounds = array<i64: 1, 32>}, {transform_indices = @transform_4, window_bounds = array<i64: 128, 32>}]} {
    %c0 = arith.constant 0 : index
    %c0_0 = arith.constant 0 : index
    %0 = vector.load %arg1[%c0, %c0_0] : memref<128x288xbf16, #tpu.memory_space<vmem>>, vector<128x288xbf16>
    %c0_1 = arith.constant 0 : index
    %c0_2 = arith.constant 0 : index
    %1 = vector.load %arg2[%c0_1, %c0_2] : memref<288x32xbf16, #tpu.memory_space<vmem>>, vector<288x32xbf16>
    %cst = arith.constant dense<0.000000e+00> : vector<128x32xf32>
    %2 = tpu.matmul %0, %1, %cst {dimension_numbers = #tpu.dot_dimension_numbers<[1], [0], [0], [1], [0, 0, 1, 1], [], []>} : vector<128x288xbf16>, vector<288x32xbf16>, vector<128x32xf32> -> vector<128x32xf32>
    %c0_3 = arith.constant 0 : index
    %c0_4 = arith.constant 0 : index
    %3 = vector.load %arg3[%c0_3, %c0_4] : memref<1x32xf32, #tpu.memory_space<vmem>>, vector<1x32xf32>
    %4 = vector.broadcast %3 : vector<1x32xf32> to vector<128x32xf32>
    %5 = arith.mulf %2, %4 : vector<128x32xf32>
    %c0_5 = arith.constant 0 : index
    %c0_6 = arith.constant 0 : index
    %6 = vector.load %arg4[%c0_5, %c0_6] : memref<1x32xf32, #tpu.memory_space<vmem>>, vector<1x32xf32>
    %7 = vector.broadcast %6 : vector<1x32xf32> to vector<128x32xf32>
    %8 = arith.addf %5, %7 : vector<128x32xf32>
    %cst_7 = arith.constant 0.000000e+00 : f32
    %9 = vector.broadcast %cst_7 : f32 to vector<128x32xf32>
    %10 = arith.maximumf %8, %9 : vector<128x32xf32>
    %11 = arith.truncf %10 : vector<128x32xf32> to vector<128x32xbf16>
    %c0_8 = arith.constant 0 : index
    %c0_9 = arith.constant 0 : index
    %12 = vector.load %arg5[%c0_8, %c0_9] : memref<128x32xbf16, #tpu.memory_space<vmem>>, vector<128x32xbf16>
    tpu.vector_store %arg5[%c0_8, %c0_9], %11 {strides = array<i32>} : memref<128x32xbf16, #tpu.memory_space<vmem>>, vector<128x32xbf16>,
    return
  }
  func.func @transform_0(%arg0: i32) -> (i32, i32) {
    %c0_i32 = arith.constant 0 : i32
    %c0_i32_0 = arith.constant 0 : i32
    return %arg0, %c0_i32 : i32, i32
  }
  func.func @transform_1(%arg0: i32) -> (i32, i32) {
    %c0_i32 = arith.constant 0 : i32
    %c0_i32_0 = arith.constant 0 : i32
    %c0_i32_1 = arith.constant 0 : i32
    return %c0_i32, %c0_i32_0 : i32, i32
  }
  func.func @transform_2(%arg0: i32) -> (i32, i32) {
    %c0_i32 = arith.constant 0 : i32
    %c0_i32_0 = arith.constant 0 : i32
    %c0_i32_1 = arith.constant 0 : i32
    return %c0_i32, %c0_i32_0 : i32, i32
  }
  func.func @transform_3(%arg0: i32) -> (i32, i32) {
    %c0_i32 = arith.constant 0 : i32
    %c0_i32_0 = arith.constant 0 : i32
    %c0_i32_1 = arith.constant 0 : i32
    return %c0_i32, %c0_i32_0 : i32, i32
  }
  func.func @transform_4(%arg0: i32) -> (i32, i32) {
    %c0_i32 = arith.constant 0 : i32
    %c0_i32_0 = arith.constant 0 : i32
    return %arg0, %c0_i32 : i32, i32
  }
}

module attributes {stable_mosaic.version = 11 : i64} {
  func.func @kernel(%arg0: memref<2x4x8x32xbf16, #tpu.memory_space<vmem>>, %arg1: memref<2x4x8x32xbf16, #tpu.memory_space<vmem>>, %arg2: memref<2x4x8x32xbf16, #tpu.memory_space<vmem>>) attributes {dimension_semantics = [], scalar_prefetch = 0 : i64, scratch_operands = 0 : i64, tpu.core_type = #tpu.core_type<tc>} {
    %c0 = arith.constant 0 : index
    %c0_0 = arith.constant 0 : index
    %c0_1 = arith.constant 0 : index
    %c0_2 = arith.constant 0 : index
    %0 = vector.load %arg0[%c0, %c0_0, %c0_1, %c0_2] : memref<2x4x8x32xbf16, #tpu.memory_space<vmem>>, vector<2x4x8x32xbf16>
    %c0_3 = arith.constant 0 : index
    %c0_4 = arith.constant 0 : index
    %c0_5 = arith.constant 0 : index
    %c0_6 = arith.constant 0 : index
    %1 = vector.load %arg1[%c0_3, %c0_4, %c0_5, %c0_6] : memref<2x4x8x32xbf16, #tpu.memory_space<vmem>>, vector<2x4x8x32xbf16>
    %2 = arith.maximumf %0, %1 : vector<2x4x8x32xbf16>
    %c0_7 = arith.constant 0 : index
    %c0_8 = arith.constant 0 : index
    %c0_9 = arith.constant 0 : index
    %c0_10 = arith.constant 0 : index
    %3 = vector.load %arg2[%c0_7, %c0_8, %c0_9, %c0_10] : memref<2x4x8x32xbf16, #tpu.memory_space<vmem>>, vector<2x4x8x32xbf16>
    tpu.vector_store %arg2[%c0_7, %c0_8, %c0_9, %c0_10], %2 {strides = array<i32>} : memref<2x4x8x32xbf16, #tpu.memory_space<vmem>>, vector<2x4x8x32xbf16>,
    return
  }
}

module attributes {stable_mosaic.version = 11 : i64} {
  func.func @matmul_bn_relu_kernel(%arg0: i32, %arg1: memref<64x288xbf16, #tpu.memory_space<vmem>>, %arg2: memref<288x32xbf16, #tpu.memory_space<vmem>>, %arg3: memref<1x32xf32, #tpu.memory_space<vmem>>, %arg4: memref<1x32xf32, #tpu.memory_space<vmem>>, %arg5: memref<64x32xbf16, #tpu.memory_space<vmem>>) attributes {dimension_semantics = [#tpu.dimension_semantics<parallel>], iteration_bounds = array<i64: 1>, scalar_prefetch = 0 : i64, scratch_operands = 0 : i64, tpu.core_type = #tpu.core_type<tc>, window_params = [{transform_indices = @transform_0, window_bounds = array<i64: 64, 288>}, {pipeline_mode = #tpu.pipeline_mode<synchronous>, transform_indices = @transform_1, window_bounds = array<i64: 288, 32>}, {pipeline_mode = #tpu.pipeline_mode<synchronous>, transform_indices = @transform_2, window_bounds = array<i64: 1, 32>}, {pipeline_mode = #tpu.pipeline_mode<synchronous>, transform_indices = @transform_3, window_bounds = array<i64: 1, 32>}, {transform_indices = @transform_4, window_bounds = array<i64: 64, 32>}]} {
    %c0 = arith.constant 0 : index
    %c0_0 = arith.constant 0 : index
    %0 = vector.load %arg1[%c0, %c0_0] : memref<64x288xbf16, #tpu.memory_space<vmem>>, vector<64x288xbf16>
    %c0_1 = arith.constant 0 : index
    %c0_2 = arith.constant 0 : index
    %1 = vector.load %arg2[%c0_1, %c0_2] : memref<288x32xbf16, #tpu.memory_space<vmem>>, vector<288x32xbf16>
    %cst = arith.constant dense<0.000000e+00> : vector<64x32xf32>
    %2 = tpu.matmul %0, %1, %cst {dimension_numbers = #tpu.dot_dimension_numbers<[1], [0], [0], [1], [0, 0, 1, 1], [], []>} : vector<64x288xbf16>, vector<288x32xbf16>, vector<64x32xf32> -> vector<64x32xf32>
    %c0_3 = arith.constant 0 : index
    %c0_4 = arith.constant 0 : index
    %3 = vector.load %arg3[%c0_3, %c0_4] : memref<1x32xf32, #tpu.memory_space<vmem>>, vector<1x32xf32>
    %4 = vector.broadcast %3 : vector<1x32xf32> to vector<64x32xf32>
    %5 = arith.mulf %2, %4 : vector<64x32xf32>
    %c0_5 = arith.constant 0 : index
    %c0_6 = arith.constant 0 : index
    %6 = vector.load %arg4[%c0_5, %c0_6] : memref<1x32xf32, #tpu.memory_space<vmem>>, vector<1x32xf32>
    %7 = vector.broadcast %6 : vector<1x32xf32> to vector<64x32xf32>
    %8 = arith.addf %5, %7 : vector<64x32xf32>
    %cst_7 = arith.constant 0.000000e+00 : f32
    %9 = vector.broadcast %cst_7 : f32 to vector<64x32xf32>
    %10 = arith.maximumf %8, %9 : vector<64x32xf32>
    %11 = arith.truncf %10 : vector<64x32xf32> to vector<64x32xbf16>
    %c0_8 = arith.constant 0 : index
    %c0_9 = arith.constant 0 : index
    %12 = vector.load %arg5[%c0_8, %c0_9] : memref<64x32xbf16, #tpu.memory_space<vmem>>, vector<64x32xbf16>
    tpu.vector_store %arg5[%c0_8, %c0_9], %11 {strides = array<i32>} : memref<64x32xbf16, #tpu.memory_space<vmem>>, vector<64x32xbf16>,
    return
  }
  func.func @transform_0(%arg0: i32) -> (i32, i32) {
    %c0_i32 = arith.constant 0 : i32
    %c0_i32_0 = arith.constant 0 : i32
    return %arg0, %c0_i32 : i32, i32
  }
  func.func @transform_1(%arg0: i32) -> (i32, i32) {
    %c0_i32 = arith.constant 0 : i32
    %c0_i32_0 = arith.constant 0 : i32
    %c0_i32_1 = arith.constant 0 : i32
    return %c0_i32, %c0_i32_0 : i32, i32
  }
  func.func @transform_2(%arg0: i32) -> (i32, i32) {
    %c0_i32 = arith.constant 0 : i32
    %c0_i32_0 = arith.constant 0 : i32
    %c0_i32_1 = arith.constant 0 : i32
    return %c0_i32, %c0_i32_0 : i32, i32
  }
  func.func @transform_3(%arg0: i32) -> (i32, i32) {
    %c0_i32 = arith.constant 0 : i32
    %c0_i32_0 = arith.constant 0 : i32
    %c0_i32_1 = arith.constant 0 : i32
    return %c0_i32, %c0_i32_0 : i32, i32
  }
  func.func @transform_4(%arg0: i32) -> (i32, i32) {
    %c0_i32 = arith.constant 0 : i32
    %c0_i32_0 = arith.constant 0 : i32
    return %arg0, %c0_i32 : i32, i32
  }
}

module attributes {stable_mosaic.version = 11 : i64} {
  func.func @kernel(%arg0: memref<2x2x8x32xbf16, #tpu.memory_space<vmem>>, %arg1: memref<2x2x8x32xbf16, #tpu.memory_space<vmem>>, %arg2: memref<2x2x8x32xbf16, #tpu.memory_space<vmem>>) attributes {dimension_semantics = [], scalar_prefetch = 0 : i64, scratch_operands = 0 : i64, tpu.core_type = #tpu.core_type<tc>} {
    %c0 = arith.constant 0 : index
    %c0_0 = arith.constant 0 : index
    %c0_1 = arith.constant 0 : index
    %c0_2 = arith.constant 0 : index
    %0 = vector.load %arg0[%c0, %c0_0, %c0_1, %c0_2] : memref<2x2x8x32xbf16, #tpu.memory_space<vmem>>, vector<2x2x8x32xbf16>
    %c0_3 = arith.constant 0 : index
    %c0_4 = arith.constant 0 : index
    %c0_5 = arith.constant 0 : index
    %c0_6 = arith.constant 0 : index
    %1 = vector.load %arg1[%c0_3, %c0_4, %c0_5, %c0_6] : memref<2x2x8x32xbf16, #tpu.memory_space<vmem>>, vector<2x2x8x32xbf16>
    %2 = arith.maximumf %0, %1 : vector<2x2x8x32xbf16>
    %c0_7 = arith.constant 0 : index
    %c0_8 = arith.constant 0 : index
    %c0_9 = arith.constant 0 : index
    %c0_10 = arith.constant 0 : index
    %3 = vector.load %arg2[%c0_7, %c0_8, %c0_9, %c0_10] : memref<2x2x8x32xbf16, #tpu.memory_space<vmem>>, vector<2x2x8x32xbf16>
    tpu.vector_store %arg2[%c0_7, %c0_8, %c0_9, %c0_10], %2 {strides = array<i32>} : memref<2x2x8x32xbf16, #tpu.memory_space<vmem>>, vector<2x2x8x32xbf16>,
    return
  }
}

module attributes {stable_mosaic.version = 11 : i64} {
  func.func @matmul_bn_relu_kernel(%arg0: i32, %arg1: memref<16x192xbf16, #tpu.memory_space<vmem>>, %arg2: memref<192x32xbf16, #tpu.memory_space<vmem>>, %arg3: memref<1x32xf32, #tpu.memory_space<vmem>>, %arg4: memref<1x32xf32, #tpu.memory_space<vmem>>, %arg5: memref<16x32xbf16, #tpu.memory_space<vmem>>) attributes {dimension_semantics = [#tpu.dimension_semantics<parallel>], iteration_bounds = array<i64: 1>, scalar_prefetch = 0 : i64, scratch_operands = 0 : i64, tpu.core_type = #tpu.core_type<tc>, window_params = [{transform_indices = @transform_0, window_bounds = array<i64: 16, 192>}, {pipeline_mode = #tpu.pipeline_mode<synchronous>, transform_indices = @transform_1, window_bounds = array<i64: 192, 32>}, {pipeline_mode = #tpu.pipeline_mode<synchronous>, transform_indices = @transform_2, window_bounds = array<i64: 1, 32>}, {pipeline_mode = #tpu.pipeline_mode<synchronous>, transform_indices = @transform_3, window_bounds = array<i64: 1, 32>}, {transform_indices = @transform_4, window_bounds = array<i64: 16, 32>}]} {
    %c0 = arith.constant 0 : index
    %c0_0 = arith.constant 0 : index
    %0 = vector.load %arg1[%c0, %c0_0] : memref<16x192xbf16, #tpu.memory_space<vmem>>, vector<16x192xbf16>
    %c0_1 = arith.constant 0 : index
    %c0_2 = arith.constant 0 : index
    %1 = vector.load %arg2[%c0_1, %c0_2] : memref<192x32xbf16, #tpu.memory_space<vmem>>, vector<192x32xbf16>
    %cst = arith.constant dense<0.000000e+00> : vector<16x32xf32>
    %2 = tpu.matmul %0, %1, %cst {dimension_numbers = #tpu.dot_dimension_numbers<[1], [0], [0], [1], [0, 0, 1, 1], [], []>} : vector<16x192xbf16>, vector<192x32xbf16>, vector<16x32xf32> -> vector<16x32xf32>
    %c0_3 = arith.constant 0 : index
    %c0_4 = arith.constant 0 : index
    %3 = vector.load %arg3[%c0_3, %c0_4] : memref<1x32xf32, #tpu.memory_space<vmem>>, vector<1x32xf32>
    %4 = vector.broadcast %3 : vector<1x32xf32> to vector<16x32xf32>
    %5 = arith.mulf %2, %4 : vector<16x32xf32>
    %c0_5 = arith.constant 0 : index
    %c0_6 = arith.constant 0 : index
    %6 = vector.load %arg4[%c0_5, %c0_6] : memref<1x32xf32, #tpu.memory_space<vmem>>, vector<1x32xf32>
    %7 = vector.broadcast %6 : vector<1x32xf32> to vector<16x32xf32>
    %8 = arith.addf %5, %7 : vector<16x32xf32>
    %cst_7 = arith.constant 0.000000e+00 : f32
    %9 = vector.broadcast %cst_7 : f32 to vector<16x32xf32>
    %10 = arith.maximumf %8, %9 : vector<16x32xf32>
    %11 = arith.truncf %10 : vector<16x32xf32> to vector<16x32xbf16>
    %c0_8 = arith.constant 0 : index
    %c0_9 = arith.constant 0 : index
    %12 = vector.load %arg5[%c0_8, %c0_9] : memref<16x32xbf16, #tpu.memory_space<vmem>>, vector<16x32xbf16>
    tpu.vector_store %arg5[%c0_8, %c0_9], %11 {strides = array<i32>} : memref<16x32xbf16, #tpu.memory_space<vmem>>, vector<16x32xbf16>,
    return
  }
  func.func @transform_0(%arg0: i32) -> (i32, i32) {
    %c0_i32 = arith.constant 0 : i32
    %c0_i32_0 = arith.constant 0 : i32
    return %arg0, %c0_i32 : i32, i32
  }
  func.func @transform_1(%arg0: i32) -> (i32, i32) {
    %c0_i32 = arith.constant 0 : i32
    %c0_i32_0 = arith.constant 0 : i32
    %c0_i32_1 = arith.constant 0 : i32
    return %c0_i32, %c0_i32_0 : i32, i32
  }
  func.func @transform_2(%arg0: i32) -> (i32, i32) {
    %c0_i32 = arith.constant 0 : i32
    %c0_i32_0 = arith.constant 0 : i32
    %c0_i32_1 = arith.constant 0 : i32
    return %c0_i32, %c0_i32_0 : i32, i32
  }
  func.func @transform_3(%arg0: i32) -> (i32, i32) {
    %c0_i32 = arith.constant 0 : i32
    %c0_i32_0 = arith.constant 0 : i32
    %c0_i32_1 = arith.constant 0 : i32
    return %c0_i32, %c0_i32_0 : i32, i32
  }
  func.func @transform_4(%arg0: i32) -> (i32, i32) {
    %c0_i32 = arith.constant 0 : i32
    %c0_i32_0 = arith.constant 0 : i32
    return %arg0, %c0_i32 : i32, i32
  }
}

module attributes {stable_mosaic.version = 11 : i64} {
  func.func @kernel(%arg0: memref<2x8x41xbf16, #tpu.memory_space<vmem>>, %arg1: memref<2x8x32xbf16, #tpu.memory_space<vmem>>, %arg2: memref<32x128xbf16, #tpu.memory_space<vmem>>, %arg3: memref<1x96xf32, #tpu.memory_space<vmem>>, %arg4: memref<1x32xf32, #tpu.memory_space<vmem>>, %arg5: memref<1x32xf32, #tpu.memory_space<vmem>>, %arg6: memref<12x96xbf16, #tpu.memory_space<vmem>>, %arg7: memref<41x96xbf16, #tpu.memory_space<vmem>>, %arg8: memref<1x96xf32, #tpu.memory_space<vmem>>, %arg9: memref<32x12xbf16, #tpu.memory_space<vmem>>, %arg10: memref<1x12xf32, #tpu.memory_space<vmem>>, %arg11: memref<2x8xi32, #tpu.memory_space<vmem>>, %arg12: memref<2x32xf32, #tpu.memory_space<vmem>>, %arg13: memref<2x12xf32, #tpu.memory_space<vmem>>, %arg14: memref<1xi32, #tpu.memory_space<smem>>) attributes {dimension_semantics = [], scalar_prefetch = 0 : i64, scratch_operands = 3 : i64, tpu.core_type = #tpu.core_type<tc>} {
    %cst = arith.constant 0.000000e+00 : f32
    %0 = vector.broadcast %cst : f32 to vector<2x32xf32>
    %c0 = arith.constant 0 : index
    %c0_0 = arith.constant 0 : index
    %1 = vector.load %arg12[%c0, %c0_0] : memref<2x32xf32, #tpu.memory_space<vmem>>, vector<2x32xf32>
    tpu.vector_store %arg12[%c0, %c0_0], %0 {strides = array<i32>} : memref<2x32xf32, #tpu.memory_space<vmem>>, vector<2x32xf32>,
    %2 = tpu.iota {dimensions = array<i32: 1>} : vector<2x12xi32>
    %c0_i32 = arith.constant 0 : i32
    %3 = vector.broadcast %c0_i32 : i32 to vector<2x12xi32>
    %4 = arith.cmpi eq, %2, %3 : vector<2x12xi32>
    %cst_1 = arith.constant 1.000000e+00 : f32
    %cst_2 = arith.constant 0.000000e+00 : f32
    %5 = vector.broadcast %cst_1 : f32 to vector<2x12xf32>
    %6 = vector.broadcast %cst_2 : f32 to vector<2x12xf32>
    %7 = arith.select %4, %5, %6 : vector<2x12xi1>, vector<2x12xf32>
    %c0_3 = arith.constant 0 : index
    %c0_4 = arith.constant 0 : index
    %8 = vector.load %arg13[%c0_3, %c0_4] : memref<2x12xf32, #tpu.memory_space<vmem>>, vector<2x12xf32>
    tpu.vector_store %arg13[%c0_3, %c0_4], %7 {strides = array<i32>} : memref<2x12xf32, #tpu.memory_space<vmem>>, vector<2x12xf32>,
    %c0_i32_5 = arith.constant 0 : i32
    %c0_6 = arith.constant 0 : index
    %9 = memref.load %arg14[%c0_6] : memref<1xi32, #tpu.memory_space<smem>>
    memref.store %c0_i32_5, %arg14[%c0_6] : memref<1xi32, #tpu.memory_space<smem>>
    %c0_i32_7 = arith.constant 0 : i32
    %10 = vector.broadcast %c0_i32_7 : i32 to vector<2x8xi32>
    %c0_8 = arith.constant 0 : index
    %c0_9 = arith.constant 0 : index
    %11 = vector.load %arg11[%c0_8, %c0_9] : memref<2x8xi32, #tpu.memory_space<vmem>>, vector<2x8xi32>
    tpu.vector_store %arg11[%c0_8, %c0_9], %10 {strides = array<i32>} : memref<2x8xi32, #tpu.memory_space<vmem>>, vector<2x8xi32>,
    %c0_10 = arith.constant 0 : index
    %c0_11 = arith.constant 0 : index
    %c0_12 = arith.constant 0 : index
    %12 = vector.load %arg0[%c0_10, %c0_11, %c0_12] : memref<2x8x41xbf16, #tpu.memory_space<vmem>>, vector<2x8x41xbf16>
    %13 = arith.extf %12 : vector<2x8x41xbf16> to vector<2x8x41xf32>
    %c0_13 = arith.constant 0 : index
    %c0_14 = arith.constant 0 : index
    %c0_15 = arith.constant 0 : index
    %14 = vector.load %arg1[%c0_13, %c0_14, %c0_15] : memref<2x8x32xbf16, #tpu.memory_space<vmem>>, vector<2x8x32xbf16>
    %15 = arith.extf %14 : vector<2x8x32xbf16> to vector<2x8x32xf32>
    %c0_16 = arith.constant 0 : index
    %c0_17 = arith.constant 0 : index
    %16 = vector.load %arg5[%c0_16, %c0_17] : memref<1x32xf32, #tpu.memory_space<vmem>>, vector<1x32xf32>
    %17 = vector.shape_cast %16 : vector<1x32xf32> to vector<1x1x32xf32>
    %c0_18 = arith.constant 0 : index
    %c0_19 = arith.constant 0 : index
    %18 = vector.load %arg2[%c0_18, %c0_19] : memref<32x128xbf16, #tpu.memory_space<vmem>>, vector<32x128xbf16>
    %c0_20 = arith.constant 0 : index
    %c0_21 = arith.constant 0 : index
    %19 = vector.load %arg6[%c0_20, %c0_21] : memref<12x96xbf16, #tpu.memory_space<vmem>>, vector<12x96xbf16>
    %c0_22 = arith.constant 0 : index
    %c0_23 = arith.constant 0 : index
    %20 = vector.load %arg7[%c0_22, %c0_23] : memref<41x96xbf16, #tpu.memory_space<vmem>>, vector<41x96xbf16>
    %c0_24 = arith.constant 0 : index
    %c0_25 = arith.constant 0 : index
    %21 = vector.load %arg9[%c0_24, %c0_25] : memref<32x12xbf16, #tpu.memory_space<vmem>>, vector<32x12xbf16>
    %c0_26 = arith.constant 0 : index
    %c0_27 = arith.constant 0 : index
    %22 = vector.load %arg3[%c0_26, %c0_27] : memref<1x96xf32, #tpu.memory_space<vmem>>, vector<1x96xf32>
    %c0_28 = arith.constant 0 : index
    %c0_29 = arith.constant 0 : index
    %23 = vector.load %arg4[%c0_28, %c0_29] : memref<1x32xf32, #tpu.memory_space<vmem>>, vector<1x32xf32>
    %c0_30 = arith.constant 0 : index
    %c0_31 = arith.constant 0 : index
    %24 = vector.load %arg8[%c0_30, %c0_31] : memref<1x96xf32, #tpu.memory_space<vmem>>, vector<1x96xf32>
    %c0_32 = arith.constant 0 : index
    %c0_33 = arith.constant 0 : index
    %25 = vector.load %arg10[%c0_32, %c0_33] : memref<1x12xf32, #tpu.memory_space<vmem>>, vector<1x12xf32>
    %26 = tpu.iota {dimensions = array<i32: 1>} : vector<2x8xi32>
    %c0_i32_34 = arith.constant 0 : i32
    %c0_35 = arith.constant 0 : index
    %27 = memref.load %arg14[%c0_35] : memref<1xi32, #tpu.memory_space<smem>>
    %c0_i32_36 = arith.constant 0 : i32
    %28 = arith.cmpi eq, %27, %c0_i32_36 : i32
    %29 = arith.extui %28 : i1 to i32
    %c0_i32_37 = arith.constant 0 : i32
    %30 = arith.cmpi ne, %29, %c0_i32_37 : i32
    scf.if %30 {
      %c0_59 = arith.constant 0 : index
      %c0_60 = arith.constant 0 : index
      %59 = vector.load %arg12[%c0_59, %c0_60] : memref<2x32xf32, #tpu.memory_space<vmem>>, vector<2x32xf32>
      %c0_61 = arith.constant 0 : index
      %c0_62 = arith.constant 0 : index
      %60 = vector.load %arg13[%c0_61, %c0_62] : memref<2x12xf32, #tpu.memory_space<vmem>>, vector<2x12xf32>
      %61 = arith.truncf %59 : vector<2x32xf32> to vector<2x32xbf16>
      %cst_63 = arith.constant dense<0.000000e+00> : vector<2x128xf32>
      %62 = tpu.matmul %61, %18, %cst_63 {dimension_numbers = #tpu.dot_dimension_numbers<[1], [0], [0], [1], [0, 0, 1, 1], [], []>} : vector<2x32xbf16>, vector<32x128xbf16>, vector<2x128xf32> -> vector<2x128xf32>
      %63 = vector.extract_strided_slice %62 {offsets = [0, 0], sizes = [2, 96], strides = [1, 1]} : vector<2x128xf32> to vector<2x96xf32>
      %64 = vector.broadcast %22 : vector<1x96xf32> to vector<2x96xf32>
      %65 = arith.addf %63, %64 : vector<2x96xf32>
      %66 = vector.extract_strided_slice %62 {offsets = [0, 96], sizes = [2, 32], strides = [1, 1]} : vector<2x128xf32> to vector<2x32xf32>
      %67 = vector.broadcast %23 : vector<1x32xf32> to vector<2x32xf32>
      %68 = arith.addf %66, %67 : vector<2x32xf32>
      %69 = vector.shape_cast %68 : vector<2x32xf32> to vector<2x1x32xf32>
      %70 = vector.broadcast %69 : vector<2x1x32xf32> to vector<2x8x32xf32>
      %71 = arith.addf %15, %70 : vector<2x8x32xf32>
      %72 = math.tanh %71 : vector<2x8x32xf32>
      %73 = vector.broadcast %17 : vector<1x1x32xf32> to vector<2x8x32xf32>
      %74 = arith.mulf %72, %73 : vector<2x8x32xf32>
      %cst_64 = arith.constant dense<0.000000e+00> : vector<2x8xf32>
      %75 = vector.multi_reduction <add>, %74, %cst_64 [2] : vector<2x8x32xf32> to vector<2x8xf32>
      %cst_65 = arith.constant dense<0xFF800000> : vector<2xf32>
      %76 = vector.multi_reduction <maximumf>, %75, %cst_65 [1] : vector<2x8xf32> to vector<2xf32>
      %77 = vector.shape_cast %76 : vector<2xf32> to vector<2x1xf32>
      %78 = vector.broadcast %77 : vector<2x1xf32> to vector<2x8xf32>
      %79 = arith.subf %75, %78 : vector<2x8xf32>
      %80 = math.exp %79 : vector<2x8xf32>
      %cst_66 = arith.constant dense<0.000000e+00> : vector<2xf32>
      %81 = vector.multi_reduction <add>, %80, %cst_66 [1] : vector<2x8xf32> to vector<2xf32>
      %82 = vector.shape_cast %81 : vector<2xf32> to vector<2x1xf32>
      %83 = vector.broadcast %82 : vector<2x1xf32> to vector<2x8xf32>
      %84 = arith.divf %80, %83 : vector<2x8xf32>
      %85 = vector.shape_cast %84 : vector<2x8xf32> to vector<2x8x1xf32>
      %86 = vector.broadcast %85 : vector<2x8x1xf32> to vector<2x8x41xf32>
      %87 = arith.mulf %86, %13 : vector<2x8x41xf32>
      %cst_67 = arith.constant dense<0.000000e+00> : vector<2x41xf32>
      %88 = vector.multi_reduction <add>, %87, %cst_67 [1] : vector<2x8x41xf32> to vector<2x41xf32>
      %89 = arith.truncf %60 : vector<2x12xf32> to vector<2x12xbf16>
      %cst_68 = arith.constant dense<0.000000e+00> : vector<2x96xf32>
      %90 = tpu.matmul %89, %19, %cst_68 {dimension_numbers = #tpu.dot_dimension_numbers<[1], [0], [0], [1], [0, 0, 1, 1], [], []>} : vector<2x12xbf16>, vector<12x96xbf16>, vector<2x96xf32> -> vector<2x96xf32>
      %91 = arith.truncf %88 : vector<2x41xf32> to vector<2x41xbf16>
      %cst_69 = arith.constant dense<0.000000e+00> : vector<2x96xf32>
      %92 = tpu.matmul %91, %20, %cst_69 {dimension_numbers = #tpu.dot_dimension_numbers<[1], [0], [0], [1], [0, 0, 1, 1], [], []>} : vector<2x41xbf16>, vector<41x96xbf16>, vector<2x96xf32> -> vector<2x96xf32>
      %93 = arith.addf %90, %92 : vector<2x96xf32>
      %94 = vector.broadcast %24 : vector<1x96xf32> to vector<2x96xf32>
      %95 = arith.addf %93, %94 : vector<2x96xf32>
      %96 = vector.extract_strided_slice %95 {offsets = [0, 0], sizes = [2, 32], strides = [1, 1]} : vector<2x96xf32> to vector<2x32xf32>
      %97 = vector.extract_strided_slice %65 {offsets = [0, 0], sizes = [2, 32], strides = [1, 1]} : vector<2x96xf32> to vector<2x32xf32>
      %98 = arith.addf %96, %97 : vector<2x32xf32>
      %99 = arith.negf %98 : vector<2x32xf32>
      %100 = math.exp %99 : vector<2x32xf32>
      %cst_70 = arith.constant 1.000000e+00 : f32
      %101 = vector.broadcast %cst_70 : f32 to vector<2x32xf32>
      %102 = arith.addf %101, %100 : vector<2x32xf32>
      %103 = arith.divf %101, %102 : vector<2x32xf32>
      %104 = vector.extract_strided_slice %95 {offsets = [0, 32], sizes = [2, 32], strides = [1, 1]} : vector<2x96xf32> to vector<2x32xf32>
      %105 = vector.extract_strided_slice %65 {offsets = [0, 32], sizes = [2, 32], strides = [1, 1]} : vector<2x96xf32> to vector<2x32xf32>
      %106 = arith.addf %104, %105 : vector<2x32xf32>
      %107 = arith.negf %106 : vector<2x32xf32>
      %108 = math.exp %107 : vector<2x32xf32>
      %cst_71 = arith.constant 1.000000e+00 : f32
      %109 = vector.broadcast %cst_71 : f32 to vector<2x32xf32>
      %110 = arith.addf %109, %108 : vector<2x32xf32>
      %111 = arith.divf %109, %110 : vector<2x32xf32>
      %112 = vector.extract_strided_slice %95 {offsets = [0, 64], sizes = [2, 32], strides = [1, 1]} : vector<2x96xf32> to vector<2x32xf32>
      %113 = vector.extract_strided_slice %65 {offsets = [0, 64], sizes = [2, 32], strides = [1, 1]} : vector<2x96xf32> to vector<2x32xf32>
      %114 = arith.mulf %103, %113 : vector<2x32xf32>
      %115 = arith.addf %112, %114 : vector<2x32xf32>
      %116 = math.tanh %115 : vector<2x32xf32>
      %cst_72 = arith.constant 1.000000e+00 : f32
      %117 = vector.broadcast %cst_72 : f32 to vector<2x32xf32>
      %118 = arith.subf %117, %111 : vector<2x32xf32>
      %119 = arith.mulf %118, %116 : vector<2x32xf32>
      %120 = arith.mulf %111, %59 : vector<2x32xf32>
      %121 = arith.addf %119, %120 : vector<2x32xf32>
      %122 = arith.truncf %121 : vector<2x32xf32> to vector<2x32xbf16>
      %cst_73 = arith.constant dense<0.000000e+00> : vector<2x12xf32>
      %123 = tpu.matmul %122, %21, %cst_73 {dimension_numbers = #tpu.dot_dimension_numbers<[1], [0], [0], [1], [0, 0, 1, 1], [], []>} : vector<2x32xbf16>, vector<32x12xbf16>, vector<2x12xf32> -> vector<2x12xf32>
      %124 = vector.broadcast %25 : vector<1x12xf32> to vector<2x12xf32>
      %125 = arith.addf %123, %124 : vector<2x12xf32>
      %cst_74 = arith.constant dense<0xFF800000> : vector<2xf32>
      %126 = vector.multi_reduction <maximumf>, %125, %cst_74 [1] : vector<2x12xf32> to vector<2xf32>
      %127 = vector.shape_cast %126 : vector<2xf32> to vector<2x1xf32>
      %128 = vector.broadcast %127 : vector<2x1xf32> to vector<2x12xf32>
      %129 = arith.cmpf oeq, %125, %128 : vector<2x12xf32>
      %c12_i32 = arith.constant 12 : i32
      %130 = vector.broadcast %c12_i32 : i32 to vector<2x12xi32>
      %131 = arith.select %129, %2, %130 : vector<2x12xi1>, vector<2x12xi32>
      %cst_75 = arith.constant dense<2147483647> : vector<2xi32>
      %132 = vector.multi_reduction <minsi>, %131, %cst_75 [1] : vector<2x12xi32> to vector<2xi32>
      %133 = vector.shape_cast %132 : vector<2xi32> to vector<2x1xi32>
      %134 = vector.broadcast %c0_i32_34 : i32 to vector<2x8xi32>
      %135 = arith.cmpi eq, %26, %134 : vector<2x8xi32>
      %c0_76 = arith.constant 0 : index
      %c0_77 = arith.constant 0 : index
      %136 = vector.load %arg11[%c0_76, %c0_77] : memref<2x8xi32, #tpu.memory_space<vmem>>, vector<2x8xi32>
      %137 = vector.shape_cast %133 : vector<2x1xi32> to vector<2x1xi32>
      %138 = vector.broadcast %137 : vector<2x1xi32> to vector<2x8xi32>
      %139 = arith.select %135, %138, %136 : vector<2x8xi1>, vector<2x8xi32>
      %c0_78 = arith.constant 0 : index
      %c0_79 = arith.constant 0 : index
      %140 = vector.load %arg11[%c0_78, %c0_79] : memref<2x8xi32, #tpu.memory_space<vmem>>, vector<2x8xi32>
      tpu.vector_store %arg11[%c0_78, %c0_79], %139 {strides = array<i32>} : memref<2x8xi32, #tpu.memory_space<vmem>>, vector<2x8xi32>,
      %c0_i32_80 = arith.constant 0 : i32
      %141 = vector.broadcast %c0_i32_80 : i32 to vector<2x1xi32>
      %142 = arith.cmpi eq, %133, %141 : vector<2x1xi32>
      %cst_81 = arith.constant 0.000000e+00 : f32
      %cst_82 = arith.constant 1.000000e+00 : f32
      %143 = vector.broadcast %cst_81 : f32 to vector<2x1xf32>
      %144 = vector.broadcast %cst_82 : f32 to vector<2x1xf32>
      %145 = arith.select %142, %143, %144 : vector<2x1xi1>, vector<2x1xf32>
      %146 = vector.shape_cast %145 : vector<2x1xf32> to vector<1x2x1xf32>
      %cst_83 = arith.constant dense<0.000000e+00> : vector<1xf32>
      %147 = vector.multi_reduction <add>, %146, %cst_83 [1, 2] : vector<1x2x1xf32> to vector<1xf32>
      %148 = vector.shape_cast %147 : vector<1xf32> to vector<1x1x1xf32>
      %149 = vector.extract %148[0, 0, 0] : f32 from vector<1x1x1xf32>
      %cst_84 = arith.constant 0.000000e+00 : f32
      %150 = arith.cmpf oeq, %149, %cst_84 : f32
      %151 = arith.extui %150 : i1 to i32
      %c0_85 = arith.constant 0 : index
      %152 = memref.load %arg14[%c0_85] : memref<1xi32, #tpu.memory_space<smem>>
      memref.store %151, %arg14[%c0_85] : memref<1xi32, #tpu.memory_space<smem>>
      %c0_86 = arith.constant 0 : index
      %c0_87 = arith.constant 0 : index
      %153 = vector.load %arg12[%c0_86, %c0_87] : memref<2x32xf32, #tpu.memory_space<vmem>>, vector<2x32xf32>
      tpu.vector_store %arg12[%c0_86, %c0_87], %121 {strides = array<i32>} : memref<2x32xf32, #tpu.memory_space<vmem>>, vector<2x32xf32>,
      %154 = vector.broadcast %133 : vector<2x1xi32> to vector<2x12xi32>
      %155 = arith.cmpi eq, %2, %154 : vector<2x12xi32>
      %cst_88 = arith.constant 1.000000e+00 : f32
      %cst_89 = arith.constant 0.000000e+00 : f32
      %156 = vector.broadcast %cst_88 : f32 to vector<2x12xf32>
      %157 = vector.broadcast %cst_89 : f32 to vector<2x12xf32>
      %158 = arith.select %155, %156, %157 : vector<2x12xi1>, vector<2x12xf32>
      %c0_90 = arith.constant 0 : index
      %c0_91 = arith.constant 0 : index
      %159 = vector.load %arg13[%c0_90, %c0_91] : memref<2x12xf32, #tpu.memory_space<vmem>>, vector<2x12xf32>
      tpu.vector_store %arg13[%c0_90, %c0_91], %158 {strides = array<i32>} : memref<2x12xf32, #tpu.memory_space<vmem>>, vector<2x12xf32>,
    } else {
    }
    %c1_i32 = arith.constant 1 : i32
    %c0_38 = arith.constant 0 : index
    %31 = memref.load %arg14[%c0_38] : memref<1xi32, #tpu.memory_space<smem>>
    %c0_i32_39 = arith.constant 0 : i32
    %32 = arith.cmpi eq, %31, %c0_i32_39 : i32
    %33 = arith.extui %32 : i1 to i32
    %c0_i32_40 = arith.constant 0 : i32
    %34 = arith.cmpi ne, %33, %c0_i32_40 : i32
    scf.if %34 {
      %c0_59 = arith.constant 0 : index
      %c0_60 = arith.constant 0 : index
      %59 = vector.load %arg12[%c0_59, %c0_60] : memref<2x32xf32, #tpu.memory_space<vmem>>, vector<2x32xf32>
      %c0_61 = arith.constant 0 : index
      %c0_62 = arith.constant 0 : index
      %60 = vector.load %arg13[%c0_61, %c0_62] : memref<2x12xf32, #tpu.memory_space<vmem>>, vector<2x12xf32>
      %61 = arith.truncf %59 : vector<2x32xf32> to vector<2x32xbf16>
      %cst_63 = arith.constant dense<0.000000e+00> : vector<2x128xf32>
      %62 = tpu.matmul %61, %18, %cst_63 {dimension_numbers = #tpu.dot_dimension_numbers<[1], [0], [0], [1], [0, 0, 1, 1], [], []>} : vector<2x32xbf16>, vector<32x128xbf16>, vector<2x128xf32> -> vector<2x128xf32>
      %63 = vector.extract_strided_slice %62 {offsets = [0, 0], sizes = [2, 96], strides = [1, 1]} : vector<2x128xf32> to vector<2x96xf32>
      %64 = vector.broadcast %22 : vector<1x96xf32> to vector<2x96xf32>
      %65 = arith.addf %63, %64 : vector<2x96xf32>
      %66 = vector.extract_strided_slice %62 {offsets = [0, 96], sizes = [2, 32], strides = [1, 1]} : vector<2x128xf32> to vector<2x32xf32>
      %67 = vector.broadcast %23 : vector<1x32xf32> to vector<2x32xf32>
      %68 = arith.addf %66, %67 : vector<2x32xf32>
      %69 = vector.shape_cast %68 : vector<2x32xf32> to vector<2x1x32xf32>
      %70 = vector.broadcast %69 : vector<2x1x32xf32> to vector<2x8x32xf32>
      %71 = arith.addf %15, %70 : vector<2x8x32xf32>
      %72 = math.tanh %71 : vector<2x8x32xf32>
      %73 = vector.broadcast %17 : vector<1x1x32xf32> to vector<2x8x32xf32>
      %74 = arith.mulf %72, %73 : vector<2x8x32xf32>
      %cst_64 = arith.constant dense<0.000000e+00> : vector<2x8xf32>
      %75 = vector.multi_reduction <add>, %74, %cst_64 [2] : vector<2x8x32xf32> to vector<2x8xf32>
      %cst_65 = arith.constant dense<0xFF800000> : vector<2xf32>
      %76 = vector.multi_reduction <maximumf>, %75, %cst_65 [1] : vector<2x8xf32> to vector<2xf32>
      %77 = vector.shape_cast %76 : vector<2xf32> to vector<2x1xf32>
      %78 = vector.broadcast %77 : vector<2x1xf32> to vector<2x8xf32>
      %79 = arith.subf %75, %78 : vector<2x8xf32>
      %80 = math.exp %79 : vector<2x8xf32>
      %cst_66 = arith.constant dense<0.000000e+00> : vector<2xf32>
      %81 = vector.multi_reduction <add>, %80, %cst_66 [1] : vector<2x8xf32> to vector<2xf32>
      %82 = vector.shape_cast %81 : vector<2xf32> to vector<2x1xf32>
      %83 = vector.broadcast %82 : vector<2x1xf32> to vector<2x8xf32>
      %84 = arith.divf %80, %83 : vector<2x8xf32>
      %85 = vector.shape_cast %84 : vector<2x8xf32> to vector<2x8x1xf32>
      %86 = vector.broadcast %85 : vector<2x8x1xf32> to vector<2x8x41xf32>
      %87 = arith.mulf %86, %13 : vector<2x8x41xf32>
      %cst_67 = arith.constant dense<0.000000e+00> : vector<2x41xf32>
      %88 = vector.multi_reduction <add>, %87, %cst_67 [1] : vector<2x8x41xf32> to vector<2x41xf32>
      %89 = arith.truncf %60 : vector<2x12xf32> to vector<2x12xbf16>
      %cst_68 = arith.constant dense<0.000000e+00> : vector<2x96xf32>
      %90 = tpu.matmul %89, %19, %cst_68 {dimension_numbers = #tpu.dot_dimension_numbers<[1], [0], [0], [1], [0, 0, 1, 1], [], []>} : vector<2x12xbf16>, vector<12x96xbf16>, vector<2x96xf32> -> vector<2x96xf32>
      %91 = arith.truncf %88 : vector<2x41xf32> to vector<2x41xbf16>
      %cst_69 = arith.constant dense<0.000000e+00> : vector<2x96xf32>
      %92 = tpu.matmul %91, %20, %cst_69 {dimension_numbers = #tpu.dot_dimension_numbers<[1], [0], [0], [1], [0, 0, 1, 1], [], []>} : vector<2x41xbf16>, vector<41x96xbf16>, vector<2x96xf32> -> vector<2x96xf32>
      %93 = arith.addf %90, %92 : vector<2x96xf32>
      %94 = vector.broadcast %24 : vector<1x96xf32> to vector<2x96xf32>
      %95 = arith.addf %93, %94 : vector<2x96xf32>
      %96 = vector.extract_strided_slice %95 {offsets = [0, 0], sizes = [2, 32], strides = [1, 1]} : vector<2x96xf32> to vector<2x32xf32>
      %97 = vector.extract_strided_slice %65 {offsets = [0, 0], sizes = [2, 32], strides = [1, 1]} : vector<2x96xf32> to vector<2x32xf32>
      %98 = arith.addf %96, %97 : vector<2x32xf32>
      %99 = arith.negf %98 : vector<2x32xf32>
      %100 = math.exp %99 : vector<2x32xf32>
      %cst_70 = arith.constant 1.000000e+00 : f32
      %101 = vector.broadcast %cst_70 : f32 to vector<2x32xf32>
      %102 = arith.addf %101, %100 : vector<2x32xf32>
      %103 = arith.divf %101, %102 : vector<2x32xf32>
      %104 = vector.extract_strided_slice %95 {offsets = [0, 32], sizes = [2, 32], strides = [1, 1]} : vector<2x96xf32> to vector<2x32xf32>
      %105 = vector.extract_strided_slice %65 {offsets = [0, 32], sizes = [2, 32], strides = [1, 1]} : vector<2x96xf32> to vector<2x32xf32>
      %106 = arith.addf %104, %105 : vector<2x32xf32>
      %107 = arith.negf %106 : vector<2x32xf32>
      %108 = math.exp %107 : vector<2x32xf32>
      %cst_71 = arith.constant 1.000000e+00 : f32
      %109 = vector.broadcast %cst_71 : f32 to vector<2x32xf32>
      %110 = arith.addf %109, %108 : vector<2x32xf32>
      %111 = arith.divf %109, %110 : vector<2x32xf32>
      %112 = vector.extract_strided_slice %95 {offsets = [0, 64], sizes = [2, 32], strides = [1, 1]} : vector<2x96xf32> to vector<2x32xf32>
      %113 = vector.extract_strided_slice %65 {offsets = [0, 64], sizes = [2, 32], strides = [1, 1]} : vector<2x96xf32> to vector<2x32xf32>
      %114 = arith.mulf %103, %113 : vector<2x32xf32>
      %115 = arith.addf %112, %114 : vector<2x32xf32>
      %116 = math.tanh %115 : vector<2x32xf32>
      %cst_72 = arith.constant 1.000000e+00 : f32
      %117 = vector.broadcast %cst_72 : f32 to vector<2x32xf32>
      %118 = arith.subf %117, %111 : vector<2x32xf32>
      %119 = arith.mulf %118, %116 : vector<2x32xf32>
      %120 = arith.mulf %111, %59 : vector<2x32xf32>
      %121 = arith.addf %119, %120 : vector<2x32xf32>
      %122 = arith.truncf %121 : vector<2x32xf32> to vector<2x32xbf16>
      %cst_73 = arith.constant dense<0.000000e+00> : vector<2x12xf32>
      %123 = tpu.matmul %122, %21, %cst_73 {dimension_numbers = #tpu.dot_dimension_numbers<[1], [0], [0], [1], [0, 0, 1, 1], [], []>} : vector<2x32xbf16>, vector<32x12xbf16>, vector<2x12xf32> -> vector<2x12xf32>
      %124 = vector.broadcast %25 : vector<1x12xf32> to vector<2x12xf32>
      %125 = arith.addf %123, %124 : vector<2x12xf32>
      %cst_74 = arith.constant dense<0xFF800000> : vector<2xf32>
      %126 = vector.multi_reduction <maximumf>, %125, %cst_74 [1] : vector<2x12xf32> to vector<2xf32>
      %127 = vector.shape_cast %126 : vector<2xf32> to vector<2x1xf32>
      %128 = vector.broadcast %127 : vector<2x1xf32> to vector<2x12xf32>
      %129 = arith.cmpf oeq, %125, %128 : vector<2x12xf32>
      %c12_i32 = arith.constant 12 : i32
      %130 = vector.broadcast %c12_i32 : i32 to vector<2x12xi32>
      %131 = arith.select %129, %2, %130 : vector<2x12xi1>, vector<2x12xi32>
      %cst_75 = arith.constant dense<2147483647> : vector<2xi32>
      %132 = vector.multi_reduction <minsi>, %131, %cst_75 [1] : vector<2x12xi32> to vector<2xi32>
      %133 = vector.shape_cast %132 : vector<2xi32> to vector<2x1xi32>
      %134 = vector.broadcast %c1_i32 : i32 to vector<2x8xi32>
      %135 = arith.cmpi eq, %26, %134 : vector<2x8xi32>
      %c0_76 = arith.constant 0 : index
      %c0_77 = arith.constant 0 : index
      %136 = vector.load %arg11[%c0_76, %c0_77] : memref<2x8xi32, #tpu.memory_space<vmem>>, vector<2x8xi32>
      %137 = vector.shape_cast %133 : vector<2x1xi32> to vector<2x1xi32>
      %138 = vector.broadcast %137 : vector<2x1xi32> to vector<2x8xi32>
      %139 = arith.select %135, %138, %136 : vector<2x8xi1>, vector<2x8xi32>
      %c0_78 = arith.constant 0 : index
      %c0_79 = arith.constant 0 : index
      %140 = vector.load %arg11[%c0_78, %c0_79] : memref<2x8xi32, #tpu.memory_space<vmem>>, vector<2x8xi32>
      tpu.vector_store %arg11[%c0_78, %c0_79], %139 {strides = array<i32>} : memref<2x8xi32, #tpu.memory_space<vmem>>, vector<2x8xi32>,
      %c0_i32_80 = arith.constant 0 : i32
      %141 = vector.broadcast %c0_i32_80 : i32 to vector<2x1xi32>
      %142 = arith.cmpi eq, %133, %141 : vector<2x1xi32>
      %cst_81 = arith.constant 0.000000e+00 : f32
      %cst_82 = arith.constant 1.000000e+00 : f32
      %143 = vector.broadcast %cst_81 : f32 to vector<2x1xf32>
      %144 = vector.broadcast %cst_82 : f32 to vector<2x1xf32>
      %145 = arith.select %142, %143, %144 : vector<2x1xi1>, vector<2x1xf32>
      %146 = vector.shape_cast %145 : vector<2x1xf32> to vector<1x2x1xf32>
      %cst_83 = arith.constant dense<0.000000e+00> : vector<1xf32>
      %147 = vector.multi_reduction <add>, %146, %cst_83 [1, 2] : vector<1x2x1xf32> to vector<1xf32>
      %148 = vector.shape_cast %147 : vector<1xf32> to vector<1x1x1xf32>
      %149 = vector.extract %148[0, 0, 0] : f32 from vector<1x1x1xf32>
      %cst_84 = arith.constant 0.000000e+00 : f32
      %150 = arith.cmpf oeq, %149, %cst_84 : f32
      %151 = arith.extui %150 : i1 to i32
      %c0_85 = arith.constant 0 : index
      %152 = memref.load %arg14[%c0_85] : memref<1xi32, #tpu.memory_space<smem>>
      memref.store %151, %arg14[%c0_85] : memref<1xi32, #tpu.memory_space<smem>>
      %c0_86 = arith.constant 0 : index
      %c0_87 = arith.constant 0 : index
      %153 = vector.load %arg12[%c0_86, %c0_87] : memref<2x32xf32, #tpu.memory_space<vmem>>, vector<2x32xf32>
      tpu.vector_store %arg12[%c0_86, %c0_87], %121 {strides = array<i32>} : memref<2x32xf32, #tpu.memory_space<vmem>>, vector<2x32xf32>,
      %154 = vector.broadcast %133 : vector<2x1xi32> to vector<2x12xi32>
      %155 = arith.cmpi eq, %2, %154 : vector<2x12xi32>
      %cst_88 = arith.constant 1.000000e+00 : f32
      %cst_89 = arith.constant 0.000000e+00 : f32
      %156 = vector.broadcast %cst_88 : f32 to vector<2x12xf32>
      %157 = vector.broadcast %cst_89 : f32 to vector<2x12xf32>
      %158 = arith.select %155, %156, %157 : vector<2x12xi1>, vector<2x12xf32>
      %c0_90 = arith.constant 0 : index
      %c0_91 = arith.constant 0 : index
      %159 = vector.load %arg13[%c0_90, %c0_91] : memref<2x12xf32, #tpu.memory_space<vmem>>, vector<2x12xf32>
      tpu.vector_store %arg13[%c0_90, %c0_91], %158 {strides = array<i32>} : memref<2x12xf32, #tpu.memory_space<vmem>>, vector<2x12xf32>,
    } else {
    }
    %c2_i32 = arith.constant 2 : i32
    %c0_41 = arith.constant 0 : index
    %35 = memref.load %arg14[%c0_41] : memref<1xi32, #tpu.memory_space<smem>>
    %c0_i32_42 = arith.constant 0 : i32
    %36 = arith.cmpi eq, %35, %c0_i32_42 : i32
    %37 = arith.extui %36 : i1 to i32
    %c0_i32_43 = arith.constant 0 : i32
    %38 = arith.cmpi ne, %37, %c0_i32_43 : i32
    scf.if %38 {
      %c0_59 = arith.constant 0 : index
      %c0_60 = arith.constant 0 : index
      %59 = vector.load %arg12[%c0_59, %c0_60] : memref<2x32xf32, #tpu.memory_space<vmem>>, vector<2x32xf32>
      %c0_61 = arith.constant 0 : index
      %c0_62 = arith.constant 0 : index
      %60 = vector.load %arg13[%c0_61, %c0_62] : memref<2x12xf32, #tpu.memory_space<vmem>>, vector<2x12xf32>
      %61 = arith.truncf %59 : vector<2x32xf32> to vector<2x32xbf16>
      %cst_63 = arith.constant dense<0.000000e+00> : vector<2x128xf32>
      %62 = tpu.matmul %61, %18, %cst_63 {dimension_numbers = #tpu.dot_dimension_numbers<[1], [0], [0], [1], [0, 0, 1, 1], [], []>} : vector<2x32xbf16>, vector<32x128xbf16>, vector<2x128xf32> -> vector<2x128xf32>
      %63 = vector.extract_strided_slice %62 {offsets = [0, 0], sizes = [2, 96], strides = [1, 1]} : vector<2x128xf32> to vector<2x96xf32>
      %64 = vector.broadcast %22 : vector<1x96xf32> to vector<2x96xf32>
      %65 = arith.addf %63, %64 : vector<2x96xf32>
      %66 = vector.extract_strided_slice %62 {offsets = [0, 96], sizes = [2, 32], strides = [1, 1]} : vector<2x128xf32> to vector<2x32xf32>
      %67 = vector.broadcast %23 : vector<1x32xf32> to vector<2x32xf32>
      %68 = arith.addf %66, %67 : vector<2x32xf32>
      %69 = vector.shape_cast %68 : vector<2x32xf32> to vector<2x1x32xf32>
      %70 = vector.broadcast %69 : vector<2x1x32xf32> to vector<2x8x32xf32>
      %71 = arith.addf %15, %70 : vector<2x8x32xf32>
      %72 = math.tanh %71 : vector<2x8x32xf32>
      %73 = vector.broadcast %17 : vector<1x1x32xf32> to vector<2x8x32xf32>
      %74 = arith.mulf %72, %73 : vector<2x8x32xf32>
      %cst_64 = arith.constant dense<0.000000e+00> : vector<2x8xf32>
      %75 = vector.multi_reduction <add>, %74, %cst_64 [2] : vector<2x8x32xf32> to vector<2x8xf32>
      %cst_65 = arith.constant dense<0xFF800000> : vector<2xf32>
      %76 = vector.multi_reduction <maximumf>, %75, %cst_65 [1] : vector<2x8xf32> to vector<2xf32>
      %77 = vector.shape_cast %76 : vector<2xf32> to vector<2x1xf32>
      %78 = vector.broadcast %77 : vector<2x1xf32> to vector<2x8xf32>
      %79 = arith.subf %75, %78 : vector<2x8xf32>
      %80 = math.exp %79 : vector<2x8xf32>
      %cst_66 = arith.constant dense<0.000000e+00> : vector<2xf32>
      %81 = vector.multi_reduction <add>, %80, %cst_66 [1] : vector<2x8xf32> to vector<2xf32>
      %82 = vector.shape_cast %81 : vector<2xf32> to vector<2x1xf32>
      %83 = vector.broadcast %82 : vector<2x1xf32> to vector<2x8xf32>
      %84 = arith.divf %80, %83 : vector<2x8xf32>
      %85 = vector.shape_cast %84 : vector<2x8xf32> to vector<2x8x1xf32>
      %86 = vector.broadcast %85 : vector<2x8x1xf32> to vector<2x8x41xf32>
      %87 = arith.mulf %86, %13 : vector<2x8x41xf32>
      %cst_67 = arith.constant dense<0.000000e+00> : vector<2x41xf32>
      %88 = vector.multi_reduction <add>, %87, %cst_67 [1] : vector<2x8x41xf32> to vector<2x41xf32>
      %89 = arith.truncf %60 : vector<2x12xf32> to vector<2x12xbf16>
      %cst_68 = arith.constant dense<0.000000e+00> : vector<2x96xf32>
      %90 = tpu.matmul %89, %19, %cst_68 {dimension_numbers = #tpu.dot_dimension_numbers<[1], [0], [0], [1], [0, 0, 1, 1], [], []>} : vector<2x12xbf16>, vector<12x96xbf16>, vector<2x96xf32> -> vector<2x96xf32>
      %91 = arith.truncf %88 : vector<2x41xf32> to vector<2x41xbf16>
      %cst_69 = arith.constant dense<0.000000e+00> : vector<2x96xf32>
      %92 = tpu.matmul %91, %20, %cst_69 {dimension_numbers = #tpu.dot_dimension_numbers<[1], [0], [0], [1], [0, 0, 1, 1], [], []>} : vector<2x41xbf16>, vector<41x96xbf16>, vector<2x96xf32> -> vector<2x96xf32>
      %93 = arith.addf %90, %92 : vector<2x96xf32>
      %94 = vector.broadcast %24 : vector<1x96xf32> to vector<2x96xf32>
      %95 = arith.addf %93, %94 : vector<2x96xf32>
      %96 = vector.extract_strided_slice %95 {offsets = [0, 0], sizes = [2, 32], strides = [1, 1]} : vector<2x96xf32> to vector<2x32xf32>
      %97 = vector.extract_strided_slice %65 {offsets = [0, 0], sizes = [2, 32], strides = [1, 1]} : vector<2x96xf32> to vector<2x32xf32>
      %98 = arith.addf %96, %97 : vector<2x32xf32>
      %99 = arith.negf %98 : vector<2x32xf32>
      %100 = math.exp %99 : vector<2x32xf32>
      %cst_70 = arith.constant 1.000000e+00 : f32
      %101 = vector.broadcast %cst_70 : f32 to vector<2x32xf32>
      %102 = arith.addf %101, %100 : vector<2x32xf32>
      %103 = arith.divf %101, %102 : vector<2x32xf32>
      %104 = vector.extract_strided_slice %95 {offsets = [0, 32], sizes = [2, 32], strides = [1, 1]} : vector<2x96xf32> to vector<2x32xf32>
      %105 = vector.extract_strided_slice %65 {offsets = [0, 32], sizes = [2, 32], strides = [1, 1]} : vector<2x96xf32> to vector<2x32xf32>
      %106 = arith.addf %104, %105 : vector<2x32xf32>
      %107 = arith.negf %106 : vector<2x32xf32>
      %108 = math.exp %107 : vector<2x32xf32>
      %cst_71 = arith.constant 1.000000e+00 : f32
      %109 = vector.broadcast %cst_71 : f32 to vector<2x32xf32>
      %110 = arith.addf %109, %108 : vector<2x32xf32>
      %111 = arith.divf %109, %110 : vector<2x32xf32>
      %112 = vector.extract_strided_slice %95 {offsets = [0, 64], sizes = [2, 32], strides = [1, 1]} : vector<2x96xf32> to vector<2x32xf32>
      %113 = vector.extract_strided_slice %65 {offsets = [0, 64], sizes = [2, 32], strides = [1, 1]} : vector<2x96xf32> to vector<2x32xf32>
      %114 = arith.mulf %103, %113 : vector<2x32xf32>
      %115 = arith.addf %112, %114 : vector<2x32xf32>
      %116 = math.tanh %115 : vector<2x32xf32>
      %cst_72 = arith.constant 1.000000e+00 : f32
      %117 = vector.broadcast %cst_72 : f32 to vector<2x32xf32>
      %118 = arith.subf %117, %111 : vector<2x32xf32>
      %119 = arith.mulf %118, %116 : vector<2x32xf32>
      %120 = arith.mulf %111, %59 : vector<2x32xf32>
      %121 = arith.addf %119, %120 : vector<2x32xf32>
      %122 = arith.truncf %121 : vector<2x32xf32> to vector<2x32xbf16>
      %cst_73 = arith.constant dense<0.000000e+00> : vector<2x12xf32>
      %123 = tpu.matmul %122, %21, %cst_73 {dimension_numbers = #tpu.dot_dimension_numbers<[1], [0], [0], [1], [0, 0, 1, 1], [], []>} : vector<2x32xbf16>, vector<32x12xbf16>, vector<2x12xf32> -> vector<2x12xf32>
      %124 = vector.broadcast %25 : vector<1x12xf32> to vector<2x12xf32>
      %125 = arith.addf %123, %124 : vector<2x12xf32>
      %cst_74 = arith.constant dense<0xFF800000> : vector<2xf32>
      %126 = vector.multi_reduction <maximumf>, %125, %cst_74 [1] : vector<2x12xf32> to vector<2xf32>
      %127 = vector.shape_cast %126 : vector<2xf32> to vector<2x1xf32>
      %128 = vector.broadcast %127 : vector<2x1xf32> to vector<2x12xf32>
      %129 = arith.cmpf oeq, %125, %128 : vector<2x12xf32>
      %c12_i32 = arith.constant 12 : i32
      %130 = vector.broadcast %c12_i32 : i32 to vector<2x12xi32>
      %131 = arith.select %129, %2, %130 : vector<2x12xi1>, vector<2x12xi32>
      %cst_75 = arith.constant dense<2147483647> : vector<2xi32>
      %132 = vector.multi_reduction <minsi>, %131, %cst_75 [1] : vector<2x12xi32> to vector<2xi32>
      %133 = vector.shape_cast %132 : vector<2xi32> to vector<2x1xi32>
      %134 = vector.broadcast %c2_i32 : i32 to vector<2x8xi32>
      %135 = arith.cmpi eq, %26, %134 : vector<2x8xi32>
      %c0_76 = arith.constant 0 : index
      %c0_77 = arith.constant 0 : index
      %136 = vector.load %arg11[%c0_76, %c0_77] : memref<2x8xi32, #tpu.memory_space<vmem>>, vector<2x8xi32>
      %137 = vector.shape_cast %133 : vector<2x1xi32> to vector<2x1xi32>
      %138 = vector.broadcast %137 : vector<2x1xi32> to vector<2x8xi32>
      %139 = arith.select %135, %138, %136 : vector<2x8xi1>, vector<2x8xi32>
      %c0_78 = arith.constant 0 : index
      %c0_79 = arith.constant 0 : index
      %140 = vector.load %arg11[%c0_78, %c0_79] : memref<2x8xi32, #tpu.memory_space<vmem>>, vector<2x8xi32>
      tpu.vector_store %arg11[%c0_78, %c0_79], %139 {strides = array<i32>} : memref<2x8xi32, #tpu.memory_space<vmem>>, vector<2x8xi32>,
      %c0_i32_80 = arith.constant 0 : i32
      %141 = vector.broadcast %c0_i32_80 : i32 to vector<2x1xi32>
      %142 = arith.cmpi eq, %133, %141 : vector<2x1xi32>
      %cst_81 = arith.constant 0.000000e+00 : f32
      %cst_82 = arith.constant 1.000000e+00 : f32
      %143 = vector.broadcast %cst_81 : f32 to vector<2x1xf32>
      %144 = vector.broadcast %cst_82 : f32 to vector<2x1xf32>
      %145 = arith.select %142, %143, %144 : vector<2x1xi1>, vector<2x1xf32>
      %146 = vector.shape_cast %145 : vector<2x1xf32> to vector<1x2x1xf32>
      %cst_83 = arith.constant dense<0.000000e+00> : vector<1xf32>
      %147 = vector.multi_reduction <add>, %146, %cst_83 [1, 2] : vector<1x2x1xf32> to vector<1xf32>
      %148 = vector.shape_cast %147 : vector<1xf32> to vector<1x1x1xf32>
      %149 = vector.extract %148[0, 0, 0] : f32 from vector<1x1x1xf32>
      %cst_84 = arith.constant 0.000000e+00 : f32
      %150 = arith.cmpf oeq, %149, %cst_84 : f32
      %151 = arith.extui %150 : i1 to i32
      %c0_85 = arith.constant 0 : index
      %152 = memref.load %arg14[%c0_85] : memref<1xi32, #tpu.memory_space<smem>>
      memref.store %151, %arg14[%c0_85] : memref<1xi32, #tpu.memory_space<smem>>
      %c0_86 = arith.constant 0 : index
      %c0_87 = arith.constant 0 : index
      %153 = vector.load %arg12[%c0_86, %c0_87] : memref<2x32xf32, #tpu.memory_space<vmem>>, vector<2x32xf32>
      tpu.vector_store %arg12[%c0_86, %c0_87], %121 {strides = array<i32>} : memref<2x32xf32, #tpu.memory_space<vmem>>, vector<2x32xf32>,
      %154 = vector.broadcast %133 : vector<2x1xi32> to vector<2x12xi32>
      %155 = arith.cmpi eq, %2, %154 : vector<2x12xi32>
      %cst_88 = arith.constant 1.000000e+00 : f32
      %cst_89 = arith.constant 0.000000e+00 : f32
      %156 = vector.broadcast %cst_88 : f32 to vector<2x12xf32>
      %157 = vector.broadcast %cst_89 : f32 to vector<2x12xf32>
      %158 = arith.select %155, %156, %157 : vector<2x12xi1>, vector<2x12xf32>
      %c0_90 = arith.constant 0 : index
      %c0_91 = arith.constant 0 : index
      %159 = vector.load %arg13[%c0_90, %c0_91] : memref<2x12xf32, #tpu.memory_space<vmem>>, vector<2x12xf32>
      tpu.vector_store %arg13[%c0_90, %c0_91], %158 {strides = array<i32>} : memref<2x12xf32, #tpu.memory_space<vmem>>, vector<2x12xf32>,
    } else {
    }
    %c3_i32 = arith.constant 3 : i32
    %c0_44 = arith.constant 0 : index
    %39 = memref.load %arg14[%c0_44] : memref<1xi32, #tpu.memory_space<smem>>
    %c0_i32_45 = arith.constant 0 : i32
    %40 = arith.cmpi eq, %39, %c0_i32_45 : i32
    %41 = arith.extui %40 : i1 to i32
    %c0_i32_46 = arith.constant 0 : i32
    %42 = arith.cmpi ne, %41, %c0_i32_46 : i32
    scf.if %42 {
      %c0_59 = arith.constant 0 : index
      %c0_60 = arith.constant 0 : index
      %59 = vector.load %arg12[%c0_59, %c0_60] : memref<2x32xf32, #tpu.memory_space<vmem>>, vector<2x32xf32>
      %c0_61 = arith.constant 0 : index
      %c0_62 = arith.constant 0 : index
      %60 = vector.load %arg13[%c0_61, %c0_62] : memref<2x12xf32, #tpu.memory_space<vmem>>, vector<2x12xf32>
      %61 = arith.truncf %59 : vector<2x32xf32> to vector<2x32xbf16>
      %cst_63 = arith.constant dense<0.000000e+00> : vector<2x128xf32>
      %62 = tpu.matmul %61, %18, %cst_63 {dimension_numbers = #tpu.dot_dimension_numbers<[1], [0], [0], [1], [0, 0, 1, 1], [], []>} : vector<2x32xbf16>, vector<32x128xbf16>, vector<2x128xf32> -> vector<2x128xf32>
      %63 = vector.extract_strided_slice %62 {offsets = [0, 0], sizes = [2, 96], strides = [1, 1]} : vector<2x128xf32> to vector<2x96xf32>
      %64 = vector.broadcast %22 : vector<1x96xf32> to vector<2x96xf32>
      %65 = arith.addf %63, %64 : vector<2x96xf32>
      %66 = vector.extract_strided_slice %62 {offsets = [0, 96], sizes = [2, 32], strides = [1, 1]} : vector<2x128xf32> to vector<2x32xf32>
      %67 = vector.broadcast %23 : vector<1x32xf32> to vector<2x32xf32>
      %68 = arith.addf %66, %67 : vector<2x32xf32>
      %69 = vector.shape_cast %68 : vector<2x32xf32> to vector<2x1x32xf32>
      %70 = vector.broadcast %69 : vector<2x1x32xf32> to vector<2x8x32xf32>
      %71 = arith.addf %15, %70 : vector<2x8x32xf32>
      %72 = math.tanh %71 : vector<2x8x32xf32>
      %73 = vector.broadcast %17 : vector<1x1x32xf32> to vector<2x8x32xf32>
      %74 = arith.mulf %72, %73 : vector<2x8x32xf32>
      %cst_64 = arith.constant dense<0.000000e+00> : vector<2x8xf32>
      %75 = vector.multi_reduction <add>, %74, %cst_64 [2] : vector<2x8x32xf32> to vector<2x8xf32>
      %cst_65 = arith.constant dense<0xFF800000> : vector<2xf32>
      %76 = vector.multi_reduction <maximumf>, %75, %cst_65 [1] : vector<2x8xf32> to vector<2xf32>
      %77 = vector.shape_cast %76 : vector<2xf32> to vector<2x1xf32>
      %78 = vector.broadcast %77 : vector<2x1xf32> to vector<2x8xf32>
      %79 = arith.subf %75, %78 : vector<2x8xf32>
      %80 = math.exp %79 : vector<2x8xf32>
      %cst_66 = arith.constant dense<0.000000e+00> : vector<2xf32>
      %81 = vector.multi_reduction <add>, %80, %cst_66 [1] : vector<2x8xf32> to vector<2xf32>
      %82 = vector.shape_cast %81 : vector<2xf32> to vector<2x1xf32>
      %83 = vector.broadcast %82 : vector<2x1xf32> to vector<2x8xf32>
      %84 = arith.divf %80, %83 : vector<2x8xf32>
      %85 = vector.shape_cast %84 : vector<2x8xf32> to vector<2x8x1xf32>
      %86 = vector.broadcast %85 : vector<2x8x1xf32> to vector<2x8x41xf32>
      %87 = arith.mulf %86, %13 : vector<2x8x41xf32>
      %cst_67 = arith.constant dense<0.000000e+00> : vector<2x41xf32>
      %88 = vector.multi_reduction <add>, %87, %cst_67 [1] : vector<2x8x41xf32> to vector<2x41xf32>
      %89 = arith.truncf %60 : vector<2x12xf32> to vector<2x12xbf16>
      %cst_68 = arith.constant dense<0.000000e+00> : vector<2x96xf32>
      %90 = tpu.matmul %89, %19, %cst_68 {dimension_numbers = #tpu.dot_dimension_numbers<[1], [0], [0], [1], [0, 0, 1, 1], [], []>} : vector<2x12xbf16>, vector<12x96xbf16>, vector<2x96xf32> -> vector<2x96xf32>
      %91 = arith.truncf %88 : vector<2x41xf32> to vector<2x41xbf16>
      %cst_69 = arith.constant dense<0.000000e+00> : vector<2x96xf32>
      %92 = tpu.matmul %91, %20, %cst_69 {dimension_numbers = #tpu.dot_dimension_numbers<[1], [0], [0], [1], [0, 0, 1, 1], [], []>} : vector<2x41xbf16>, vector<41x96xbf16>, vector<2x96xf32> -> vector<2x96xf32>
      %93 = arith.addf %90, %92 : vector<2x96xf32>
      %94 = vector.broadcast %24 : vector<1x96xf32> to vector<2x96xf32>
      %95 = arith.addf %93, %94 : vector<2x96xf32>
      %96 = vector.extract_strided_slice %95 {offsets = [0, 0], sizes = [2, 32], strides = [1, 1]} : vector<2x96xf32> to vector<2x32xf32>
      %97 = vector.extract_strided_slice %65 {offsets = [0, 0], sizes = [2, 32], strides = [1, 1]} : vector<2x96xf32> to vector<2x32xf32>
      %98 = arith.addf %96, %97 : vector<2x32xf32>
      %99 = arith.negf %98 : vector<2x32xf32>
      %100 = math.exp %99 : vector<2x32xf32>
      %cst_70 = arith.constant 1.000000e+00 : f32
      %101 = vector.broadcast %cst_70 : f32 to vector<2x32xf32>
      %102 = arith.addf %101, %100 : vector<2x32xf32>
      %103 = arith.divf %101, %102 : vector<2x32xf32>
      %104 = vector.extract_strided_slice %95 {offsets = [0, 32], sizes = [2, 32], strides = [1, 1]} : vector<2x96xf32> to vector<2x32xf32>
      %105 = vector.extract_strided_slice %65 {offsets = [0, 32], sizes = [2, 32], strides = [1, 1]} : vector<2x96xf32> to vector<2x32xf32>
      %106 = arith.addf %104, %105 : vector<2x32xf32>
      %107 = arith.negf %106 : vector<2x32xf32>
      %108 = math.exp %107 : vector<2x32xf32>
      %cst_71 = arith.constant 1.000000e+00 : f32
      %109 = vector.broadcast %cst_71 : f32 to vector<2x32xf32>
      %110 = arith.addf %109, %108 : vector<2x32xf32>
      %111 = arith.divf %109, %110 : vector<2x32xf32>
      %112 = vector.extract_strided_slice %95 {offsets = [0, 64], sizes = [2, 32], strides = [1, 1]} : vector<2x96xf32> to vector<2x32xf32>
      %113 = vector.extract_strided_slice %65 {offsets = [0, 64], sizes = [2, 32], strides = [1, 1]} : vector<2x96xf32> to vector<2x32xf32>
      %114 = arith.mulf %103, %113 : vector<2x32xf32>
      %115 = arith.addf %112, %114 : vector<2x32xf32>
      %116 = math.tanh %115 : vector<2x32xf32>
      %cst_72 = arith.constant 1.000000e+00 : f32
      %117 = vector.broadcast %cst_72 : f32 to vector<2x32xf32>
      %118 = arith.subf %117, %111 : vector<2x32xf32>
      %119 = arith.mulf %118, %116 : vector<2x32xf32>
      %120 = arith.mulf %111, %59 : vector<2x32xf32>
      %121 = arith.addf %119, %120 : vector<2x32xf32>
      %122 = arith.truncf %121 : vector<2x32xf32> to vector<2x32xbf16>
      %cst_73 = arith.constant dense<0.000000e+00> : vector<2x12xf32>
      %123 = tpu.matmul %122, %21, %cst_73 {dimension_numbers = #tpu.dot_dimension_numbers<[1], [0], [0], [1], [0, 0, 1, 1], [], []>} : vector<2x32xbf16>, vector<32x12xbf16>, vector<2x12xf32> -> vector<2x12xf32>
      %124 = vector.broadcast %25 : vector<1x12xf32> to vector<2x12xf32>
      %125 = arith.addf %123, %124 : vector<2x12xf32>
      %cst_74 = arith.constant dense<0xFF800000> : vector<2xf32>
      %126 = vector.multi_reduction <maximumf>, %125, %cst_74 [1] : vector<2x12xf32> to vector<2xf32>
      %127 = vector.shape_cast %126 : vector<2xf32> to vector<2x1xf32>
      %128 = vector.broadcast %127 : vector<2x1xf32> to vector<2x12xf32>
      %129 = arith.cmpf oeq, %125, %128 : vector<2x12xf32>
      %c12_i32 = arith.constant 12 : i32
      %130 = vector.broadcast %c12_i32 : i32 to vector<2x12xi32>
      %131 = arith.select %129, %2, %130 : vector<2x12xi1>, vector<2x12xi32>
      %cst_75 = arith.constant dense<2147483647> : vector<2xi32>
      %132 = vector.multi_reduction <minsi>, %131, %cst_75 [1] : vector<2x12xi32> to vector<2xi32>
      %133 = vector.shape_cast %132 : vector<2xi32> to vector<2x1xi32>
      %134 = vector.broadcast %c3_i32 : i32 to vector<2x8xi32>
      %135 = arith.cmpi eq, %26, %134 : vector<2x8xi32>
      %c0_76 = arith.constant 0 : index
      %c0_77 = arith.constant 0 : index
      %136 = vector.load %arg11[%c0_76, %c0_77] : memref<2x8xi32, #tpu.memory_space<vmem>>, vector<2x8xi32>
      %137 = vector.shape_cast %133 : vector<2x1xi32> to vector<2x1xi32>
      %138 = vector.broadcast %137 : vector<2x1xi32> to vector<2x8xi32>
      %139 = arith.select %135, %138, %136 : vector<2x8xi1>, vector<2x8xi32>
      %c0_78 = arith.constant 0 : index
      %c0_79 = arith.constant 0 : index
      %140 = vector.load %arg11[%c0_78, %c0_79] : memref<2x8xi32, #tpu.memory_space<vmem>>, vector<2x8xi32>
      tpu.vector_store %arg11[%c0_78, %c0_79], %139 {strides = array<i32>} : memref<2x8xi32, #tpu.memory_space<vmem>>, vector<2x8xi32>,
      %c0_i32_80 = arith.constant 0 : i32
      %141 = vector.broadcast %c0_i32_80 : i32 to vector<2x1xi32>
      %142 = arith.cmpi eq, %133, %141 : vector<2x1xi32>
      %cst_81 = arith.constant 0.000000e+00 : f32
      %cst_82 = arith.constant 1.000000e+00 : f32
      %143 = vector.broadcast %cst_81 : f32 to vector<2x1xf32>
      %144 = vector.broadcast %cst_82 : f32 to vector<2x1xf32>
      %145 = arith.select %142, %143, %144 : vector<2x1xi1>, vector<2x1xf32>
      %146 = vector.shape_cast %145 : vector<2x1xf32> to vector<1x2x1xf32>
      %cst_83 = arith.constant dense<0.000000e+00> : vector<1xf32>
      %147 = vector.multi_reduction <add>, %146, %cst_83 [1, 2] : vector<1x2x1xf32> to vector<1xf32>
      %148 = vector.shape_cast %147 : vector<1xf32> to vector<1x1x1xf32>
      %149 = vector.extract %148[0, 0, 0] : f32 from vector<1x1x1xf32>
      %cst_84 = arith.constant 0.000000e+00 : f32
      %150 = arith.cmpf oeq, %149, %cst_84 : f32
      %151 = arith.extui %150 : i1 to i32
      %c0_85 = arith.constant 0 : index
      %152 = memref.load %arg14[%c0_85] : memref<1xi32, #tpu.memory_space<smem>>
      memref.store %151, %arg14[%c0_85] : memref<1xi32, #tpu.memory_space<smem>>
      %c0_86 = arith.constant 0 : index
      %c0_87 = arith.constant 0 : index
      %153 = vector.load %arg12[%c0_86, %c0_87] : memref<2x32xf32, #tpu.memory_space<vmem>>, vector<2x32xf32>
      tpu.vector_store %arg12[%c0_86, %c0_87], %121 {strides = array<i32>} : memref<2x32xf32, #tpu.memory_space<vmem>>, vector<2x32xf32>,
      %154 = vector.broadcast %133 : vector<2x1xi32> to vector<2x12xi32>
      %155 = arith.cmpi eq, %2, %154 : vector<2x12xi32>
      %cst_88 = arith.constant 1.000000e+00 : f32
      %cst_89 = arith.constant 0.000000e+00 : f32
      %156 = vector.broadcast %cst_88 : f32 to vector<2x12xf32>
      %157 = vector.broadcast %cst_89 : f32 to vector<2x12xf32>
      %158 = arith.select %155, %156, %157 : vector<2x12xi1>, vector<2x12xf32>
      %c0_90 = arith.constant 0 : index
      %c0_91 = arith.constant 0 : index
      %159 = vector.load %arg13[%c0_90, %c0_91] : memref<2x12xf32, #tpu.memory_space<vmem>>, vector<2x12xf32>
      tpu.vector_store %arg13[%c0_90, %c0_91], %158 {strides = array<i32>} : memref<2x12xf32, #tpu.memory_space<vmem>>, vector<2x12xf32>,
    } else {
    }
    %c4_i32 = arith.constant 4 : i32
    %c0_47 = arith.constant 0 : index
    %43 = memref.load %arg14[%c0_47] : memref<1xi32, #tpu.memory_space<smem>>
    %c0_i32_48 = arith.constant 0 : i32
    %44 = arith.cmpi eq, %43, %c0_i32_48 : i32
    %45 = arith.extui %44 : i1 to i32
    %c0_i32_49 = arith.constant 0 : i32
    %46 = arith.cmpi ne, %45, %c0_i32_49 : i32
    scf.if %46 {
      %c0_59 = arith.constant 0 : index
      %c0_60 = arith.constant 0 : index
      %59 = vector.load %arg12[%c0_59, %c0_60] : memref<2x32xf32, #tpu.memory_space<vmem>>, vector<2x32xf32>
      %c0_61 = arith.constant 0 : index
      %c0_62 = arith.constant 0 : index
      %60 = vector.load %arg13[%c0_61, %c0_62] : memref<2x12xf32, #tpu.memory_space<vmem>>, vector<2x12xf32>
      %61 = arith.truncf %59 : vector<2x32xf32> to vector<2x32xbf16>
      %cst_63 = arith.constant dense<0.000000e+00> : vector<2x128xf32>
      %62 = tpu.matmul %61, %18, %cst_63 {dimension_numbers = #tpu.dot_dimension_numbers<[1], [0], [0], [1], [0, 0, 1, 1], [], []>} : vector<2x32xbf16>, vector<32x128xbf16>, vector<2x128xf32> -> vector<2x128xf32>
      %63 = vector.extract_strided_slice %62 {offsets = [0, 0], sizes = [2, 96], strides = [1, 1]} : vector<2x128xf32> to vector<2x96xf32>
      %64 = vector.broadcast %22 : vector<1x96xf32> to vector<2x96xf32>
      %65 = arith.addf %63, %64 : vector<2x96xf32>
      %66 = vector.extract_strided_slice %62 {offsets = [0, 96], sizes = [2, 32], strides = [1, 1]} : vector<2x128xf32> to vector<2x32xf32>
      %67 = vector.broadcast %23 : vector<1x32xf32> to vector<2x32xf32>
      %68 = arith.addf %66, %67 : vector<2x32xf32>
      %69 = vector.shape_cast %68 : vector<2x32xf32> to vector<2x1x32xf32>
      %70 = vector.broadcast %69 : vector<2x1x32xf32> to vector<2x8x32xf32>
      %71 = arith.addf %15, %70 : vector<2x8x32xf32>
      %72 = math.tanh %71 : vector<2x8x32xf32>
      %73 = vector.broadcast %17 : vector<1x1x32xf32> to vector<2x8x32xf32>
      %74 = arith.mulf %72, %73 : vector<2x8x32xf32>
      %cst_64 = arith.constant dense<0.000000e+00> : vector<2x8xf32>
      %75 = vector.multi_reduction <add>, %74, %cst_64 [2] : vector<2x8x32xf32> to vector<2x8xf32>
      %cst_65 = arith.constant dense<0xFF800000> : vector<2xf32>
      %76 = vector.multi_reduction <maximumf>, %75, %cst_65 [1] : vector<2x8xf32> to vector<2xf32>
      %77 = vector.shape_cast %76 : vector<2xf32> to vector<2x1xf32>
      %78 = vector.broadcast %77 : vector<2x1xf32> to vector<2x8xf32>
      %79 = arith.subf %75, %78 : vector<2x8xf32>
      %80 = math.exp %79 : vector<2x8xf32>
      %cst_66 = arith.constant dense<0.000000e+00> : vector<2xf32>
      %81 = vector.multi_reduction <add>, %80, %cst_66 [1] : vector<2x8xf32> to vector<2xf32>
      %82 = vector.shape_cast %81 : vector<2xf32> to vector<2x1xf32>
      %83 = vector.broadcast %82 : vector<2x1xf32> to vector<2x8xf32>
      %84 = arith.divf %80, %83 : vector<2x8xf32>
      %85 = vector.shape_cast %84 : vector<2x8xf32> to vector<2x8x1xf32>
      %86 = vector.broadcast %85 : vector<2x8x1xf32> to vector<2x8x41xf32>
      %87 = arith.mulf %86, %13 : vector<2x8x41xf32>
      %cst_67 = arith.constant dense<0.000000e+00> : vector<2x41xf32>
      %88 = vector.multi_reduction <add>, %87, %cst_67 [1] : vector<2x8x41xf32> to vector<2x41xf32>
      %89 = arith.truncf %60 : vector<2x12xf32> to vector<2x12xbf16>
      %cst_68 = arith.constant dense<0.000000e+00> : vector<2x96xf32>
      %90 = tpu.matmul %89, %19, %cst_68 {dimension_numbers = #tpu.dot_dimension_numbers<[1], [0], [0], [1], [0, 0, 1, 1], [], []>} : vector<2x12xbf16>, vector<12x96xbf16>, vector<2x96xf32> -> vector<2x96xf32>
      %91 = arith.truncf %88 : vector<2x41xf32> to vector<2x41xbf16>
      %cst_69 = arith.constant dense<0.000000e+00> : vector<2x96xf32>
      %92 = tpu.matmul %91, %20, %cst_69 {dimension_numbers = #tpu.dot_dimension_numbers<[1], [0], [0], [1], [0, 0, 1, 1], [], []>} : vector<2x41xbf16>, vector<41x96xbf16>, vector<2x96xf32> -> vector<2x96xf32>
      %93 = arith.addf %90, %92 : vector<2x96xf32>
      %94 = vector.broadcast %24 : vector<1x96xf32> to vector<2x96xf32>
      %95 = arith.addf %93, %94 : vector<2x96xf32>
      %96 = vector.extract_strided_slice %95 {offsets = [0, 0], sizes = [2, 32], strides = [1, 1]} : vector<2x96xf32> to vector<2x32xf32>
      %97 = vector.extract_strided_slice %65 {offsets = [0, 0], sizes = [2, 32], strides = [1, 1]} : vector<2x96xf32> to vector<2x32xf32>
      %98 = arith.addf %96, %97 : vector<2x32xf32>
      %99 = arith.negf %98 : vector<2x32xf32>
      %100 = math.exp %99 : vector<2x32xf32>
      %cst_70 = arith.constant 1.000000e+00 : f32
      %101 = vector.broadcast %cst_70 : f32 to vector<2x32xf32>
      %102 = arith.addf %101, %100 : vector<2x32xf32>
      %103 = arith.divf %101, %102 : vector<2x32xf32>
      %104 = vector.extract_strided_slice %95 {offsets = [0, 32], sizes = [2, 32], strides = [1, 1]} : vector<2x96xf32> to vector<2x32xf32>
      %105 = vector.extract_strided_slice %65 {offsets = [0, 32], sizes = [2, 32], strides = [1, 1]} : vector<2x96xf32> to vector<2x32xf32>
      %106 = arith.addf %104, %105 : vector<2x32xf32>
      %107 = arith.negf %106 : vector<2x32xf32>
      %108 = math.exp %107 : vector<2x32xf32>
      %cst_71 = arith.constant 1.000000e+00 : f32
      %109 = vector.broadcast %cst_71 : f32 to vector<2x32xf32>
      %110 = arith.addf %109, %108 : vector<2x32xf32>
      %111 = arith.divf %109, %110 : vector<2x32xf32>
      %112 = vector.extract_strided_slice %95 {offsets = [0, 64], sizes = [2, 32], strides = [1, 1]} : vector<2x96xf32> to vector<2x32xf32>
      %113 = vector.extract_strided_slice %65 {offsets = [0, 64], sizes = [2, 32], strides = [1, 1]} : vector<2x96xf32> to vector<2x32xf32>
      %114 = arith.mulf %103, %113 : vector<2x32xf32>
      %115 = arith.addf %112, %114 : vector<2x32xf32>
      %116 = math.tanh %115 : vector<2x32xf32>
      %cst_72 = arith.constant 1.000000e+00 : f32
      %117 = vector.broadcast %cst_72 : f32 to vector<2x32xf32>
      %118 = arith.subf %117, %111 : vector<2x32xf32>
      %119 = arith.mulf %118, %116 : vector<2x32xf32>
      %120 = arith.mulf %111, %59 : vector<2x32xf32>
      %121 = arith.addf %119, %120 : vector<2x32xf32>
      %122 = arith.truncf %121 : vector<2x32xf32> to vector<2x32xbf16>
      %cst_73 = arith.constant dense<0.000000e+00> : vector<2x12xf32>
      %123 = tpu.matmul %122, %21, %cst_73 {dimension_numbers = #tpu.dot_dimension_numbers<[1], [0], [0], [1], [0, 0, 1, 1], [], []>} : vector<2x32xbf16>, vector<32x12xbf16>, vector<2x12xf32> -> vector<2x12xf32>
      %124 = vector.broadcast %25 : vector<1x12xf32> to vector<2x12xf32>
      %125 = arith.addf %123, %124 : vector<2x12xf32>
      %cst_74 = arith.constant dense<0xFF800000> : vector<2xf32>
      %126 = vector.multi_reduction <maximumf>, %125, %cst_74 [1] : vector<2x12xf32> to vector<2xf32>
      %127 = vector.shape_cast %126 : vector<2xf32> to vector<2x1xf32>
      %128 = vector.broadcast %127 : vector<2x1xf32> to vector<2x12xf32>
      %129 = arith.cmpf oeq, %125, %128 : vector<2x12xf32>
      %c12_i32 = arith.constant 12 : i32
      %130 = vector.broadcast %c12_i32 : i32 to vector<2x12xi32>
      %131 = arith.select %129, %2, %130 : vector<2x12xi1>, vector<2x12xi32>
      %cst_75 = arith.constant dense<2147483647> : vector<2xi32>
      %132 = vector.multi_reduction <minsi>, %131, %cst_75 [1] : vector<2x12xi32> to vector<2xi32>
      %133 = vector.shape_cast %132 : vector<2xi32> to vector<2x1xi32>
      %134 = vector.broadcast %c4_i32 : i32 to vector<2x8xi32>
      %135 = arith.cmpi eq, %26, %134 : vector<2x8xi32>
      %c0_76 = arith.constant 0 : index
      %c0_77 = arith.constant 0 : index
      %136 = vector.load %arg11[%c0_76, %c0_77] : memref<2x8xi32, #tpu.memory_space<vmem>>, vector<2x8xi32>
      %137 = vector.shape_cast %133 : vector<2x1xi32> to vector<2x1xi32>
      %138 = vector.broadcast %137 : vector<2x1xi32> to vector<2x8xi32>
      %139 = arith.select %135, %138, %136 : vector<2x8xi1>, vector<2x8xi32>
      %c0_78 = arith.constant 0 : index
      %c0_79 = arith.constant 0 : index
      %140 = vector.load %arg11[%c0_78, %c0_79] : memref<2x8xi32, #tpu.memory_space<vmem>>, vector<2x8xi32>
      tpu.vector_store %arg11[%c0_78, %c0_79], %139 {strides = array<i32>} : memref<2x8xi32, #tpu.memory_space<vmem>>, vector<2x8xi32>,
      %c0_i32_80 = arith.constant 0 : i32
      %141 = vector.broadcast %c0_i32_80 : i32 to vector<2x1xi32>
      %142 = arith.cmpi eq, %133, %141 : vector<2x1xi32>
      %cst_81 = arith.constant 0.000000e+00 : f32
      %cst_82 = arith.constant 1.000000e+00 : f32
      %143 = vector.broadcast %cst_81 : f32 to vector<2x1xf32>
      %144 = vector.broadcast %cst_82 : f32 to vector<2x1xf32>
      %145 = arith.select %142, %143, %144 : vector<2x1xi1>, vector<2x1xf32>
      %146 = vector.shape_cast %145 : vector<2x1xf32> to vector<1x2x1xf32>
      %cst_83 = arith.constant dense<0.000000e+00> : vector<1xf32>
      %147 = vector.multi_reduction <add>, %146, %cst_83 [1, 2] : vector<1x2x1xf32> to vector<1xf32>
      %148 = vector.shape_cast %147 : vector<1xf32> to vector<1x1x1xf32>
      %149 = vector.extract %148[0, 0, 0] : f32 from vector<1x1x1xf32>
      %cst_84 = arith.constant 0.000000e+00 : f32
      %150 = arith.cmpf oeq, %149, %cst_84 : f32
      %151 = arith.extui %150 : i1 to i32
      %c0_85 = arith.constant 0 : index
      %152 = memref.load %arg14[%c0_85] : memref<1xi32, #tpu.memory_space<smem>>
      memref.store %151, %arg14[%c0_85] : memref<1xi32, #tpu.memory_space<smem>>
      %c0_86 = arith.constant 0 : index
      %c0_87 = arith.constant 0 : index
      %153 = vector.load %arg12[%c0_86, %c0_87] : memref<2x32xf32, #tpu.memory_space<vmem>>, vector<2x32xf32>
      tpu.vector_store %arg12[%c0_86, %c0_87], %121 {strides = array<i32>} : memref<2x32xf32, #tpu.memory_space<vmem>>, vector<2x32xf32>,
      %154 = vector.broadcast %133 : vector<2x1xi32> to vector<2x12xi32>
      %155 = arith.cmpi eq, %2, %154 : vector<2x12xi32>
      %cst_88 = arith.constant 1.000000e+00 : f32
      %cst_89 = arith.constant 0.000000e+00 : f32
      %156 = vector.broadcast %cst_88 : f32 to vector<2x12xf32>
      %157 = vector.broadcast %cst_89 : f32 to vector<2x12xf32>
      %158 = arith.select %155, %156, %157 : vector<2x12xi1>, vector<2x12xf32>
      %c0_90 = arith.constant 0 : index
      %c0_91 = arith.constant 0 : index
      %159 = vector.load %arg13[%c0_90, %c0_91] : memref<2x12xf32, #tpu.memory_space<vmem>>, vector<2x12xf32>
      tpu.vector_store %arg13[%c0_90, %c0_91], %158 {strides = array<i32>} : memref<2x12xf32, #tpu.memory_space<vmem>>, vector<2x12xf32>,
    } else {
    }
    %c5_i32 = arith.constant 5 : i32
    %c0_50 = arith.constant 0 : index
    %47 = memref.load %arg14[%c0_50] : memref<1xi32, #tpu.memory_space<smem>>
    %c0_i32_51 = arith.constant 0 : i32
    %48 = arith.cmpi eq, %47, %c0_i32_51 : i32
    %49 = arith.extui %48 : i1 to i32
    %c0_i32_52 = arith.constant 0 : i32
    %50 = arith.cmpi ne, %49, %c0_i32_52 : i32
    scf.if %50 {
      %c0_59 = arith.constant 0 : index
      %c0_60 = arith.constant 0 : index
      %59 = vector.load %arg12[%c0_59, %c0_60] : memref<2x32xf32, #tpu.memory_space<vmem>>, vector<2x32xf32>
      %c0_61 = arith.constant 0 : index
      %c0_62 = arith.constant 0 : index
      %60 = vector.load %arg13[%c0_61, %c0_62] : memref<2x12xf32, #tpu.memory_space<vmem>>, vector<2x12xf32>
      %61 = arith.truncf %59 : vector<2x32xf32> to vector<2x32xbf16>
      %cst_63 = arith.constant dense<0.000000e+00> : vector<2x128xf32>
      %62 = tpu.matmul %61, %18, %cst_63 {dimension_numbers = #tpu.dot_dimension_numbers<[1], [0], [0], [1], [0, 0, 1, 1], [], []>} : vector<2x32xbf16>, vector<32x128xbf16>, vector<2x128xf32> -> vector<2x128xf32>
      %63 = vector.extract_strided_slice %62 {offsets = [0, 0], sizes = [2, 96], strides = [1, 1]} : vector<2x128xf32> to vector<2x96xf32>
      %64 = vector.broadcast %22 : vector<1x96xf32> to vector<2x96xf32>
      %65 = arith.addf %63, %64 : vector<2x96xf32>
      %66 = vector.extract_strided_slice %62 {offsets = [0, 96], sizes = [2, 32], strides = [1, 1]} : vector<2x128xf32> to vector<2x32xf32>
      %67 = vector.broadcast %23 : vector<1x32xf32> to vector<2x32xf32>
      %68 = arith.addf %66, %67 : vector<2x32xf32>
      %69 = vector.shape_cast %68 : vector<2x32xf32> to vector<2x1x32xf32>
      %70 = vector.broadcast %69 : vector<2x1x32xf32> to vector<2x8x32xf32>
      %71 = arith.addf %15, %70 : vector<2x8x32xf32>
      %72 = math.tanh %71 : vector<2x8x32xf32>
      %73 = vector.broadcast %17 : vector<1x1x32xf32> to vector<2x8x32xf32>
      %74 = arith.mulf %72, %73 : vector<2x8x32xf32>
      %cst_64 = arith.constant dense<0.000000e+00> : vector<2x8xf32>
      %75 = vector.multi_reduction <add>, %74, %cst_64 [2] : vector<2x8x32xf32> to vector<2x8xf32>
      %cst_65 = arith.constant dense<0xFF800000> : vector<2xf32>
      %76 = vector.multi_reduction <maximumf>, %75, %cst_65 [1] : vector<2x8xf32> to vector<2xf32>
      %77 = vector.shape_cast %76 : vector<2xf32> to vector<2x1xf32>
      %78 = vector.broadcast %77 : vector<2x1xf32> to vector<2x8xf32>
      %79 = arith.subf %75, %78 : vector<2x8xf32>
      %80 = math.exp %79 : vector<2x8xf32>
      %cst_66 = arith.constant dense<0.000000e+00> : vector<2xf32>
      %81 = vector.multi_reduction <add>, %80, %cst_66 [1] : vector<2x8xf32> to vector<2xf32>
      %82 = vector.shape_cast %81 : vector<2xf32> to vector<2x1xf32>
      %83 = vector.broadcast %82 : vector<2x1xf32> to vector<2x8xf32>
      %84 = arith.divf %80, %83 : vector<2x8xf32>
      %85 = vector.shape_cast %84 : vector<2x8xf32> to vector<2x8x1xf32>
      %86 = vector.broadcast %85 : vector<2x8x1xf32> to vector<2x8x41xf32>
      %87 = arith.mulf %86, %13 : vector<2x8x41xf32>
      %cst_67 = arith.constant dense<0.000000e+00> : vector<2x41xf32>
      %88 = vector.multi_reduction <add>, %87, %cst_67 [1] : vector<2x8x41xf32> to vector<2x41xf32>
      %89 = arith.truncf %60 : vector<2x12xf32> to vector<2x12xbf16>
      %cst_68 = arith.constant dense<0.000000e+00> : vector<2x96xf32>
      %90 = tpu.matmul %89, %19, %cst_68 {dimension_numbers = #tpu.dot_dimension_numbers<[1], [0], [0], [1], [0, 0, 1, 1], [], []>} : vector<2x12xbf16>, vector<12x96xbf16>, vector<2x96xf32> -> vector<2x96xf32>
      %91 = arith.truncf %88 : vector<2x41xf32> to vector<2x41xbf16>
      %cst_69 = arith.constant dense<0.000000e+00> : vector<2x96xf32>
      %92 = tpu.matmul %91, %20, %cst_69 {dimension_numbers = #tpu.dot_dimension_numbers<[1], [0], [0], [1], [0, 0, 1, 1], [], []>} : vector<2x41xbf16>, vector<41x96xbf16>, vector<2x96xf32> -> vector<2x96xf32>
      %93 = arith.addf %90, %92 : vector<2x96xf32>
      %94 = vector.broadcast %24 : vector<1x96xf32> to vector<2x96xf32>
      %95 = arith.addf %93, %94 : vector<2x96xf32>
      %96 = vector.extract_strided_slice %95 {offsets = [0, 0], sizes = [2, 32], strides = [1, 1]} : vector<2x96xf32> to vector<2x32xf32>
      %97 = vector.extract_strided_slice %65 {offsets = [0, 0], sizes = [2, 32], strides = [1, 1]} : vector<2x96xf32> to vector<2x32xf32>
      %98 = arith.addf %96, %97 : vector<2x32xf32>
      %99 = arith.negf %98 : vector<2x32xf32>
      %100 = math.exp %99 : vector<2x32xf32>
      %cst_70 = arith.constant 1.000000e+00 : f32
      %101 = vector.broadcast %cst_70 : f32 to vector<2x32xf32>
      %102 = arith.addf %101, %100 : vector<2x32xf32>
      %103 = arith.divf %101, %102 : vector<2x32xf32>
      %104 = vector.extract_strided_slice %95 {offsets = [0, 32], sizes = [2, 32], strides = [1, 1]} : vector<2x96xf32> to vector<2x32xf32>
      %105 = vector.extract_strided_slice %65 {offsets = [0, 32], sizes = [2, 32], strides = [1, 1]} : vector<2x96xf32> to vector<2x32xf32>
      %106 = arith.addf %104, %105 : vector<2x32xf32>
      %107 = arith.negf %106 : vector<2x32xf32>
      %108 = math.exp %107 : vector<2x32xf32>
      %cst_71 = arith.constant 1.000000e+00 : f32
      %109 = vector.broadcast %cst_71 : f32 to vector<2x32xf32>
      %110 = arith.addf %109, %108 : vector<2x32xf32>
      %111 = arith.divf %109, %110 : vector<2x32xf32>
      %112 = vector.extract_strided_slice %95 {offsets = [0, 64], sizes = [2, 32], strides = [1, 1]} : vector<2x96xf32> to vector<2x32xf32>
      %113 = vector.extract_strided_slice %65 {offsets = [0, 64], sizes = [2, 32], strides = [1, 1]} : vector<2x96xf32> to vector<2x32xf32>
      %114 = arith.mulf %103, %113 : vector<2x32xf32>
      %115 = arith.addf %112, %114 : vector<2x32xf32>
      %116 = math.tanh %115 : vector<2x32xf32>
      %cst_72 = arith.constant 1.000000e+00 : f32
      %117 = vector.broadcast %cst_72 : f32 to vector<2x32xf32>
      %118 = arith.subf %117, %111 : vector<2x32xf32>
      %119 = arith.mulf %118, %116 : vector<2x32xf32>
      %120 = arith.mulf %111, %59 : vector<2x32xf32>
      %121 = arith.addf %119, %120 : vector<2x32xf32>
      %122 = arith.truncf %121 : vector<2x32xf32> to vector<2x32xbf16>
      %cst_73 = arith.constant dense<0.000000e+00> : vector<2x12xf32>
      %123 = tpu.matmul %122, %21, %cst_73 {dimension_numbers = #tpu.dot_dimension_numbers<[1], [0], [0], [1], [0, 0, 1, 1], [], []>} : vector<2x32xbf16>, vector<32x12xbf16>, vector<2x12xf32> -> vector<2x12xf32>
      %124 = vector.broadcast %25 : vector<1x12xf32> to vector<2x12xf32>
      %125 = arith.addf %123, %124 : vector<2x12xf32>
      %cst_74 = arith.constant dense<0xFF800000> : vector<2xf32>
      %126 = vector.multi_reduction <maximumf>, %125, %cst_74 [1] : vector<2x12xf32> to vector<2xf32>
      %127 = vector.shape_cast %126 : vector<2xf32> to vector<2x1xf32>
      %128 = vector.broadcast %127 : vector<2x1xf32> to vector<2x12xf32>
      %129 = arith.cmpf oeq, %125, %128 : vector<2x12xf32>
      %c12_i32 = arith.constant 12 : i32
      %130 = vector.broadcast %c12_i32 : i32 to vector<2x12xi32>
      %131 = arith.select %129, %2, %130 : vector<2x12xi1>, vector<2x12xi32>
      %cst_75 = arith.constant dense<2147483647> : vector<2xi32>
      %132 = vector.multi_reduction <minsi>, %131, %cst_75 [1] : vector<2x12xi32> to vector<2xi32>
      %133 = vector.shape_cast %132 : vector<2xi32> to vector<2x1xi32>
      %134 = vector.broadcast %c5_i32 : i32 to vector<2x8xi32>
      %135 = arith.cmpi eq, %26, %134 : vector<2x8xi32>
      %c0_76 = arith.constant 0 : index
      %c0_77 = arith.constant 0 : index
      %136 = vector.load %arg11[%c0_76, %c0_77] : memref<2x8xi32, #tpu.memory_space<vmem>>, vector<2x8xi32>
      %137 = vector.shape_cast %133 : vector<2x1xi32> to vector<2x1xi32>
      %138 = vector.broadcast %137 : vector<2x1xi32> to vector<2x8xi32>
      %139 = arith.select %135, %138, %136 : vector<2x8xi1>, vector<2x8xi32>
      %c0_78 = arith.constant 0 : index
      %c0_79 = arith.constant 0 : index
      %140 = vector.load %arg11[%c0_78, %c0_79] : memref<2x8xi32, #tpu.memory_space<vmem>>, vector<2x8xi32>
      tpu.vector_store %arg11[%c0_78, %c0_79], %139 {strides = array<i32>} : memref<2x8xi32, #tpu.memory_space<vmem>>, vector<2x8xi32>,
      %c0_i32_80 = arith.constant 0 : i32
      %141 = vector.broadcast %c0_i32_80 : i32 to vector<2x1xi32>
      %142 = arith.cmpi eq, %133, %141 : vector<2x1xi32>
      %cst_81 = arith.constant 0.000000e+00 : f32
      %cst_82 = arith.constant 1.000000e+00 : f32
      %143 = vector.broadcast %cst_81 : f32 to vector<2x1xf32>
      %144 = vector.broadcast %cst_82 : f32 to vector<2x1xf32>
      %145 = arith.select %142, %143, %144 : vector<2x1xi1>, vector<2x1xf32>
      %146 = vector.shape_cast %145 : vector<2x1xf32> to vector<1x2x1xf32>
      %cst_83 = arith.constant dense<0.000000e+00> : vector<1xf32>
      %147 = vector.multi_reduction <add>, %146, %cst_83 [1, 2] : vector<1x2x1xf32> to vector<1xf32>
      %148 = vector.shape_cast %147 : vector<1xf32> to vector<1x1x1xf32>
      %149 = vector.extract %148[0, 0, 0] : f32 from vector<1x1x1xf32>
      %cst_84 = arith.constant 0.000000e+00 : f32
      %150 = arith.cmpf oeq, %149, %cst_84 : f32
      %151 = arith.extui %150 : i1 to i32
      %c0_85 = arith.constant 0 : index
      %152 = memref.load %arg14[%c0_85] : memref<1xi32, #tpu.memory_space<smem>>
      memref.store %151, %arg14[%c0_85] : memref<1xi32, #tpu.memory_space<smem>>
      %c0_86 = arith.constant 0 : index
      %c0_87 = arith.constant 0 : index
      %153 = vector.load %arg12[%c0_86, %c0_87] : memref<2x32xf32, #tpu.memory_space<vmem>>, vector<2x32xf32>
      tpu.vector_store %arg12[%c0_86, %c0_87], %121 {strides = array<i32>} : memref<2x32xf32, #tpu.memory_space<vmem>>, vector<2x32xf32>,
      %154 = vector.broadcast %133 : vector<2x1xi32> to vector<2x12xi32>
      %155 = arith.cmpi eq, %2, %154 : vector<2x12xi32>
      %cst_88 = arith.constant 1.000000e+00 : f32
      %cst_89 = arith.constant 0.000000e+00 : f32
      %156 = vector.broadcast %cst_88 : f32 to vector<2x12xf32>
      %157 = vector.broadcast %cst_89 : f32 to vector<2x12xf32>
      %158 = arith.select %155, %156, %157 : vector<2x12xi1>, vector<2x12xf32>
      %c0_90 = arith.constant 0 : index
      %c0_91 = arith.constant 0 : index
      %159 = vector.load %arg13[%c0_90, %c0_91] : memref<2x12xf32, #tpu.memory_space<vmem>>, vector<2x12xf32>
      tpu.vector_store %arg13[%c0_90, %c0_91], %158 {strides = array<i32>} : memref<2x12xf32, #tpu.memory_space<vmem>>, vector<2x12xf32>,
    } else {
    }
    %c6_i32 = arith.constant 6 : i32
    %c0_53 = arith.constant 0 : index
    %51 = memref.load %arg14[%c0_53] : memref<1xi32, #tpu.memory_space<smem>>
    %c0_i32_54 = arith.constant 0 : i32
    %52 = arith.cmpi eq, %51, %c0_i32_54 : i32
    %53 = arith.extui %52 : i1 to i32
    %c0_i32_55 = arith.constant 0 : i32
    %54 = arith.cmpi ne, %53, %c0_i32_55 : i32
    scf.if %54 {
      %c0_59 = arith.constant 0 : index
      %c0_60 = arith.constant 0 : index
      %59 = vector.load %arg12[%c0_59, %c0_60] : memref<2x32xf32, #tpu.memory_space<vmem>>, vector<2x32xf32>
      %c0_61 = arith.constant 0 : index
      %c0_62 = arith.constant 0 : index
      %60 = vector.load %arg13[%c0_61, %c0_62] : memref<2x12xf32, #tpu.memory_space<vmem>>, vector<2x12xf32>
      %61 = arith.truncf %59 : vector<2x32xf32> to vector<2x32xbf16>
      %cst_63 = arith.constant dense<0.000000e+00> : vector<2x128xf32>
      %62 = tpu.matmul %61, %18, %cst_63 {dimension_numbers = #tpu.dot_dimension_numbers<[1], [0], [0], [1], [0, 0, 1, 1], [], []>} : vector<2x32xbf16>, vector<32x128xbf16>, vector<2x128xf32> -> vector<2x128xf32>
      %63 = vector.extract_strided_slice %62 {offsets = [0, 0], sizes = [2, 96], strides = [1, 1]} : vector<2x128xf32> to vector<2x96xf32>
      %64 = vector.broadcast %22 : vector<1x96xf32> to vector<2x96xf32>
      %65 = arith.addf %63, %64 : vector<2x96xf32>
      %66 = vector.extract_strided_slice %62 {offsets = [0, 96], sizes = [2, 32], strides = [1, 1]} : vector<2x128xf32> to vector<2x32xf32>
      %67 = vector.broadcast %23 : vector<1x32xf32> to vector<2x32xf32>
      %68 = arith.addf %66, %67 : vector<2x32xf32>
      %69 = vector.shape_cast %68 : vector<2x32xf32> to vector<2x1x32xf32>
      %70 = vector.broadcast %69 : vector<2x1x32xf32> to vector<2x8x32xf32>
      %71 = arith.addf %15, %70 : vector<2x8x32xf32>
      %72 = math.tanh %71 : vector<2x8x32xf32>
      %73 = vector.broadcast %17 : vector<1x1x32xf32> to vector<2x8x32xf32>
      %74 = arith.mulf %72, %73 : vector<2x8x32xf32>
      %cst_64 = arith.constant dense<0.000000e+00> : vector<2x8xf32>
      %75 = vector.multi_reduction <add>, %74, %cst_64 [2] : vector<2x8x32xf32> to vector<2x8xf32>
      %cst_65 = arith.constant dense<0xFF800000> : vector<2xf32>
      %76 = vector.multi_reduction <maximumf>, %75, %cst_65 [1] : vector<2x8xf32> to vector<2xf32>
      %77 = vector.shape_cast %76 : vector<2xf32> to vector<2x1xf32>
      %78 = vector.broadcast %77 : vector<2x1xf32> to vector<2x8xf32>
      %79 = arith.subf %75, %78 : vector<2x8xf32>
      %80 = math.exp %79 : vector<2x8xf32>
      %cst_66 = arith.constant dense<0.000000e+00> : vector<2xf32>
      %81 = vector.multi_reduction <add>, %80, %cst_66 [1] : vector<2x8xf32> to vector<2xf32>
      %82 = vector.shape_cast %81 : vector<2xf32> to vector<2x1xf32>
      %83 = vector.broadcast %82 : vector<2x1xf32> to vector<2x8xf32>
      %84 = arith.divf %80, %83 : vector<2x8xf32>
      %85 = vector.shape_cast %84 : vector<2x8xf32> to vector<2x8x1xf32>
      %86 = vector.broadcast %85 : vector<2x8x1xf32> to vector<2x8x41xf32>
      %87 = arith.mulf %86, %13 : vector<2x8x41xf32>
      %cst_67 = arith.constant dense<0.000000e+00> : vector<2x41xf32>
      %88 = vector.multi_reduction <add>, %87, %cst_67 [1] : vector<2x8x41xf32> to vector<2x41xf32>
      %89 = arith.truncf %60 : vector<2x12xf32> to vector<2x12xbf16>
      %cst_68 = arith.constant dense<0.000000e+00> : vector<2x96xf32>
      %90 = tpu.matmul %89, %19, %cst_68 {dimension_numbers = #tpu.dot_dimension_numbers<[1], [0], [0], [1], [0, 0, 1, 1], [], []>} : vector<2x12xbf16>, vector<12x96xbf16>, vector<2x96xf32> -> vector<2x96xf32>
      %91 = arith.truncf %88 : vector<2x41xf32> to vector<2x41xbf16>
      %cst_69 = arith.constant dense<0.000000e+00> : vector<2x96xf32>
      %92 = tpu.matmul %91, %20, %cst_69 {dimension_numbers = #tpu.dot_dimension_numbers<[1], [0], [0], [1], [0, 0, 1, 1], [], []>} : vector<2x41xbf16>, vector<41x96xbf16>, vector<2x96xf32> -> vector<2x96xf32>
      %93 = arith.addf %90, %92 : vector<2x96xf32>
      %94 = vector.broadcast %24 : vector<1x96xf32> to vector<2x96xf32>
      %95 = arith.addf %93, %94 : vector<2x96xf32>
      %96 = vector.extract_strided_slice %95 {offsets = [0, 0], sizes = [2, 32], strides = [1, 1]} : vector<2x96xf32> to vector<2x32xf32>
      %97 = vector.extract_strided_slice %65 {offsets = [0, 0], sizes = [2, 32], strides = [1, 1]} : vector<2x96xf32> to vector<2x32xf32>
      %98 = arith.addf %96, %97 : vector<2x32xf32>
      %99 = arith.negf %98 : vector<2x32xf32>
      %100 = math.exp %99 : vector<2x32xf32>
      %cst_70 = arith.constant 1.000000e+00 : f32
      %101 = vector.broadcast %cst_70 : f32 to vector<2x32xf32>
      %102 = arith.addf %101, %100 : vector<2x32xf32>
      %103 = arith.divf %101, %102 : vector<2x32xf32>
      %104 = vector.extract_strided_slice %95 {offsets = [0, 32], sizes = [2, 32], strides = [1, 1]} : vector<2x96xf32> to vector<2x32xf32>
      %105 = vector.extract_strided_slice %65 {offsets = [0, 32], sizes = [2, 32], strides = [1, 1]} : vector<2x96xf32> to vector<2x32xf32>
      %106 = arith.addf %104, %105 : vector<2x32xf32>
      %107 = arith.negf %106 : vector<2x32xf32>
      %108 = math.exp %107 : vector<2x32xf32>
      %cst_71 = arith.constant 1.000000e+00 : f32
      %109 = vector.broadcast %cst_71 : f32 to vector<2x32xf32>
      %110 = arith.addf %109, %108 : vector<2x32xf32>
      %111 = arith.divf %109, %110 : vector<2x32xf32>
      %112 = vector.extract_strided_slice %95 {offsets = [0, 64], sizes = [2, 32], strides = [1, 1]} : vector<2x96xf32> to vector<2x32xf32>
      %113 = vector.extract_strided_slice %65 {offsets = [0, 64], sizes = [2, 32], strides = [1, 1]} : vector<2x96xf32> to vector<2x32xf32>
      %114 = arith.mulf %103, %113 : vector<2x32xf32>
      %115 = arith.addf %112, %114 : vector<2x32xf32>
      %116 = math.tanh %115 : vector<2x32xf32>
      %cst_72 = arith.constant 1.000000e+00 : f32
      %117 = vector.broadcast %cst_72 : f32 to vector<2x32xf32>
      %118 = arith.subf %117, %111 : vector<2x32xf32>
      %119 = arith.mulf %118, %116 : vector<2x32xf32>
      %120 = arith.mulf %111, %59 : vector<2x32xf32>
      %121 = arith.addf %119, %120 : vector<2x32xf32>
      %122 = arith.truncf %121 : vector<2x32xf32> to vector<2x32xbf16>
      %cst_73 = arith.constant dense<0.000000e+00> : vector<2x12xf32>
      %123 = tpu.matmul %122, %21, %cst_73 {dimension_numbers = #tpu.dot_dimension_numbers<[1], [0], [0], [1], [0, 0, 1, 1], [], []>} : vector<2x32xbf16>, vector<32x12xbf16>, vector<2x12xf32> -> vector<2x12xf32>
      %124 = vector.broadcast %25 : vector<1x12xf32> to vector<2x12xf32>
      %125 = arith.addf %123, %124 : vector<2x12xf32>
      %cst_74 = arith.constant dense<0xFF800000> : vector<2xf32>
      %126 = vector.multi_reduction <maximumf>, %125, %cst_74 [1] : vector<2x12xf32> to vector<2xf32>
      %127 = vector.shape_cast %126 : vector<2xf32> to vector<2x1xf32>
      %128 = vector.broadcast %127 : vector<2x1xf32> to vector<2x12xf32>
      %129 = arith.cmpf oeq, %125, %128 : vector<2x12xf32>
      %c12_i32 = arith.constant 12 : i32
      %130 = vector.broadcast %c12_i32 : i32 to vector<2x12xi32>
      %131 = arith.select %129, %2, %130 : vector<2x12xi1>, vector<2x12xi32>
      %cst_75 = arith.constant dense<2147483647> : vector<2xi32>
      %132 = vector.multi_reduction <minsi>, %131, %cst_75 [1] : vector<2x12xi32> to vector<2xi32>
      %133 = vector.shape_cast %132 : vector<2xi32> to vector<2x1xi32>
      %134 = vector.broadcast %c6_i32 : i32 to vector<2x8xi32>
      %135 = arith.cmpi eq, %26, %134 : vector<2x8xi32>
      %c0_76 = arith.constant 0 : index
      %c0_77 = arith.constant 0 : index
      %136 = vector.load %arg11[%c0_76, %c0_77] : memref<2x8xi32, #tpu.memory_space<vmem>>, vector<2x8xi32>
      %137 = vector.shape_cast %133 : vector<2x1xi32> to vector<2x1xi32>
      %138 = vector.broadcast %137 : vector<2x1xi32> to vector<2x8xi32>
      %139 = arith.select %135, %138, %136 : vector<2x8xi1>, vector<2x8xi32>
      %c0_78 = arith.constant 0 : index
      %c0_79 = arith.constant 0 : index
      %140 = vector.load %arg11[%c0_78, %c0_79] : memref<2x8xi32, #tpu.memory_space<vmem>>, vector<2x8xi32>
      tpu.vector_store %arg11[%c0_78, %c0_79], %139 {strides = array<i32>} : memref<2x8xi32, #tpu.memory_space<vmem>>, vector<2x8xi32>,
      %c0_i32_80 = arith.constant 0 : i32
      %141 = vector.broadcast %c0_i32_80 : i32 to vector<2x1xi32>
      %142 = arith.cmpi eq, %133, %141 : vector<2x1xi32>
      %cst_81 = arith.constant 0.000000e+00 : f32
      %cst_82 = arith.constant 1.000000e+00 : f32
      %143 = vector.broadcast %cst_81 : f32 to vector<2x1xf32>
      %144 = vector.broadcast %cst_82 : f32 to vector<2x1xf32>
      %145 = arith.select %142, %143, %144 : vector<2x1xi1>, vector<2x1xf32>
      %146 = vector.shape_cast %145 : vector<2x1xf32> to vector<1x2x1xf32>
      %cst_83 = arith.constant dense<0.000000e+00> : vector<1xf32>
      %147 = vector.multi_reduction <add>, %146, %cst_83 [1, 2] : vector<1x2x1xf32> to vector<1xf32>
      %148 = vector.shape_cast %147 : vector<1xf32> to vector<1x1x1xf32>
      %149 = vector.extract %148[0, 0, 0] : f32 from vector<1x1x1xf32>
      %cst_84 = arith.constant 0.000000e+00 : f32
      %150 = arith.cmpf oeq, %149, %cst_84 : f32
      %151 = arith.extui %150 : i1 to i32
      %c0_85 = arith.constant 0 : index
      %152 = memref.load %arg14[%c0_85] : memref<1xi32, #tpu.memory_space<smem>>
      memref.store %151, %arg14[%c0_85] : memref<1xi32, #tpu.memory_space<smem>>
      %c0_86 = arith.constant 0 : index
      %c0_87 = arith.constant 0 : index
      %153 = vector.load %arg12[%c0_86, %c0_87] : memref<2x32xf32, #tpu.memory_space<vmem>>, vector<2x32xf32>
      tpu.vector_store %arg12[%c0_86, %c0_87], %121 {strides = array<i32>} : memref<2x32xf32, #tpu.memory_space<vmem>>, vector<2x32xf32>,
      %154 = vector.broadcast %133 : vector<2x1xi32> to vector<2x12xi32>
      %155 = arith.cmpi eq, %2, %154 : vector<2x12xi32>
      %cst_88 = arith.constant 1.000000e+00 : f32
      %cst_89 = arith.constant 0.000000e+00 : f32
      %156 = vector.broadcast %cst_88 : f32 to vector<2x12xf32>
      %157 = vector.broadcast %cst_89 : f32 to vector<2x12xf32>
      %158 = arith.select %155, %156, %157 : vector<2x12xi1>, vector<2x12xf32>
      %c0_90 = arith.constant 0 : index
      %c0_91 = arith.constant 0 : index
      %159 = vector.load %arg13[%c0_90, %c0_91] : memref<2x12xf32, #tpu.memory_space<vmem>>, vector<2x12xf32>
      tpu.vector_store %arg13[%c0_90, %c0_91], %158 {strides = array<i32>} : memref<2x12xf32, #tpu.memory_space<vmem>>, vector<2x12xf32>,
    } else {
    }
    %c7_i32 = arith.constant 7 : i32
    %c0_56 = arith.constant 0 : index
    %55 = memref.load %arg14[%c0_56] : memref<1xi32, #tpu.memory_space<smem>>
    %c0_i32_57 = arith.constant 0 : i32
    %56 = arith.cmpi eq, %55, %c0_i32_57 : i32
    %57 = arith.extui %56 : i1 to i32
    %c0_i32_58 = arith.constant 0 : i32
    %58 = arith.cmpi ne, %57, %c0_i32_58 : i32
    scf.if %58 {
      %c0_59 = arith.constant 0 : index
      %c0_60 = arith.constant 0 : index
      %59 = vector.load %arg12[%c0_59, %c0_60] : memref<2x32xf32, #tpu.memory_space<vmem>>, vector<2x32xf32>
      %c0_61 = arith.constant 0 : index
      %c0_62 = arith.constant 0 : index
      %60 = vector.load %arg13[%c0_61, %c0_62] : memref<2x12xf32, #tpu.memory_space<vmem>>, vector<2x12xf32>
      %61 = arith.truncf %59 : vector<2x32xf32> to vector<2x32xbf16>
      %cst_63 = arith.constant dense<0.000000e+00> : vector<2x128xf32>
      %62 = tpu.matmul %61, %18, %cst_63 {dimension_numbers = #tpu.dot_dimension_numbers<[1], [0], [0], [1], [0, 0, 1, 1], [], []>} : vector<2x32xbf16>, vector<32x128xbf16>, vector<2x128xf32> -> vector<2x128xf32>
      %63 = vector.extract_strided_slice %62 {offsets = [0, 0], sizes = [2, 96], strides = [1, 1]} : vector<2x128xf32> to vector<2x96xf32>
      %64 = vector.broadcast %22 : vector<1x96xf32> to vector<2x96xf32>
      %65 = arith.addf %63, %64 : vector<2x96xf32>
      %66 = vector.extract_strided_slice %62 {offsets = [0, 96], sizes = [2, 32], strides = [1, 1]} : vector<2x128xf32> to vector<2x32xf32>
      %67 = vector.broadcast %23 : vector<1x32xf32> to vector<2x32xf32>
      %68 = arith.addf %66, %67 : vector<2x32xf32>
      %69 = vector.shape_cast %68 : vector<2x32xf32> to vector<2x1x32xf32>
      %70 = vector.broadcast %69 : vector<2x1x32xf32> to vector<2x8x32xf32>
      %71 = arith.addf %15, %70 : vector<2x8x32xf32>
      %72 = math.tanh %71 : vector<2x8x32xf32>
      %73 = vector.broadcast %17 : vector<1x1x32xf32> to vector<2x8x32xf32>
      %74 = arith.mulf %72, %73 : vector<2x8x32xf32>
      %cst_64 = arith.constant dense<0.000000e+00> : vector<2x8xf32>
      %75 = vector.multi_reduction <add>, %74, %cst_64 [2] : vector<2x8x32xf32> to vector<2x8xf32>
      %cst_65 = arith.constant dense<0xFF800000> : vector<2xf32>
      %76 = vector.multi_reduction <maximumf>, %75, %cst_65 [1] : vector<2x8xf32> to vector<2xf32>
      %77 = vector.shape_cast %76 : vector<2xf32> to vector<2x1xf32>
      %78 = vector.broadcast %77 : vector<2x1xf32> to vector<2x8xf32>
      %79 = arith.subf %75, %78 : vector<2x8xf32>
      %80 = math.exp %79 : vector<2x8xf32>
      %cst_66 = arith.constant dense<0.000000e+00> : vector<2xf32>
      %81 = vector.multi_reduction <add>, %80, %cst_66 [1] : vector<2x8xf32> to vector<2xf32>
      %82 = vector.shape_cast %81 : vector<2xf32> to vector<2x1xf32>
      %83 = vector.broadcast %82 : vector<2x1xf32> to vector<2x8xf32>
      %84 = arith.divf %80, %83 : vector<2x8xf32>
      %85 = vector.shape_cast %84 : vector<2x8xf32> to vector<2x8x1xf32>
      %86 = vector.broadcast %85 : vector<2x8x1xf32> to vector<2x8x41xf32>
      %87 = arith.mulf %86, %13 : vector<2x8x41xf32>
      %cst_67 = arith.constant dense<0.000000e+00> : vector<2x41xf32>
      %88 = vector.multi_reduction <add>, %87, %cst_67 [1] : vector<2x8x41xf32> to vector<2x41xf32>
      %89 = arith.truncf %60 : vector<2x12xf32> to vector<2x12xbf16>
      %cst_68 = arith.constant dense<0.000000e+00> : vector<2x96xf32>
      %90 = tpu.matmul %89, %19, %cst_68 {dimension_numbers = #tpu.dot_dimension_numbers<[1], [0], [0], [1], [0, 0, 1, 1], [], []>} : vector<2x12xbf16>, vector<12x96xbf16>, vector<2x96xf32> -> vector<2x96xf32>
      %91 = arith.truncf %88 : vector<2x41xf32> to vector<2x41xbf16>
      %cst_69 = arith.constant dense<0.000000e+00> : vector<2x96xf32>
      %92 = tpu.matmul %91, %20, %cst_69 {dimension_numbers = #tpu.dot_dimension_numbers<[1], [0], [0], [1], [0, 0, 1, 1], [], []>} : vector<2x41xbf16>, vector<41x96xbf16>, vector<2x96xf32> -> vector<2x96xf32>
      %93 = arith.addf %90, %92 : vector<2x96xf32>
      %94 = vector.broadcast %24 : vector<1x96xf32> to vector<2x96xf32>
      %95 = arith.addf %93, %94 : vector<2x96xf32>
      %96 = vector.extract_strided_slice %95 {offsets = [0, 0], sizes = [2, 32], strides = [1, 1]} : vector<2x96xf32> to vector<2x32xf32>
      %97 = vector.extract_strided_slice %65 {offsets = [0, 0], sizes = [2, 32], strides = [1, 1]} : vector<2x96xf32> to vector<2x32xf32>
      %98 = arith.addf %96, %97 : vector<2x32xf32>
      %99 = arith.negf %98 : vector<2x32xf32>
      %100 = math.exp %99 : vector<2x32xf32>
      %cst_70 = arith.constant 1.000000e+00 : f32
      %101 = vector.broadcast %cst_70 : f32 to vector<2x32xf32>
      %102 = arith.addf %101, %100 : vector<2x32xf32>
      %103 = arith.divf %101, %102 : vector<2x32xf32>
      %104 = vector.extract_strided_slice %95 {offsets = [0, 32], sizes = [2, 32], strides = [1, 1]} : vector<2x96xf32> to vector<2x32xf32>
      %105 = vector.extract_strided_slice %65 {offsets = [0, 32], sizes = [2, 32], strides = [1, 1]} : vector<2x96xf32> to vector<2x32xf32>
      %106 = arith.addf %104, %105 : vector<2x32xf32>
      %107 = arith.negf %106 : vector<2x32xf32>
      %108 = math.exp %107 : vector<2x32xf32>
      %cst_71 = arith.constant 1.000000e+00 : f32
      %109 = vector.broadcast %cst_71 : f32 to vector<2x32xf32>
      %110 = arith.addf %109, %108 : vector<2x32xf32>
      %111 = arith.divf %109, %110 : vector<2x32xf32>
      %112 = vector.extract_strided_slice %95 {offsets = [0, 64], sizes = [2, 32], strides = [1, 1]} : vector<2x96xf32> to vector<2x32xf32>
      %113 = vector.extract_strided_slice %65 {offsets = [0, 64], sizes = [2, 32], strides = [1, 1]} : vector<2x96xf32> to vector<2x32xf32>
      %114 = arith.mulf %103, %113 : vector<2x32xf32>
      %115 = arith.addf %112, %114 : vector<2x32xf32>
      %116 = math.tanh %115 : vector<2x32xf32>
      %cst_72 = arith.constant 1.000000e+00 : f32
      %117 = vector.broadcast %cst_72 : f32 to vector<2x32xf32>
      %118 = arith.subf %117, %111 : vector<2x32xf32>
      %119 = arith.mulf %118, %116 : vector<2x32xf32>
      %120 = arith.mulf %111, %59 : vector<2x32xf32>
      %121 = arith.addf %119, %120 : vector<2x32xf32>
      %122 = arith.truncf %121 : vector<2x32xf32> to vector<2x32xbf16>
      %cst_73 = arith.constant dense<0.000000e+00> : vector<2x12xf32>
      %123 = tpu.matmul %122, %21, %cst_73 {dimension_numbers = #tpu.dot_dimension_numbers<[1], [0], [0], [1], [0, 0, 1, 1], [], []>} : vector<2x32xbf16>, vector<32x12xbf16>, vector<2x12xf32> -> vector<2x12xf32>
      %124 = vector.broadcast %25 : vector<1x12xf32> to vector<2x12xf32>
      %125 = arith.addf %123, %124 : vector<2x12xf32>
      %cst_74 = arith.constant dense<0xFF800000> : vector<2xf32>
      %126 = vector.multi_reduction <maximumf>, %125, %cst_74 [1] : vector<2x12xf32> to vector<2xf32>
      %127 = vector.shape_cast %126 : vector<2xf32> to vector<2x1xf32>
      %128 = vector.broadcast %127 : vector<2x1xf32> to vector<2x12xf32>
      %129 = arith.cmpf oeq, %125, %128 : vector<2x12xf32>
      %c12_i32 = arith.constant 12 : i32
      %130 = vector.broadcast %c12_i32 : i32 to vector<2x12xi32>
      %131 = arith.select %129, %2, %130 : vector<2x12xi1>, vector<2x12xi32>
      %cst_75 = arith.constant dense<2147483647> : vector<2xi32>
      %132 = vector.multi_reduction <minsi>, %131, %cst_75 [1] : vector<2x12xi32> to vector<2xi32>
      %133 = vector.shape_cast %132 : vector<2xi32> to vector<2x1xi32>
      %134 = vector.broadcast %c7_i32 : i32 to vector<2x8xi32>
      %135 = arith.cmpi eq, %26, %134 : vector<2x8xi32>
      %c0_76 = arith.constant 0 : index
      %c0_77 = arith.constant 0 : index
      %136 = vector.load %arg11[%c0_76, %c0_77] : memref<2x8xi32, #tpu.memory_space<vmem>>, vector<2x8xi32>
      %137 = vector.shape_cast %133 : vector<2x1xi32> to vector<2x1xi32>
      %138 = vector.broadcast %137 : vector<2x1xi32> to vector<2x8xi32>
      %139 = arith.select %135, %138, %136 : vector<2x8xi1>, vector<2x8xi32>
      %c0_78 = arith.constant 0 : index
      %c0_79 = arith.constant 0 : index
      %140 = vector.load %arg11[%c0_78, %c0_79] : memref<2x8xi32, #tpu.memory_space<vmem>>, vector<2x8xi32>
      tpu.vector_store %arg11[%c0_78, %c0_79], %139 {strides = array<i32>} : memref<2x8xi32, #tpu.memory_space<vmem>>, vector<2x8xi32>,
      %c0_i32_80 = arith.constant 0 : i32
      %141 = vector.broadcast %c0_i32_80 : i32 to vector<2x1xi32>
      %142 = arith.cmpi eq, %133, %141 : vector<2x1xi32>
      %cst_81 = arith.constant 0.000000e+00 : f32
      %cst_82 = arith.constant 1.000000e+00 : f32
      %143 = vector.broadcast %cst_81 : f32 to vector<2x1xf32>
      %144 = vector.broadcast %cst_82 : f32 to vector<2x1xf32>
      %145 = arith.select %142, %143, %144 : vector<2x1xi1>, vector<2x1xf32>
      %146 = vector.shape_cast %145 : vector<2x1xf32> to vector<1x2x1xf32>
      %cst_83 = arith.constant dense<0.000000e+00> : vector<1xf32>
      %147 = vector.multi_reduction <add>, %146, %cst_83 [1, 2] : vector<1x2x1xf32> to vector<1xf32>
      %148 = vector.shape_cast %147 : vector<1xf32> to vector<1x1x1xf32>
      %149 = vector.extract %148[0, 0, 0] : f32 from vector<1x1x1xf32>
      %cst_84 = arith.constant 0.000000e+00 : f32
      %150 = arith.cmpf oeq, %149, %cst_84 : f32
      %151 = arith.extui %150 : i1 to i32
      %c0_85 = arith.constant 0 : index
      %152 = memref.load %arg14[%c0_85] : memref<1xi32, #tpu.memory_space<smem>>
      memref.store %151, %arg14[%c0_85] : memref<1xi32, #tpu.memory_space<smem>>
      %c0_86 = arith.constant 0 : index
      %c0_87 = arith.constant 0 : index
      %153 = vector.load %arg12[%c0_86, %c0_87] : memref<2x32xf32, #tpu.memory_space<vmem>>, vector<2x32xf32>
      tpu.vector_store %arg12[%c0_86, %c0_87], %121 {strides = array<i32>} : memref<2x32xf32, #tpu.memory_space<vmem>>, vector<2x32xf32>,
      %154 = vector.broadcast %133 : vector<2x1xi32> to vector<2x12xi32>
      %155 = arith.cmpi eq, %2, %154 : vector<2x12xi32>
      %cst_88 = arith.constant 1.000000e+00 : f32
      %cst_89 = arith.constant 0.000000e+00 : f32
      %156 = vector.broadcast %cst_88 : f32 to vector<2x12xf32>
      %157 = vector.broadcast %cst_89 : f32 to vector<2x12xf32>
      %158 = arith.select %155, %156, %157 : vector<2x12xi1>, vector<2x12xf32>
      %c0_90 = arith.constant 0 : index
      %c0_91 = arith.constant 0 : index
      %159 = vector.load %arg13[%c0_90, %c0_91] : memref<2x12xf32, #tpu.memory_space<vmem>>, vector<2x12xf32>
      tpu.vector_store %arg13[%c0_90, %c0_91], %158 {strides = array<i32>} : memref<2x12xf32, #tpu.memory_space<vmem>>, vector<2x12xf32>,
    } else {
    }
    %c8_i32 = arith.constant 8 : i32
    return
  }
}

</mosaic_0001>

<llo_original>
// kernel: attention_decoder_forward.11
$region0: #{attention_decoder_forward.11}
  #allocation0 [shape = 'u32[]', space=smem, size = 0x4, offset = 0x4, fixed_abs, tag = 'smem constant byte address 0x4 - core index']
  #allocation1 [shape = 'u32[144,128]{1,0:T(1,128)}', space=vmem, size = 0x12000, scoped, tag = 'internal scratch']
  %s0 = inlined_call_operand.vmem [shape: bf16[512,36], index: 0, kind: input, shape index: {}]
  %s1 = inlined_call_operand.vmem [shape: bf16[36,32], index: 1, kind: input, shape index: {}]
  %s2 = inlined_call_operand.vmem [shape: f32[1,32], index: 2, kind: input, shape index: {}]
  %s3 = inlined_call_operand.vmem [shape: f32[1,32], index: 3, kind: input, shape index: {}]
  %s4 = inlined_call_operand.vmem [shape: bf16[512,32], index: 4, kind: output, shape index: {}]
  %s5 = sld [smem:[#allocation0]]
  $region26: #{attention_decoder_forward.11} parent=0
    _
  %s7 = ssub.s32 1, %s5
  %s8 = scalar_select 0, %s7, %s5
  // Predicated region
  $region2: #{attention_decoder_forward.11} parent=0 // pred_check
    _
  $region3: #{attention_decoder_forward.11} parent=0 // pred_check_branch
    %10 = sbr.rel (0) target = $region5
  $region4: #{attention_decoder_forward.11} parent=0 // pred_region
    _
  $region5: #{attention_decoder_forward.11} parent=0 // pred_fallthru
    _
  // Predicated region
  $region6: #{attention_decoder_forward.11} parent=0 // pred_check
    _
  $region7: #{attention_decoder_forward.11} parent=0 // pred_check_branch
    %12 = sbr.rel (0) target = $region9
  $region8: #{attention_decoder_forward.11} parent=0 // pred_region
    _
  $region9: #{attention_decoder_forward.11} parent=0 // pred_fallthru
    _
  // Predicated region
  $region10: #{attention_decoder_forward.11} parent=0 // pred_check
    _
  $region11: #{attention_decoder_forward.11} parent=0 // pred_check_branch
    %14 = sbr.rel (0) target = $region13
  $region12: #{attention_decoder_forward.11} parent=0 // pred_region
    _
  $region13: #{attention_decoder_forward.11} parent=0 // pred_fallthru
    _
  // Predicated region
  $region14: #{attention_decoder_forward.11} parent=0 // pred_check
    _
  $region15: #{attention_decoder_forward.11} parent=0 // pred_check_branch
    %16 = sbr.rel (0) target = $region17
  $region16: #{attention_decoder_forward.11} parent=0 // pred_region
    _
  $region17: #{attention_decoder_forward.11} parent=0 // pred_fallthru
    _
  %v18 = vld [vmem:[%s0] sm:$0xf]
  %v19 = vld [vmem:[%s0 + $0x4] sm:$0xf]
  %v20 = vld [vmem:[%s0 + $0x8] sm:$0xf]
  %v21 = vld [vmem:[%s0 + $0xc] sm:$0xf]
  %v22 = vld [vmem:[%s0 + $0x10] sm:$0xf]
  %v23 = vld [vmem:[%s0 + $0x14] sm:$0xf]
  %v24 = vld [vmem:[%s0 + $0x18] sm:$0xf]
  %v25 = vld [vmem:[%s0 + $0x1c] sm:$0xf]
  %v26 = vld [vmem:[%s0 + $0x20] sm:$0xf]
  %v27 = vld [vmem:[%s0 + $0x24] sm:$0xf]
  %v28 = vld [vmem:[%s0 + $0x28] sm:$0xf]
  %v29 = vld [vmem:[%s0 + $0x2c] sm:$0xf]
  %v30 = vld [vmem:[%s0 + $0x30] sm:$0xf]
  %v31 = vld [vmem:[%s0 + $0x34] sm:$0xf]
  %v32 = vld [vmem:[%s0 + $0x38] sm:$0xf]
  %v33 = vld [vmem:[%s0 + $0x3c] sm:$0xf]
  %v34 = vld [vmem:[%s0 + $0x40] sm:$0xf]
  %v35 = vld [vmem:[%s0 + $0x44] sm:$0xf]
  %v36 = vld [vmem:[%s0 + $0x48] sm:$0xf]
  %v37 = vld [vmem:[%s0 + $0x4c] sm:$0xf]
  %v38 = vld [vmem:[%s0 + $0x50] sm:$0xf]
  %v39 = vld [vmem:[%s0 + $0x54] sm:$0xf]
  %v40 = vld [vmem:[%s0 + $0x58] sm:$0xf]
  %v41 = vld [vmem:[%s0 + $0x5c] sm:$0xf]
  %v42 = vld [vmem:[%s0 + $0x60] sm:$0xf]
  %v43 = vld [vmem:[%s0 + $0x64] sm:$0xf]
  %v44 = vld [vmem:[%s0 + $0x68] sm:$0xf]
  %v45 = vld [vmem:[%s0 + $0x6c] sm:$0xf]
  %v46 = vld [vmem:[%s0 + $0x70] sm:$0xf]
  %v47 = vld [vmem:[%s0 + $0x74] sm:$0xf]
  %v48 = vld [vmem:[%s0 + $0x78] sm:$0xf]
  %v49 = vld [vmem:[%s0 + $0x7c] sm:$0xf]
  %v50 = vld [vmem:[%s0 + $0x80] sm:$0xf]
  %v51 = vld [vmem:[%s0 + $0x84] sm:$0xf]
  %v52 = vld [vmem:[%s0 + $0x88] sm:$0xf]
  %v53 = vld [vmem:[%s0 + $0x8c] sm:$0xf]
  %v54 = vld [vmem:[%s0 + $0x90] sm:$0xf]
  %v55 = vld [vmem:[%s0 + $0x94] sm:$0xf]
  %v56 = vld [vmem:[%s0 + $0x98] sm:$0xf]
  %v57 = vld [vmem:[%s0 + $0x9c] sm:$0xf]
  %v58 = vld [vmem:[%s0 + $0xa0] sm:$0xf]
  %v59 = vld [vmem:[%s0 + $0xa4] sm:$0xf]
  %v60 = vld [vmem:[%s0 + $0xa8] sm:$0xf]
  %v61 = vld [vmem:[%s0 + $0xac] sm:$0xf]
  %v62 = vld [vmem:[%s0 + $0xb0] sm:$0xf]
  %v63 = vld [vmem:[%s0 + $0xb4] sm:$0xf]
  %v64 = vld [vmem:[%s0 + $0xb8] sm:$0xf]
  %v65 = vld [vmem:[%s0 + $0xbc] sm:$0xf]
  %v66 = vld [vmem:[%s0 + $0xc0] sm:$0xf]
  %v67 = vld [vmem:[%s0 + $0xc4] sm:$0xf]
  %v68 = vld [vmem:[%s0 + $0xc8] sm:$0xf]
  %v69 = vld [vmem:[%s0 + $0xcc] sm:$0xf]
  %v70 = vld [vmem:[%s0 + $0xd0] sm:$0xf]
  %v71 = vld [vmem:[%s0 + $0xd4] sm:$0xf]
  %v72 = vld [vmem:[%s0 + $0xd8] sm:$0xf]
  %v73 = vld [vmem:[%s0 + $0xdc] sm:$0xf]
  %v74 = vld [vmem:[%s0 + $0xe0] sm:$0xf]
  %v75 = vld [vmem:[%s0 + $0xe4] sm:$0xf]
  %v76 = vld [vmem:[%s0 + $0xe8] sm:$0xf]
  %v77 = vld [vmem:[%s0 + $0xec] sm:$0xf]
  %v78 = vld [vmem:[%s0 + $0xf0] sm:$0xf]
  %v79 = vld [vmem:[%s0 + $0xf4] sm:$0xf]
  %v80 = vld [vmem:[%s0 + $0xf8] sm:$0xf]
  %v81 = vld [vmem:[%s0 + $0xfc] sm:$0xf]
  %v82 = vld [vmem:[%s1] sm:$0xf]
  %v83 = vld [vmem:[%s1 + $0x4] sm:$0xf]
  %v84 = vld [vmem:[%s1 + $0x8] sm:$0xf]
  %v85 = vld [vmem:[%s1 + $0xc] sm:$0xf]
  %v86 = vld [vmem:[%s1 + $0x10] sm:$0x3]
  %v151 = vunpack.c.l.b16 %v18
  %v152 = vunpack.c.l.b16 %v19
  %v153 = vunpack.c.l.b16 %v20
  %v154 = vunpack.c.l.b16 %v21
  %v155 = vunpack.c.l.b16 %v22
  %v156 = vunpack.c.l.b16 %v23
  %v157 = vunpack.c.l.b16 %v24
  %v158 = vunpack.c.l.b16 %v25
  %v159 = vunpack.c.l.b16 %v26
  %v160 = vunpack.c.l.b16 %v27
  %v161 = vunpack.c.l.b16 %v28
  %v162 = vunpack.c.l.b16 %v29
  %v163 = vunpack.c.l.b16 %v30
  %v164 = vunpack.c.l.b16 %v31
  %v165 = vunpack.c.l.b16 %v32
  %v166 = vunpack.c.l.b16 %v33
  %v167 = vunpack.c.l.b16 %v34
  %v168 = vunpack.c.l.b16 %v35
  %v169 = vunpack.c.l.b16 %v36
  %v170 = vunpack.c.l.b16 %v37
  %v171 = vunpack.c.l.b16 %v38
  %v172 = vunpack.c.l.b16 %v39
  %v173 = vunpack.c.l.b16 %v40
  %v174 = vunpack.c.l.b16 %v41
  %v175 = vunpack.c.l.b16 %v42
  %v176 = vunpack.c.l.b16 %v43
  %v177 = vunpack.c.l.b16 %v44
  %v178 = vunpack.c.l.b16 %v45
  %v179 = vunpack.c.l.b16 %v46
  %v180 = vunpack.c.l.b16 %v47
  %v181 = vunpack.c.l.b16 %v48
  %v182 = vunpack.c.l.b16 %v49
  %v183 = vunpack.c.l.b16 %v50
  %v184 = vunpack.c.l.b16 %v51
  %v185 = vunpack.c.l.b16 %v52
  %v186 = vunpack.c.l.b16 %v53
  %v187 = vunpack.c.l.b16 %v54
  %v188 = vunpack.c.l.b16 %v55
  %v189 = vunpack.c.l.b16 %v56
  %v190 = vunpack.c.l.b16 %v57
  %v191 = vunpack.c.l.b16 %v58
  %v192 = vunpack.c.l.b16 %v59
  %v193 = vunpack.c.l.b16 %v60
  %v194 = vunpack.c.l.b16 %v61
  %v195 = vunpack.c.l.b16 %v62
  %v196 = vunpack.c.l.b16 %v63
  %v197 = vunpack.c.l.b16 %v64
  %v198 = vunpack.c.l.b16 %v65
  %v199 = vunpack.c.l.b16 %v66
  %v200 = vunpack.c.l.b16 %v67
  %v201 = vunpack.c.l.b16 %v68
  %v202 = vunpack.c.l.b16 %v69
  %v203 = vunpack.c.l.b16 %v70
  %v204 = vunpack.c.l.b16 %v71
  %v205 = vunpack.c.l.b16 %v72
  %v206 = vunpack.c.l.b16 %v73
  %v207 = vunpack.c.l.b16 %v74
  %v208 = vunpack.c.l.b16 %v75
  %v209 = vunpack.c.l.b16 %v76
  %v210 = vunpack.c.l.b16 %v77
  %v211 = vunpack.c.l.b16 %v78
  %v212 = vunpack.c.l.b16 %v79
  %v213 = vunpack.c.l.b16 %v80
  %v214 = vunpack.c.l.b16 %v81
  %v215 = vpack.c.b16 %v152, %v151
  %v216 = vpack.c.b16 %v154, %v153
  %v217 = vpack.c.b16 %v156, %v155
  %v218 = vpack.c.b16 %v158, %v157
  %v219 = vpack.c.b16 %v160, %v159
  %v220 = vpack.c.b16 %v162, %v161
  %v221 = vpack.c.b16 %v164, %v163
  %v222 = vpack.c.b16 %v166, %v165
  %v223 = vpack.c.b16 %v168, %v167
  %v224 = vpack.c.b16 %v170, %v169
  %v225 = vpack.c.b16 %v172, %v171
  %v226 = vpack.c.b16 %v174, %v173
  %v227 = vpack.c.b16 %v176, %v175
  %v228 = vpack.c.b16 %v178, %v177
  %v229 = vpack.c.b16 %v180, %v179
  %v230 = vpack.c.b16 %v182, %v181
  %v231 = vpack.c.b16 %v184, %v183
  %v232 = vpack.c.b16 %v186, %v185
  %v233 = vpack.c.b16 %v188, %v187
  %v234 = vpack.c.b16 %v190, %v189
  %v235 = vpack.c.b16 %v192, %v191
  %v236 = vpack.c.b16 %v194, %v193
  %v237 = vpack.c.b16 %v196, %v195
  %v238 = vpack.c.b16 %v198, %v197
  %v239 = vpack.c.b16 %v200, %v199
  %v240 = vpack.c.b16 %v202, %v201
  %v241 = vpack.c.b16 %v204, %v203
  %v242 = vpack.c.b16 %v206, %v205
  %v243 = vpack.c.b16 %v208, %v207
  %v244 = vpack.c.b16 %v210, %v209
  %v245 = vpack.c.b16 %v212, %v211
  %v246 = vpack.c.b16 %v214, %v213
  %v252 = vunpack.c.l.b16 %v82
  %v253 = vunpack.c.l.b16 %v83
  %v254 = vunpack.c.l.b16 %v84
  %v255 = vunpack.c.l.b16 %v85
  %v256 = vunpack.c.l.b16 %v86
  %v257 = vpack.c.b16 %v253, %v252
  %v258 = vpack.c.b16 %v255, %v254
  %v259 = vpack.c.b16 %v256, %v256
  %vm262 = vcmask 293888
  %v264 = vsel %vm262, %v215, 0
  %v267 = vsel %vm262, %v216, 0
  %v270 = vsel %vm262, %v217, 0
  %v273 = vsel %vm262, %v218, 0
  %v276 = vsel %vm262, %v219, 0
  %v279 = vsel %vm262, %v220, 0
  %v282 = vsel %vm262, %v221, 0
  %v285 = vsel %vm262, %v222, 0
  %v288 = vsel %vm262, %v223, 0
  %v291 = vsel %vm262, %v224, 0
  %v294 = vsel %vm262, %v225, 0
  %v297 = vsel %vm262, %v226, 0
  %v300 = vsel %vm262, %v227, 0
  %v303 = vsel %vm262, %v228, 0
  %v306 = vsel %vm262, %v229, 0
  %v309 = vsel %vm262, %v230, 0
  %v312 = vsel %vm262, %v231, 0
  %v315 = vsel %vm262, %v232, 0
  %v318 = vsel %vm262, %v233, 0
  %v321 = vsel %vm262, %v234, 0
  %v324 = vsel %vm262, %v235, 0
  %v327 = vsel %vm262, %v236, 0
  %v330 = vsel %vm262, %v237, 0
  %v333 = vsel %vm262, %v238, 0
  %v336 = vsel %vm262, %v239, 0
  %v339 = vsel %vm262, %v240, 0
  %v342 = vsel %vm262, %v241, 0
  %v345 = vsel %vm262, %v242, 0
  %v348 = vsel %vm262, %v243, 0
  %v351 = vsel %vm262, %v244, 0
  %v354 = vsel %vm262, %v245, 0
  %v357 = vsel %vm262, %v246, 0
  %vm359 = vcmask 1041408
  %v361 = vsel %vm359, %v259, 0
  %363 = vmatprep.subr.bf16.mxu0 0
  %364 = vmatpush1.bf16.msra.mxu0 %v257
  %365 = vmatprep.subr.bf16.mxu0 0
  %366 = vmatpush1.bf16.msra.mxu0 %v258
  %367 = vmatprep.subr.bf16.mxu0 0
  %368 = vmatpush1.bf16.msra.mxu0 %v361
  %369 = vmatprep.subr.bf16.mxu0 0
  %370 = vmatpush1.bf16.msra.mxu0 0
  %371 = vmatprep.subr.bf16.mxu0 0
  %372 = vmatpush1.bf16.msra.mxu0 0
  %373 = vmatprep.subr.bf16.mxu0 0
  %374 = vmatpush1.bf16.msra.mxu0 0
  %375 = vmatprep.subr.bf16.mxu0 0
  %376 = vmatpush1.bf16.msra.mxu0 0
  %377 = vmatprep.subr.bf16.mxu0 0
  %378 = vmatpush1.bf16.msra.mxu0 0
  %379 = vmatprep.subr.bf16.mxu0 0
  %380 = vmatpush1.bf16.msra.mxu0 0
  %381 = vmatprep.subr.bf16.mxu0 0
  %382 = vmatpush1.bf16.msra.mxu0 0
  %383 = vmatprep.subr.bf16.mxu0 0
  %384 = vmatpush1.bf16.msra.mxu0 0
  %385 = vmatprep.subr.bf16.mxu0 0
  %386 = vmatpush1.bf16.msra.mxu0 0
  %387 = vmatprep.subr.bf16.mxu0 0
  %388 = vmatpush1.bf16.msra.mxu0 0
  %389 = vmatprep.subr.bf16.mxu0 0
  %390 = vmatpush1.bf16.msra.mxu0 0
  %391 = vmatprep.subr.bf16.mxu0 0
  %392 = vmatpush1.bf16.msra.mxu0 0
  %393 = vmatprep.subr.bf16.mxu0 0
  %394 = vmatpush1.bf16.msra.mxu0 0
  %395 = vmatprep.mubr.bf16.mxu0 0
  %396 = vmatmul.mubr.bf16.gmra.mrb[0].mxu0 %v264
  %v397 = vpop.f32.mrb[0].mxu0
  %v398 = vadd.f32 0.0, %v397
  %v399 = vpop.f32.mrb[0].mxu0
  %v400 = vpop.f32.mrb[0].mxu0
  %v401 = vadd.f32 0.0, %v400
  %v402 = vpop.f32.mrb[0].mxu0
  %403 = vmatprep.mubr.bf16.mxu0 0
  %404 = vmatmul.mubr.bf16.gmra.mrb[0].mxu0 %v267
  %v405 = vpop.f32.mrb[0].mxu0
  %v406 = vadd.f32 0.0, %v405
  %v407 = vpop.f32.mrb[0].mxu0
  %v408 = vpop.f32.mrb[0].mxu0
  %v409 = vadd.f32 0.0, %v408
  %v410 = vpop.f32.mrb[0].mxu0
  %411 = vmatprep.mubr.bf16.mxu0 0
  %412 = vmatmul.mubr.bf16.gmra.mrb[0].mxu0 %v270
  %v413 = vpop.f32.mrb[0].mxu0
  %v414 = vadd.f32 0.0, %v413
  %v415 = vpop.f32.mrb[0].mxu0
  %v416 = vpop.f32.mrb[0].mxu0
  %v417 = vadd.f32 0.0, %v416
  %v418 = vpop.f32.mrb[0].mxu0
  %419 = vmatprep.mubr.bf16.mxu0 0
  %420 = vmatmul.mubr.bf16.gmra.mrb[0].mxu0 %v273
  %v421 = vpop.f32.mrb[0].mxu0
  %v422 = vadd.f32 0.0, %v421
  %v423 = vpop.f32.mrb[0].mxu0
  %v424 = vpop.f32.mrb[0].mxu0
  %v425 = vadd.f32 0.0, %v424
  %v426 = vpop.f32.mrb[0].mxu0
  %427 = vmatprep.mubr.bf16.mxu0 0
  %428 = vmatmul.mubr.bf16.gmra.mrb[0].mxu0 %v276
  %v429 = vpop.f32.mrb[0].mxu0
  %v430 = vadd.f32 0.0, %v429
  %v431 = vpop.f32.mrb[0].mxu0
  %v432 = vpop.f32.mrb[0].mxu0
  %v433 = vadd.f32 0.0, %v432
  %v434 = vpop.f32.mrb[0].mxu0
  %435 = vmatprep.mubr.bf16.mxu0 0
  %436 = vmatmul.mubr.bf16.gmra.mrb[0].mxu0 %v279
  %v437 = vpop.f32.mrb[0].mxu0
  %v438 = vadd.f32 0.0, %v437
  %v439 = vpop.f32.mrb[0].mxu0
  %v440 = vpop.f32.mrb[0].mxu0
  %v441 = vadd.f32 0.0, %v440
  %v442 = vpop.f32.mrb[0].mxu0
  %443 = vmatprep.mubr.bf16.mxu0 0
  %444 = vmatmul.mubr.bf16.gmra.mrb[0].mxu0 %v282
  %v445 = vpop.f32.mrb[0].mxu0
  %v446 = vadd.f32 0.0, %v445
  %v447 = vpop.f32.mrb[0].mxu0
  %v448 = vpop.f32.mrb[0].mxu0
  %v449 = vadd.f32 0.0, %v448
  %v450 = vpop.f32.mrb[0].mxu0
  %451 = vmatprep.mubr.bf16.mxu0 0
  %452 = vmatmul.mubr.bf16.gmra.mrb[0].mxu0 %v285
  %v453 = vpop.f32.mrb[0].mxu0
  %v454 = vadd.f32 0.0, %v453
  %v455 = vpop.f32.mrb[0].mxu0
  %v456 = vpop.f32.mrb[0].mxu0
  %v457 = vadd.f32 0.0, %v456
  %v458 = vpop.f32.mrb[0].mxu0
  %459 = vmatprep.mubr.bf16.mxu0 0
  %460 = vmatmul.mubr.bf16.gmra.mrb[0].mxu0 %v288
  %v461 = vpop.f32.mrb[0].mxu0
  %v462 = vadd.f32 0.0, %v461
  %v463 = vpop.f32.mrb[0].mxu0
  %v464 = vpop.f32.mrb[0].mxu0
  %v465 = vadd.f32 0.0, %v464
  %v466 = vpop.f32.mrb[0].mxu0
  %467 = vmatprep.mubr.bf16.mxu0 0
  %468 = vmatmul.mubr.bf16.gmra.mrb[0].mxu0 %v291
  %v469 = vpop.f32.mrb[0].mxu0
  %v470 = vadd.f32 0.0, %v469
  %v471 = vpop.f32.mrb[0].mxu0
  %v472 = vpop.f32.mrb[0].mxu0
  %v473 = vadd.f32 0.0, %v472
  %v474 = vpop.f32.mrb[0].mxu0
  %475 = vmatprep.mubr.bf16.mxu0 0
  %476 = vmatmul.mubr.bf16.gmra.mrb[0].mxu0 %v294
  %v477 = vpop.f32.mrb[0].mxu0
  %v478 = vadd.f32 0.0, %v477
  %v479 = vpop.f32.mrb[0].mxu0
  %v480 = vpop.f32.mrb[0].mxu0
  %v481 = vadd.f32 0.0, %v480
  %v482 = vpop.f32.mrb[0].mxu0
  %483 = vmatprep.mubr.bf16.mxu0 0
  %484 = vmatmul.mubr.bf16.gmra.mrb[0].mxu0 %v297
  %v485 = vpop.f32.mrb[0].mxu0
  %v486 = vadd.f32 0.0, %v485
  %v487 = vpop.f32.mrb[0].mxu0
  %v488 = vpop.f32.mrb[0].mxu0
  %v489 = vadd.f32 0.0, %v488
  %v490 = vpop.f32.mrb[0].mxu0
  %491 = vmatprep.mubr.bf16.mxu0 0
  %492 = vmatmul.mubr.bf16.gmra.mrb[0].mxu0 %v300
  %v493 = vpop.f32.mrb[0].mxu0
  %v494 = vadd.f32 0.0, %v493
  %v495 = vpop.f32.mrb[0].mxu0
  %v496 = vpop.f32.mrb[0].mxu0
  %v497 = vadd.f32 0.0, %v496
  %v498 = vpop.f32.mrb[0].mxu0
  %499 = vmatprep.mubr.bf16.mxu0 0
  %500 = vmatmul.mubr.bf16.gmra.mrb[0].mxu0 %v303
  %v501 = vpop.f32.mrb[0].mxu0
  %v502 = vadd.f32 0.0, %v501
  %v503 = vpop.f32.mrb[0].mxu0
  %v504 = vpop.f32.mrb[0].mxu0
  %v505 = vadd.f32 0.0, %v504
  %v506 = vpop.f32.mrb[0].mxu0
  %507 = vmatprep.mubr.bf16.mxu0 0
  %508 = vmatmul.mubr.bf16.gmra.mrb[0].mxu0 %v306
  %v509 = vpop.f32.mrb[0].mxu0
  %v510 = vadd.f32 0.0, %v509
  %v511 = vpop.f32.mrb[0].mxu0
  %v512 = vpop.f32.mrb[0].mxu0
  %v513 = vadd.f32 0.0, %v512
  %v514 = vpop.f32.mrb[0].mxu0
  %515 = vmatprep.mubr.bf16.mxu0 0
  %516 = vmatmul.mubr.bf16.gmra.mrb[0].mxu0 %v309
  %v517 = vpop.f32.mrb[0].mxu0
  %v518 = vadd.f32 0.0, %v517
  %v519 = vpop.f32.mrb[0].mxu0
  %v520 = vpop.f32.mrb[0].mxu0
  %v521 = vadd.f32 0.0, %v520
  %v522 = vpop.f32.mrb[0].mxu0
  %523 = vmatprep.mubr.bf16.mxu0 0
  %524 = vmatmul.mubr.bf16.gmra.mrb[0].mxu0 %v312
  %v525 = vpop.f32.mrb[0].mxu0
  %v526 = vadd.f32 0.0, %v525
  %v527 = vpop.f32.mrb[0].mxu0
  %v528 = vpop.f32.mrb[0].mxu0
  %v529 = vadd.f32 0.0, %v528
  %v530 = vpop.f32.mrb[0].mxu0
  %531 = vmatprep.mubr.bf16.mxu0 0
  %532 = vmatmul.mubr.bf16.gmra.mrb[0].mxu0 %v315
  %v533 = vpop.f32.mrb[0].mxu0
  %v534 = vadd.f32 0.0, %v533
  %v535 = vpop.f32.mrb[0].mxu0
  %v536 = vpop.f32.mrb[0].mxu0
  %v537 = vadd.f32 0.0, %v536
  %v538 = vpop.f32.mrb[0].mxu0
  %539 = vmatprep.mubr.bf16.mxu0 0
  %540 = vmatmul.mubr.bf16.gmra.mrb[0].mxu0 %v318
  %v541 = vpop.f32.mrb[0].mxu0
  %v542 = vadd.f32 0.0, %v541
  %v543 = vpop.f32.mrb[0].mxu0
  %v544 = vpop.f32.mrb[0].mxu0
  %v545 = vadd.f32 0.0, %v544
  %v546 = vpop.f32.mrb[0].mxu0
  %547 = vmatprep.mubr.bf16.mxu0 0
  %548 = vmatmul.mubr.bf16.gmra.mrb[0].mxu0 %v321
  %v549 = vpop.f32.mrb[0].mxu0
  %v550 = vadd.f32 0.0, %v549
  %v551 = vpop.f32.mrb[0].mxu0
  %v552 = vpop.f32.mrb[0].mxu0
  %v553 = vadd.f32 0.0, %v552
  %v554 = vpop.f32.mrb[0].mxu0
  %555 = vmatprep.mubr.bf16.mxu0 0
  %556 = vmatmul.mubr.bf16.gmra.mrb[0].mxu0 %v324
  %v557 = vpop.f32.mrb[0].mxu0
  %v558 = vadd.f32 0.0, %v557
  %v559 = vpop.f32.mrb[0].mxu0
  %v560 = vpop.f32.mrb[0].mxu0
  %v561 = vadd.f32 0.0, %v560
  %v562 = vpop.f32.mrb[0].mxu0
  %563 = vmatprep.mubr.bf16.mxu0 0
  %564 = vmatmul.mubr.bf16.gmra.mrb[0].mxu0 %v327
  %v565 = vpop.f32.mrb[0].mxu0
  %v566 = vadd.f32 0.0, %v565
  %v567 = vpop.f32.mrb[0].mxu0
  %v568 = vpop.f32.mrb[0].mxu0
  %v569 = vadd.f32 0.0, %v568
  %v570 = vpop.f32.mrb[0].mxu0
  %571 = vmatprep.mubr.bf16.mxu0 0
  %572 = vmatmul.mubr.bf16.gmra.mrb[0].mxu0 %v330
  %v573 = vpop.f32.mrb[0].mxu0
  %v574 = vadd.f32 0.0, %v573
  %v575 = vpop.f32.mrb[0].mxu0
  %v576 = vpop.f32.mrb[0].mxu0
  %v577 = vadd.f32 0.0, %v576
  %v578 = vpop.f32.mrb[0].mxu0
  %579 = vmatprep.mubr.bf16.mxu0 0
  %580 = vmatmul.mubr.bf16.gmra.mrb[0].mxu0 %v333
  %v581 = vpop.f32.mrb[0].mxu0
  %v582 = vadd.f32 0.0, %v581
  %v583 = vpop.f32.mrb[0].mxu0
  %v584 = vpop.f32.mrb[0].mxu0
  %v585 = vadd.f32 0.0, %v584
  %v586 = vpop.f32.mrb[0].mxu0
  %587 = vmatprep.mubr.bf16.mxu0 0
  %588 = vmatmul.mubr.bf16.gmra.mrb[0].mxu0 %v336
  %v589 = vpop.f32.mrb[0].mxu0
  %v590 = vadd.f32 0.0, %v589
  %v591 = vpop.f32.mrb[0].mxu0
  %v592 = vpop.f32.mrb[0].mxu0
  %v593 = vadd.f32 0.0, %v592
  %v594 = vpop.f32.mrb[0].mxu0
  %595 = vmatprep.mubr.bf16.mxu0 0
  %596 = vmatmul.mubr.bf16.gmra.mrb[0].mxu0 %v339
  %v597 = vpop.f32.mrb[0].mxu0
  %v598 = vadd.f32 0.0, %v597
  %v599 = vpop.f32.mrb[0].mxu0
  %v600 = vpop.f32.mrb[0].mxu0
  %v601 = vadd.f32 0.0, %v600
  %v602 = vpop.f32.mrb[0].mxu0
  %603 = vmatprep.mubr.bf16.mxu0 0
  %604 = vmatmul.mubr.bf16.gmra.mrb[0].mxu0 %v342
  %v605 = vpop.f32.mrb[0].mxu0
  %v606 = vadd.f32 0.0, %v605
  %v607 = vpop.f32.mrb[0].mxu0
  %v608 = vpop.f32.mrb[0].mxu0
  %v609 = vadd.f32 0.0, %v608
  %v610 = vpop.f32.mrb[0].mxu0
  %611 = vmatprep.mubr.bf16.mxu0 0
  %612 = vmatmul.mubr.bf16.gmra.mrb[0].mxu0 %v345
  %v613 = vpop.f32.mrb[0].mxu0
  %v614 = vadd.f32 0.0, %v613
  %v615 = vpop.f32.mrb[0].mxu0
  %v616 = vpop.f32.mrb[0].mxu0
  %v617 = vadd.f32 0.0, %v616
  %v618 = vpop.f32.mrb[0].mxu0
  %619 = vmatprep.mubr.bf16.mxu0 0
  %620 = vmatmul.mubr.bf16.gmra.mrb[0].mxu0 %v348
  %v621 = vpop.f32.mrb[0].mxu0
  %v622 = vadd.f32 0.0, %v621
  %v623 = vpop.f32.mrb[0].mxu0
  %v624 = vpop.f32.mrb[0].mxu0
  %v625 = vadd.f32 0.0, %v624
  %v626 = vpop.f32.mrb[0].mxu0
  %627 = vmatprep.mubr.bf16.mxu0 0
  %628 = vmatmul.mubr.bf16.gmra.mrb[0].mxu0 %v351
  %v629 = vpop.f32.mrb[0].mxu0
  %v630 = vadd.f32 0.0, %v629
  %v631 = vpop.f32.mrb[0].mxu0
  %v632 = vpop.f32.mrb[0].mxu0
  %v633 = vadd.f32 0.0, %v632
  %v634 = vpop.f32.mrb[0].mxu0
  %635 = vmatprep.mubr.bf16.mxu0 0
  %636 = vmatmul.mubr.bf16.gmra.mrb[0].mxu0 %v354
  %v637 = vpop.f32.mrb[0].mxu0
  %v638 = vadd.f32 0.0, %v637
  %v639 = vpop.f32.mrb[0].mxu0
  %v640 = vpop.f32.mrb[0].mxu0
  %v641 = vadd.f32 0.0, %v640
  %v642 = vpop.f32.mrb[0].mxu0
  %643 = vmatprep.mubr.bf16.mxu0 0
  %644 = vmatmul.mubr.bf16.gmra.mrb[0].mxu0 %v357
  %v645 = vpop.f32.mrb[0].mxu0
  %v646 = vadd.f32 0.0, %v645
  %v647 = vpop.f32.mrb[0].mxu0
  %v648 = vpop.f32.mrb[0].mxu0
  %v649 = vadd.f32 0.0, %v648
  %v650 = vpop.f32.mrb[0].mxu0
  %651 = vdwg.mxu0
  %v652 = vld [vmem:[%s2] sm:$0x1]
  %v654 = vlaneseq
  %v655 = vshrl.u32 %v654, 7
  %v656 = vsub.s32 0, %v655
  %v657 = vrot.slane %v652, %v656
  %v659 = vmul.f32 %v398, %v657
  %v660 = vmul.f32 %v401, %v657
  %v661 = vmul.f32 %v406, %v657
  %v662 = vmul.f32 %v409, %v657
  %v663 = vmul.f32 %v414, %v657
  %v664 = vmul.f32 %v417, %v657
  %v665 = vmul.f32 %v422, %v657
  %v666 = vmul.f32 %v425, %v657
  %v667 = vmul.f32 %v430, %v657
  %v668 = vmul.f32 %v433, %v657
  %v669 = vmul.f32 %v438, %v657
  %v670 = vmul.f32 %v441, %v657
  %v671 = vmul.f32 %v446, %v657
  %v672 = vmul.f32 %v449, %v657
  %v673 = vmul.f32 %v454, %v657
  %v674 = vmul.f32 %v457, %v657
  %v675 = vmul.f32 %v462, %v657
  %v676 = vmul.f32 %v465, %v657
  %v677 = vmul.f32 %v470, %v657
  %v678 = vmul.f32 %v473, %v657
  %v679 = vmul.f32 %v478, %v657
  %v680 = vmul.f32 %v481, %v657
  %v681 = vmul.f32 %v486, %v657
  %v682 = vmul.f32 %v489, %v657
  %v683 = vmul.f32 %v494, %v657
  %v684 = vmul.f32 %v497, %v657
  %v685 = vmul.f32 %v502, %v657
  %v686 = vmul.f32 %v505, %v657
  %v687 = vmul.f32 %v510, %v657
  %v688 = vmul.f32 %v513, %v657
  %v689 = vmul.f32 %v518, %v657
  %v690 = vmul.f32 %v521, %v657
  %v691 = vmul.f32 %v526, %v657
  %v692 = vmul.f32 %v529, %v657
  %v693 = vmul.f32 %v534, %v657
  %v694 = vmul.f32 %v537, %v657
  %v695 = vmul.f32 %v542, %v657
  %v696 = vmul.f32 %v545, %v657
  %v697 = vmul.f32 %v550, %v657
  %v698 = vmul.f32 %v553, %v657
  %v699 = vmul.f32 %v558, %v657
  %v700 = vmul.f32 %v561, %v657
  %v701 = vmul.f32 %v566, %v657
  %v702 = vmul.f32 %v569, %v657
  %v703 = vmul.f32 %v574, %v657
  %v704 = vmul.f32 %v577, %v657
  %v705 = vmul.f32 %v582, %v657
  %v706 = vmul.f32 %v585, %v657
  %v707 = vmul.f32 %v590, %v657
  %v708 = vmul.f32 %v593, %v657
  %v709 = vmul.f32 %v598, %v657
  %v710 = vmul.f32 %v601, %v657
  %v711 = vmul.f32 %v606, %v657
  %v712 = vmul.f32 %v609, %v657
  %v713 = vmul.f32 %v614, %v657
  %v714 = vmul.f32 %v617, %v657
  %v715 = vmul.f32 %v622, %v657
  %v716 = vmul.f32 %v625, %v657
  %v717 = vmul.f32 %v630, %v657
  %v718 = vmul.f32 %v633, %v657
  %v719 = vmul.f32 %v638, %v657
  %v720 = vmul.f32 %v641, %v657
  %v721 = vmul.f32 %v646, %v657
  %v722 = vmul.f32 %v649, %v657
  %v723 = vld [vmem:[%s3] sm:$0x1]
  %v725 = vlaneseq
  %v726 = vshrl.u32 %v725, 7
  %v727 = vsub.s32 0, %v726
  %v728 = vrot.slane %v723, %v727
  %v730 = vadd.f32 %v659, %v728
  %v731 = vadd.f32 %v660, %v728
  %v732 = vadd.f32 %v661, %v728
  %v733 = vadd.f32 %v662, %v728
  %v734 = vadd.f32 %v663, %v728
  %v735 = vadd.f32 %v664, %v728
  %v736 = vadd.f32 %v665, %v728
  %v737 = vadd.f32 %v666, %v728
  %v738 = vadd.f32 %v667, %v728
  %v739 = vadd.f32 %v668, %v728
  %v740 = vadd.f32 %v669, %v728
  %v741 = vadd.f32 %v670, %v728
  %v742 = vadd.f32 %v671, %v728
  %v743 = vadd.f32 %v672, %v728
  %v744 = vadd.f32 %v673, %v728
  %v745 = vadd.f32 %v674, %v728
  %v746 = vadd.f32 %v675, %v728
  %v747 = vadd.f32 %v676, %v728
  %v748 = vadd.f32 %v677, %v728
  %v749 = vadd.f32 %v678, %v728
  %v750 = vadd.f32 %v679, %v728
  %v751 = vadd.f32 %v680, %v728
  %v752 = vadd.f32 %v681, %v728
  %v753 = vadd.f32 %v682, %v728
  %v754 = vadd.f32 %v683, %v728
  %v755 = vadd.f32 %v684, %v728
  %v756 = vadd.f32 %v685, %v728
  %v757 = vadd.f32 %v686, %v728
  %v758 = vadd.f32 %v687, %v728
  %v759 = vadd.f32 %v688, %v728
  %v760 = vadd.f32 %v689, %v728
  %v761 = vadd.f32 %v690, %v728
  %v762 = vadd.f32 %v691, %v728
  %v763 = vadd.f32 %v692, %v728
  %v764 = vadd.f32 %v693, %v728
  %v765 = vadd.f32 %v694, %v728
  %v766 = vadd.f32 %v695, %v728
  %v767 = vadd.f32 %v696, %v728
  %v768 = vadd.f32 %v697, %v728
  %v769 = vadd.f32 %v698, %v728
  %v770 = vadd.f32 %v699, %v728
  %v771 = vadd.f32 %v700, %v728
  %v772 = vadd.f32 %v701, %v728
  %v773 = vadd.f32 %v702, %v728
  %v774 = vadd.f32 %v703, %v728
  %v775 = vadd.f32 %v704, %v728
  %v776 = vadd.f32 %v705, %v728
  %v777 = vadd.f32 %v706, %v728
  %v778 = vadd.f32 %v707, %v728
  %v779 = vadd.f32 %v708, %v728
  %v780 = vadd.f32 %v709, %v728
  %v781 = vadd.f32 %v710, %v728
  %v782 = vadd.f32 %v711, %v728
  %v783 = vadd.f32 %v712, %v728
  %v784 = vadd.f32 %v713, %v728
  %v785 = vadd.f32 %v714, %v728
  %v786 = vadd.f32 %v715, %v728
  %v787 = vadd.f32 %v716, %v728
  %v788 = vadd.f32 %v717, %v728
  %v789 = vadd.f32 %v718, %v728
  %v790 = vadd.f32 %v719, %v728
  %v791 = vadd.f32 %v720, %v728
  %v792 = vadd.f32 %v721, %v728
  %v793 = vadd.f32 %v722, %v728
  %v794 = vmax.f32 %v730, 0.0
  %v795 = vmax.f32 %v731, 0.0
  %v796 = vmax.f32 %v732, 0.0
  %v797 = vmax.f32 %v733, 0.0
  %v798 = vmax.f32 %v734, 0.0
  %v799 = vmax.f32 %v735, 0.0
  %v800 = vmax.f32 %v736, 0.0
  %v801 = vmax.f32 %v737, 0.0
  %v802 = vmax.f32 %v738, 0.0
  %v803 = vmax.f32 %v739, 0.0
  %v804 = vmax.f32 %v740, 0.0
  %v805 = vmax.f32 %v741, 0.0
  %v806 = vmax.f32 %v742, 0.0
  %v807 = vmax.f32 %v743, 0.0
  %v808 = vmax.f32 %v744, 0.0
  %v809 = vmax.f32 %v745, 0.0
  %v810 = vmax.f32 %v746, 0.0
  %v811 = vmax.f32 %v747, 0.0
  %v812 = vmax.f32 %v748, 0.0
  %v813 = vmax.f32 %v749, 0.0
  %v814 = vmax.f32 %v750, 0.0
  %v815 = vmax.f32 %v751, 0.0
  %v816 = vmax.f32 %v752, 0.0
  %v817 = vmax.f32 %v753, 0.0
  %v818 = vmax.f32 %v754, 0.0
  %v819 = vmax.f32 %v755, 0.0
  %v820 = vmax.f32 %v756, 0.0
  %v821 = vmax.f32 %v757, 0.0
  %v822 = vmax.f32 %v758, 0.0
  %v823 = vmax.f32 %v759, 0.0
  %v824 = vmax.f32 %v760, 0.0
  %v825 = vmax.f32 %v761, 0.0
  %v826 = vmax.f32 %v762, 0.0
  %v827 = vmax.f32 %v763, 0.0
  %v828 = vmax.f32 %v764, 0.0
  %v829 = vmax.f32 %v765, 0.0
  %v830 = vmax.f32 %v766, 0.0
  %v831 = vmax.f32 %v767, 0.0
  %v832 = vmax.f32 %v768, 0.0
  %v833 = vmax.f32 %v769, 0.0
  %v834 = vmax.f32 %v770, 0.0
  %v835 = vmax.f32 %v771, 0.0
  %v836 = vmax.f32 %v772, 0.0
  %v837 = vmax.f32 %v773, 0.0
  %v838 = vmax.f32 %v774, 0.0
  %v839 = vmax.f32 %v775, 0.0
  %v840 = vmax.f32 %v776, 0.0
  %v841 = vmax.f32 %v777, 0.0
  %v842 = vmax.f32 %v778, 0.0
  %v843 = vmax.f32 %v779, 0.0
  %v844 = vmax.f32 %v780, 0.0
  %v845 = vmax.f32 %v781, 0.0
  %v846 = vmax.f32 %v782, 0.0
  %v847 = vmax.f32 %v783, 0.0
  %v848 = vmax.f32 %v784, 0.0
  %v849 = vmax.f32 %v785, 0.0
  %v850 = vmax.f32 %v786, 0.0
  %v851 = vmax.f32 %v787, 0.0
  %v852 = vmax.f32 %v788, 0.0
  %v853 = vmax.f32 %v789, 0.0
  %v854 = vmax.f32 %v790, 0.0
  %v855 = vmax.f32 %v791, 0.0
  %v856 = vmax.f32 %v792, 0.0
  %v857 = vmax.f32 %v793, 0.0
  %v858 = vpack.c.bf16 %v795, %v794
  %v859 = vpack.c.bf16 %v797, %v796
  %v860 = vpack.c.bf16 %v799, %v798
  %v861 = vpack.c.bf16 %v801, %v800
  %v862 = vpack.c.bf16 %v803, %v802
  %v863 = vpack.c.bf16 %v805, %v804
  %v864 = vpack.c.bf16 %v807, %v806
  %v865 = vpack.c.bf16 %v809, %v808
  %v866 = vpack.c.bf16 %v811, %v810
  %v867 = vpack.c.bf16 %v813, %v812
  %v868 = vpack.c.bf16 %v815, %v814
  %v869 = vpack.c.bf16 %v817, %v816
  %v870 = vpack.c.bf16 %v819, %v818
  %v871 = vpack.c.bf16 %v821, %v820
  %v872 = vpack.c.bf16 %v823, %v822
  %v873 = vpack.c.bf16 %v825, %v824
  %v874 = vpack.c.bf16 %v827, %v826
  %v875 = vpack.c.bf16 %v829, %v828
  %v876 = vpack.c.bf16 %v831, %v830
  %v877 = vpack.c.bf16 %v833, %v832
  %v878 = vpack.c.bf16 %v835, %v834
  %v879 = vpack.c.bf16 %v837, %v836
  %v880 = vpack.c.bf16 %v839, %v838
  %v881 = vpack.c.bf16 %v841, %v840
  %v882 = vpack.c.bf16 %v843, %v842
  %v883 = vpack.c.bf16 %v845, %v844
  %v884 = vpack.c.bf16 %v847, %v846
  %v885 = vpack.c.bf16 %v849, %v848
  %v886 = vpack.c.bf16 %v851, %v850
  %v887 = vpack.c.bf16 %v853, %v852
  %v888 = vpack.c.bf16 %v855, %v854
  %v889 = vpack.c.bf16 %v857, %v856
  %v922 = vunpack.c.l.b16 %v858
  %v923 = vunpack.c.h.b16 %v858
  %v924 = vunpack.c.l.b16 %v859
  %v925 = vunpack.c.h.b16 %v859
  %v926 = vunpack.c.l.b16 %v860
  %v927 = vunpack.c.h.b16 %v860
  %v928 = vunpack.c.l.b16 %v861
  %v929 = vunpack.c.h.b16 %v861
  %v930 = vunpack.c.l.b16 %v862
  %v931 = vunpack.c.h.b16 %v862
  %v932 = vunpack.c.l.b16 %v863
  %v933 = vunpack.c.h.b16 %v863
  %v934 = vunpack.c.l.b16 %v864
  %v935 = vunpack.c.h.b16 %v864
  %v936 = vunpack.c.l.b16 %v865
  %v937 = vunpack.c.h.b16 %v865
  %v938 = vunpack.c.l.b16 %v866
  %v939 = vunpack.c.h.b16 %v866
  %v940 = vunpack.c.l.b16 %v867
  %v941 = vunpack.c.h.b16 %v867
  %v942 = vunpack.c.l.b16 %v868
  %v943 = vunpack.c.h.b16 %v868
  %v944 = vunpack.c.l.b16 %v869
  %v945 = vunpack.c.h.b16 %v869
  %v946 = vunpack.c.l.b16 %v870
  %v947 = vunpack.c.h.b16 %v870
  %v948 = vunpack.c.l.b16 %v871
  %v949 = vunpack.c.h.b16 %v871
  %v950 = vunpack.c.l.b16 %v872
  %v951 = vunpack.c.h.b16 %v872
  %v952 = vunpack.c.l.b16 %v873
  %v953 = vunpack.c.h.b16 %v873
  %v954 = vunpack.c.l.b16 %v874
  %v955 = vunpack.c.h.b16 %v874
  %v956 = vunpack.c.l.b16 %v875
  %v957 = vunpack.c.h.b16 %v875
  %v958 = vunpack.c.l.b16 %v876
  %v959 = vunpack.c.h.b16 %v876
  %v960 = vunpack.c.l.b16 %v877
  %v961 = vunpack.c.h.b16 %v877
  %v962 = vunpack.c.l.b16 %v878
  %v963 = vunpack.c.h.b16 %v878
  %v964 = vunpack.c.l.b16 %v879
  %v965 = vunpack.c.h.b16 %v879
  %v966 = vunpack.c.l.b16 %v880
  %v967 = vunpack.c.h.b16 %v880
  %v968 = vunpack.c.l.b16 %v881
  %v969 = vunpack.c.h.b16 %v881
  %v970 = vunpack.c.l.b16 %v882
  %v971 = vunpack.c.h.b16 %v882
  %v972 = vunpack.c.l.b16 %v883
  %v973 = vunpack.c.h.b16 %v883
  %v974 = vunpack.c.l.b16 %v884
  %v975 = vunpack.c.h.b16 %v884
  %v976 = vunpack.c.l.b16 %v885
  %v977 = vunpack.c.h.b16 %v885
  %v978 = vunpack.c.l.b16 %v886
  %v979 = vunpack.c.h.b16 %v886
  %v980 = vunpack.c.l.b16 %v887
  %v981 = vunpack.c.h.b16 %v887
  %v982 = vunpack.c.l.b16 %v888
  %v983 = vunpack.c.h.b16 %v888
  %v984 = vunpack.c.l.b16 %v889
  %v985 = vunpack.c.h.b16 %v889
  %v986 = vpack.c.b16 %v922, %v922
  %v987 = vpack.c.b16 %v923, %v923
  %v988 = vpack.c.b16 %v924, %v924
  %v989 = vpack.c.b16 %v925, %v925
  %v990 = vpack.c.b16 %v926, %v926
  %v991 = vpack.c.b16 %v927, %v927
  %v992 = vpack.c.b16 %v928, %v928
  %v993 = vpack.c.b16 %v929, %v929
  %v994 = vpack.c.b16 %v930, %v930
  %v995 = vpack.c.b16 %v931, %v931
  %v996 = vpack.c.b16 %v932, %v932
  %v997 = vpack.c.b16 %v933, %v933
  %v998 = vpack.c.b16 %v934, %v934
  %v999 = vpack.c.b16 %v935, %v935
  %v1000 = vpack.c.b16 %v936, %v936
  %v1001 = vpack.c.b16 %v937, %v937
  %v1002 = vpack.c.b16 %v938, %v938
  %v1003 = vpack.c.b16 %v939, %v939
  %v1004 = vpack.c.b16 %v940, %v940
  %v1005 = vpack.c.b16 %v941, %v941
  %v1006 = vpack.c.b16 %v942, %v942
  %v1007 = vpack.c.b16 %v943, %v943
  %v1008 = vpack.c.b16 %v944, %v944
  %v1009 = vpack.c.b16 %v945, %v945
  %v1010 = vpack.c.b16 %v946, %v946
  %v1011 = vpack.c.b16 %v947, %v947
  %v1012 = vpack.c.b16 %v948, %v948
  %v1013 = vpack.c.b16 %v949, %v949
  %v1014 = vpack.c.b16 %v950, %v950
  %v1015 = vpack.c.b16 %v951, %v951
  %v1016 = vpack.c.b16 %v952, %v952
  %v1017 = vpack.c.b16 %v953, %v953
  %v1018 = vpack.c.b16 %v954, %v954
  %v1019 = vpack.c.b16 %v955, %v955
  %v1020 = vpack.c.b16 %v956, %v956
  %v1021 = vpack.c.b16 %v957, %v957
  %v1022 = vpack.c.b16 %v958, %v958
  %v1023 = vpack.c.b16 %v959, %v959
  %v1024 = vpack.c.b16 %v960, %v960
  %v1025 = vpack.c.b16 %v961, %v961
  %v1026 = vpack.c.b16 %v962, %v962
  %v1027 = vpack.c.b16 %v963, %v963
  %v1028 = vpack.c.b16 %v964, %v964
  %v1029 = vpack.c.b16 %v965, %v965
  %v1030 = vpack.c.b16 %v966, %v966
  %v1031 = vpack.c.b16 %v967, %v967
  %v1032 = vpack.c.b16 %v968, %v968
  %v1033 = vpack.c.b16 %v969, %v969
  %v1034 = vpack.c.b16 %v970, %v970
  %v1035 = vpack.c.b16 %v971, %v971
  %v1036 = vpack.c.b16 %v972, %v972
  %v1037 = vpack.c.b16 %v973, %v973
  %v1038 = vpack.c.b16 %v974, %v974
  %v1039 = vpack.c.b16 %v975, %v975
  %v1040 = vpack.c.b16 %v976, %v976
  %v1041 = vpack.c.b16 %v977, %v977
  %v1042 = vpack.c.b16 %v978, %v978
  %v1043 = vpack.c.b16 %v979, %v979
  %v1044 = vpack.c.b16 %v980, %v980
  %v1045 = vpack.c.b16 %v981, %v981
  %v1046 = vpack.c.b16 %v982, %v982
  %v1047 = vpack.c.b16 %v983, %v983
  %v1048 = vpack.c.b16 %v984, %v984
  %v1049 = vpack.c.b16 %v985, %v985
  %vm1114 = vcmask 257024
  %1115 = vst.msk [vmem:[%s4] sm:$0xf] %vm1114, %v986
  %1116 = vst.msk [vmem:[%s4 + $0x4] sm:$0xf] %vm1114, %v987
  %1117 = vst.msk [vmem:[%s4 + $0x8] sm:$0xf] %vm1114, %v988
  %1118 = vst.msk [vmem:[%s4 + $0xc] sm:$0xf] %vm1114, %v989
  %1119 = vst.msk [vmem:[%s4 + $0x10] sm:$0xf] %vm1114, %v990
  %1120 = vst.msk [vmem:[%s4 + $0x14] sm:$0xf] %vm1114, %v991
  %1121 = vst.msk [vmem:[%s4 + $0x18] sm:$0xf] %vm1114, %v992
  %1122 = vst.msk [vmem:[%s4 + $0x1c] sm:$0xf] %vm1114, %v993
  %1123 = vst.msk [vmem:[%s4 + $0x20] sm:$0xf] %vm1114, %v994
  %1124 = vst.msk [vmem:[%s4 + $0x24] sm:$0xf] %vm1114, %v995
  %1125 = vst.msk [vmem:[%s4 + $0x28] sm:$0xf] %vm1114, %v996
  %1126 = vst.msk [vmem:[%s4 + $0x2c] sm:$0xf] %vm1114, %v997
  %1127 = vst.msk [vmem:[%s4 + $0x30] sm:$0xf] %vm1114, %v998
  %1128 = vst.msk [vmem:[%s4 + $0x34] sm:$0xf] %vm1114, %v999
  %1129 = vst.msk [vmem:[%s4 + $0x38] sm:$0xf] %vm1114, %v1000
  %1130 = vst.msk [vmem:[%s4 + $0x3c] sm:$0xf] %vm1114, %v1001
  %1131 = vst.msk [vmem:[%s4 + $0x40] sm:$0xf] %vm1114, %v1002
  %1132 = vst.msk [vmem:[%s4 + $0x44] sm:$0xf] %vm1114, %v1003
  %1133 = vst.msk [vmem:[%s4 + $0x48] sm:$0xf] %vm1114, %v1004
  %1134 = vst.msk [vmem:[%s4 + $0x4c] sm:$0xf] %vm1114, %v1005
  %1135 = vst.msk [vmem:[%s4 + $0x50] sm:$0xf] %vm1114, %v1006
  %1136 = vst.msk [vmem:[%s4 + $0x54] sm:$0xf] %vm1114, %v1007
  %1137 = vst.msk [vmem:[%s4 + $0x58] sm:$0xf] %vm1114, %v1008
  %1138 = vst.msk [vmem:[%s4 + $0x5c] sm:$0xf] %vm1114, %v1009
  %1139 = vst.msk [vmem:[%s4 + $0x60] sm:$0xf] %vm1114, %v1010
  %1140 = vst.msk [vmem:[%s4 + $0x64] sm:$0xf] %vm1114, %v1011
  %1141 = vst.msk [vmem:[%s4 + $0x68] sm:$0xf] %vm1114, %v1012
  %1142 = vst.msk [vmem:[%s4 + $0x6c] sm:$0xf] %vm1114, %v1013
  %1143 = vst.msk [vmem:[%s4 + $0x70] sm:$0xf] %vm1114, %v1014
  %1144 = vst.msk [vmem:[%s4 + $0x74] sm:$0xf] %vm1114, %v1015
  %1145 = vst.msk [vmem:[%s4 + $0x78] sm:$0xf] %vm1114, %v1016
  %1146 = vst.msk [vmem:[%s4 + $0x7c] sm:$0xf] %vm1114, %v1017
  %1147 = vst.msk [vmem:[%s4 + $0x80] sm:$0xf] %vm1114, %v1018
  %1148 = vst.msk [vmem:[%s4 + $0x84] sm:$0xf] %vm1114, %v1019
  %1149 = vst.msk [vmem:[%s4 + $0x88] sm:$0xf] %vm1114, %v1020
  %1150 = vst.msk [vmem:[%s4 + $0x8c] sm:$0xf] %vm1114, %v1021
  %1151 = vst.msk [vmem:[%s4 + $0x90] sm:$0xf] %vm1114, %v1022
  %1152 = vst.msk [vmem:[%s4 + $0x94] sm:$0xf] %vm1114, %v1023
  %1153 = vst.msk [vmem:[%s4 + $0x98] sm:$0xf] %vm1114, %v1024
  %1154 = vst.msk [vmem:[%s4 + $0x9c] sm:$0xf] %vm1114, %v1025
  %1155 = vst.msk [vmem:[%s4 + $0xa0] sm:$0xf] %vm1114, %v1026
  %1156 = vst.msk [vmem:[%s4 + $0xa4] sm:$0xf] %vm1114, %v1027
  %1157 = vst.msk [vmem:[%s4 + $0xa8] sm:$0xf] %vm1114, %v1028
  %1158 = vst.msk [vmem:[%s4 + $0xac] sm:$0xf] %vm1114, %v1029
  %1159 = vst.msk [vmem:[%s4 + $0xb0] sm:$0xf] %vm1114, %v1030
  %1160 = vst.msk [vmem:[%s4 + $0xb4] sm:$0xf] %vm1114, %v1031
  %1161 = vst.msk [vmem:[%s4 + $0xb8] sm:$0xf] %vm1114, %v1032
  %1162 = vst.msk [vmem:[%s4 + $0xbc] sm:$0xf] %vm1114, %v1033
  %1163 = vst.msk [vmem:[%s4 + $0xc0] sm:$0xf] %vm1114, %v1034
  %1164 = vst.msk [vmem:[%s4 + $0xc4] sm:$0xf] %vm1114, %v1035
  %1165 = vst.msk [vmem:[%s4 + $0xc8] sm:$0xf] %vm1114, %v1036
  %1166 = vst.msk [vmem:[%s4 + $0xcc] sm:$0xf] %vm1114, %v1037
  %1167 = vst.msk [vmem:[%s4 + $0xd0] sm:$0xf] %vm1114, %v1038
  %1168 = vst.msk [vmem:[%s4 + $0xd4] sm:$0xf] %vm1114, %v1039
  %1169 = vst.msk [vmem:[%s4 + $0xd8] sm:$0xf] %vm1114, %v1040
  %1170 = vst.msk [vmem:[%s4 + $0xdc] sm:$0xf] %vm1114, %v1041
  %1171 = vst.msk [vmem:[%s4 + $0xe0] sm:$0xf] %vm1114, %v1042
  %1172 = vst.msk [vmem:[%s4 + $0xe4] sm:$0xf] %vm1114, %v1043
  %1173 = vst.msk [vmem:[%s4 + $0xe8] sm:$0xf] %vm1114, %v1044
  %1174 = vst.msk [vmem:[%s4 + $0xec] sm:$0xf] %vm1114, %v1045
  %1175 = vst.msk [vmem:[%s4 + $0xf0] sm:$0xf] %vm1114, %v1046
  %1176 = vst.msk [vmem:[%s4 + $0xf4] sm:$0xf] %vm1114, %v1047
  %1177 = vst.msk [vmem:[%s4 + $0xf8] sm:$0xf] %vm1114, %v1048
  %1178 = vst.msk [vmem:[%s4 + $0xfc] sm:$0xf] %vm1114, %v1049
  // Predicated region
  $region18: #{attention_decoder_forward.11} parent=0 // pred_check
    _
  $region19: #{attention_decoder_forward.11} parent=0 // pred_check_branch
    %1180 = sbr.rel (0) target = $region21
  $region20: #{attention_decoder_forward.11} parent=0 // pred_region
    _
  $region21: #{attention_decoder_forward.11} parent=0 // pred_fallthru
    _
  // Predicated region
  $region22: #{attention_decoder_forward.11} parent=0 // pred_check
    _
  $region23: #{attention_decoder_forward.11} parent=0 // pred_check_branch
    %1182 = sbr.rel (0) target = $region25
  $region24: #{attention_decoder_forward.11} parent=0 // pred_region
    _
  $region25: #{attention_decoder_forward.11} parent=0 // pred_fallthru
    _

// kernel: attention_decoder_forward.12
$region0: #{attention_decoder_forward.12}
  #allocation0 [shape = 'u32[]', space=smem, size = 0x4, offset = 0x4, fixed_abs, tag = 'smem constant byte address 0x4 - core index']
  #allocation1 [shape = 'u32[144,128]{1,0:T(1,128)}', space=vmem, size = 0x12000, scoped, tag = 'internal scratch']
  %s0 = inlined_call_operand.vmem [shape: bf16[512,288], index: 0, kind: input, shape index: {}]
  %s1 = inlined_call_operand.vmem [shape: bf16[288,32], index: 1, kind: input, shape index: {}]
  %s2 = inlined_call_operand.vmem [shape: f32[1,32], index: 2, kind: input, shape index: {}]
  %s3 = inlined_call_operand.vmem [shape: f32[1,32], index: 3, kind: input, shape index: {}]
  %s4 = inlined_call_operand.vmem [shape: bf16[512,32], index: 4, kind: output, shape index: {}]
  %s5 = sld [smem:[#allocation0]]
  $region26: #{attention_decoder_forward.12} parent=0
    _
  %s7 = ssub.s32 1, %s5
  %s8 = scalar_select 0, %s7, %s5
  // Predicated region
  $region2: #{attention_decoder_forward.12} parent=0 // pred_check
    _
  $region3: #{attention_decoder_forward.12} parent=0 // pred_check_branch
    %10 = sbr.rel (0) target = $region5
  $region4: #{attention_decoder_forward.12} parent=0 // pred_region
    _
  $region5: #{attention_decoder_forward.12} parent=0 // pred_fallthru
    _
  // Predicated region
  $region6: #{attention_decoder_forward.12} parent=0 // pred_check
    _
  $region7: #{attention_decoder_forward.12} parent=0 // pred_check_branch
    %12 = sbr.rel (0) target = $region9
  $region8: #{attention_decoder_forward.12} parent=0 // pred_region
    _
  $region9: #{attention_decoder_forward.12} parent=0 // pred_fallthru
    _
  // Predicated region
  $region10: #{attention_decoder_forward.12} parent=0 // pred_check
    _
  $region11: #{attention_decoder_forward.12} parent=0 // pred_check_branch
    %14 = sbr.rel (0) target = $region13
  $region12: #{attention_decoder_forward.12} parent=0 // pred_region
    _
  $region13: #{attention_decoder_forward.12} parent=0 // pred_fallthru
    _
  // Predicated region
  $region14: #{attention_decoder_forward.12} parent=0 // pred_check
    _
  $region15: #{attention_decoder_forward.12} parent=0 // pred_check_branch
    %16 = sbr.rel (0) target = $region17
  $region16: #{attention_decoder_forward.12} parent=0 // pred_region
    _
  $region17: #{attention_decoder_forward.12} parent=0 // pred_fallthru
    _
  %v18 = vld [vmem:[%s0] sm:$0xff]
  %v19 = vld [vmem:[%s0 + $0x8] sm:$0xf]
  %v20 = vld [vmem:[%s0 + $0xc] sm:$0xff]
  %v21 = vld [vmem:[%s0 + $0x14] sm:$0xf]
  %v22 = vld [vmem:[%s0 + $0x18] sm:$0xff]
  %v23 = vld [vmem:[%s0 + $0x20] sm:$0xf]
  %v24 = vld [vmem:[%s0 + $0x24] sm:$0xff]
  %v25 = vld [vmem:[%s0 + $0x2c] sm:$0xf]
  %v26 = vld [vmem:[%s0 + $0x30] sm:$0xff]
  %v27 = vld [vmem:[%s0 + $0x38] sm:$0xf]
  %v28 = vld [vmem:[%s0 + $0x3c] sm:$0xff]
  %v29 = vld [vmem:[%s0 + $0x44] sm:$0xf]
  %v30 = vld [vmem:[%s0 + $0x48] sm:$0xff]
  %v31 = vld [vmem:[%s0 + $0x50] sm:$0xf]
  %v32 = vld [vmem:[%s0 + $0x54] sm:$0xff]
  %v33 = vld [vmem:[%s0 + $0x5c] sm:$0xf]
  %v34 = vld [vmem:[%s0 + $0x60] sm:$0xff]
  %v35 = vld [vmem:[%s0 + $0x68] sm:$0xf]
  %v36 = vld [vmem:[%s0 + $0x6c] sm:$0xff]
  %v37 = vld [vmem:[%s0 + $0x74] sm:$0xf]
  %v38 = vld [vmem:[%s0 + $0x78] sm:$0xff]
  %v39 = vld [vmem:[%s0 + $0x80] sm:$0xf]
  %v40 = vld [vmem:[%s0 + $0x84] sm:$0xff]
  %v41 = vld [vmem:[%s0 + $0x8c] sm:$0xf]
  %v42 = vld [vmem:[%s0 + $0x90] sm:$0xff]
  %v43 = vld [vmem:[%s0 + $0x98] sm:$0xf]
  %v44 = vld [vmem:[%s0 + $0x9c] sm:$0xff]
  %v45 = vld [vmem:[%s0 + $0xa4] sm:$0xf]
  %v46 = vld [vmem:[%s0 + $0xa8] sm:$0xff]
  %v47 = vld [vmem:[%s0 + $0xb0] sm:$0xf]
  %v48 = vld [vmem:[%s0 + $0xb4] sm:$0xff]
  %v49 = vld [vmem:[%s0 + $0xbc] sm:$0xf]
  %v50 = vld [vmem:[%s0 + $0xc0] sm:$0xff]
  %v51 = vld [vmem:[%s0 + $0xc8] sm:$0xf]
  %v52 = vld [vmem:[%s0 + $0xcc] sm:$0xff]
  %v53 = vld [vmem:[%s0 + $0xd4] sm:$0xf]
  %v54 = vld [vmem:[%s0 + $0xd8] sm:$0xff]
  %v55 = vld [vmem:[%s0 + $0xe0] sm:$0xf]
  %v56 = vld [vmem:[%s0 + $0xe4] sm:$0xff]
  %v57 = vld [vmem:[%s0 + $0xec] sm:$0xf]
  %v58 = vld [vmem:[%s0 + $0xf0] sm:$0xff]
  %v59 = vld [vmem:[%s0 + $0xf8] sm:$0xf]
  %v60 = vld [vmem:[%s0 + $0xfc] sm:$0xff]
  %v61 = vld [vmem:[%s0 + $0x104] sm:$0xf]
  %v62 = vld [vmem:[%s0 + $0x108] sm:$0xff]
  %v63 = vld [vmem:[%s0 + $0x110] sm:$0xf]
  %v64 = vld [vmem:[%s0 + $0x114] sm:$0xff]
  %v65 = vld [vmem:[%s0 + $0x11c] sm:$0xf]
  %v66 = vld [vmem:[%s0 + $0x120] sm:$0xff]
  %v67 = vld [vmem:[%s0 + $0x128] sm:$0xf]
  %v68 = vld [vmem:[%s0 + $0x12c] sm:$0xff]
  %v69 = vld [vmem:[%s0 + $0x134] sm:$0xf]
  %v70 = vld [vmem:[%s0 + $0x138] sm:$0xff]
  %v71 = vld [vmem:[%s0 + $0x140] sm:$0xf]
  %v72 = vld [vmem:[%s0 + $0x144] sm:$0xff]
  %v73 = vld [vmem:[%s0 + $0x14c] sm:$0xf]
  %v74 = vld [vmem:[%s0 + $0x150] sm:$0xff]
  %v75 = vld [vmem:[%s0 + $0x158] sm:$0xf]
  %v76 = vld [vmem:[%s0 + $0x15c] sm:$0xff]
  %v77 = vld [vmem:[%s0 + $0x164] sm:$0xf]
  %v78 = vld [vmem:[%s0 + $0x168] sm:$0xff]
  %v79 = vld [vmem:[%s0 + $0x170] sm:$0xf]
  %v80 = vld [vmem:[%s0 + $0x174] sm:$0xff]
  %v81 = vld [vmem:[%s0 + $0x17c] sm:$0xf]
  %v82 = vld [vmem:[%s0 + $0x180] sm:$0xff]
  %v83 = vld [vmem:[%s0 + $0x188] sm:$0xf]
  %v84 = vld [vmem:[%s0 + $0x18c] sm:$0xff]
  %v85 = vld [vmem:[%s0 + $0x194] sm:$0xf]
  %v86 = vld [vmem:[%s0 + $0x198] sm:$0xff]
  %v87 = vld [vmem:[%s0 + $0x1a0] sm:$0xf]
  %v88 = vld [vmem:[%s0 + $0x1a4] sm:$0xff]
  %v89 = vld [vmem:[%s0 + $0x1ac] sm:$0xf]
  %v90 = vld [vmem:[%s0 + $0x1b0] sm:$0xff]
  %v91 = vld [vmem:[%s0 + $0x1b8] sm:$0xf]
  %v92 = vld [vmem:[%s0 + $0x1bc] sm:$0xff]
  %v93 = vld [vmem:[%s0 + $0x1c4] sm:$0xf]
  %v94 = vld [vmem:[%s0 + $0x1c8] sm:$0xff]
  %v95 = vld [vmem:[%s0 + $0x1d0] sm:$0xf]
  %v96 = vld [vmem:[%s0 + $0x1d4] sm:$0xff]
  %v97 = vld [vmem:[%s0 + $0x1dc] sm:$0xf]
  %v98 = vld [vmem:[%s0 + $0x1e0] sm:$0xff]
  %v99 = vld [vmem:[%s0 + $0x1e8] sm:$0xf]
  %v100 = vld [vmem:[%s0 + $0x1ec] sm:$0xff]
  %v101 = vld [vmem:[%s0 + $0x1f4] sm:$0xf]
  %v102 = vld [vmem:[%s0 + $0x1f8] sm:$0xff]
  %v103 = vld [vmem:[%s0 + $0x200] sm:$0xf]
  %v104 = vld [vmem:[%s0 + $0x204] sm:$0xff]
  %v105 = vld [vmem:[%s0 + $0x20c] sm:$0xf]
  %v106 = vld [vmem:[%s0 + $0x210] sm:$0xff]
  %v107 = vld [vmem:[%s0 + $0x218] sm:$0xf]
  %v108 = vld [vmem:[%s0 + $0x21c] sm:$0xff]
  %v109 = vld [vmem:[%s0 + $0x224] sm:$0xf]
  %v110 = vld [vmem:[%s0 + $0x228] sm:$0xff]
  %v111 = vld [vmem:[%s0 + $0x230] sm:$0xf]
  %v112 = vld [vmem:[%s0 + $0x234] sm:$0xff]
  %v113 = vld [vmem:[%s0 + $0x23c] sm:$0xf]
  %v114 = vld [vmem:[%s0 + $0x240] sm:$0xff]
  %v115 = vld [vmem:[%s0 + $0x248] sm:$0xf]
  %v116 = vld [vmem:[%s0 + $0x24c] sm:$0xff]
  %v117 = vld [vmem:[%s0 + $0x254] sm:$0xf]
  %v118 = vld [vmem:[%s0 + $0x258] sm:$0xff]
  %v119 = vld [vmem:[%s0 + $0x260] sm:$0xf]
  %v120 = vld [vmem:[%s0 + $0x264] sm:$0xff]
  %v121 = vld [vmem:[%s0 + $0x26c] sm:$0xf]
  %v122 = vld [vmem:[%s0 + $0x270] sm:$0xff]
  %v123 = vld [vmem:[%s0 + $0x278] sm:$0xf]
  %v124 = vld [vmem:[%s0 + $0x27c] sm:$0xff]
  %v125 = vld [vmem:[%s0 + $0x284] sm:$0xf]
  %v126 = vld [vmem:[%s0 + $0x288] sm:$0xff]
  %v127 = vld [vmem:[%s0 + $0x290] sm:$0xf]
  %v128 = vld [vmem:[%s0 + $0x294] sm:$0xff]
  %v129 = vld [vmem:[%s0 + $0x29c] sm:$0xf]
  %v130 = vld [vmem:[%s0 + $0x2a0] sm:$0xff]
  %v131 = vld [vmem:[%s0 + $0x2a8] sm:$0xf]
  %v132 = vld [vmem:[%s0 + $0x2ac] sm:$0xff]
  %v133 = vld [vmem:[%s0 + $0x2b4] sm:$0xf]
  %v134 = vld [vmem:[%s0 + $0x2b8] sm:$0xff]
  %v135 = vld [vmem:[%s0 + $0x2c0] sm:$0xf]
  %v136 = vld [vmem:[%s0 + $0x2c4] sm:$0xff]
  %v137 = vld [vmem:[%s0 + $0x2cc] sm:$0xf]
  %v138 = vld [vmem:[%s0 + $0x2d0] sm:$0xff]
  %v139 = vld [vmem:[%s0 + $0x2d8] sm:$0xf]
  %v140 = vld [vmem:[%s0 + $0x2dc] sm:$0xff]
  %v141 = vld [vmem:[%s0 + $0x2e4] sm:$0xf]
  %v142 = vld [vmem:[%s0 + $0x2e8] sm:$0xff]
  %v143 = vld [vmem:[%s0 + $0x2f0] sm:$0xf]
  %v144 = vld [vmem:[%s0 + $0x2f4] sm:$0xff]
  %v145 = vld [vmem:[%s0 + $0x2fc] sm:$0xf]
  %v146 = vld [vmem:[%s1] sm:$0xf]
  %v147 = vld [vmem:[%s1 + $0x4] sm:$0xf]
  %v148 = vld [vmem:[%s1 + $0x8] sm:$0xf]
  %v149 = vld [vmem:[%s1 + $0xc] sm:$0xf]
  %v150 = vld [vmem:[%s1 + $0x10] sm:$0xf]
  %v151 = vld [vmem:[%s1 + $0x14] sm:$0xf]
  %v152 = vld [vmem:[%s1 + $0x18] sm:$0xf]
  %v153 = vld [vmem:[%s1 + $0x1c] sm:$0xf]
  %v154 = vld [vmem:[%s1 + $0x20] sm:$0xf]
  %v155 = vld [vmem:[%s1 + $0x24] sm:$0xf]
  %v156 = vld [vmem:[%s1 + $0x28] sm:$0xf]
  %v157 = vld [vmem:[%s1 + $0x2c] sm:$0xf]
  %v158 = vld [vmem:[%s1 + $0x30] sm:$0xf]
  %v159 = vld [vmem:[%s1 + $0x34] sm:$0xf]
  %v160 = vld [vmem:[%s1 + $0x38] sm:$0xf]
  %v161 = vld [vmem:[%s1 + $0x3c] sm:$0xf]
  %v162 = vld [vmem:[%s1 + $0x40] sm:$0xf]
  %v163 = vld [vmem:[%s1 + $0x44] sm:$0xf]
  %v164 = vld [vmem:[%s1 + $0x48] sm:$0xf]
  %v165 = vld [vmem:[%s1 + $0x4c] sm:$0xf]
  %v166 = vld [vmem:[%s1 + $0x50] sm:$0xf]
  %v167 = vld [vmem:[%s1 + $0x54] sm:$0xf]
  %v168 = vld [vmem:[%s1 + $0x58] sm:$0xf]
  %v169 = vld [vmem:[%s1 + $0x5c] sm:$0xf]
  %v170 = vld [vmem:[%s1 + $0x60] sm:$0xf]
  %v171 = vld [vmem:[%s1 + $0x64] sm:$0xf]
  %v172 = vld [vmem:[%s1 + $0x68] sm:$0xf]
  %v173 = vld [vmem:[%s1 + $0x6c] sm:$0xf]
  %v174 = vld [vmem:[%s1 + $0x70] sm:$0xf]
  %v175 = vld [vmem:[%s1 + $0x74] sm:$0xf]
  %v176 = vld [vmem:[%s1 + $0x78] sm:$0xf]
  %v177 = vld [vmem:[%s1 + $0x7c] sm:$0xf]
  %v178 = vld [vmem:[%s1 + $0x80] sm:$0xf]
  %v179 = vld [vmem:[%s1 + $0x84] sm:$0xf]
  %v180 = vld [vmem:[%s1 + $0x88] sm:$0xf]
  %v181 = vld [vmem:[%s1 + $0x8c] sm:$0xf]
  %v310 = vunpack.c.l.b16 %v18
  %v311 = vunpack.c.h.b16 %v18
  %v312 = vunpack.c.l.b16 %v19
  %v313 = vunpack.c.l.b16 %v20
  %v314 = vunpack.c.h.b16 %v20
  %v315 = vunpack.c.l.b16 %v21
  %v316 = vunpack.c.l.b16 %v22
  %v317 = vunpack.c.h.b16 %v22
  %v318 = vunpack.c.l.b16 %v23
  %v319 = vunpack.c.l.b16 %v24
  %v320 = vunpack.c.h.b16 %v24
  %v321 = vunpack.c.l.b16 %v25
  %v322 = vunpack.c.l.b16 %v26
  %v323 = vunpack.c.h.b16 %v26
  %v324 = vunpack.c.l.b16 %v27
  %v325 = vunpack.c.l.b16 %v28
  %v326 = vunpack.c.h.b16 %v28
  %v327 = vunpack.c.l.b16 %v29
  %v328 = vunpack.c.l.b16 %v30
  %v329 = vunpack.c.h.b16 %v30
  %v330 = vunpack.c.l.b16 %v31
  %v331 = vunpack.c.l.b16 %v32
  %v332 = vunpack.c.h.b16 %v32
  %v333 = vunpack.c.l.b16 %v33
  %v334 = vunpack.c.l.b16 %v34
  %v335 = vunpack.c.h.b16 %v34
  %v336 = vunpack.c.l.b16 %v35
  %v337 = vunpack.c.l.b16 %v36
  %v338 = vunpack.c.h.b16 %v36
  %v339 = vunpack.c.l.b16 %v37
  %v340 = vunpack.c.l.b16 %v38
  %v341 = vunpack.c.h.b16 %v38
  %v342 = vunpack.c.l.b16 %v39
  %v343 = vunpack.c.l.b16 %v40
  %v344 = vunpack.c.h.b16 %v40
  %v345 = vunpack.c.l.b16 %v41
  %v346 = vunpack.c.l.b16 %v42
  %v347 = vunpack.c.h.b16 %v42
  %v348 = vunpack.c.l.b16 %v43
  %v349 = vunpack.c.l.b16 %v44
  %v350 = vunpack.c.h.b16 %v44
  %v351 = vunpack.c.l.b16 %v45
  %v352 = vunpack.c.l.b16 %v46
  %v353 = vunpack.c.h.b16 %v46
  %v354 = vunpack.c.l.b16 %v47
  %v355 = vunpack.c.l.b16 %v48
  %v356 = vunpack.c.h.b16 %v48
  %v357 = vunpack.c.l.b16 %v49
  %v358 = vunpack.c.l.b16 %v50
  %v359 = vunpack.c.h.b16 %v50
  %v360 = vunpack.c.l.b16 %v51
  %v361 = vunpack.c.l.b16 %v52
  %v362 = vunpack.c.h.b16 %v52
  %v363 = vunpack.c.l.b16 %v53
  %v364 = vunpack.c.l.b16 %v54
  %v365 = vunpack.c.h.b16 %v54
  %v366 = vunpack.c.l.b16 %v55
  %v367 = vunpack.c.l.b16 %v56
  %v368 = vunpack.c.h.b16 %v56
  %v369 = vunpack.c.l.b16 %v57
  %v370 = vunpack.c.l.b16 %v58
  %v371 = vunpack.c.h.b16 %v58
  %v372 = vunpack.c.l.b16 %v59
  %v373 = vunpack.c.l.b16 %v60
  %v374 = vunpack.c.h.b16 %v60
  %v375 = vunpack.c.l.b16 %v61
  %v376 = vunpack.c.l.b16 %v62
  %v377 = vunpack.c.h.b16 %v62
  %v378 = vunpack.c.l.b16 %v63
  %v379 = vunpack.c.l.b16 %v64
  %v380 = vunpack.c.h.b16 %v64
  %v381 = vunpack.c.l.b16 %v65
  %v382 = vunpack.c.l.b16 %v66
  %v383 = vunpack.c.h.b16 %v66
  %v384 = vunpack.c.l.b16 %v67
  %v385 = vunpack.c.l.b16 %v68
  %v386 = vunpack.c.h.b16 %v68
  %v387 = vunpack.c.l.b16 %v69
  %v388 = vunpack.c.l.b16 %v70
  %v389 = vunpack.c.h.b16 %v70
  %v390 = vunpack.c.l.b16 %v71
  %v391 = vunpack.c.l.b16 %v72
  %v392 = vunpack.c.h.b16 %v72
  %v393 = vunpack.c.l.b16 %v73
  %v394 = vunpack.c.l.b16 %v74
  %v395 = vunpack.c.h.b16 %v74
  %v396 = vunpack.c.l.b16 %v75
  %v397 = vunpack.c.l.b16 %v76
  %v398 = vunpack.c.h.b16 %v76
  %v399 = vunpack.c.l.b16 %v77
  %v400 = vunpack.c.l.b16 %v78
  %v401 = vunpack.c.h.b16 %v78
  %v402 = vunpack.c.l.b16 %v79
  %v403 = vunpack.c.l.b16 %v80
  %v404 = vunpack.c.h.b16 %v80
  %v405 = vunpack.c.l.b16 %v81
  %v406 = vunpack.c.l.b16 %v82
  %v407 = vunpack.c.h.b16 %v82
  %v408 = vunpack.c.l.b16 %v83
  %v409 = vunpack.c.l.b16 %v84
  %v410 = vunpack.c.h.b16 %v84
  %v411 = vunpack.c.l.b16 %v85
  %v412 = vunpack.c.l.b16 %v86
  %v413 = vunpack.c.h.b16 %v86
  %v414 = vunpack.c.l.b16 %v87
  %v415 = vunpack.c.l.b16 %v88
  %v416 = vunpack.c.h.b16 %v88
  %v417 = vunpack.c.l.b16 %v89
  %v418 = vunpack.c.l.b16 %v90
  %v419 = vunpack.c.h.b16 %v90
  %v420 = vunpack.c.l.b16 %v91
  %v421 = vunpack.c.l.b16 %v92
  %v422 = vunpack.c.h.b16 %v92
  %v423 = vunpack.c.l.b16 %v93
  %v424 = vunpack.c.l.b16 %v94
  %v425 = vunpack.c.h.b16 %v94
  %v426 = vunpack.c.l.b16 %v95
  %v427 = vunpack.c.l.b16 %v96
  %v428 = vunpack.c.h.b16 %v96
  %v429 = vunpack.c.l.b16 %v97
  %v430 = vunpack.c.l.b16 %v98
  %v431 = vunpack.c.h.b16 %v98
  %v432 = vunpack.c.l.b16 %v99
  %v433 = vunpack.c.l.b16 %v100
  %v434 = vunpack.c.h.b16 %v100
  %v435 = vunpack.c.l.b16 %v101
  %v436 = vunpack.c.l.b16 %v102
  %v437 = vunpack.c.h.b16 %v102
  %v438 = vunpack.c.l.b16 %v103
  %v439 = vunpack.c.l.b16 %v104
  %v440 = vunpack.c.h.b16 %v104
  %v441 = vunpack.c.l.b16 %v105
  %v442 = vunpack.c.l.b16 %v106
  %v443 = vunpack.c.h.b16 %v106
  %v444 = vunpack.c.l.b16 %v107
  %v445 = vunpack.c.l.b16 %v108
  %v446 = vunpack.c.h.b16 %v108
  %v447 = vunpack.c.l.b16 %v109
  %v448 = vunpack.c.l.b16 %v110
  %v449 = vunpack.c.h.b16 %v110
  %v450 = vunpack.c.l.b16 %v111
  %v451 = vunpack.c.l.b16 %v112
  %v452 = vunpack.c.h.b16 %v112
  %v453 = vunpack.c.l.b16 %v113
  %v454 = vunpack.c.l.b16 %v114
  %v455 = vunpack.c.h.b16 %v114
  %v456 = vunpack.c.l.b16 %v115
  %v457 = vunpack.c.l.b16 %v116
  %v458 = vunpack.c.h.b16 %v116
  %v459 = vunpack.c.l.b16 %v117
  %v460 = vunpack.c.l.b16 %v118
  %v461 = vunpack.c.h.b16 %v118
  %v462 = vunpack.c.l.b16 %v119
  %v463 = vunpack.c.l.b16 %v120
  %v464 = vunpack.c.h.b16 %v120
  %v465 = vunpack.c.l.b16 %v121
  %v466 = vunpack.c.l.b16 %v122
  %v467 = vunpack.c.h.b16 %v122
  %v468 = vunpack.c.l.b16 %v123
  %v469 = vunpack.c.l.b16 %v124
  %v470 = vunpack.c.h.b16 %v124
  %v471 = vunpack.c.l.b16 %v125
  %v472 = vunpack.c.l.b16 %v126
  %v473 = vunpack.c.h.b16 %v126
  %v474 = vunpack.c.l.b16 %v127
  %v475 = vunpack.c.l.b16 %v128
  %v476 = vunpack.c.h.b16 %v128
  %v477 = vunpack.c.l.b16 %v129
  %v478 = vunpack.c.l.b16 %v130
  %v479 = vunpack.c.h.b16 %v130
  %v480 = vunpack.c.l.b16 %v131
  %v481 = vunpack.c.l.b16 %v132
  %v482 = vunpack.c.h.b16 %v132
  %v483 = vunpack.c.l.b16 %v133
  %v484 = vunpack.c.l.b16 %v134
  %v485 = vunpack.c.h.b16 %v134
  %v486 = vunpack.c.l.b16 %v135
  %v487 = vunpack.c.l.b16 %v136
  %v488 = vunpack.c.h.b16 %v136
  %v489 = vunpack.c.l.b16 %v137
  %v490 = vunpack.c.l.b16 %v138
  %v491 = vunpack.c.h.b16 %v138
  %v492 = vunpack.c.l.b16 %v139
  %v493 = vunpack.c.l.b16 %v140
  %v494 = vunpack.c.h.b16 %v140
  %v495 = vunpack.c.l.b16 %v141
  %v496 = vunpack.c.l.b16 %v142
  %v497 = vunpack.c.h.b16 %v142
  %v498 = vunpack.c.l.b16 %v143
  %v499 = vunpack.c.l.b16 %v144
  %v500 = vunpack.c.h.b16 %v144
  %v501 = vunpack.c.l.b16 %v145
  %v502 = vpack.c.b16 %v313, %v310
  %v503 = vpack.c.b16 %v314, %v311
  %v504 = vpack.c.b16 %v315, %v312
  %v505 = vpack.c.b16 %v319, %v316
  %v506 = vpack.c.b16 %v320, %v317
  %v507 = vpack.c.b16 %v321, %v318
  %v508 = vpack.c.b16 %v325, %v322
  %v509 = vpack.c.b16 %v326, %v323
  %v510 = vpack.c.b16 %v327, %v324
  %v511 = vpack.c.b16 %v331, %v328
  %v512 = vpack.c.b16 %v332, %v329
  %v513 = vpack.c.b16 %v333, %v330
  %v514 = vpack.c.b16 %v337, %v334
  %v515 = vpack.c.b16 %v338, %v335
  %v516 = vpack.c.b16 %v339, %v336
  %v517 = vpack.c.b16 %v343, %v340
  %v518 = vpack.c.b16 %v344, %v341
  %v519 = vpack.c.b16 %v345, %v342
  %v520 = vpack.c.b16 %v349, %v346
  %v521 = vpack.c.b16 %v350, %v347
  %v522 = vpack.c.b16 %v351, %v348
  %v523 = vpack.c.b16 %v355, %v352
  %v524 = vpack.c.b16 %v356, %v353
  %v525 = vpack.c.b16 %v357, %v354
  %v526 = vpack.c.b16 %v361, %v358
  %v527 = vpack.c.b16 %v362, %v359
  %v528 = vpack.c.b16 %v363, %v360
  %v529 = vpack.c.b16 %v367, %v364
  %v530 = vpack.c.b16 %v368, %v365
  %v531 = vpack.c.b16 %v369, %v366
  %v532 = vpack.c.b16 %v373, %v370
  %v533 = vpack.c.b16 %v374, %v371
  %v534 = vpack.c.b16 %v375, %v372
  %v535 = vpack.c.b16 %v379, %v376
  %v536 = vpack.c.b16 %v380, %v377
  %v537 = vpack.c.b16 %v381, %v378
  %v538 = vpack.c.b16 %v385, %v382
  %v539 = vpack.c.b16 %v386, %v383
  %v540 = vpack.c.b16 %v387, %v384
  %v541 = vpack.c.b16 %v391, %v388
  %v542 = vpack.c.b16 %v392, %v389
  %v543 = vpack.c.b16 %v393, %v390
  %v544 = vpack.c.b16 %v397, %v394
  %v545 = vpack.c.b16 %v398, %v395
  %v546 = vpack.c.b16 %v399, %v396
  %v547 = vpack.c.b16 %v403, %v400
  %v548 = vpack.c.b16 %v404, %v401
  %v549 = vpack.c.b16 %v405, %v402
  %v550 = vpack.c.b16 %v409, %v406
  %v551 = vpack.c.b16 %v410, %v407
  %v552 = vpack.c.b16 %v411, %v408
  %v553 = vpack.c.b16 %v415, %v412
  %v554 = vpack.c.b16 %v416, %v413
  %v555 = vpack.c.b16 %v417, %v414
  %v556 = vpack.c.b16 %v421, %v418
  %v557 = vpack.c.b16 %v422, %v419
  %v558 = vpack.c.b16 %v423, %v420
  %v559 = vpack.c.b16 %v427, %v424
  %v560 = vpack.c.b16 %v428, %v425
  %v561 = vpack.c.b16 %v429, %v426
  %v562 = vpack.c.b16 %v433, %v430
  %v563 = vpack.c.b16 %v434, %v431
  %v564 = vpack.c.b16 %v435, %v432
  %v565 = vpack.c.b16 %v439, %v436
  %v566 = vpack.c.b16 %v440, %v437
  %v567 = vpack.c.b16 %v441, %v438
  %v568 = vpack.c.b16 %v445, %v442
  %v569 = vpack.c.b16 %v446, %v443
  %v570 = vpack.c.b16 %v447, %v444
  %v571 = vpack.c.b16 %v451, %v448
  %v572 = vpack.c.b16 %v452, %v449
  %v573 = vpack.c.b16 %v453, %v450
  %v574 = vpack.c.b16 %v457, %v454
  %v575 = vpack.c.b16 %v458, %v455
  %v576 = vpack.c.b16 %v459, %v456
  %v577 = vpack.c.b16 %v463, %v460
  %v578 = vpack.c.b16 %v464, %v461
  %v579 = vpack.c.b16 %v465, %v462
  %v580 = vpack.c.b16 %v469, %v466
  %v581 = vpack.c.b16 %v470, %v467
  %v582 = vpack.c.b16 %v471, %v468
  %v583 = vpack.c.b16 %v475, %v472
  %v584 = vpack.c.b16 %v476, %v473
  %v585 = vpack.c.b16 %v477, %v474
  %v586 = vpack.c.b16 %v481, %v478
  %v587 = vpack.c.b16 %v482, %v479
  %v588 = vpack.c.b16 %v483, %v480
  %v589 = vpack.c.b16 %v487, %v484
  %v590 = vpack.c.b16 %v488, %v485
  %v591 = vpack.c.b16 %v489, %v486
  %v592 = vpack.c.b16 %v493, %v490
  %v593 = vpack.c.b16 %v494, %v491
  %v594 = vpack.c.b16 %v495, %v492
  %v595 = vpack.c.b16 %v499, %v496
  %v596 = vpack.c.b16 %v500, %v497
  %v597 = vpack.c.b16 %v501, %v498
  %v698 = vunpack.c.l.b16 %v146
  %v699 = vunpack.c.l.b16 %v147
  %v700 = vunpack.c.l.b16 %v148
  %v701 = vunpack.c.l.b16 %v149
  %v702 = vunpack.c.l.b16 %v150
  %v703 = vunpack.c.l.b16 %v151
  %v704 = vunpack.c.l.b16 %v152
  %v705 = vunpack.c.l.b16 %v153
  %v706 = vunpack.c.l.b16 %v154
  %v707 = vunpack.c.l.b16 %v155
  %v708 = vunpack.c.l.b16 %v156
  %v709 = vunpack.c.l.b16 %v157
  %v710 = vunpack.c.l.b16 %v158
  %v711 = vunpack.c.l.b16 %v159
  %v712 = vunpack.c.l.b16 %v160
  %v713 = vunpack.c.l.b16 %v161
  %v714 = vunpack.c.l.b16 %v162
  %v715 = vunpack.c.l.b16 %v163
  %v716 = vunpack.c.l.b16 %v164
  %v717 = vunpack.c.l.b16 %v165
  %v718 = vunpack.c.l.b16 %v166
  %v719 = vunpack.c.l.b16 %v167
  %v720 = vunpack.c.l.b16 %v168
  %v721 = vunpack.c.l.b16 %v169
  %v722 = vunpack.c.l.b16 %v170
  %v723 = vunpack.c.l.b16 %v171
  %v724 = vunpack.c.l.b16 %v172
  %v725 = vunpack.c.l.b16 %v173
  %v726 = vunpack.c.l.b16 %v174
  %v727 = vunpack.c.l.b16 %v175
  %v728 = vunpack.c.l.b16 %v176
  %v729 = vunpack.c.l.b16 %v177
  %v730 = vunpack.c.l.b16 %v178
  %v731 = vunpack.c.l.b16 %v179
  %v732 = vunpack.c.l.b16 %v180
  %v733 = vunpack.c.l.b16 %v181
  %v734 = vpack.c.b16 %v699, %v698
  %v735 = vpack.c.b16 %v701, %v700
  %v736 = vpack.c.b16 %v703, %v702
  %v737 = vpack.c.b16 %v705, %v704
  %v738 = vpack.c.b16 %v707, %v706
  %v739 = vpack.c.b16 %v709, %v708
  %v740 = vpack.c.b16 %v711, %v710
  %v741 = vpack.c.b16 %v713, %v712
  %v742 = vpack.c.b16 %v715, %v714
  %v743 = vpack.c.b16 %v717, %v716
  %v744 = vpack.c.b16 %v719, %v718
  %v745 = vpack.c.b16 %v721, %v720
  %v746 = vpack.c.b16 %v723, %v722
  %v747 = vpack.c.b16 %v725, %v724
  %v748 = vpack.c.b16 %v727, %v726
  %v749 = vpack.c.b16 %v729, %v728
  %v750 = vpack.c.b16 %v731, %v730
  %v751 = vpack.c.b16 %v733, %v732
  %vm770 = vcmask 261120
  %v772 = vsel %vm770, %v504, 0
  %v775 = vsel %vm770, %v507, 0
  %v778 = vsel %vm770, %v510, 0
  %v781 = vsel %vm770, %v513, 0
  %v784 = vsel %vm770, %v516, 0
  %v787 = vsel %vm770, %v519, 0
  %v790 = vsel %vm770, %v522, 0
  %v793 = vsel %vm770, %v525, 0
  %v796 = vsel %vm770, %v528, 0
  %v799 = vsel %vm770, %v531, 0
  %v802 = vsel %vm770, %v534, 0
  %v805 = vsel %vm770, %v537, 0
  %v808 = vsel %vm770, %v540, 0
  %v811 = vsel %vm770, %v543, 0
  %v814 = vsel %vm770, %v546, 0
  %v817 = vsel %vm770, %v549, 0
  %v820 = vsel %vm770, %v552, 0
  %v823 = vsel %vm770, %v555, 0
  %v826 = vsel %vm770, %v558, 0
  %v829 = vsel %vm770, %v561, 0
  %v832 = vsel %vm770, %v564, 0
  %v835 = vsel %vm770, %v567, 0
  %v838 = vsel %vm770, %v570, 0
  %v841 = vsel %vm770, %v573, 0
  %v844 = vsel %vm770, %v576, 0
  %v847 = vsel %vm770, %v579, 0
  %v850 = vsel %vm770, %v582, 0
  %v853 = vsel %vm770, %v585, 0
  %v856 = vsel %vm770, %v588, 0
  %v859 = vsel %vm770, %v591, 0
  %v862 = vsel %vm770, %v594, 0
  %v865 = vsel %vm770, %v597, 0
  %867 = vmatprep.subr.bf16.mxu0 0
  %868 = vmatpush1.bf16.msra.mxu0 %v734
  %869 = vmatprep.subr.bf16.mxu0 0
  %870 = vmatpush1.bf16.msra.mxu0 %v735
  %871 = vmatprep.subr.bf16.mxu0 0
  %872 = vmatpush1.bf16.msra.mxu0 %v736
  %873 = vmatprep.subr.bf16.mxu0 0
  %874 = vmatpush1.bf16.msra.mxu0 %v737
  %875 = vmatprep.subr.bf16.mxu0 0
  %876 = vmatpush1.bf16.msra.mxu0 %v738
  %877 = vmatprep.subr.bf16.mxu0 0
  %878 = vmatpush1.bf16.msra.mxu0 %v739
  %879 = vmatprep.subr.bf16.mxu0 0
  %880 = vmatpush1.bf16.msra.mxu0 %v740
  %881 = vmatprep.subr.bf16.mxu0 0
  %882 = vmatpush1.bf16.msra.mxu0 %v741
  %883 = vmatprep.subr.bf16.mxu0 0
  %884 = vmatpush1.bf16.msra.mxu0 %v742
  %885 = vmatprep.subr.bf16.mxu0 0
  %886 = vmatpush1.bf16.msra.mxu0 %v743
  %887 = vmatprep.subr.bf16.mxu0 0
  %888 = vmatpush1.bf16.msra.mxu0 %v744
  %889 = vmatprep.subr.bf16.mxu0 0
  %890 = vmatpush1.bf16.msra.mxu0 %v745
  %891 = vmatprep.subr.bf16.mxu0 0
  %892 = vmatpush1.bf16.msra.mxu0 %v746
  %893 = vmatprep.subr.bf16.mxu0 0
  %894 = vmatpush1.bf16.msra.mxu0 %v747
  %895 = vmatprep.subr.bf16.mxu0 0
  %896 = vmatpush1.bf16.msra.mxu0 %v748
  %897 = vmatprep.subr.bf16.mxu0 0
  %898 = vmatpush1.bf16.msra.mxu0 %v749
  %899 = vmatprep.mubr.bf16.mxu0 %v503
  %900 = vmatmul.mubr.bf16.gmra.mrb[0].mxu0 %v502
  %v901 = vpop.f32.mrb[0].mxu0
  %v902 = vadd.f32 0.0, %v901
  %v903 = vpop.f32.mrb[0].mxu0
  %v904 = vpop.f32.mrb[0].mxu0
  %v905 = vadd.f32 0.0, %v904
  %v906 = vpop.f32.mrb[0].mxu0
  %907 = vmatprep.mubr.bf16.mxu0 %v506
  %908 = vmatmul.mubr.bf16.gmra.mrb[0].mxu0 %v505
  %v909 = vpop.f32.mrb[0].mxu0
  %v910 = vadd.f32 0.0, %v909
  %v911 = vpop.f32.mrb[0].mxu0
  %v912 = vpop.f32.mrb[0].mxu0
  %v913 = vadd.f32 0.0, %v912
  %v914 = vpop.f32.mrb[0].mxu0
  %915 = vmatprep.mubr.bf16.mxu0 %v509
  %916 = vmatmul.mubr.bf16.gmra.mrb[0].mxu0 %v508
  %v917 = vpop.f32.mrb[0].mxu0
  %v918 = vadd.f32 0.0, %v917
  %v919 = vpop.f32.mrb[0].mxu0
  %v920 = vpop.f32.mrb[0].mxu0
  %v921 = vadd.f32 0.0, %v920
  %v922 = vpop.f32.mrb[0].mxu0
  %923 = vmatprep.mubr.bf16.mxu0 %v512
  %924 = vmatmul.mubr.bf16.gmra.mrb[0].mxu0 %v511
  %v925 = vpop.f32.mrb[0].mxu0
  %v926 = vadd.f32 0.0, %v925
  %v927 = vpop.f32.mrb[0].mxu0
  %v928 = vpop.f32.mrb[0].mxu0
  %v929 = vadd.f32 0.0, %v928
  %v930 = vpop.f32.mrb[0].mxu0
  %931 = vmatprep.mubr.bf16.mxu0 %v515
  %932 = vmatmul.mubr.bf16.gmra.mrb[0].mxu0 %v514
  %v933 = vpop.f32.mrb[0].mxu0
  %v934 = vadd.f32 0.0, %v933
  %v935 = vpop.f32.mrb[0].mxu0
  %v936 = vpop.f32.mrb[0].mxu0
  %v937 = vadd.f32 0.0, %v936
  %v938 = vpop.f32.mrb[0].mxu0
  %939 = vmatprep.mubr.bf16.mxu0 %v518
  %940 = vmatmul.mubr.bf16.gmra.mrb[0].mxu0 %v517
  %v941 = vpop.f32.mrb[0].mxu0
  %v942 = vadd.f32 0.0, %v941
  %v943 = vpop.f32.mrb[0].mxu0
  %v944 = vpop.f32.mrb[0].mxu0
  %v945 = vadd.f32 0.0, %v944
  %v946 = vpop.f32.mrb[0].mxu0
  %947 = vmatprep.mubr.bf16.mxu0 %v521
  %948 = vmatmul.mubr.bf16.gmra.mrb[0].mxu0 %v520
  %v949 = vpop.f32.mrb[0].mxu0
  %v950 = vadd.f32 0.0, %v949
  %v951 = vpop.f32.mrb[0].mxu0
  %v952 = vpop.f32.mrb[0].mxu0
  %v953 = vadd.f32 0.0, %v952
  %v954 = vpop.f32.mrb[0].mxu0
  %955 = vmatprep.mubr.bf16.mxu0 %v524
  %956 = vmatmul.mubr.bf16.gmra.mrb[0].mxu0 %v523
  %v957 = vpop.f32.mrb[0].mxu0
  %v958 = vadd.f32 0.0, %v957
  %v959 = vpop.f32.mrb[0].mxu0
  %v960 = vpop.f32.mrb[0].mxu0
  %v961 = vadd.f32 0.0, %v960
  %v962 = vpop.f32.mrb[0].mxu0
  %963 = vmatprep.mubr.bf16.mxu0 %v527
  %964 = vmatmul.mubr.bf16.gmra.mrb[0].mxu0 %v526
  %v965 = vpop.f32.mrb[0].mxu0
  %v966 = vadd.f32 0.0, %v965
  %v967 = vpop.f32.mrb[0].mxu0
  %v968 = vpop.f32.mrb[0].mxu0
  %v969 = vadd.f32 0.0, %v968
  %v970 = vpop.f32.mrb[0].mxu0
  %971 = vmatprep.mubr.bf16.mxu0 %v530
  %972 = vmatmul.mubr.bf16.gmra.mrb[0].mxu0 %v529
  %v973 = vpop.f32.mrb[0].mxu0
  %v974 = vadd.f32 0.0, %v973
  %v975 = vpop.f32.mrb[0].mxu0
  %v976 = vpop.f32.mrb[0].mxu0
  %v977 = vadd.f32 0.0, %v976
  %v978 = vpop.f32.mrb[0].mxu0
  %979 = vmatprep.mubr.bf16.mxu0 %v533
  %980 = vmatmul.mubr.bf16.gmra.mrb[0].mxu0 %v532
  %v981 = vpop.f32.mrb[0].mxu0
  %v982 = vadd.f32 0.0, %v981
  %v983 = vpop.f32.mrb[0].mxu0
  %v984 = vpop.f32.mrb[0].mxu0
  %v985 = vadd.f32 0.0, %v984
  %v986 = vpop.f32.mrb[0].mxu0
  %987 = vmatprep.mubr.bf16.mxu0 %v536
  %988 = vmatmul.mubr.bf16.gmra.mrb[0].mxu0 %v535
  %v989 = vpop.f32.mrb[0].mxu0
  %v990 = vadd.f32 0.0, %v989
  %v991 = vpop.f32.mrb[0].mxu0
  %v992 = vpop.f32.mrb[0].mxu0
  %v993 = vadd.f32 0.0, %v992
  %v994 = vpop.f32.mrb[0].mxu0
  %995 = vmatprep.mubr.bf16.mxu0 %v539
  %996 = vmatmul.mubr.bf16.gmra.mrb[0].mxu0 %v538
  %v997 = vpop.f32.mrb[0].mxu0
  %v998 = vadd.f32 0.0, %v997
  %v999 = vpop.f32.mrb[0].mxu0
  %v1000 = vpop.f32.mrb[0].mxu0
  %v1001 = vadd.f32 0.0, %v1000
  %v1002 = vpop.f32.mrb[0].mxu0
  %1003 = vmatprep.mubr.bf16.mxu0 %v542
  %1004 = vmatmul.mubr.bf16.gmra.mrb[0].mxu0 %v541
  %v1005 = vpop.f32.mrb[0].mxu0
  %v1006 = vadd.f32 0.0, %v1005
  %v1007 = vpop.f32.mrb[0].mxu0
  %v1008 = vpop.f32.mrb[0].mxu0
  %v1009 = vadd.f32 0.0, %v1008
  %v1010 = vpop.f32.mrb[0].mxu0
  %1011 = vmatprep.mubr.bf16.mxu0 %v545
  %1012 = vmatmul.mubr.bf16.gmra.mrb[0].mxu0 %v544
  %v1013 = vpop.f32.mrb[0].mxu0
  %v1014 = vadd.f32 0.0, %v1013
  %v1015 = vpop.f32.mrb[0].mxu0
  %v1016 = vpop.f32.mrb[0].mxu0
  %v1017 = vadd.f32 0.0, %v1016
  %v1018 = vpop.f32.mrb[0].mxu0
  %1019 = vmatprep.mubr.bf16.mxu0 %v548
  %1020 = vmatmul.mubr.bf16.gmra.mrb[0].mxu0 %v547
  %v1021 = vpop.f32.mrb[0].mxu0
  %v1022 = vadd.f32 0.0, %v1021
  %v1023 = vpop.f32.mrb[0].mxu0
  %v1024 = vpop.f32.mrb[0].mxu0
  %v1025 = vadd.f32 0.0, %v1024
  %v1026 = vpop.f32.mrb[0].mxu0
  %1027 = vmatprep.mubr.bf16.mxu0 %v551
  %1028 = vmatmul.mubr.bf16.gmra.mrb[0].mxu0 %v550
  %v1029 = vpop.f32.mrb[0].mxu0
  %v1030 = vadd.f32 0.0, %v1029
  %v1031 = vpop.f32.mrb[0].mxu0
  %v1032 = vpop.f32.mrb[0].mxu0
  %v1033 = vadd.f32 0.0, %v1032
  %v1034 = vpop.f32.mrb[0].mxu0
  %1035 = vmatprep.mubr.bf16.mxu0 %v554
  %1036 = vmatmul.mubr.bf16.gmra.mrb[0].mxu0 %v553
  %v1037 = vpop.f32.mrb[0].mxu0
  %v1038 = vadd.f32 0.0, %v1037
  %v1039 = vpop.f32.mrb[0].mxu0
  %v1040 = vpop.f32.mrb[0].mxu0
  %v1041 = vadd.f32 0.0, %v1040
  %v1042 = vpop.f32.mrb[0].mxu0
  %1043 = vmatprep.mubr.bf16.mxu0 %v557
  %1044 = vmatmul.mubr.bf16.gmra.mrb[0].mxu0 %v556
  %v1045 = vpop.f32.mrb[0].mxu0
  %v1046 = vadd.f32 0.0, %v1045
  %v1047 = vpop.f32.mrb[0].mxu0
  %v1048 = vpop.f32.mrb[0].mxu0
  %v1049 = vadd.f32 0.0, %v1048
  %v1050 = vpop.f32.mrb[0].mxu0
  %1051 = vmatprep.mubr.bf16.mxu0 %v560
  %1052 = vmatmul.mubr.bf16.gmra.mrb[0].mxu0 %v559
  %v1053 = vpop.f32.mrb[0].mxu0
  %v1054 = vadd.f32 0.0, %v1053
  %v1055 = vpop.f32.mrb[0].mxu0
  %v1056 = vpop.f32.mrb[0].mxu0
  %v1057 = vadd.f32 0.0, %v1056
  %v1058 = vpop.f32.mrb[0].mxu0
  %1059 = vmatprep.mubr.bf16.mxu0 %v563
  %1060 = vmatmul.mubr.bf16.gmra.mrb[0].mxu0 %v562
  %v1061 = vpop.f32.mrb[0].mxu0
  %v1062 = vadd.f32 0.0, %v1061
  %v1063 = vpop.f32.mrb[0].mxu0
  %v1064 = vpop.f32.mrb[0].mxu0
  %v1065 = vadd.f32 0.0, %v1064
  %v1066 = vpop.f32.mrb[0].mxu0
  %1067 = vmatprep.mubr.bf16.mxu0 %v566
  %1068 = vmatmul.mubr.bf16.gmra.mrb[0].mxu0 %v565
  %v1069 = vpop.f32.mrb[0].mxu0
  %v1070 = vadd.f32 0.0, %v1069
  %v1071 = vpop.f32.mrb[0].mxu0
  %v1072 = vpop.f32.mrb[0].mxu0
  %v1073 = vadd.f32 0.0, %v1072
  %v1074 = vpop.f32.mrb[0].mxu0
  %1075 = vmatprep.mubr.bf16.mxu0 %v569
  %1076 = vmatmul.mubr.bf16.gmra.mrb[0].mxu0 %v568
  %v1077 = vpop.f32.mrb[0].mxu0
  %v1078 = vadd.f32 0.0, %v1077
  %v1079 = vpop.f32.mrb[0].mxu0
  %v1080 = vpop.f32.mrb[0].mxu0
  %v1081 = vadd.f32 0.0, %v1080
  %v1082 = vpop.f32.mrb[0].mxu0
  %1083 = vmatprep.mubr.bf16.mxu0 %v572
  %1084 = vmatmul.mubr.bf16.gmra.mrb[0].mxu0 %v571
  %v1085 = vpop.f32.mrb[0].mxu0
  %v1086 = vadd.f32 0.0, %v1085
  %v1087 = vpop.f32.mrb[0].mxu0
  %v1088 = vpop.f32.mrb[0].mxu0
  %v1089 = vadd.f32 0.0, %v1088
  %v1090 = vpop.f32.mrb[0].mxu0
  %1091 = vmatprep.mubr.bf16.mxu0 %v575
  %1092 = vmatmul.mubr.bf16.gmra.mrb[0].mxu0 %v574
  %v1093 = vpop.f32.mrb[0].mxu0
  %v1094 = vadd.f32 0.0, %v1093
  %v1095 = vpop.f32.mrb[0].mxu0
  %v1096 = vpop.f32.mrb[0].mxu0
  %v1097 = vadd.f32 0.0, %v1096
  %v1098 = vpop.f32.mrb[0].mxu0
  %1099 = vmatprep.mubr.bf16.mxu0 %v578
  %1100 = vmatmul.mubr.bf16.gmra.mrb[0].mxu0 %v577
  %v1101 = vpop.f32.mrb[0].mxu0
  %v1102 = vadd.f32 0.0, %v1101
  %v1103 = vpop.f32.mrb[0].mxu0
  %v1104 = vpop.f32.mrb[0].mxu0
  %v1105 = vadd.f32 0.0, %v1104
  %v1106 = vpop.f32.mrb[0].mxu0
  %1107 = vmatprep.mubr.bf16.mxu0 %v581
  %1108 = vmatmul.mubr.bf16.gmra.mrb[0].mxu0 %v580
  %v1109 = vpop.f32.mrb[0].mxu0
  %v1110 = vadd.f32 0.0, %v1109
  %v1111 = vpop.f32.mrb[0].mxu0
  %v1112 = vpop.f32.mrb[0].mxu0
  %v1113 = vadd.f32 0.0, %v1112
  %v1114 = vpop.f32.mrb[0].mxu0
  %1115 = vmatprep.mubr.bf16.mxu0 %v584
  %1116 = vmatmul.mubr.bf16.gmra.mrb[0].mxu0 %v583
  %v1117 = vpop.f32.mrb[0].mxu0
  %v1118 = vadd.f32 0.0, %v1117
  %v1119 = vpop.f32.mrb[0].mxu0
  %v1120 = vpop.f32.mrb[0].mxu0
  %v1121 = vadd.f32 0.0, %v1120
  %v1122 = vpop.f32.mrb[0].mxu0
  %1123 = vmatprep.mubr.bf16.mxu0 %v587
  %1124 = vmatmul.mubr.bf16.gmra.mrb[0].mxu0 %v586
  %v1125 = vpop.f32.mrb[0].mxu0
  %v1126 = vadd.f32 0.0, %v1125
  %v1127 = vpop.f32.mrb[0].mxu0
  %v1128 = vpop.f32.mrb[0].mxu0
  %v1129 = vadd.f32 0.0, %v1128
  %v1130 = vpop.f32.mrb[0].mxu0
  %1131 = vmatprep.mubr.bf16.mxu0 %v590
  %1132 = vmatmul.mubr.bf16.gmra.mrb[0].mxu0 %v589
  %v1133 = vpop.f32.mrb[0].mxu0
  %v1134 = vadd.f32 0.0, %v1133
  %v1135 = vpop.f32.mrb[0].mxu0
  %v1136 = vpop.f32.mrb[0].mxu0
  %v1137 = vadd.f32 0.0, %v1136
  %v1138 = vpop.f32.mrb[0].mxu0
  %1139 = vmatprep.mubr.bf16.mxu0 %v593
  %1140 = vmatmul.mubr.bf16.gmra.mrb[0].mxu0 %v592
  %v1141 = vpop.f32.mrb[0].mxu0
  %v1142 = vadd.f32 0.0, %v1141
  %v1143 = vpop.f32.mrb[0].mxu0
  %v1144 = vpop.f32.mrb[0].mxu0
  %v1145 = vadd.f32 0.0, %v1144
  %v1146 = vpop.f32.mrb[0].mxu0
  %1147 = vmatprep.mubr.bf16.mxu0 %v596
  %1148 = vmatmul.mubr.bf16.gmra.mrb[0].mxu0 %v595
  %v1149 = vpop.f32.mrb[0].mxu0
  %v1150 = vadd.f32 0.0, %v1149
  %v1151 = vpop.f32.mrb[0].mxu0
  %v1152 = vpop.f32.mrb[0].mxu0
  %v1153 = vadd.f32 0.0, %v1152
  %v1154 = vpop.f32.mrb[0].mxu0
  %1155 = vdwg.mxu0
  %1156 = vmatprep.subr.bf16.mxu0 0
  %1157 = vmatpush1.bf16.msra.mxu0 %v750
  %1158 = vmatprep.subr.bf16.mxu0 0
  %1159 = vmatpush1.bf16.msra.mxu0 %v751
  %1160 = vmatprep.subr.bf16.mxu0 0
  %1161 = vmatpush1.bf16.msra.mxu0 0
  %1162 = vmatprep.subr.bf16.mxu0 0
  %1163 = vmatpush1.bf16.msra.mxu0 0
  %1164 = vmatprep.subr.bf16.mxu0 0
  %1165 = vmatpush1.bf16.msra.mxu0 0
  %1166 = vmatprep.subr.bf16.mxu0 0
  %1167 = vmatpush1.bf16.msra.mxu0 0
  %1168 = vmatprep.subr.bf16.mxu0 0
  %1169 = vmatpush1.bf16.msra.mxu0 0
  %1170 = vmatprep.subr.bf16.mxu0 0
  %1171 = vmatpush1.bf16.msra.mxu0 0
  %1172 = vmatprep.subr.bf16.mxu0 0
  %1173 = vmatpush1.bf16.msra.mxu0 0
  %1174 = vmatprep.subr.bf16.mxu0 0
  %1175 = vmatpush1.bf16.msra.mxu0 0
  %1176 = vmatprep.subr.bf16.mxu0 0
  %1177 = vmatpush1.bf16.msra.mxu0 0
  %1178 = vmatprep.subr.bf16.mxu0 0
  %1179 = vmatpush1.bf16.msra.mxu0 0
  %1180 = vmatprep.subr.bf16.mxu0 0
  %1181 = vmatpush1.bf16.msra.mxu0 0
  %1182 = vmatprep.subr.bf16.mxu0 0
  %1183 = vmatpush1.bf16.msra.mxu0 0
  %1184 = vmatprep.subr.bf16.mxu0 0
  %1185 = vmatpush1.bf16.msra.mxu0 0
  %1186 = vmatprep.subr.bf16.mxu0 0
  %1187 = vmatpush1.bf16.msra.mxu0 0
  %1188 = vmatprep.mubr.bf16.mxu0 0
  %1189 = vmatmul.mubr.bf16.gmra.mrb[0].mxu0 %v772
  %v1190 = vpop.f32.mrb[0].mxu0
  %v1191 = vadd.f32 %v902, %v1190
  %v1192 = vpop.f32.mrb[0].mxu0
  %v1193 = vpop.f32.mrb[0].mxu0
  %v1194 = vadd.f32 %v905, %v1193
  %v1195 = vpop.f32.mrb[0].mxu0
  %1196 = vmatprep.mubr.bf16.mxu0 0
  %1197 = vmatmul.mubr.bf16.gmra.mrb[0].mxu0 %v775
  %v1198 = vpop.f32.mrb[0].mxu0
  %v1199 = vadd.f32 %v910, %v1198
  %v1200 = vpop.f32.mrb[0].mxu0
  %v1201 = vpop.f32.mrb[0].mxu0
  %v1202 = vadd.f32 %v913, %v1201
  %v1203 = vpop.f32.mrb[0].mxu0
  %1204 = vmatprep.mubr.bf16.mxu0 0
  %1205 = vmatmul.mubr.bf16.gmra.mrb[0].mxu0 %v778
  %v1206 = vpop.f32.mrb[0].mxu0
  %v1207 = vadd.f32 %v918, %v1206
  %v1208 = vpop.f32.mrb[0].mxu0
  %v1209 = vpop.f32.mrb[0].mxu0
  %v1210 = vadd.f32 %v921, %v1209
  %v1211 = vpop.f32.mrb[0].mxu0
  %1212 = vmatprep.mubr.bf16.mxu0 0
  %1213 = vmatmul.mubr.bf16.gmra.mrb[0].mxu0 %v781
  %v1214 = vpop.f32.mrb[0].mxu0
  %v1215 = vadd.f32 %v926, %v1214
  %v1216 = vpop.f32.mrb[0].mxu0
  %v1217 = vpop.f32.mrb[0].mxu0
  %v1218 = vadd.f32 %v929, %v1217
  %v1219 = vpop.f32.mrb[0].mxu0
  %1220 = vmatprep.mubr.bf16.mxu0 0
  %1221 = vmatmul.mubr.bf16.gmra.mrb[0].mxu0 %v784
  %v1222 = vpop.f32.mrb[0].mxu0
  %v1223 = vadd.f32 %v934, %v1222
  %v1224 = vpop.f32.mrb[0].mxu0
  %v1225 = vpop.f32.mrb[0].mxu0
  %v1226 = vadd.f32 %v937, %v1225
  %v1227 = vpop.f32.mrb[0].mxu0
  %1228 = vmatprep.mubr.bf16.mxu0 0
  %1229 = vmatmul.mubr.bf16.gmra.mrb[0].mxu0 %v787
  %v1230 = vpop.f32.mrb[0].mxu0
  %v1231 = vadd.f32 %v942, %v1230
  %v1232 = vpop.f32.mrb[0].mxu0
  %v1233 = vpop.f32.mrb[0].mxu0
  %v1234 = vadd.f32 %v945, %v1233
  %v1235 = vpop.f32.mrb[0].mxu0
  %1236 = vmatprep.mubr.bf16.mxu0 0
  %1237 = vmatmul.mubr.bf16.gmra.mrb[0].mxu0 %v790
  %v1238 = vpop.f32.mrb[0].mxu0
  %v1239 = vadd.f32 %v950, %v1238
  %v1240 = vpop.f32.mrb[0].mxu0
  %v1241 = vpop.f32.mrb[0].mxu0
  %v1242 = vadd.f32 %v953, %v1241
  %v1243 = vpop.f32.mrb[0].mxu0
  %1244 = vmatprep.mubr.bf16.mxu0 0
  %1245 = vmatmul.mubr.bf16.gmra.mrb[0].mxu0 %v793
  %v1246 = vpop.f32.mrb[0].mxu0
  %v1247 = vadd.f32 %v958, %v1246
  %v1248 = vpop.f32.mrb[0].mxu0
  %v1249 = vpop.f32.mrb[0].mxu0
  %v1250 = vadd.f32 %v961, %v1249
  %v1251 = vpop.f32.mrb[0].mxu0
  %1252 = vmatprep.mubr.bf16.mxu0 0
  %1253 = vmatmul.mubr.bf16.gmra.mrb[0].mxu0 %v796
  %v1254 = vpop.f32.mrb[0].mxu0
  %v1255 = vadd.f32 %v966, %v1254
  %v1256 = vpop.f32.mrb[0].mxu0
  %v1257 = vpop.f32.mrb[0].mxu0
  %v1258 = vadd.f32 %v969, %v1257
  %v1259 = vpop.f32.mrb[0].mxu0
  %1260 = vmatprep.mubr.bf16.mxu0 0
  %1261 = vmatmul.mubr.bf16.gmra.mrb[0].mxu0 %v799
  %v1262 = vpop.f32.mrb[0].mxu0
  %v1263 = vadd.f32 %v974, %v1262
  %v1264 = vpop.f32.mrb[0].mxu0
  %v1265 = vpop.f32.mrb[0].mxu0
  %v1266 = vadd.f32 %v977, %v1265
  %v1267 = vpop.f32.mrb[0].mxu0
  %1268 = vmatprep.mubr.bf16.mxu0 0
  %1269 = vmatmul.mubr.bf16.gmra.mrb[0].mxu0 %v802
  %v1270 = vpop.f32.mrb[0].mxu0
  %v1271 = vadd.f32 %v982, %v1270
  %v1272 = vpop.f32.mrb[0].mxu0
  %v1273 = vpop.f32.mrb[0].mxu0
  %v1274 = vadd.f32 %v985, %v1273
  %v1275 = vpop.f32.mrb[0].mxu0
  %1276 = vmatprep.mubr.bf16.mxu0 0
  %1277 = vmatmul.mubr.bf16.gmra.mrb[0].mxu0 %v805
  %v1278 = vpop.f32.mrb[0].mxu0
  %v1279 = vadd.f32 %v990, %v1278
  %v1280 = vpop.f32.mrb[0].mxu0
  %v1281 = vpop.f32.mrb[0].mxu0
  %v1282 = vadd.f32 %v993, %v1281
  %v1283 = vpop.f32.mrb[0].mxu0
  %1284 = vmatprep.mubr.bf16.mxu0 0
  %1285 = vmatmul.mubr.bf16.gmra.mrb[0].mxu0 %v808
  %v1286 = vpop.f32.mrb[0].mxu0
  %v1287 = vadd.f32 %v998, %v1286
  %v1288 = vpop.f32.mrb[0].mxu0
  %v1289 = vpop.f32.mrb[0].mxu0
  %v1290 = vadd.f32 %v1001, %v1289
  %v1291 = vpop.f32.mrb[0].mxu0
  %1292 = vmatprep.mubr.bf16.mxu0 0
  %1293 = vmatmul.mubr.bf16.gmra.mrb[0].mxu0 %v811
  %v1294 = vpop.f32.mrb[0].mxu0
  %v1295 = vadd.f32 %v1006, %v1294
  %v1296 = vpop.f32.mrb[0].mxu0
  %v1297 = vpop.f32.mrb[0].mxu0
  %v1298 = vadd.f32 %v1009, %v1297
  %v1299 = vpop.f32.mrb[0].mxu0
  %1300 = vmatprep.mubr.bf16.mxu0 0
  %1301 = vmatmul.mubr.bf16.gmra.mrb[0].mxu0 %v814
  %v1302 = vpop.f32.mrb[0].mxu0
  %v1303 = vadd.f32 %v1014, %v1302
  %v1304 = vpop.f32.mrb[0].mxu0
  %v1305 = vpop.f32.mrb[0].mxu0
  %v1306 = vadd.f32 %v1017, %v1305
  %v1307 = vpop.f32.mrb[0].mxu0
  %1308 = vmatprep.mubr.bf16.mxu0 0
  %1309 = vmatmul.mubr.bf16.gmra.mrb[0].mxu0 %v817
  %v1310 = vpop.f32.mrb[0].mxu0
  %v1311 = vadd.f32 %v1022, %v1310
  %v1312 = vpop.f32.mrb[0].mxu0
  %v1313 = vpop.f32.mrb[0].mxu0
  %v1314 = vadd.f32 %v1025, %v1313
  %v1315 = vpop.f32.mrb[0].mxu0
  %1316 = vmatprep.mubr.bf16.mxu0 0
  %1317 = vmatmul.mubr.bf16.gmra.mrb[0].mxu0 %v820
  %v1318 = vpop.f32.mrb[0].mxu0
  %v1319 = vadd.f32 %v1030, %v1318
  %v1320 = vpop.f32.mrb[0].mxu0
  %v1321 = vpop.f32.mrb[0].mxu0
  %v1322 = vadd.f32 %v1033, %v1321
  %v1323 = vpop.f32.mrb[0].mxu0
  %1324 = vmatprep.mubr.bf16.mxu0 0
  %1325 = vmatmul.mubr.bf16.gmra.mrb[0].mxu0 %v823
  %v1326 = vpop.f32.mrb[0].mxu0
  %v1327 = vadd.f32 %v1038, %v1326
  %v1328 = vpop.f32.mrb[0].mxu0
  %v1329 = vpop.f32.mrb[0].mxu0
  %v1330 = vadd.f32 %v1041, %v1329
  %v1331 = vpop.f32.mrb[0].mxu0
  %1332 = vmatprep.mubr.bf16.mxu0 0
  %1333 = vmatmul.mubr.bf16.gmra.mrb[0].mxu0 %v826
  %v1334 = vpop.f32.mrb[0].mxu0
  %v1335 = vadd.f32 %v1046, %v1334
  %v1336 = vpop.f32.mrb[0].mxu0
  %v1337 = vpop.f32.mrb[0].mxu0
  %v1338 = vadd.f32 %v1049, %v1337
  %v1339 = vpop.f32.mrb[0].mxu0
  %1340 = vmatprep.mubr.bf16.mxu0 0
  %1341 = vmatmul.mubr.bf16.gmra.mrb[0].mxu0 %v829
  %v1342 = vpop.f32.mrb[0].mxu0
  %v1343 = vadd.f32 %v1054, %v1342
  %v1344 = vpop.f32.mrb[0].mxu0
  %v1345 = vpop.f32.mrb[0].mxu0
  %v1346 = vadd.f32 %v1057, %v1345
  %v1347 = vpop.f32.mrb[0].mxu0
  %1348 = vmatprep.mubr.bf16.mxu0 0
  %1349 = vmatmul.mubr.bf16.gmra.mrb[0].mxu0 %v832
  %v1350 = vpop.f32.mrb[0].mxu0
  %v1351 = vadd.f32 %v1062, %v1350
  %v1352 = vpop.f32.mrb[0].mxu0
  %v1353 = vpop.f32.mrb[0].mxu0
  %v1354 = vadd.f32 %v1065, %v1353
  %v1355 = vpop.f32.mrb[0].mxu0
  %1356 = vmatprep.mubr.bf16.mxu0 0
  %1357 = vmatmul.mubr.bf16.gmra.mrb[0].mxu0 %v835
  %v1358 = vpop.f32.mrb[0].mxu0
  %v1359 = vadd.f32 %v1070, %v1358
  %v1360 = vpop.f32.mrb[0].mxu0
  %v1361 = vpop.f32.mrb[0].mxu0
  %v1362 = vadd.f32 %v1073, %v1361
  %v1363 = vpop.f32.mrb[0].mxu0
  %1364 = vmatprep.mubr.bf16.mxu0 0
  %1365 = vmatmul.mubr.bf16.gmra.mrb[0].mxu0 %v838
  %v1366 = vpop.f32.mrb[0].mxu0
  %v1367 = vadd.f32 %v1078, %v1366
  %v1368 = vpop.f32.mrb[0].mxu0
  %v1369 = vpop.f32.mrb[0].mxu0
  %v1370 = vadd.f32 %v1081, %v1369
  %v1371 = vpop.f32.mrb[0].mxu0
  %1372 = vmatprep.mubr.bf16.mxu0 0
  %1373 = vmatmul.mubr.bf16.gmra.mrb[0].mxu0 %v841
  %v1374 = vpop.f32.mrb[0].mxu0
  %v1375 = vadd.f32 %v1086, %v1374
  %v1376 = vpop.f32.mrb[0].mxu0
  %v1377 = vpop.f32.mrb[0].mxu0
  %v1378 = vadd.f32 %v1089, %v1377
  %v1379 = vpop.f32.mrb[0].mxu0
  %1380 = vmatprep.mubr.bf16.mxu0 0
  %1381 = vmatmul.mubr.bf16.gmra.mrb[0].mxu0 %v844
  %v1382 = vpop.f32.mrb[0].mxu0
  %v1383 = vadd.f32 %v1094, %v1382
  %v1384 = vpop.f32.mrb[0].mxu0
  %v1385 = vpop.f32.mrb[0].mxu0
  %v1386 = vadd.f32 %v1097, %v1385
  %v1387 = vpop.f32.mrb[0].mxu0
  %1388 = vmatprep.mubr.bf16.mxu0 0
  %1389 = vmatmul.mubr.bf16.gmra.mrb[0].mxu0 %v847
  %v1390 = vpop.f32.mrb[0].mxu0
  %v1391 = vadd.f32 %v1102, %v1390
  %v1392 = vpop.f32.mrb[0].mxu0
  %v1393 = vpop.f32.mrb[0].mxu0
  %v1394 = vadd.f32 %v1105, %v1393
  %v1395 = vpop.f32.mrb[0].mxu0
  %1396 = vmatprep.mubr.bf16.mxu0 0
  %1397 = vmatmul.mubr.bf16.gmra.mrb[0].mxu0 %v850
  %v1398 = vpop.f32.mrb[0].mxu0
  %v1399 = vadd.f32 %v1110, %v1398
  %v1400 = vpop.f32.mrb[0].mxu0
  %v1401 = vpop.f32.mrb[0].mxu0
  %v1402 = vadd.f32 %v1113, %v1401
  %v1403 = vpop.f32.mrb[0].mxu0
  %1404 = vmatprep.mubr.bf16.mxu0 0
  %1405 = vmatmul.mubr.bf16.gmra.mrb[0].mxu0 %v853
  %v1406 = vpop.f32.mrb[0].mxu0
  %v1407 = vadd.f32 %v1118, %v1406
  %v1408 = vpop.f32.mrb[0].mxu0
  %v1409 = vpop.f32.mrb[0].mxu0
  %v1410 = vadd.f32 %v1121, %v1409
  %v1411 = vpop.f32.mrb[0].mxu0
  %1412 = vmatprep.mubr.bf16.mxu0 0
  %1413 = vmatmul.mubr.bf16.gmra.mrb[0].mxu0 %v856
  %v1414 = vpop.f32.mrb[0].mxu0
  %v1415 = vadd.f32 %v1126, %v1414
  %v1416 = vpop.f32.mrb[0].mxu0
  %v1417 = vpop.f32.mrb[0].mxu0
  %v1418 = vadd.f32 %v1129, %v1417
  %v1419 = vpop.f32.mrb[0].mxu0
  %1420 = vmatprep.mubr.bf16.mxu0 0
  %1421 = vmatmul.mubr.bf16.gmra.mrb[0].mxu0 %v859
  %v1422 = vpop.f32.mrb[0].mxu0
  %v1423 = vadd.f32 %v1134, %v1422
  %v1424 = vpop.f32.mrb[0].mxu0
  %v1425 = vpop.f32.mrb[0].mxu0
  %v1426 = vadd.f32 %v1137, %v1425
  %v1427 = vpop.f32.mrb[0].mxu0
  %1428 = vmatprep.mubr.bf16.mxu0 0
  %1429 = vmatmul.mubr.bf16.gmra.mrb[0].mxu0 %v862
  %v1430 = vpop.f32.mrb[0].mxu0
  %v1431 = vadd.f32 %v1142, %v1430
  %v1432 = vpop.f32.mrb[0].mxu0
  %v1433 = vpop.f32.mrb[0].mxu0
  %v1434 = vadd.f32 %v1145, %v1433
  %v1435 = vpop.f32.mrb[0].mxu0
  %1436 = vmatprep.mubr.bf16.mxu0 0
  %1437 = vmatmul.mubr.bf16.gmra.mrb[0].mxu0 %v865
  %v1438 = vpop.f32.mrb[0].mxu0
  %v1439 = vadd.f32 %v1150, %v1438
  %v1440 = vpop.f32.mrb[0].mxu0
  %v1441 = vpop.f32.mrb[0].mxu0
  %v1442 = vadd.f32 %v1153, %v1441
  %v1443 = vpop.f32.mrb[0].mxu0
  %1444 = vdwg.mxu0
  %v1445 = vld [vmem:[%s2] sm:$0x1]
  %v1447 = vlaneseq
  %v1448 = vshrl.u32 %v1447, 7
  %v1449 = vsub.s32 0, %v1448
  %v1450 = vrot.slane %v1445, %v1449
  %v1452 = vmul.f32 %v1191, %v1450
  %v1453 = vmul.f32 %v1194, %v1450
  %v1454 = vmul.f32 %v1199, %v1450
  %v1455 = vmul.f32 %v1202, %v1450
  %v1456 = vmul.f32 %v1207, %v1450
  %v1457 = vmul.f32 %v1210, %v1450
  %v1458 = vmul.f32 %v1215, %v1450
  %v1459 = vmul.f32 %v1218, %v1450
  %v1460 = vmul.f32 %v1223, %v1450
  %v1461 = vmul.f32 %v1226, %v1450
  %v1462 = vmul.f32 %v1231, %v1450
  %v1463 = vmul.f32 %v1234, %v1450
  %v1464 = vmul.f32 %v1239, %v1450
  %v1465 = vmul.f32 %v1242, %v1450
  %v1466 = vmul.f32 %v1247, %v1450
  %v1467 = vmul.f32 %v1250, %v1450
  %v1468 = vmul.f32 %v1255, %v1450
  %v1469 = vmul.f32 %v1258, %v1450
  %v1470 = vmul.f32 %v1263, %v1450
  %v1471 = vmul.f32 %v1266, %v1450
  %v1472 = vmul.f32 %v1271, %v1450
  %v1473 = vmul.f32 %v1274, %v1450
  %v1474 = vmul.f32 %v1279, %v1450
  %v1475 = vmul.f32 %v1282, %v1450
  %v1476 = vmul.f32 %v1287, %v1450
  %v1477 = vmul.f32 %v1290, %v1450
  %v1478 = vmul.f32 %v1295, %v1450
  %v1479 = vmul.f32 %v1298, %v1450
  %v1480 = vmul.f32 %v1303, %v1450
  %v1481 = vmul.f32 %v1306, %v1450
  %v1482 = vmul.f32 %v1311, %v1450
  %v1483 = vmul.f32 %v1314, %v1450
  %v1484 = vmul.f32 %v1319, %v1450
  %v1485 = vmul.f32 %v1322, %v1450
  %v1486 = vmul.f32 %v1327, %v1450
  %v1487 = vmul.f32 %v1330, %v1450
  %v1488 = vmul.f32 %v1335, %v1450
  %v1489 = vmul.f32 %v1338, %v1450
  %v1490 = vmul.f32 %v1343, %v1450
  %v1491 = vmul.f32 %v1346, %v1450
  %v1492 = vmul.f32 %v1351, %v1450
  %v1493 = vmul.f32 %v1354, %v1450
  %v1494 = vmul.f32 %v1359, %v1450
  %v1495 = vmul.f32 %v1362, %v1450
  %v1496 = vmul.f32 %v1367, %v1450
  %v1497 = vmul.f32 %v1370, %v1450
  %v1498 = vmul.f32 %v1375, %v1450
  %v1499 = vmul.f32 %v1378, %v1450
  %v1500 = vmul.f32 %v1383, %v1450
  %v1501 = vmul.f32 %v1386, %v1450
  %v1502 = vmul.f32 %v1391, %v1450
  %v1503 = vmul.f32 %v1394, %v1450
  %v1504 = vmul.f32 %v1399, %v1450
  %v1505 = vmul.f32 %v1402, %v1450
  %v1506 = vmul.f32 %v1407, %v1450
  %v1507 = vmul.f32 %v1410, %v1450
  %v1508 = vmul.f32 %v1415, %v1450
  %v1509 = vmul.f32 %v1418, %v1450
  %v1510 = vmul.f32 %v1423, %v1450
  %v1511 = vmul.f32 %v1426, %v1450
  %v1512 = vmul.f32 %v1431, %v1450
  %v1513 = vmul.f32 %v1434, %v1450
  %v1514 = vmul.f32 %v1439, %v1450
  %v1515 = vmul.f32 %v1442, %v1450
  %v1516 = vld [vmem:[%s3] sm:$0x1]
  %v1518 = vlaneseq
  %v1519 = vshrl.u32 %v1518, 7
  %v1520 = vsub.s32 0, %v1519
  %v1521 = vrot.slane %v1516, %v1520
  %v1523 = vadd.f32 %v1452, %v1521
  %v1524 = vadd.f32 %v1453, %v1521
  %v1525 = vadd.f32 %v1454, %v1521
  %v1526 = vadd.f32 %v1455, %v1521
  %v1527 = vadd.f32 %v1456, %v1521
  %v1528 = vadd.f32 %v1457, %v1521
  %v1529 = vadd.f32 %v1458, %v1521
  %v1530 = vadd.f32 %v1459, %v1521
  %v1531 = vadd.f32 %v1460, %v1521
  %v1532 = vadd.f32 %v1461, %v1521
  %v1533 = vadd.f32 %v1462, %v1521
  %v1534 = vadd.f32 %v1463, %v1521
  %v1535 = vadd.f32 %v1464, %v1521
  %v1536 = vadd.f32 %v1465, %v1521
  %v1537 = vadd.f32 %v1466, %v1521
  %v1538 = vadd.f32 %v1467, %v1521
  %v1539 = vadd.f32 %v1468, %v1521
  %v1540 = vadd.f32 %v1469, %v1521
  %v1541 = vadd.f32 %v1470, %v1521
  %v1542 = vadd.f32 %v1471, %v1521
  %v1543 = vadd.f32 %v1472, %v1521
  %v1544 = vadd.f32 %v1473, %v1521
  %v1545 = vadd.f32 %v1474, %v1521
  %v1546 = vadd.f32 %v1475, %v1521
  %v1547 = vadd.f32 %v1476, %v1521
  %v1548 = vadd.f32 %v1477, %v1521
  %v1549 = vadd.f32 %v1478, %v1521
  %v1550 = vadd.f32 %v1479, %v1521
  %v1551 = vadd.f32 %v1480, %v1521
  %v1552 = vadd.f32 %v1481, %v1521
  %v1553 = vadd.f32 %v1482, %v1521
  %v1554 = vadd.f32 %v1483, %v1521
  %v1555 = vadd.f32 %v1484, %v1521
  %v1556 = vadd.f32 %v1485, %v1521
  %v1557 = vadd.f32 %v1486, %v1521
  %v1558 = vadd.f32 %v1487, %v1521
  %v1559 = vadd.f32 %v1488, %v1521
  %v1560 = vadd.f32 %v1489, %v1521
  %v1561 = vadd.f32 %v1490, %v1521
  %v1562 = vadd.f32 %v1491, %v1521
  %v1563 = vadd.f32 %v1492, %v1521
  %v1564 = vadd.f32 %v1493, %v1521
  %v1565 = vadd.f32 %v1494, %v1521
  %v1566 = vadd.f32 %v1495, %v1521
  %v1567 = vadd.f32 %v1496, %v1521
  %v1568 = vadd.f32 %v1497, %v1521
  %v1569 = vadd.f32 %v1498, %v1521
  %v1570 = vadd.f32 %v1499, %v1521
  %v1571 = vadd.f32 %v1500, %v1521
  %v1572 = vadd.f32 %v1501, %v1521
  %v1573 = vadd.f32 %v1502, %v1521
  %v1574 = vadd.f32 %v1503, %v1521
  %v1575 = vadd.f32 %v1504, %v1521
  %v1576 = vadd.f32 %v1505, %v1521
  %v1577 = vadd.f32 %v1506, %v1521
  %v1578 = vadd.f32 %v1507, %v1521
  %v1579 = vadd.f32 %v1508, %v1521
  %v1580 = vadd.f32 %v1509, %v1521
  %v1581 = vadd.f32 %v1510, %v1521
  %v1582 = vadd.f32 %v1511, %v1521
  %v1583 = vadd.f32 %v1512, %v1521
  %v1584 = vadd.f32 %v1513, %v1521
  %v1585 = vadd.f32 %v1514, %v1521
  %v1586 = vadd.f32 %v1515, %v1521
  %v1587 = vmax.f32 %v1523, 0.0
  %v1588 = vmax.f32 %v1524, 0.0
  %v1589 = vmax.f32 %v1525, 0.0
  %v1590 = vmax.f32 %v1526, 0.0
  %v1591 = vmax.f32 %v1527, 0.0
  %v1592 = vmax.f32 %v1528, 0.0
  %v1593 = vmax.f32 %v1529, 0.0
  %v1594 = vmax.f32 %v1530, 0.0
  %v1595 = vmax.f32 %v1531, 0.0
  %v1596 = vmax.f32 %v1532, 0.0
  %v1597 = vmax.f32 %v1533, 0.0
  %v1598 = vmax.f32 %v1534, 0.0
  %v1599 = vmax.f32 %v1535, 0.0
  %v1600 = vmax.f32 %v1536, 0.0
  %v1601 = vmax.f32 %v1537, 0.0
  %v1602 = vmax.f32 %v1538, 0.0
  %v1603 = vmax.f32 %v1539, 0.0
  %v1604 = vmax.f32 %v1540, 0.0
  %v1605 = vmax.f32 %v1541, 0.0
  %v1606 = vmax.f32 %v1542, 0.0
  %v1607 = vmax.f32 %v1543, 0.0
  %v1608 = vmax.f32 %v1544, 0.0
  %v1609 = vmax.f32 %v1545, 0.0
  %v1610 = vmax.f32 %v1546, 0.0
  %v1611 = vmax.f32 %v1547, 0.0
  %v1612 = vmax.f32 %v1548, 0.0
  %v1613 = vmax.f32 %v1549, 0.0
  %v1614 = vmax.f32 %v1550, 0.0
  %v1615 = vmax.f32 %v1551, 0.0
  %v1616 = vmax.f32 %v1552, 0.0
  %v1617 = vmax.f32 %v1553, 0.0
  %v1618 = vmax.f32 %v1554, 0.0
  %v1619 = vmax.f32 %v1555, 0.0
  %v1620 = vmax.f32 %v1556, 0.0
  %v1621 = vmax.f32 %v1557, 0.0
  %v1622 = vmax.f32 %v1558, 0.0
  %v1623 = vmax.f32 %v1559, 0.0
  %v1624 = vmax.f32 %v1560, 0.0
  %v1625 = vmax.f32 %v1561, 0.0
  %v1626 = vmax.f32 %v1562, 0.0
  %v1627 = vmax.f32 %v1563, 0.0
  %v1628 = vmax.f32 %v1564, 0.0
  %v1629 = vmax.f32 %v1565, 0.0
  %v1630 = vmax.f32 %v1566, 0.0
  %v1631 = vmax.f32 %v1567, 0.0
  %v1632 = vmax.f32 %v1568, 0.0
  %v1633 = vmax.f32 %v1569, 0.0
  %v1634 = vmax.f32 %v1570, 0.0
  %v1635 = vmax.f32 %v1571, 0.0
  %v1636 = vmax.f32 %v1572, 0.0
  %v1637 = vmax.f32 %v1573, 0.0
  %v1638 = vmax.f32 %v1574, 0.0
  %v1639 = vmax.f32 %v1575, 0.0
  %v1640 = vmax.f32 %v1576, 0.0
  %v1641 = vmax.f32 %v1577, 0.0
  %v1642 = vmax.f32 %v1578, 0.0
  %v1643 = vmax.f32 %v1579, 0.0
  %v1644 = vmax.f32 %v1580, 0.0
  %v1645 = vmax.f32 %v1581, 0.0
  %v1646 = vmax.f32 %v1582, 0.0
  %v1647 = vmax.f32 %v1583, 0.0
  %v1648 = vmax.f32 %v1584, 0.0
  %v1649 = vmax.f32 %v1585, 0.0
  %v1650 = vmax.f32 %v1586, 0.0
  %v1651 = vpack.c.bf16 %v1588, %v1587
  %v1652 = vpack.c.bf16 %v1590, %v1589
  %v1653 = vpack.c.bf16 %v1592, %v1591
  %v1654 = vpack.c.bf16 %v1594, %v1593
  %v1655 = vpack.c.bf16 %v1596, %v1595
  %v1656 = vpack.c.bf16 %v1598, %v1597
  %v1657 = vpack.c.bf16 %v1600, %v1599
  %v1658 = vpack.c.bf16 %v1602, %v1601
  %v1659 = vpack.c.bf16 %v1604, %v1603
  %v1660 = vpack.c.bf16 %v1606, %v1605
  %v1661 = vpack.c.bf16 %v1608, %v1607
  %v1662 = vpack.c.bf16 %v1610, %v1609
  %v1663 = vpack.c.bf16 %v1612, %v1611
  %v1664 = vpack.c.bf16 %v1614, %v1613
  %v1665 = vpack.c.bf16 %v1616, %v1615
  %v1666 = vpack.c.bf16 %v1618, %v1617
  %v1667 = vpack.c.bf16 %v1620, %v1619
  %v1668 = vpack.c.bf16 %v1622, %v1621
  %v1669 = vpack.c.bf16 %v1624, %v1623
  %v1670 = vpack.c.bf16 %v1626, %v1625
  %v1671 = vpack.c.bf16 %v1628, %v1627
  %v1672 = vpack.c.bf16 %v1630, %v1629
  %v1673 = vpack.c.bf16 %v1632, %v1631
  %v1674 = vpack.c.bf16 %v1634, %v1633
  %v1675 = vpack.c.bf16 %v1636, %v1635
  %v1676 = vpack.c.bf16 %v1638, %v1637
  %v1677 = vpack.c.bf16 %v1640, %v1639
  %v1678 = vpack.c.bf16 %v1642, %v1641
  %v1679 = vpack.c.bf16 %v1644, %v1643
  %v1680 = vpack.c.bf16 %v1646, %v1645
  %v1681 = vpack.c.bf16 %v1648, %v1647
  %v1682 = vpack.c.bf16 %v1650, %v1649
  %v1715 = vunpack.c.l.b16 %v1651
  %v1716 = vunpack.c.h.b16 %v1651
  %v1717 = vunpack.c.l.b16 %v1652
  %v1718 = vunpack.c.h.b16 %v1652
  %v1719 = vunpack.c.l.b16 %v1653
  %v1720 = vunpack.c.h.b16 %v1653
  %v1721 = vunpack.c.l.b16 %v1654
  %v1722 = vunpack.c.h.b16 %v1654
  %v1723 = vunpack.c.l.b16 %v1655
  %v1724 = vunpack.c.h.b16 %v1655
  %v1725 = vunpack.c.l.b16 %v1656
  %v1726 = vunpack.c.h.b16 %v1656
  %v1727 = vunpack.c.l.b16 %v1657
  %v1728 = vunpack.c.h.b16 %v1657
  %v1729 = vunpack.c.l.b16 %v1658
  %v1730 = vunpack.c.h.b16 %v1658
  %v1731 = vunpack.c.l.b16 %v1659
  %v1732 = vunpack.c.h.b16 %v1659
  %v1733 = vunpack.c.l.b16 %v1660
  %v1734 = vunpack.c.h.b16 %v1660
  %v1735 = vunpack.c.l.b16 %v1661
  %v1736 = vunpack.c.h.b16 %v1661
  %v1737 = vunpack.c.l.b16 %v1662
  %v1738 = vunpack.c.h.b16 %v1662
  %v1739 = vunpack.c.l.b16 %v1663
  %v1740 = vunpack.c.h.b16 %v1663
  %v1741 = vunpack.c.l.b16 %v1664
  %v1742 = vunpack.c.h.b16 %v1664
  %v1743 = vunpack.c.l.b16 %v1665
  %v1744 = vunpack.c.h.b16 %v1665
  %v1745 = vunpack.c.l.b16 %v1666
  %v1746 = vunpack.c.h.b16 %v1666
  %v1747 = vunpack.c.l.b16 %v1667
  %v1748 = vunpack.c.h.b16 %v1667
  %v1749 = vunpack.c.l.b16 %v1668
  %v1750 = vunpack.c.h.b16 %v1668
  %v1751 = vunpack.c.l.b16 %v1669
  %v1752 = vunpack.c.h.b16 %v1669
  %v1753 = vunpack.c.l.b16 %v1670
  %v1754 = vunpack.c.h.b16 %v1670
  %v1755 = vunpack.c.l.b16 %v1671
  %v1756 = vunpack.c.h.b16 %v1671
  %v1757 = vunpack.c.l.b16 %v1672
  %v1758 = vunpack.c.h.b16 %v1672
  %v1759 = vunpack.c.l.b16 %v1673
  %v1760 = vunpack.c.h.b16 %v1673
  %v1761 = vunpack.c.l.b16 %v1674
  %v1762 = vunpack.c.h.b16 %v1674
  %v1763 = vunpack.c.l.b16 %v1675
  %v1764 = vunpack.c.h.b16 %v1675
  %v1765 = vunpack.c.l.b16 %v1676
  %v1766 = vunpack.c.h.b16 %v1676
  %v1767 = vunpack.c.l.b16 %v1677
  %v1768 = vunpack.c.h.b16 %v1677
  %v1769 = vunpack.c.l.b16 %v1678
  %v1770 = vunpack.c.h.b16 %v1678
  %v1771 = vunpack.c.l.b16 %v1679
  %v1772 = vunpack.c.h.b16 %v1679
  %v1773 = vunpack.c.l.b16 %v1680
  %v1774 = vunpack.c.h.b16 %v1680
  %v1775 = vunpack.c.l.b16 %v1681
  %v1776 = vunpack.c.h.b16 %v1681
  %v1777 = vunpack.c.l.b16 %v1682
  %v1778 = vunpack.c.h.b16 %v1682
  %v1779 = vpack.c.b16 %v1715, %v1715
  %v1780 = vpack.c.b16 %v1716, %v1716
  %v1781 = vpack.c.b16 %v1717, %v1717
  %v1782 = vpack.c.b16 %v1718, %v1718
  %v1783 = vpack.c.b16 %v1719, %v1719
  %v1784 = vpack.c.b16 %v1720, %v1720
  %v1785 = vpack.c.b16 %v1721, %v1721
  %v1786 = vpack.c.b16 %v1722, %v1722
  %v1787 = vpack.c.b16 %v1723, %v1723
  %v1788 = vpack.c.b16 %v1724, %v1724
  %v1789 = vpack.c.b16 %v1725, %v1725
  %v1790 = vpack.c.b16 %v1726, %v1726
  %v1791 = vpack.c.b16 %v1727, %v1727
  %v1792 = vpack.c.b16 %v1728, %v1728
  %v1793 = vpack.c.b16 %v1729, %v1729
  %v1794 = vpack.c.b16 %v1730, %v1730
  %v1795 = vpack.c.b16 %v1731, %v1731
  %v1796 = vpack.c.b16 %v1732, %v1732
  %v1797 = vpack.c.b16 %v1733, %v1733
  %v1798 = vpack.c.b16 %v1734, %v1734
  %v1799 = vpack.c.b16 %v1735, %v1735
  %v1800 = vpack.c.b16 %v1736, %v1736
  %v1801 = vpack.c.b16 %v1737, %v1737
  %v1802 = vpack.c.b16 %v1738, %v1738
  %v1803 = vpack.c.b16 %v1739, %v1739
  %v1804 = vpack.c.b16 %v1740, %v1740
  %v1805 = vpack.c.b16 %v1741, %v1741
  %v1806 = vpack.c.b16 %v1742, %v1742
  %v1807 = vpack.c.b16 %v1743, %v1743
  %v1808 = vpack.c.b16 %v1744, %v1744
  %v1809 = vpack.c.b16 %v1745, %v1745
  %v1810 = vpack.c.b16 %v1746, %v1746
  %v1811 = vpack.c.b16 %v1747, %v1747
  %v1812 = vpack.c.b16 %v1748, %v1748
  %v1813 = vpack.c.b16 %v1749, %v1749
  %v1814 = vpack.c.b16 %v1750, %v1750
  %v1815 = vpack.c.b16 %v1751, %v1751
  %v1816 = vpack.c.b16 %v1752, %v1752
  %v1817 = vpack.c.b16 %v1753, %v1753
  %v1818 = vpack.c.b16 %v1754, %v1754
  %v1819 = vpack.c.b16 %v1755, %v1755
  %v1820 = vpack.c.b16 %v1756, %v1756
  %v1821 = vpack.c.b16 %v1757, %v1757
  %v1822 = vpack.c.b16 %v1758, %v1758
  %v1823 = vpack.c.b16 %v1759, %v1759
  %v1824 = vpack.c.b16 %v1760, %v1760
  %v1825 = vpack.c.b16 %v1761, %v1761
  %v1826 = vpack.c.b16 %v1762, %v1762
  %v1827 = vpack.c.b16 %v1763, %v1763
  %v1828 = vpack.c.b16 %v1764, %v1764
  %v1829 = vpack.c.b16 %v1765, %v1765
  %v1830 = vpack.c.b16 %v1766, %v1766
  %v1831 = vpack.c.b16 %v1767, %v1767
  %v1832 = vpack.c.b16 %v1768, %v1768
  %v1833 = vpack.c.b16 %v1769, %v1769
  %v1834 = vpack.c.b16 %v1770, %v1770
  %v1835 = vpack.c.b16 %v1771, %v1771
  %v1836 = vpack.c.b16 %v1772, %v1772
  %v1837 = vpack.c.b16 %v1773, %v1773
  %v1838 = vpack.c.b16 %v1774, %v1774
  %v1839 = vpack.c.b16 %v1775, %v1775
  %v1840 = vpack.c.b16 %v1776, %v1776
  %v1841 = vpack.c.b16 %v1777, %v1777
  %v1842 = vpack.c.b16 %v1778, %v1778
  %vm1907 = vcmask 257024
  %1908 = vst.msk [vmem:[%s4] sm:$0xf] %vm1907, %v1779
  %1909 = vst.msk [vmem:[%s4 + $0x4] sm:$0xf] %vm1907, %v1780
  %1910 = vst.msk [vmem:[%s4 + $0x8] sm:$0xf] %vm1907, %v1781
  %1911 = vst.msk [vmem:[%s4 + $0xc] sm:$0xf] %vm1907, %v1782
  %1912 = vst.msk [vmem:[%s4 + $0x10] sm:$0xf] %vm1907, %v1783
  %1913 = vst.msk [vmem:[%s4 + $0x14] sm:$0xf] %vm1907, %v1784
  %1914 = vst.msk [vmem:[%s4 + $0x18] sm:$0xf] %vm1907, %v1785
  %1915 = vst.msk [vmem:[%s4 + $0x1c] sm:$0xf] %vm1907, %v1786
  %1916 = vst.msk [vmem:[%s4 + $0x20] sm:$0xf] %vm1907, %v1787
  %1917 = vst.msk [vmem:[%s4 + $0x24] sm:$0xf] %vm1907, %v1788
  %1918 = vst.msk [vmem:[%s4 + $0x28] sm:$0xf] %vm1907, %v1789
  %1919 = vst.msk [vmem:[%s4 + $0x2c] sm:$0xf] %vm1907, %v1790
  %1920 = vst.msk [vmem:[%s4 + $0x30] sm:$0xf] %vm1907, %v1791
  %1921 = vst.msk [vmem:[%s4 + $0x34] sm:$0xf] %vm1907, %v1792
  %1922 = vst.msk [vmem:[%s4 + $0x38] sm:$0xf] %vm1907, %v1793
  %1923 = vst.msk [vmem:[%s4 + $0x3c] sm:$0xf] %vm1907, %v1794
  %1924 = vst.msk [vmem:[%s4 + $0x40] sm:$0xf] %vm1907, %v1795
  %1925 = vst.msk [vmem:[%s4 + $0x44] sm:$0xf] %vm1907, %v1796
  %1926 = vst.msk [vmem:[%s4 + $0x48] sm:$0xf] %vm1907, %v1797
  %1927 = vst.msk [vmem:[%s4 + $0x4c] sm:$0xf] %vm1907, %v1798
  %1928 = vst.msk [vmem:[%s4 + $0x50] sm:$0xf] %vm1907, %v1799
  %1929 = vst.msk [vmem:[%s4 + $0x54] sm:$0xf] %vm1907, %v1800
  %1930 = vst.msk [vmem:[%s4 + $0x58] sm:$0xf] %vm1907, %v1801
  %1931 = vst.msk [vmem:[%s4 + $0x5c] sm:$0xf] %vm1907, %v1802
  %1932 = vst.msk [vmem:[%s4 + $0x60] sm:$0xf] %vm1907, %v1803
  %1933 = vst.msk [vmem:[%s4 + $0x64] sm:$0xf] %vm1907, %v1804
  %1934 = vst.msk [vmem:[%s4 + $0x68] sm:$0xf] %vm1907, %v1805
  %1935 = vst.msk [vmem:[%s4 + $0x6c] sm:$0xf] %vm1907, %v1806
  %1936 = vst.msk [vmem:[%s4 + $0x70] sm:$0xf] %vm1907, %v1807
  %1937 = vst.msk [vmem:[%s4 + $0x74] sm:$0xf] %vm1907, %v1808
  %1938 = vst.msk [vmem:[%s4 + $0x78] sm:$0xf] %vm1907, %v1809
  %1939 = vst.msk [vmem:[%s4 + $0x7c] sm:$0xf] %vm1907, %v1810
  %1940 = vst.msk [vmem:[%s4 + $0x80] sm:$0xf] %vm1907, %v1811
  %1941 = vst.msk [vmem:[%s4 + $0x84] sm:$0xf] %vm1907, %v1812
  %1942 = vst.msk [vmem:[%s4 + $0x88] sm:$0xf] %vm1907, %v1813
  %1943 = vst.msk [vmem:[%s4 + $0x8c] sm:$0xf] %vm1907, %v1814
  %1944 = vst.msk [vmem:[%s4 + $0x90] sm:$0xf] %vm1907, %v1815
  %1945 = vst.msk [vmem:[%s4 + $0x94] sm:$0xf] %vm1907, %v1816
  %1946 = vst.msk [vmem:[%s4 + $0x98] sm:$0xf] %vm1907, %v1817
  %1947 = vst.msk [vmem:[%s4 + $0x9c] sm:$0xf] %vm1907, %v1818
  %1948 = vst.msk [vmem:[%s4 + $0xa0] sm:$0xf] %vm1907, %v1819
  %1949 = vst.msk [vmem:[%s4 + $0xa4] sm:$0xf] %vm1907, %v1820
  %1950 = vst.msk [vmem:[%s4 + $0xa8] sm:$0xf] %vm1907, %v1821
  %1951 = vst.msk [vmem:[%s4 + $0xac] sm:$0xf] %vm1907, %v1822
  %1952 = vst.msk [vmem:[%s4 + $0xb0] sm:$0xf] %vm1907, %v1823
  %1953 = vst.msk [vmem:[%s4 + $0xb4] sm:$0xf] %vm1907, %v1824
  %1954 = vst.msk [vmem:[%s4 + $0xb8] sm:$0xf] %vm1907, %v1825
  %1955 = vst.msk [vmem:[%s4 + $0xbc] sm:$0xf] %vm1907, %v1826
  %1956 = vst.msk [vmem:[%s4 + $0xc0] sm:$0xf] %vm1907, %v1827
  %1957 = vst.msk [vmem:[%s4 + $0xc4] sm:$0xf] %vm1907, %v1828
  %1958 = vst.msk [vmem:[%s4 + $0xc8] sm:$0xf] %vm1907, %v1829
  %1959 = vst.msk [vmem:[%s4 + $0xcc] sm:$0xf] %vm1907, %v1830
  %1960 = vst.msk [vmem:[%s4 + $0xd0] sm:$0xf] %vm1907, %v1831
  %1961 = vst.msk [vmem:[%s4 + $0xd4] sm:$0xf] %vm1907, %v1832
  %1962 = vst.msk [vmem:[%s4 + $0xd8] sm:$0xf] %vm1907, %v1833
  %1963 = vst.msk [vmem:[%s4 + $0xdc] sm:$0xf] %vm1907, %v1834
  %1964 = vst.msk [vmem:[%s4 + $0xe0] sm:$0xf] %vm1907, %v1835
  %1965 = vst.msk [vmem:[%s4 + $0xe4] sm:$0xf] %vm1907, %v1836
  %1966 = vst.msk [vmem:[%s4 + $0xe8] sm:$0xf] %vm1907, %v1837
  %1967 = vst.msk [vmem:[%s4 + $0xec] sm:$0xf] %vm1907, %v1838
  %1968 = vst.msk [vmem:[%s4 + $0xf0] sm:$0xf] %vm1907, %v1839
  %1969 = vst.msk [vmem:[%s4 + $0xf4] sm:$0xf] %vm1907, %v1840
  %1970 = vst.msk [vmem:[%s4 + $0xf8] sm:$0xf] %vm1907, %v1841
  %1971 = vst.msk [vmem:[%s4 + $0xfc] sm:$0xf] %vm1907, %v1842
  // Predicated region
  $region18: #{attention_decoder_forward.12} parent=0 // pred_check
    _
  $region19: #{attention_decoder_forward.12} parent=0 // pred_check_branch
    %1973 = sbr.rel (0) target = $region21
  $region20: #{attention_decoder_forward.12} parent=0 // pred_region
    _
  $region21: #{attention_decoder_forward.12} parent=0 // pred_fallthru
    _
  // Predicated region
  $region22: #{attention_decoder_forward.12} parent=0 // pred_check
    _
  $region23: #{attention_decoder_forward.12} parent=0 // pred_check_branch
    %1975 = sbr.rel (0) target = $region25
  $region24: #{attention_decoder_forward.12} parent=0 // pred_region
    _
  $region25: #{attention_decoder_forward.12} parent=0 // pred_fallthru
    _

// kernel: attention_decoder_forward.13
$region0: #{attention_decoder_forward.13}
  #allocation0 [shape = 'u32[]', space=smem, size = 0x4, offset = 0x4, fixed_abs, tag = 'smem constant byte address 0x4 - core index']
  #allocation1 [shape = 'u32[144,128]{1,0:T(1,128)}', space=vmem, size = 0x12000, scoped, tag = 'internal scratch']
  %s0 = inlined_call_operand.vmem [shape: bf16[2,8,8,32], index: 0, kind: input, shape index: {}]
  %s1 = inlined_call_operand.vmem [shape: bf16[2,8,8,32], index: 1, kind: input, shape index: {}]
  %s2 = inlined_call_operand.vmem [shape: bf16[2,8,8,32], index: 2, kind: input, shape index: {}]
  %s3 = inlined_call_operand.vmem [shape: bf16[2,8,8,32], index: 3, kind: input, shape index: {}]
  %s4 = inlined_call_operand.vmem [shape: bf16[2,8,8,32], index: 4, kind: output, shape index: {}]
  %s5 = sld [smem:[#allocation0]]
  $region26: #{attention_decoder_forward.13} parent=0
    _
  %s7 = ssub.s32 1, %s5
  %s8 = scalar_select 0, %s7, %s5
  // Predicated region
  $region2: #{attention_decoder_forward.13} parent=0 // pred_check
    _
  $region3: #{attention_decoder_forward.13} parent=0 // pred_check_branch
    %10 = sbr.rel (0) target = $region5
  $region4: #{attention_decoder_forward.13} parent=0 // pred_region
    _
  $region5: #{attention_decoder_forward.13} parent=0 // pred_fallthru
    _
  // Predicated region
  $region6: #{attention_decoder_forward.13} parent=0 // pred_check
    _
  $region7: #{attention_decoder_forward.13} parent=0 // pred_check_branch
    %12 = sbr.rel (0) target = $region9
  $region8: #{attention_decoder_forward.13} parent=0 // pred_region
    _
  $region9: #{attention_decoder_forward.13} parent=0 // pred_fallthru
    _
  // Predicated region
  $region10: #{attention_decoder_forward.13} parent=0 // pred_check
    _
  $region11: #{attention_decoder_forward.13} parent=0 // pred_check_branch
    %14 = sbr.rel (0) target = $region13
  $region12: #{attention_decoder_forward.13} parent=0 // pred_region
    _
  $region13: #{attention_decoder_forward.13} parent=0 // pred_fallthru
    _
  // Predicated region
  $region14: #{attention_decoder_forward.13} parent=0 // pred_check
    _
  $region15: #{attention_decoder_forward.13} parent=0 // pred_check_branch
    %16 = sbr.rel (0) target = $region17
  $region16: #{attention_decoder_forward.13} parent=0 // pred_region
    _
  $region17: #{attention_decoder_forward.13} parent=0 // pred_fallthru
    _
  %v17 = vld [vmem:[%s0] sm:$0xf]
  %v18 = vld [vmem:[%s0 + $0x4] sm:$0xf]
  %v19 = vld [vmem:[%s0 + $0x8] sm:$0xf]
  %v20 = vld [vmem:[%s0 + $0xc] sm:$0xf]
  %v21 = vld [vmem:[%s0 + $0x10] sm:$0xf]
  %v22 = vld [vmem:[%s0 + $0x14] sm:$0xf]
  %v23 = vld [vmem:[%s0 + $0x18] sm:$0xf]
  %v24 = vld [vmem:[%s0 + $0x1c] sm:$0xf]
  %v25 = vld [vmem:[%s0 + $0x20] sm:$0xf]
  %v26 = vld [vmem:[%s0 + $0x24] sm:$0xf]
  %v27 = vld [vmem:[%s0 + $0x28] sm:$0xf]
  %v28 = vld [vmem:[%s0 + $0x2c] sm:$0xf]
  %v29 = vld [vmem:[%s0 + $0x30] sm:$0xf]
  %v30 = vld [vmem:[%s0 + $0x34] sm:$0xf]
  %v31 = vld [vmem:[%s0 + $0x38] sm:$0xf]
  %v32 = vld [vmem:[%s0 + $0x3c] sm:$0xf]
  %v33 = vld [vmem:[%s1] sm:$0xf]
  %v34 = vld [vmem:[%s1 + $0x4] sm:$0xf]
  %v35 = vld [vmem:[%s1 + $0x8] sm:$0xf]
  %v36 = vld [vmem:[%s1 + $0xc] sm:$0xf]
  %v37 = vld [vmem:[%s1 + $0x10] sm:$0xf]
  %v38 = vld [vmem:[%s1 + $0x14] sm:$0xf]
  %v39 = vld [vmem:[%s1 + $0x18] sm:$0xf]
  %v40 = vld [vmem:[%s1 + $0x1c] sm:$0xf]
  %v41 = vld [vmem:[%s1 + $0x20] sm:$0xf]
  %v42 = vld [vmem:[%s1 + $0x24] sm:$0xf]
  %v43 = vld [vmem:[%s1 + $0x28] sm:$0xf]
  %v44 = vld [vmem:[%s1 + $0x2c] sm:$0xf]
  %v45 = vld [vmem:[%s1 + $0x30] sm:$0xf]
  %v46 = vld [vmem:[%s1 + $0x34] sm:$0xf]
  %v47 = vld [vmem:[%s1 + $0x38] sm:$0xf]
  %v48 = vld [vmem:[%s1 + $0x3c] sm:$0xf]
  %v49 = vmax.bf16 %v17, %v33
  %v50 = vmax.bf16 %v18, %v34
  %v51 = vmax.bf16 %v19, %v35
  %v52 = vmax.bf16 %v20, %v36
  %v53 = vmax.bf16 %v21, %v37
  %v54 = vmax.bf16 %v22, %v38
  %v55 = vmax.bf16 %v23, %v39
  %v56 = vmax.bf16 %v24, %v40
  %v57 = vmax.bf16 %v25, %v41
  %v58 = vmax.bf16 %v26, %v42
  %v59 = vmax.bf16 %v27, %v43
  %v60 = vmax.bf16 %v28, %v44
  %v61 = vmax.bf16 %v29, %v45
  %v62 = vmax.bf16 %v30, %v46
  %v63 = vmax.bf16 %v31, %v47
  %v64 = vmax.bf16 %v32, %v48
  %v65 = vld [vmem:[%s2] sm:$0xf]
  %v66 = vld [vmem:[%s2 + $0x4] sm:$0xf]
  %v67 = vld [vmem:[%s2 + $0x8] sm:$0xf]
  %v68 = vld [vmem:[%s2 + $0xc] sm:$0xf]
  %v69 = vld [vmem:[%s2 + $0x10] sm:$0xf]
  %v70 = vld [vmem:[%s2 + $0x14] sm:$0xf]
  %v71 = vld [vmem:[%s2 + $0x18] sm:$0xf]
  %v72 = vld [vmem:[%s2 + $0x1c] sm:$0xf]
  %v73 = vld [vmem:[%s2 + $0x20] sm:$0xf]
  %v74 = vld [vmem:[%s2 + $0x24] sm:$0xf]
  %v75 = vld [vmem:[%s2 + $0x28] sm:$0xf]
  %v76 = vld [vmem:[%s2 + $0x2c] sm:$0xf]
  %v77 = vld [vmem:[%s2 + $0x30] sm:$0xf]
  %v78 = vld [vmem:[%s2 + $0x34] sm:$0xf]
  %v79 = vld [vmem:[%s2 + $0x38] sm:$0xf]
  %v80 = vld [vmem:[%s2 + $0x3c] sm:$0xf]
  %v81 = vmax.bf16 %v49, %v65
  %v82 = vmax.bf16 %v50, %v66
  %v83 = vmax.bf16 %v51, %v67
  %v84 = vmax.bf16 %v52, %v68
  %v85 = vmax.bf16 %v53, %v69
  %v86 = vmax.bf16 %v54, %v70
  %v87 = vmax.bf16 %v55, %v71
  %v88 = vmax.bf16 %v56, %v72
  %v89 = vmax.bf16 %v57, %v73
  %v90 = vmax.bf16 %v58, %v74
  %v91 = vmax.bf16 %v59, %v75
  %v92 = vmax.bf16 %v60, %v76
  %v93 = vmax.bf16 %v61, %v77
  %v94 = vmax.bf16 %v62, %v78
  %v95 = vmax.bf16 %v63, %v79
  %v96 = vmax.bf16 %v64, %v80
  %v97 = vld [vmem:[%s3] sm:$0xf]
  %v98 = vld [vmem:[%s3 + $0x4] sm:$0xf]
  %v99 = vld [vmem:[%s3 + $0x8] sm:$0xf]
  %v100 = vld [vmem:[%s3 + $0xc] sm:$0xf]
  %v101 = vld [vmem:[%s3 + $0x10] sm:$0xf]
  %v102 = vld [vmem:[%s3 + $0x14] sm:$0xf]
  %v103 = vld [vmem:[%s3 + $0x18] sm:$0xf]
  %v104 = vld [vmem:[%s3 + $0x1c] sm:$0xf]
  %v105 = vld [vmem:[%s3 + $0x20] sm:$0xf]
  %v106 = vld [vmem:[%s3 + $0x24] sm:$0xf]
  %v107 = vld [vmem:[%s3 + $0x28] sm:$0xf]
  %v108 = vld [vmem:[%s3 + $0x2c] sm:$0xf]
  %v109 = vld [vmem:[%s3 + $0x30] sm:$0xf]
  %v110 = vld [vmem:[%s3 + $0x34] sm:$0xf]
  %v111 = vld [vmem:[%s3 + $0x38] sm:$0xf]
  %v112 = vld [vmem:[%s3 + $0x3c] sm:$0xf]
  %v113 = vmax.bf16 %v81, %v97
  %v114 = vmax.bf16 %v82, %v98
  %v115 = vmax.bf16 %v83, %v99
  %v116 = vmax.bf16 %v84, %v100
  %v117 = vmax.bf16 %v85, %v101
  %v118 = vmax.bf16 %v86, %v102
  %v119 = vmax.bf16 %v87, %v103
  %v120 = vmax.bf16 %v88, %v104
  %v121 = vmax.bf16 %v89, %v105
  %v122 = vmax.bf16 %v90, %v106
  %v123 = vmax.bf16 %v91, %v107
  %v124 = vmax.bf16 %v92, %v108
  %v125 = vmax.bf16 %v93, %v109
  %v126 = vmax.bf16 %v94, %v110
  %v127 = vmax.bf16 %v95, %v111
  %v128 = vmax.bf16 %v96, %v112
  %vm129 = vcmask 257024
  %130 = vst.msk [vmem:[%s4] sm:$0xf] %vm129, %v113
  %131 = vst.msk [vmem:[%s4 + $0x4] sm:$0xf] %vm129, %v114
  %132 = vst.msk [vmem:[%s4 + $0x8] sm:$0xf] %vm129, %v115
  %133 = vst.msk [vmem:[%s4 + $0xc] sm:$0xf] %vm129, %v116
  %134 = vst.msk [vmem:[%s4 + $0x10] sm:$0xf] %vm129, %v117
  %135 = vst.msk [vmem:[%s4 + $0x14] sm:$0xf] %vm129, %v118
  %136 = vst.msk [vmem:[%s4 + $0x18] sm:$0xf] %vm129, %v119
  %137 = vst.msk [vmem:[%s4 + $0x1c] sm:$0xf] %vm129, %v120
  %138 = vst.msk [vmem:[%s4 + $0x20] sm:$0xf] %vm129, %v121
  %139 = vst.msk [vmem:[%s4 + $0x24] sm:$0xf] %vm129, %v122
  %140 = vst.msk [vmem:[%s4 + $0x28] sm:$0xf] %vm129, %v123
  %141 = vst.msk [vmem:[%s4 + $0x2c] sm:$0xf] %vm129, %v124
  %142 = vst.msk [vmem:[%s4 + $0x30] sm:$0xf] %vm129, %v125
  %143 = vst.msk [vmem:[%s4 + $0x34] sm:$0xf] %vm129, %v126
  %144 = vst.msk [vmem:[%s4 + $0x38] sm:$0xf] %vm129, %v127
  %145 = vst.msk [vmem:[%s4 + $0x3c] sm:$0xf] %vm129, %v128
  // Predicated region
  $region18: #{attention_decoder_forward.13} parent=0 // pred_check
    _
  $region19: #{attention_decoder_forward.13} parent=0 // pred_check_branch
    %147 = sbr.rel (0) target = $region21
  $region20: #{attention_decoder_forward.13} parent=0 // pred_region
    _
  $region21: #{attention_decoder_forward.13} parent=0 // pred_fallthru
    _
  // Predicated region
  $region22: #{attention_decoder_forward.13} parent=0 // pred_check
    _
  $region23: #{attention_decoder_forward.13} parent=0 // pred_check_branch
    %149 = sbr.rel (0) target = $region25
  $region24: #{attention_decoder_forward.13} parent=0 // pred_region
    _
  $region25: #{attention_decoder_forward.13} parent=0 // pred_fallthru
    _

// kernel: attention_decoder_forward.14
$region0: #{attention_decoder_forward.14}
  #allocation0 [shape = 'u32[]', space=smem, size = 0x4, offset = 0x4, fixed_abs, tag = 'smem constant byte address 0x4 - core index']
  #allocation1 [shape = 'u32[144,128]{1,0:T(1,128)}', space=vmem, size = 0x12000, scoped, tag = 'internal scratch']
  %s0 = inlined_call_operand.vmem [shape: bf16[128,288], index: 0, kind: input, shape index: {}]
  %s1 = inlined_call_operand.vmem [shape: bf16[288,32], index: 1, kind: input, shape index: {}]
  %s2 = inlined_call_operand.vmem [shape: f32[1,32], index: 2, kind: input, shape index: {}]
  %s3 = inlined_call_operand.vmem [shape: f32[1,32], index: 3, kind: input, shape index: {}]
  %s4 = inlined_call_operand.vmem [shape: bf16[128,32], index: 4, kind: output, shape index: {}]
  %s5 = sld [smem:[#allocation0]]
  $region26: #{attention_decoder_forward.14} parent=0
    _
  %s7 = ssub.s32 1, %s5
  %s8 = scalar_select 0, %s7, %s5
  // Predicated region
  $region2: #{attention_decoder_forward.14} parent=0 // pred_check
    _
  $region3: #{attention_decoder_forward.14} parent=0 // pred_check_branch
    %10 = sbr.rel (0) target = $region5
  $region4: #{attention_decoder_forward.14} parent=0 // pred_region
    _
  $region5: #{attention_decoder_forward.14} parent=0 // pred_fallthru
    _
  // Predicated region
  $region6: #{attention_decoder_forward.14} parent=0 // pred_check
    _
  $region7: #{attention_decoder_forward.14} parent=0 // pred_check_branch
    %12 = sbr.rel (0) target = $region9
  $region8: #{attention_decoder_forward.14} parent=0 // pred_region
    _
  $region9: #{attention_decoder_forward.14} parent=0 // pred_fallthru
    _
  // Predicated region
  $region10: #{attention_decoder_forward.14} parent=0 // pred_check
    _
  $region11: #{attention_decoder_forward.14} parent=0 // pred_check_branch
    %14 = sbr.rel (0) target = $region13
  $region12: #{attention_decoder_forward.14} parent=0 // pred_region
    _
  $region13: #{attention_decoder_forward.14} parent=0 // pred_fallthru
    _
  // Predicated region
  $region14: #{attention_decoder_forward.14} parent=0 // pred_check
    _
  $region15: #{attention_decoder_forward.14} parent=0 // pred_check_branch
    %16 = sbr.rel (0) target = $region17
  $region16: #{attention_decoder_forward.14} parent=0 // pred_region
    _
  $region17: #{attention_decoder_forward.14} parent=0 // pred_fallthru
    _
  %v18 = vld [vmem:[%s0] sm:$0xff]
  %v19 = vld [vmem:[%s0 + $0x8] sm:$0xf]
  %v20 = vld [vmem:[%s0 + $0xc] sm:$0xff]
  %v21 = vld [vmem:[%s0 + $0x14] sm:$0xf]
  %v22 = vld [vmem:[%s0 + $0x18] sm:$0xff]
  %v23 = vld [vmem:[%s0 + $0x20] sm:$0xf]
  %v24 = vld [vmem:[%s0 + $0x24] sm:$0xff]
  %v25 = vld [vmem:[%s0 + $0x2c] sm:$0xf]
  %v26 = vld [vmem:[%s0 + $0x30] sm:$0xff]
  %v27 = vld [vmem:[%s0 + $0x38] sm:$0xf]
  %v28 = vld [vmem:[%s0 + $0x3c] sm:$0xff]
  %v29 = vld [vmem:[%s0 + $0x44] sm:$0xf]
  %v30 = vld [vmem:[%s0 + $0x48] sm:$0xff]
  %v31 = vld [vmem:[%s0 + $0x50] sm:$0xf]
  %v32 = vld [vmem:[%s0 + $0x54] sm:$0xff]
  %v33 = vld [vmem:[%s0 + $0x5c] sm:$0xf]
  %v34 = vld [vmem:[%s0 + $0x60] sm:$0xff]
  %v35 = vld [vmem:[%s0 + $0x68] sm:$0xf]
  %v36 = vld [vmem:[%s0 + $0x6c] sm:$0xff]
  %v37 = vld [vmem:[%s0 + $0x74] sm:$0xf]
  %v38 = vld [vmem:[%s0 + $0x78] sm:$0xff]
  %v39 = vld [vmem:[%s0 + $0x80] sm:$0xf]
  %v40 = vld [vmem:[%s0 + $0x84] sm:$0xff]
  %v41 = vld [vmem:[%s0 + $0x8c] sm:$0xf]
  %v42 = vld [vmem:[%s0 + $0x90] sm:$0xff]
  %v43 = vld [vmem:[%s0 + $0x98] sm:$0xf]
  %v44 = vld [vmem:[%s0 + $0x9c] sm:$0xff]
  %v45 = vld [vmem:[%s0 + $0xa4] sm:$0xf]
  %v46 = vld [vmem:[%s0 + $0xa8] sm:$0xff]
  %v47 = vld [vmem:[%s0 + $0xb0] sm:$0xf]
  %v48 = vld [vmem:[%s0 + $0xb4] sm:$0xff]
  %v49 = vld [vmem:[%s0 + $0xbc] sm:$0xf]
  %v50 = vld [vmem:[%s1] sm:$0xf]
  %v51 = vld [vmem:[%s1 + $0x4] sm:$0xf]
  %v52 = vld [vmem:[%s1 + $0x8] sm:$0xf]
  %v53 = vld [vmem:[%s1 + $0xc] sm:$0xf]
  %v54 = vld [vmem:[%s1 + $0x10] sm:$0xf]
  %v55 = vld [vmem:[%s1 + $0x14] sm:$0xf]
  %v56 = vld [vmem:[%s1 + $0x18] sm:$0xf]
  %v57 = vld [vmem:[%s1 + $0x1c] sm:$0xf]
  %v58 = vld [vmem:[%s1 + $0x20] sm:$0xf]
  %v59 = vld [vmem:[%s1 + $0x24] sm:$0xf]
  %v60 = vld [vmem:[%s1 + $0x28] sm:$0xf]
  %v61 = vld [vmem:[%s1 + $0x2c] sm:$0xf]
  %v62 = vld [vmem:[%s1 + $0x30] sm:$0xf]
  %v63 = vld [vmem:[%s1 + $0x34] sm:$0xf]
  %v64 = vld [vmem:[%s1 + $0x38] sm:$0xf]
  %v65 = vld [vmem:[%s1 + $0x3c] sm:$0xf]
  %v66 = vld [vmem:[%s1 + $0x40] sm:$0xf]
  %v67 = vld [vmem:[%s1 + $0x44] sm:$0xf]
  %v68 = vld [vmem:[%s1 + $0x48] sm:$0xf]
  %v69 = vld [vmem:[%s1 + $0x4c] sm:$0xf]
  %v70 = vld [vmem:[%s1 + $0x50] sm:$0xf]
  %v71 = vld [vmem:[%s1 + $0x54] sm:$0xf]
  %v72 = vld [vmem:[%s1 + $0x58] sm:$0xf]
  %v73 = vld [vmem:[%s1 + $0x5c] sm:$0xf]
  %v74 = vld [vmem:[%s1 + $0x60] sm:$0xf]
  %v75 = vld [vmem:[%s1 + $0x64] sm:$0xf]
  %v76 = vld [vmem:[%s1 + $0x68] sm:$0xf]
  %v77 = vld [vmem:[%s1 + $0x6c] sm:$0xf]
  %v78 = vld [vmem:[%s1 + $0x70] sm:$0xf]
  %v79 = vld [vmem:[%s1 + $0x74] sm:$0xf]
  %v80 = vld [vmem:[%s1 + $0x78] sm:$0xf]
  %v81 = vld [vmem:[%s1 + $0x7c] sm:$0xf]
  %v82 = vld [vmem:[%s1 + $0x80] sm:$0xf]
  %v83 = vld [vmem:[%s1 + $0x84] sm:$0xf]
  %v84 = vld [vmem:[%s1 + $0x88] sm:$0xf]
  %v85 = vld [vmem:[%s1 + $0x8c] sm:$0xf]
  %v118 = vunpack.c.l.b16 %v18
  %v119 = vunpack.c.h.b16 %v18
  %v120 = vunpack.c.l.b16 %v19
  %v121 = vunpack.c.l.b16 %v20
  %v122 = vunpack.c.h.b16 %v20
  %v123 = vunpack.c.l.b16 %v21
  %v124 = vunpack.c.l.b16 %v22
  %v125 = vunpack.c.h.b16 %v22
  %v126 = vunpack.c.l.b16 %v23
  %v127 = vunpack.c.l.b16 %v24
  %v128 = vunpack.c.h.b16 %v24
  %v129 = vunpack.c.l.b16 %v25
  %v130 = vunpack.c.l.b16 %v26
  %v131 = vunpack.c.h.b16 %v26
  %v132 = vunpack.c.l.b16 %v27
  %v133 = vunpack.c.l.b16 %v28
  %v134 = vunpack.c.h.b16 %v28
  %v135 = vunpack.c.l.b16 %v29
  %v136 = vunpack.c.l.b16 %v30
  %v137 = vunpack.c.h.b16 %v30
  %v138 = vunpack.c.l.b16 %v31
  %v139 = vunpack.c.l.b16 %v32
  %v140 = vunpack.c.h.b16 %v32
  %v141 = vunpack.c.l.b16 %v33
  %v142 = vunpack.c.l.b16 %v34
  %v143 = vunpack.c.h.b16 %v34
  %v144 = vunpack.c.l.b16 %v35
  %v145 = vunpack.c.l.b16 %v36
  %v146 = vunpack.c.h.b16 %v36
  %v147 = vunpack.c.l.b16 %v37
  %v148 = vunpack.c.l.b16 %v38
  %v149 = vunpack.c.h.b16 %v38
  %v150 = vunpack.c.l.b16 %v39
  %v151 = vunpack.c.l.b16 %v40
  %v152 = vunpack.c.h.b16 %v40
  %v153 = vunpack.c.l.b16 %v41
  %v154 = vunpack.c.l.b16 %v42
  %v155 = vunpack.c.h.b16 %v42
  %v156 = vunpack.c.l.b16 %v43
  %v157 = vunpack.c.l.b16 %v44
  %v158 = vunpack.c.h.b16 %v44
  %v159 = vunpack.c.l.b16 %v45
  %v160 = vunpack.c.l.b16 %v46
  %v161 = vunpack.c.h.b16 %v46
  %v162 = vunpack.c.l.b16 %v47
  %v163 = vunpack.c.l.b16 %v48
  %v164 = vunpack.c.h.b16 %v48
  %v165 = vunpack.c.l.b16 %v49
  %v166 = vpack.c.b16 %v121, %v118
  %v167 = vpack.c.b16 %v122, %v119
  %v168 = vpack.c.b16 %v123, %v120
  %v169 = vpack.c.b16 %v127, %v124
  %v170 = vpack.c.b16 %v128, %v125
  %v171 = vpack.c.b16 %v129, %v126
  %v172 = vpack.c.b16 %v133, %v130
  %v173 = vpack.c.b16 %v134, %v131
  %v174 = vpack.c.b16 %v135, %v132
  %v175 = vpack.c.b16 %v139, %v136
  %v176 = vpack.c.b16 %v140, %v137
  %v177 = vpack.c.b16 %v141, %v138
  %v178 = vpack.c.b16 %v145, %v142
  %v179 = vpack.c.b16 %v146, %v143
  %v180 = vpack.c.b16 %v147, %v144
  %v181 = vpack.c.b16 %v151, %v148
  %v182 = vpack.c.b16 %v152, %v149
  %v183 = vpack.c.b16 %v153, %v150
  %v184 = vpack.c.b16 %v157, %v154
  %v185 = vpack.c.b16 %v158, %v155
  %v186 = vpack.c.b16 %v159, %v156
  %v187 = vpack.c.b16 %v163, %v160
  %v188 = vpack.c.b16 %v164, %v161
  %v189 = vpack.c.b16 %v165, %v162
  %v242 = vunpack.c.l.b16 %v50
  %v243 = vunpack.c.l.b16 %v51
  %v244 = vunpack.c.l.b16 %v52
  %v245 = vunpack.c.l.b16 %v53
  %v246 = vunpack.c.l.b16 %v54
  %v247 = vunpack.c.l.b16 %v55
  %v248 = vunpack.c.l.b16 %v56
  %v249 = vunpack.c.l.b16 %v57
  %v250 = vunpack.c.l.b16 %v58
  %v251 = vunpack.c.l.b16 %v59
  %v252 = vunpack.c.l.b16 %v60
  %v253 = vunpack.c.l.b16 %v61
  %v254 = vunpack.c.l.b16 %v62
  %v255 = vunpack.c.l.b16 %v63
  %v256 = vunpack.c.l.b16 %v64
  %v257 = vunpack.c.l.b16 %v65
  %v258 = vunpack.c.l.b16 %v66
  %v259 = vunpack.c.l.b16 %v67
  %v260 = vunpack.c.l.b16 %v68
  %v261 = vunpack.c.l.b16 %v69
  %v262 = vunpack.c.l.b16 %v70
  %v263 = vunpack.c.l.b16 %v71
  %v264 = vunpack.c.l.b16 %v72
  %v265 = vunpack.c.l.b16 %v73
  %v266 = vunpack.c.l.b16 %v74
  %v267 = vunpack.c.l.b16 %v75
  %v268 = vunpack.c.l.b16 %v76
  %v269 = vunpack.c.l.b16 %v77
  %v270 = vunpack.c.l.b16 %v78
  %v271 = vunpack.c.l.b16 %v79
  %v272 = vunpack.c.l.b16 %v80
  %v273 = vunpack.c.l.b16 %v81
  %v274 = vunpack.c.l.b16 %v82
  %v275 = vunpack.c.l.b16 %v83
  %v276 = vunpack.c.l.b16 %v84
  %v277 = vunpack.c.l.b16 %v85
  %v278 = vpack.c.b16 %v243, %v242
  %v279 = vpack.c.b16 %v245, %v244
  %v280 = vpack.c.b16 %v247, %v246
  %v281 = vpack.c.b16 %v249, %v248
  %v282 = vpack.c.b16 %v251, %v250
  %v283 = vpack.c.b16 %v253, %v252
  %v284 = vpack.c.b16 %v255, %v254
  %v285 = vpack.c.b16 %v257, %v256
  %v286 = vpack.c.b16 %v259, %v258
  %v287 = vpack.c.b16 %v261, %v260
  %v288 = vpack.c.b16 %v263, %v262
  %v289 = vpack.c.b16 %v265, %v264
  %v290 = vpack.c.b16 %v267, %v266
  %v291 = vpack.c.b16 %v269, %v268
  %v292 = vpack.c.b16 %v271, %v270
  %v293 = vpack.c.b16 %v273, %v272
  %v294 = vpack.c.b16 %v275, %v274
  %v295 = vpack.c.b16 %v277, %v276
  %vm314 = vcmask 261120
  %v316 = vsel %vm314, %v168, 0
  %v319 = vsel %vm314, %v171, 0
  %v322 = vsel %vm314, %v174, 0
  %v325 = vsel %vm314, %v177, 0
  %v328 = vsel %vm314, %v180, 0
  %v331 = vsel %vm314, %v183, 0
  %v334 = vsel %vm314, %v186, 0
  %v337 = vsel %vm314, %v189, 0
  %339 = vmatprep.subr.bf16.mxu0 0
  %340 = vmatpush1.bf16.msra.mxu0 %v278
  %341 = vmatprep.subr.bf16.mxu0 0
  %342 = vmatpush1.bf16.msra.mxu0 %v279
  %343 = vmatprep.subr.bf16.mxu0 0
  %344 = vmatpush1.bf16.msra.mxu0 %v280
  %345 = vmatprep.subr.bf16.mxu0 0
  %346 = vmatpush1.bf16.msra.mxu0 %v281
  %347 = vmatprep.subr.bf16.mxu0 0
  %348 = vmatpush1.bf16.msra.mxu0 %v282
  %349 = vmatprep.subr.bf16.mxu0 0
  %350 = vmatpush1.bf16.msra.mxu0 %v283
  %351 = vmatprep.subr.bf16.mxu0 0
  %352 = vmatpush1.bf16.msra.mxu0 %v284
  %353 = vmatprep.subr.bf16.mxu0 0
  %354 = vmatpush1.bf16.msra.mxu0 %v285
  %355 = vmatprep.subr.bf16.mxu0 0
  %356 = vmatpush1.bf16.msra.mxu0 %v286
  %357 = vmatprep.subr.bf16.mxu0 0
  %358 = vmatpush1.bf16.msra.mxu0 %v287
  %359 = vmatprep.subr.bf16.mxu0 0
  %360 = vmatpush1.bf16.msra.mxu0 %v288
  %361 = vmatprep.subr.bf16.mxu0 0
  %362 = vmatpush1.bf16.msra.mxu0 %v289
  %363 = vmatprep.subr.bf16.mxu0 0
  %364 = vmatpush1.bf16.msra.mxu0 %v290
  %365 = vmatprep.subr.bf16.mxu0 0
  %366 = vmatpush1.bf16.msra.mxu0 %v291
  %367 = vmatprep.subr.bf16.mxu0 0
  %368 = vmatpush1.bf16.msra.mxu0 %v292
  %369 = vmatprep.subr.bf16.mxu0 0
  %370 = vmatpush1.bf16.msra.mxu0 %v293
  %371 = vmatprep.mubr.bf16.mxu0 %v167
  %372 = vmatmul.mubr.bf16.gmra.mrb[0].mxu0 %v166
  %v373 = vpop.f32.mrb[0].mxu0
  %v374 = vadd.f32 0.0, %v373
  %v375 = vpop.f32.mrb[0].mxu0
  %v376 = vpop.f32.mrb[0].mxu0
  %v377 = vadd.f32 0.0, %v376
  %v378 = vpop.f32.mrb[0].mxu0
  %379 = vmatprep.mubr.bf16.mxu0 %v170
  %380 = vmatmul.mubr.bf16.gmra.mrb[0].mxu0 %v169
  %v381 = vpop.f32.mrb[0].mxu0
  %v382 = vadd.f32 0.0, %v381
  %v383 = vpop.f32.mrb[0].mxu0
  %v384 = vpop.f32.mrb[0].mxu0
  %v385 = vadd.f32 0.0, %v384
  %v386 = vpop.f32.mrb[0].mxu0
  %387 = vmatprep.mubr.bf16.mxu0 %v173
  %388 = vmatmul.mubr.bf16.gmra.mrb[0].mxu0 %v172
  %v389 = vpop.f32.mrb[0].mxu0
  %v390 = vadd.f32 0.0, %v389
  %v391 = vpop.f32.mrb[0].mxu0
  %v392 = vpop.f32.mrb[0].mxu0
  %v393 = vadd.f32 0.0, %v392
  %v394 = vpop.f32.mrb[0].mxu0
  %395 = vmatprep.mubr.bf16.mxu0 %v176
  %396 = vmatmul.mubr.bf16.gmra.mrb[0].mxu0 %v175
  %v397 = vpop.f32.mrb[0].mxu0
  %v398 = vadd.f32 0.0, %v397
  %v399 = vpop.f32.mrb[0].mxu0
  %v400 = vpop.f32.mrb[0].mxu0
  %v401 = vadd.f32 0.0, %v400
  %v402 = vpop.f32.mrb[0].mxu0
  %403 = vmatprep.mubr.bf16.mxu0 %v179
  %404 = vmatmul.mubr.bf16.gmra.mrb[0].mxu0 %v178
  %v405 = vpop.f32.mrb[0].mxu0
  %v406 = vadd.f32 0.0, %v405
  %v407 = vpop.f32.mrb[0].mxu0
  %v408 = vpop.f32.mrb[0].mxu0
  %v409 = vadd.f32 0.0, %v408
  %v410 = vpop.f32.mrb[0].mxu0
  %411 = vmatprep.mubr.bf16.mxu0 %v182
  %412 = vmatmul.mubr.bf16.gmra.mrb[0].mxu0 %v181
  %v413 = vpop.f32.mrb[0].mxu0
  %v414 = vadd.f32 0.0, %v413
  %v415 = vpop.f32.mrb[0].mxu0
  %v416 = vpop.f32.mrb[0].mxu0
  %v417 = vadd.f32 0.0, %v416
  %v418 = vpop.f32.mrb[0].mxu0
  %419 = vmatprep.mubr.bf16.mxu0 %v185
  %420 = vmatmul.mubr.bf16.gmra.mrb[0].mxu0 %v184
  %v421 = vpop.f32.mrb[0].mxu0
  %v422 = vadd.f32 0.0, %v421
  %v423 = vpop.f32.mrb[0].mxu0
  %v424 = vpop.f32.mrb[0].mxu0
  %v425 = vadd.f32 0.0, %v424
  %v426 = vpop.f32.mrb[0].mxu0
  %427 = vmatprep.mubr.bf16.mxu0 %v188
  %428 = vmatmul.mubr.bf16.gmra.mrb[0].mxu0 %v187
  %v429 = vpop.f32.mrb[0].mxu0
  %v430 = vadd.f32 0.0, %v429
  %v431 = vpop.f32.mrb[0].mxu0
  %v432 = vpop.f32.mrb[0].mxu0
  %v433 = vadd.f32 0.0, %v432
  %v434 = vpop.f32.mrb[0].mxu0
  %435 = vdwg.mxu0
  %436 = vmatprep.subr.bf16.mxu0 0
  %437 = vmatpush1.bf16.msra.mxu0 %v294
  %438 = vmatprep.subr.bf16.mxu0 0
  %439 = vmatpush1.bf16.msra.mxu0 %v295
  %440 = vmatprep.subr.bf16.mxu0 0
  %441 = vmatpush1.bf16.msra.mxu0 0
  %442 = vmatprep.subr.bf16.mxu0 0
  %443 = vmatpush1.bf16.msra.mxu0 0
  %444 = vmatprep.subr.bf16.mxu0 0
  %445 = vmatpush1.bf16.msra.mxu0 0
  %446 = vmatprep.subr.bf16.mxu0 0
  %447 = vmatpush1.bf16.msra.mxu0 0
  %448 = vmatprep.subr.bf16.mxu0 0
  %449 = vmatpush1.bf16.msra.mxu0 0
  %450 = vmatprep.subr.bf16.mxu0 0
  %451 = vmatpush1.bf16.msra.mxu0 0
  %452 = vmatprep.subr.bf16.mxu0 0
  %453 = vmatpush1.bf16.msra.mxu0 0
  %454 = vmatprep.subr.bf16.mxu0 0
  %455 = vmatpush1.bf16.msra.mxu0 0
  %456 = vmatprep.subr.bf16.mxu0 0
  %457 = vmatpush1.bf16.msra.mxu0 0
  %458 = vmatprep.subr.bf16.mxu0 0
  %459 = vmatpush1.bf16.msra.mxu0 0
  %460 = vmatprep.subr.bf16.mxu0 0
  %461 = vmatpush1.bf16.msra.mxu0 0
  %462 = vmatprep.subr.bf16.mxu0 0
  %463 = vmatpush1.bf16.msra.mxu0 0
  %464 = vmatprep.subr.bf16.mxu0 0
  %465 = vmatpush1.bf16.msra.mxu0 0
  %466 = vmatprep.subr.bf16.mxu0 0
  %467 = vmatpush1.bf16.msra.mxu0 0
  %468 = vmatprep.mubr.bf16.mxu0 0
  %469 = vmatmul.mubr.bf16.gmra.mrb[0].mxu0 %v316
  %v470 = vpop.f32.mrb[0].mxu0
  %v471 = vadd.f32 %v374, %v470
  %v472 = vpop.f32.mrb[0].mxu0
  %v473 = vpop.f32.mrb[0].mxu0
  %v474 = vadd.f32 %v377, %v473
  %v475 = vpop.f32.mrb[0].mxu0
  %476 = vmatprep.mubr.bf16.mxu0 0
  %477 = vmatmul.mubr.bf16.gmra.mrb[0].mxu0 %v319
  %v478 = vpop.f32.mrb[0].mxu0
  %v479 = vadd.f32 %v382, %v478
  %v480 = vpop.f32.mrb[0].mxu0
  %v481 = vpop.f32.mrb[0].mxu0
  %v482 = vadd.f32 %v385, %v481
  %v483 = vpop.f32.mrb[0].mxu0
  %484 = vmatprep.mubr.bf16.mxu0 0
  %485 = vmatmul.mubr.bf16.gmra.mrb[0].mxu0 %v322
  %v486 = vpop.f32.mrb[0].mxu0
  %v487 = vadd.f32 %v390, %v486
  %v488 = vpop.f32.mrb[0].mxu0
  %v489 = vpop.f32.mrb[0].mxu0
  %v490 = vadd.f32 %v393, %v489
  %v491 = vpop.f32.mrb[0].mxu0
  %492 = vmatprep.mubr.bf16.mxu0 0
  %493 = vmatmul.mubr.bf16.gmra.mrb[0].mxu0 %v325
  %v494 = vpop.f32.mrb[0].mxu0
  %v495 = vadd.f32 %v398, %v494
  %v496 = vpop.f32.mrb[0].mxu0
  %v497 = vpop.f32.mrb[0].mxu0
  %v498 = vadd.f32 %v401, %v497
  %v499 = vpop.f32.mrb[0].mxu0
  %500 = vmatprep.mubr.bf16.mxu0 0
  %501 = vmatmul.mubr.bf16.gmra.mrb[0].mxu0 %v328
  %v502 = vpop.f32.mrb[0].mxu0
  %v503 = vadd.f32 %v406, %v502
  %v504 = vpop.f32.mrb[0].mxu0
  %v505 = vpop.f32.mrb[0].mxu0
  %v506 = vadd.f32 %v409, %v505
  %v507 = vpop.f32.mrb[0].mxu0
  %508 = vmatprep.mubr.bf16.mxu0 0
  %509 = vmatmul.mubr.bf16.gmra.mrb[0].mxu0 %v331
  %v510 = vpop.f32.mrb[0].mxu0
  %v511 = vadd.f32 %v414, %v510
  %v512 = vpop.f32.mrb[0].mxu0
  %v513 = vpop.f32.mrb[0].mxu0
  %v514 = vadd.f32 %v417, %v513
  %v515 = vpop.f32.mrb[0].mxu0
  %516 = vmatprep.mubr.bf16.mxu0 0
  %517 = vmatmul.mubr.bf16.gmra.mrb[0].mxu0 %v334
  %v518 = vpop.f32.mrb[0].mxu0
  %v519 = vadd.f32 %v422, %v518
  %v520 = vpop.f32.mrb[0].mxu0
  %v521 = vpop.f32.mrb[0].mxu0
  %v522 = vadd.f32 %v425, %v521
  %v523 = vpop.f32.mrb[0].mxu0
  %524 = vmatprep.mubr.bf16.mxu0 0
  %525 = vmatmul.mubr.bf16.gmra.mrb[0].mxu0 %v337
  %v526 = vpop.f32.mrb[0].mxu0
  %v527 = vadd.f32 %v430, %v526
  %v528 = vpop.f32.mrb[0].mxu0
  %v529 = vpop.f32.mrb[0].mxu0
  %v530 = vadd.f32 %v433, %v529
  %v531 = vpop.f32.mrb[0].mxu0
  %532 = vdwg.mxu0
  %v533 = vld [vmem:[%s2] sm:$0x1]
  %v535 = vlaneseq
  %v536 = vshrl.u32 %v535, 7
  %v537 = vsub.s32 0, %v536
  %v538 = vrot.slane %v533, %v537
  %v540 = vmul.f32 %v471, %v538
  %v541 = vmul.f32 %v474, %v538
  %v542 = vmul.f32 %v479, %v538
  %v543 = vmul.f32 %v482, %v538
  %v544 = vmul.f32 %v487, %v538
  %v545 = vmul.f32 %v490, %v538
  %v546 = vmul.f32 %v495, %v538
  %v547 = vmul.f32 %v498, %v538
  %v548 = vmul.f32 %v503, %v538
  %v549 = vmul.f32 %v506, %v538
  %v550 = vmul.f32 %v511, %v538
  %v551 = vmul.f32 %v514, %v538
  %v552 = vmul.f32 %v519, %v538
  %v553 = vmul.f32 %v522, %v538
  %v554 = vmul.f32 %v527, %v538
  %v555 = vmul.f32 %v530, %v538
  %v556 = vld [vmem:[%s3] sm:$0x1]
  %v558 = vlaneseq
  %v559 = vshrl.u32 %v558, 7
  %v560 = vsub.s32 0, %v559
  %v561 = vrot.slane %v556, %v560
  %v563 = vadd.f32 %v540, %v561
  %v564 = vadd.f32 %v541, %v561
  %v565 = vadd.f32 %v542, %v561
  %v566 = vadd.f32 %v543, %v561
  %v567 = vadd.f32 %v544, %v561
  %v568 = vadd.f32 %v545, %v561
  %v569 = vadd.f32 %v546, %v561
  %v570 = vadd.f32 %v547, %v561
  %v571 = vadd.f32 %v548, %v561
  %v572 = vadd.f32 %v549, %v561
  %v573 = vadd.f32 %v550, %v561
  %v574 = vadd.f32 %v551, %v561
  %v575 = vadd.f32 %v552, %v561
  %v576 = vadd.f32 %v553, %v561
  %v577 = vadd.f32 %v554, %v561
  %v578 = vadd.f32 %v555, %v561
  %v579 = vmax.f32 %v563, 0.0
  %v580 = vmax.f32 %v564, 0.0
  %v581 = vmax.f32 %v565, 0.0
  %v582 = vmax.f32 %v566, 0.0
  %v583 = vmax.f32 %v567, 0.0
  %v584 = vmax.f32 %v568, 0.0
  %v585 = vmax.f32 %v569, 0.0
  %v586 = vmax.f32 %v570, 0.0
  %v587 = vmax.f32 %v571, 0.0
  %v588 = vmax.f32 %v572, 0.0
  %v589 = vmax.f32 %v573, 0.0
  %v590 = vmax.f32 %v574, 0.0
  %v591 = vmax.f32 %v575, 0.0
  %v592 = vmax.f32 %v576, 0.0
  %v593 = vmax.f32 %v577, 0.0
  %v594 = vmax.f32 %v578, 0.0
  %v595 = vpack.c.bf16 %v580, %v579
  %v596 = vpack.c.bf16 %v582, %v581
  %v597 = vpack.c.bf16 %v584, %v583
  %v598 = vpack.c.bf16 %v586, %v585
  %v599 = vpack.c.bf16 %v588, %v587
  %v600 = vpack.c.bf16 %v590, %v589
  %v601 = vpack.c.bf16 %v592, %v591
  %v602 = vpack.c.bf16 %v594, %v593
  %v611 = vunpack.c.l.b16 %v595
  %v612 = vunpack.c.h.b16 %v595
  %v613 = vunpack.c.l.b16 %v596
  %v614 = vunpack.c.h.b16 %v596
  %v615 = vunpack.c.l.b16 %v597
  %v616 = vunpack.c.h.b16 %v597
  %v617 = vunpack.c.l.b16 %v598
  %v618 = vunpack.c.h.b16 %v598
  %v619 = vunpack.c.l.b16 %v599
  %v620 = vunpack.c.h.b16 %v599
  %v621 = vunpack.c.l.b16 %v600
  %v622 = vunpack.c.h.b16 %v600
  %v623 = vunpack.c.l.b16 %v601
  %v624 = vunpack.c.h.b16 %v601
  %v625 = vunpack.c.l.b16 %v602
  %v626 = vunpack.c.h.b16 %v602
  %v627 = vpack.c.b16 %v611, %v611
  %v628 = vpack.c.b16 %v612, %v612
  %v629 = vpack.c.b16 %v613, %v613
  %v630 = vpack.c.b16 %v614, %v614
  %v631 = vpack.c.b16 %v615, %v615
  %v632 = vpack.c.b16 %v616, %v616
  %v633 = vpack.c.b16 %v617, %v617
  %v634 = vpack.c.b16 %v618, %v618
  %v635 = vpack.c.b16 %v619, %v619
  %v636 = vpack.c.b16 %v620, %v620
  %v637 = vpack.c.b16 %v621, %v621
  %v638 = vpack.c.b16 %v622, %v622
  %v639 = vpack.c.b16 %v623, %v623
  %v640 = vpack.c.b16 %v624, %v624
  %v641 = vpack.c.b16 %v625, %v625
  %v642 = vpack.c.b16 %v626, %v626
  %vm659 = vcmask 257024
  %660 = vst.msk [vmem:[%s4] sm:$0xf] %vm659, %v627
  %661 = vst.msk [vmem:[%s4 + $0x4] sm:$0xf] %vm659, %v628
  %662 = vst.msk [vmem:[%s4 + $0x8] sm:$0xf] %vm659, %v629
  %663 = vst.msk [vmem:[%s4 + $0xc] sm:$0xf] %vm659, %v630
  %664 = vst.msk [vmem:[%s4 + $0x10] sm:$0xf] %vm659, %v631
  %665 = vst.msk [vmem:[%s4 + $0x14] sm:$0xf] %vm659, %v632
  %666 = vst.msk [vmem:[%s4 + $0x18] sm:$0xf] %vm659, %v633
  %667 = vst.msk [vmem:[%s4 + $0x1c] sm:$0xf] %vm659, %v634
  %668 = vst.msk [vmem:[%s4 + $0x20] sm:$0xf] %vm659, %v635
  %669 = vst.msk [vmem:[%s4 + $0x24] sm:$0xf] %vm659, %v636
  %670 = vst.msk [vmem:[%s4 + $0x28] sm:$0xf] %vm659, %v637
  %671 = vst.msk [vmem:[%s4 + $0x2c] sm:$0xf] %vm659, %v638
  %672 = vst.msk [vmem:[%s4 + $0x30] sm:$0xf] %vm659, %v639
  %673 = vst.msk [vmem:[%s4 + $0x34] sm:$0xf] %vm659, %v640
  %674 = vst.msk [vmem:[%s4 + $0x38] sm:$0xf] %vm659, %v641
  %675 = vst.msk [vmem:[%s4 + $0x3c] sm:$0xf] %vm659, %v642
  // Predicated region
  $region18: #{attention_decoder_forward.14} parent=0 // pred_check
    _
  $region19: #{attention_decoder_forward.14} parent=0 // pred_check_branch
    %677 = sbr.rel (0) target = $region21
  $region20: #{attention_decoder_forward.14} parent=0 // pred_region
    _
  $region21: #{attention_decoder_forward.14} parent=0 // pred_fallthru
    _
  // Predicated region
  $region22: #{attention_decoder_forward.14} parent=0 // pred_check
    _
  $region23: #{attention_decoder_forward.14} parent=0 // pred_check_branch
    %679 = sbr.rel (0) target = $region25
  $region24: #{attention_decoder_forward.14} parent=0 // pred_region
    _
  $region25: #{attention_decoder_forward.14} parent=0 // pred_fallthru
    _

// kernel: attention_decoder_forward.16
$region0: #{attention_decoder_forward.16}
  #allocation0 [shape = 'u32[]', space=smem, size = 0x4, offset = 0x4, fixed_abs, tag = 'smem constant byte address 0x4 - core index']
  #allocation1 [shape = 'u32[144,128]{1,0:T(1,128)}', space=vmem, size = 0x12000, scoped, tag = 'internal scratch']
  %s0 = inlined_call_operand.vmem [shape: bf16[2,4,8,32], index: 0, kind: input, shape index: {}]
  %s1 = inlined_call_operand.vmem [shape: bf16[2,4,8,32], index: 1, kind: input, shape index: {}]
  %s2 = inlined_call_operand.vmem [shape: bf16[2,4,8,32], index: 2, kind: output, shape index: {}]
  %s3 = sld [smem:[#allocation0]]
  $region18: #{attention_decoder_forward.16} parent=0
    _
  %s5 = ssub.s32 1, %s3
  %s6 = scalar_select 0, %s5, %s3
  // Predicated region
  $region2: #{attention_decoder_forward.16} parent=0 // pred_check
    _
  $region3: #{attention_decoder_forward.16} parent=0 // pred_check_branch
    %8 = sbr.rel (0) target = $region5
  $region4: #{attention_decoder_forward.16} parent=0 // pred_region
    _
  $region5: #{attention_decoder_forward.16} parent=0 // pred_fallthru
    _
  // Predicated region
  $region6: #{attention_decoder_forward.16} parent=0 // pred_check
    _
  $region7: #{attention_decoder_forward.16} parent=0 // pred_check_branch
    %10 = sbr.rel (0) target = $region9
  $region8: #{attention_decoder_forward.16} parent=0 // pred_region
    _
  $region9: #{attention_decoder_forward.16} parent=0 // pred_fallthru
    _
  %v11 = vld [vmem:[%s0] sm:$0xf]
  %v12 = vld [vmem:[%s0 + $0x4] sm:$0xf]
  %v13 = vld [vmem:[%s0 + $0x8] sm:$0xf]
  %v14 = vld [vmem:[%s0 + $0xc] sm:$0xf]
  %v15 = vld [vmem:[%s0 + $0x10] sm:$0xf]
  %v16 = vld [vmem:[%s0 + $0x14] sm:$0xf]
  %v17 = vld [vmem:[%s0 + $0x18] sm:$0xf]
  %v18 = vld [vmem:[%s0 + $0x1c] sm:$0xf]
  %v19 = vld [vmem:[%s1] sm:$0xf]
  %v20 = vld [vmem:[%s1 + $0x4] sm:$0xf]
  %v21 = vld [vmem:[%s1 + $0x8] sm:$0xf]
  %v22 = vld [vmem:[%s1 + $0xc] sm:$0xf]
  %v23 = vld [vmem:[%s1 + $0x10] sm:$0xf]
  %v24 = vld [vmem:[%s1 + $0x14] sm:$0xf]
  %v25 = vld [vmem:[%s1 + $0x18] sm:$0xf]
  %v26 = vld [vmem:[%s1 + $0x1c] sm:$0xf]
  %v27 = vmax.bf16 %v11, %v19
  %v28 = vmax.bf16 %v12, %v20
  %v29 = vmax.bf16 %v13, %v21
  %v30 = vmax.bf16 %v14, %v22
  %v31 = vmax.bf16 %v15, %v23
  %v32 = vmax.bf16 %v16, %v24
  %v33 = vmax.bf16 %v17, %v25
  %v34 = vmax.bf16 %v18, %v26
  %vm35 = vcmask 257024
  %36 = vst.msk [vmem:[%s2] sm:$0xf] %vm35, %v27
  %37 = vst.msk [vmem:[%s2 + $0x4] sm:$0xf] %vm35, %v28
  %38 = vst.msk [vmem:[%s2 + $0x8] sm:$0xf] %vm35, %v29
  %39 = vst.msk [vmem:[%s2 + $0xc] sm:$0xf] %vm35, %v30
  %40 = vst.msk [vmem:[%s2 + $0x10] sm:$0xf] %vm35, %v31
  %41 = vst.msk [vmem:[%s2 + $0x14] sm:$0xf] %vm35, %v32
  %42 = vst.msk [vmem:[%s2 + $0x18] sm:$0xf] %vm35, %v33
  %43 = vst.msk [vmem:[%s2 + $0x1c] sm:$0xf] %vm35, %v34
  // Predicated region
  $region10: #{attention_decoder_forward.16} parent=0 // pred_check
    _
  $region11: #{attention_decoder_forward.16} parent=0 // pred_check_branch
    %45 = sbr.rel (0) target = $region13
  $region12: #{attention_decoder_forward.16} parent=0 // pred_region
    _
  $region13: #{attention_decoder_forward.16} parent=0 // pred_fallthru
    _
  // Predicated region
  $region14: #{attention_decoder_forward.16} parent=0 // pred_check
    _
  $region15: #{attention_decoder_forward.16} parent=0 // pred_check_branch
    %47 = sbr.rel (0) target = $region17
  $region16: #{attention_decoder_forward.16} parent=0 // pred_region
    _
  $region17: #{attention_decoder_forward.16} parent=0 // pred_fallthru
    _

// kernel: attention_decoder_forward.17
$region0: #{attention_decoder_forward.17}
  #allocation0 [shape = 'u32[]', space=smem, size = 0x4, offset = 0x4, fixed_abs, tag = 'smem constant byte address 0x4 - core index']
  #allocation1 [shape = 'u32[144,128]{1,0:T(1,128)}', space=vmem, size = 0x12000, scoped, tag = 'internal scratch']
  %s0 = inlined_call_operand.vmem [shape: bf16[64,288], index: 0, kind: input, shape index: {}]
  %s1 = inlined_call_operand.vmem [shape: bf16[288,32], index: 1, kind: input, shape index: {}]
  %s2 = inlined_call_operand.vmem [shape: f32[1,32], index: 2, kind: input, shape index: {}]
  %s3 = inlined_call_operand.vmem [shape: f32[1,32], index: 3, kind: input, shape index: {}]
  %s4 = inlined_call_operand.vmem [shape: bf16[64,32], index: 4, kind: output, shape index: {}]
  %s5 = sld [smem:[#allocation0]]
  $region26: #{attention_decoder_forward.17} parent=0
    _
  %s7 = ssub.s32 1, %s5
  %s8 = scalar_select 0, %s7, %s5
  // Predicated region
  $region2: #{attention_decoder_forward.17} parent=0 // pred_check
    _
  $region3: #{attention_decoder_forward.17} parent=0 // pred_check_branch
    %10 = sbr.rel (0) target = $region5
  $region4: #{attention_decoder_forward.17} parent=0 // pred_region
    _
  $region5: #{attention_decoder_forward.17} parent=0 // pred_fallthru
    _
  // Predicated region
  $region6: #{attention_decoder_forward.17} parent=0 // pred_check
    _
  $region7: #{attention_decoder_forward.17} parent=0 // pred_check_branch
    %12 = sbr.rel (0) target = $region9
  $region8: #{attention_decoder_forward.17} parent=0 // pred_region
    _
  $region9: #{attention_decoder_forward.17} parent=0 // pred_fallthru
    _
  // Predicated region
  $region10: #{attention_decoder_forward.17} parent=0 // pred_check
    _
  $region11: #{attention_decoder_forward.17} parent=0 // pred_check_branch
    %14 = sbr.rel (0) target = $region13
  $region12: #{attention_decoder_forward.17} parent=0 // pred_region
    _
  $region13: #{attention_decoder_forward.17} parent=0 // pred_fallthru
    _
  // Predicated region
  $region14: #{attention_decoder_forward.17} parent=0 // pred_check
    _
  $region15: #{attention_decoder_forward.17} parent=0 // pred_check_branch
    %16 = sbr.rel (0) target = $region17
  $region16: #{attention_decoder_forward.17} parent=0 // pred_region
    _
  $region17: #{attention_decoder_forward.17} parent=0 // pred_fallthru
    _
  %v18 = vld [vmem:[%s0] sm:$0xff]
  %v19 = vld [vmem:[%s0 + $0x8] sm:$0xf]
  %v20 = vld [vmem:[%s0 + $0xc] sm:$0xff]
  %v21 = vld [vmem:[%s0 + $0x14] sm:$0xf]
  %v22 = vld [vmem:[%s0 + $0x18] sm:$0xff]
  %v23 = vld [vmem:[%s0 + $0x20] sm:$0xf]
  %v24 = vld [vmem:[%s0 + $0x24] sm:$0xff]
  %v25 = vld [vmem:[%s0 + $0x2c] sm:$0xf]
  %v26 = vld [vmem:[%s0 + $0x30] sm:$0xff]
  %v27 = vld [vmem:[%s0 + $0x38] sm:$0xf]
  %v28 = vld [vmem:[%s0 + $0x3c] sm:$0xff]
  %v29 = vld [vmem:[%s0 + $0x44] sm:$0xf]
  %v30 = vld [vmem:[%s0 + $0x48] sm:$0xff]
  %v31 = vld [vmem:[%s0 + $0x50] sm:$0xf]
  %v32 = vld [vmem:[%s0 + $0x54] sm:$0xff]
  %v33 = vld [vmem:[%s0 + $0x5c] sm:$0xf]
  %v34 = vld [vmem:[%s1] sm:$0xf]
  %v35 = vld [vmem:[%s1 + $0x4] sm:$0xf]
  %v36 = vld [vmem:[%s1 + $0x8] sm:$0xf]
  %v37 = vld [vmem:[%s1 + $0xc] sm:$0xf]
  %v38 = vld [vmem:[%s1 + $0x10] sm:$0xf]
  %v39 = vld [vmem:[%s1 + $0x14] sm:$0xf]
  %v40 = vld [vmem:[%s1 + $0x18] sm:$0xf]
  %v41 = vld [vmem:[%s1 + $0x1c] sm:$0xf]
  %v42 = vld [vmem:[%s1 + $0x20] sm:$0xf]
  %v43 = vld [vmem:[%s1 + $0x24] sm:$0xf]
  %v44 = vld [vmem:[%s1 + $0x28] sm:$0xf]
  %v45 = vld [vmem:[%s1 + $0x2c] sm:$0xf]
  %v46 = vld [vmem:[%s1 + $0x30] sm:$0xf]
  %v47 = vld [vmem:[%s1 + $0x34] sm:$0xf]
  %v48 = vld [vmem:[%s1 + $0x38] sm:$0xf]
  %v49 = vld [vmem:[%s1 + $0x3c] sm:$0xf]
  %v50 = vld [vmem:[%s1 + $0x40] sm:$0xf]
  %v51 = vld [vmem:[%s1 + $0x44] sm:$0xf]
  %v52 = vld [vmem:[%s1 + $0x48] sm:$0xf]
  %v53 = vld [vmem:[%s1 + $0x4c] sm:$0xf]
  %v54 = vld [vmem:[%s1 + $0x50] sm:$0xf]
  %v55 = vld [vmem:[%s1 + $0x54] sm:$0xf]
  %v56 = vld [vmem:[%s1 + $0x58] sm:$0xf]
  %v57 = vld [vmem:[%s1 + $0x5c] sm:$0xf]
  %v58 = vld [vmem:[%s1 + $0x60] sm:$0xf]
  %v59 = vld [vmem:[%s1 + $0x64] sm:$0xf]
  %v60 = vld [vmem:[%s1 + $0x68] sm:$0xf]
  %v61 = vld [vmem:[%s1 + $0x6c] sm:$0xf]
  %v62 = vld [vmem:[%s1 + $0x70] sm:$0xf]
  %v63 = vld [vmem:[%s1 + $0x74] sm:$0xf]
  %v64 = vld [vmem:[%s1 + $0x78] sm:$0xf]
  %v65 = vld [vmem:[%s1 + $0x7c] sm:$0xf]
  %v66 = vld [vmem:[%s1 + $0x80] sm:$0xf]
  %v67 = vld [vmem:[%s1 + $0x84] sm:$0xf]
  %v68 = vld [vmem:[%s1 + $0x88] sm:$0xf]
  %v69 = vld [vmem:[%s1 + $0x8c] sm:$0xf]
  %v86 = vunpack.c.l.b16 %v18
  %v87 = vunpack.c.h.b16 %v18
  %v88 = vunpack.c.l.b16 %v19
  %v89 = vunpack.c.l.b16 %v20
  %v90 = vunpack.c.h.b16 %v20
  %v91 = vunpack.c.l.b16 %v21
  %v92 = vunpack.c.l.b16 %v22
  %v93 = vunpack.c.h.b16 %v22
  %v94 = vunpack.c.l.b16 %v23
  %v95 = vunpack.c.l.b16 %v24
  %v96 = vunpack.c.h.b16 %v24
  %v97 = vunpack.c.l.b16 %v25
  %v98 = vunpack.c.l.b16 %v26
  %v99 = vunpack.c.h.b16 %v26
  %v100 = vunpack.c.l.b16 %v27
  %v101 = vunpack.c.l.b16 %v28
  %v102 = vunpack.c.h.b16 %v28
  %v103 = vunpack.c.l.b16 %v29
  %v104 = vunpack.c.l.b16 %v30
  %v105 = vunpack.c.h.b16 %v30
  %v106 = vunpack.c.l.b16 %v31
  %v107 = vunpack.c.l.b16 %v32
  %v108 = vunpack.c.h.b16 %v32
  %v109 = vunpack.c.l.b16 %v33
  %v110 = vpack.c.b16 %v89, %v86
  %v111 = vpack.c.b16 %v90, %v87
  %v112 = vpack.c.b16 %v91, %v88
  %v113 = vpack.c.b16 %v95, %v92
  %v114 = vpack.c.b16 %v96, %v93
  %v115 = vpack.c.b16 %v97, %v94
  %v116 = vpack.c.b16 %v101, %v98
  %v117 = vpack.c.b16 %v102, %v99
  %v118 = vpack.c.b16 %v103, %v100
  %v119 = vpack.c.b16 %v107, %v104
  %v120 = vpack.c.b16 %v108, %v105
  %v121 = vpack.c.b16 %v109, %v106
  %v166 = vunpack.c.l.b16 %v34
  %v167 = vunpack.c.l.b16 %v35
  %v168 = vunpack.c.l.b16 %v36
  %v169 = vunpack.c.l.b16 %v37
  %v170 = vunpack.c.l.b16 %v38
  %v171 = vunpack.c.l.b16 %v39
  %v172 = vunpack.c.l.b16 %v40
  %v173 = vunpack.c.l.b16 %v41
  %v174 = vunpack.c.l.b16 %v42
  %v175 = vunpack.c.l.b16 %v43
  %v176 = vunpack.c.l.b16 %v44
  %v177 = vunpack.c.l.b16 %v45
  %v178 = vunpack.c.l.b16 %v46
  %v179 = vunpack.c.l.b16 %v47
  %v180 = vunpack.c.l.b16 %v48
  %v181 = vunpack.c.l.b16 %v49
  %v182 = vunpack.c.l.b16 %v50
  %v183 = vunpack.c.l.b16 %v51
  %v184 = vunpack.c.l.b16 %v52
  %v185 = vunpack.c.l.b16 %v53
  %v186 = vunpack.c.l.b16 %v54
  %v187 = vunpack.c.l.b16 %v55
  %v188 = vunpack.c.l.b16 %v56
  %v189 = vunpack.c.l.b16 %v57
  %v190 = vunpack.c.l.b16 %v58
  %v191 = vunpack.c.l.b16 %v59
  %v192 = vunpack.c.l.b16 %v60
  %v193 = vunpack.c.l.b16 %v61
  %v194 = vunpack.c.l.b16 %v62
  %v195 = vunpack.c.l.b16 %v63
  %v196 = vunpack.c.l.b16 %v64
  %v197 = vunpack.c.l.b16 %v65
  %v198 = vunpack.c.l.b16 %v66
  %v199 = vunpack.c.l.b16 %v67
  %v200 = vunpack.c.l.b16 %v68
  %v201 = vunpack.c.l.b16 %v69
  %v202 = vpack.c.b16 %v167, %v166
  %v203 = vpack.c.b16 %v169, %v168
  %v204 = vpack.c.b16 %v171, %v170
  %v205 = vpack.c.b16 %v173, %v172
  %v206 = vpack.c.b16 %v175, %v174
  %v207 = vpack.c.b16 %v177, %v176
  %v208 = vpack.c.b16 %v179, %v178
  %v209 = vpack.c.b16 %v181, %v180
  %v210 = vpack.c.b16 %v183, %v182
  %v211 = vpack.c.b16 %v185, %v184
  %v212 = vpack.c.b16 %v187, %v186
  %v213 = vpack.c.b16 %v189, %v188
  %v214 = vpack.c.b16 %v191, %v190
  %v215 = vpack.c.b16 %v193, %v192
  %v216 = vpack.c.b16 %v195, %v194
  %v217 = vpack.c.b16 %v197, %v196
  %v218 = vpack.c.b16 %v199, %v198
  %v219 = vpack.c.b16 %v201, %v200
  %vm238 = vcmask 261120
  %v240 = vsel %vm238, %v112, 0
  %v243 = vsel %vm238, %v115, 0
  %v246 = vsel %vm238, %v118, 0
  %v249 = vsel %vm238, %v121, 0
  %251 = vmatprep.subr.bf16.mxu0 0
  %252 = vmatpush1.bf16.msra.mxu0 %v202
  %253 = vmatprep.subr.bf16.mxu0 0
  %254 = vmatpush1.bf16.msra.mxu0 %v203
  %255 = vmatprep.subr.bf16.mxu0 0
  %256 = vmatpush1.bf16.msra.mxu0 %v204
  %257 = vmatprep.subr.bf16.mxu0 0
  %258 = vmatpush1.bf16.msra.mxu0 %v205
  %259 = vmatprep.subr.bf16.mxu0 0
  %260 = vmatpush1.bf16.msra.mxu0 %v206
  %261 = vmatprep.subr.bf16.mxu0 0
  %262 = vmatpush1.bf16.msra.mxu0 %v207
  %263 = vmatprep.subr.bf16.mxu0 0
  %264 = vmatpush1.bf16.msra.mxu0 %v208
  %265 = vmatprep.subr.bf16.mxu0 0
  %266 = vmatpush1.bf16.msra.mxu0 %v209
  %267 = vmatprep.subr.bf16.mxu0 0
  %268 = vmatpush1.bf16.msra.mxu0 %v210
  %269 = vmatprep.subr.bf16.mxu0 0
  %270 = vmatpush1.bf16.msra.mxu0 %v211
  %271 = vmatprep.subr.bf16.mxu0 0
  %272 = vmatpush1.bf16.msra.mxu0 %v212
  %273 = vmatprep.subr.bf16.mxu0 0
  %274 = vmatpush1.bf16.msra.mxu0 %v213
  %275 = vmatprep.subr.bf16.mxu0 0
  %276 = vmatpush1.bf16.msra.mxu0 %v214
  %277 = vmatprep.subr.bf16.mxu0 0
  %278 = vmatpush1.bf16.msra.mxu0 %v215
  %279 = vmatprep.subr.bf16.mxu0 0
  %280 = vmatpush1.bf16.msra.mxu0 %v216
  %281 = vmatprep.subr.bf16.mxu0 0
  %282 = vmatpush1.bf16.msra.mxu0 %v217
  %283 = vmatprep.mubr.bf16.mxu0 %v111
  %284 = vmatmul.mubr.bf16.gmra.mrb[0].mxu0 %v110
  %v285 = vpop.f32.mrb[0].mxu0
  %v286 = vadd.f32 0.0, %v285
  %v287 = vpop.f32.mrb[0].mxu0
  %v288 = vpop.f32.mrb[0].mxu0
  %v289 = vadd.f32 0.0, %v288
  %v290 = vpop.f32.mrb[0].mxu0
  %291 = vmatprep.mubr.bf16.mxu0 %v114
  %292 = vmatmul.mubr.bf16.gmra.mrb[0].mxu0 %v113
  %v293 = vpop.f32.mrb[0].mxu0
  %v294 = vadd.f32 0.0, %v293
  %v295 = vpop.f32.mrb[0].mxu0
  %v296 = vpop.f32.mrb[0].mxu0
  %v297 = vadd.f32 0.0, %v296
  %v298 = vpop.f32.mrb[0].mxu0
  %299 = vmatprep.mubr.bf16.mxu0 %v117
  %300 = vmatmul.mubr.bf16.gmra.mrb[0].mxu0 %v116
  %v301 = vpop.f32.mrb[0].mxu0
  %v302 = vadd.f32 0.0, %v301
  %v303 = vpop.f32.mrb[0].mxu0
  %v304 = vpop.f32.mrb[0].mxu0
  %v305 = vadd.f32 0.0, %v304
  %v306 = vpop.f32.mrb[0].mxu0
  %307 = vmatprep.mubr.bf16.mxu0 %v120
  %308 = vmatmul.mubr.bf16.gmra.mrb[0].mxu0 %v119
  %v309 = vpop.f32.mrb[0].mxu0
  %v310 = vadd.f32 0.0, %v309
  %v311 = vpop.f32.mrb[0].mxu0
  %v312 = vpop.f32.mrb[0].mxu0
  %v313 = vadd.f32 0.0, %v312
  %v314 = vpop.f32.mrb[0].mxu0
  %315 = vdwg.mxu0
  %316 = vmatprep.subr.bf16.mxu0 0
  %317 = vmatpush1.bf16.msra.mxu0 %v218
  %318 = vmatprep.subr.bf16.mxu0 0
  %319 = vmatpush1.bf16.msra.mxu0 %v219
  %320 = vmatprep.subr.bf16.mxu0 0
  %321 = vmatpush1.bf16.msra.mxu0 0
  %322 = vmatprep.subr.bf16.mxu0 0
  %323 = vmatpush1.bf16.msra.mxu0 0
  %324 = vmatprep.subr.bf16.mxu0 0
  %325 = vmatpush1.bf16.msra.mxu0 0
  %326 = vmatprep.subr.bf16.mxu0 0
  %327 = vmatpush1.bf16.msra.mxu0 0
  %328 = vmatprep.subr.bf16.mxu0 0
  %329 = vmatpush1.bf16.msra.mxu0 0
  %330 = vmatprep.subr.bf16.mxu0 0
  %331 = vmatpush1.bf16.msra.mxu0 0
  %332 = vmatprep.subr.bf16.mxu0 0
  %333 = vmatpush1.bf16.msra.mxu0 0
  %334 = vmatprep.subr.bf16.mxu0 0
  %335 = vmatpush1.bf16.msra.mxu0 0
  %336 = vmatprep.subr.bf16.mxu0 0
  %337 = vmatpush1.bf16.msra.mxu0 0
  %338 = vmatprep.subr.bf16.mxu0 0
  %339 = vmatpush1.bf16.msra.mxu0 0
  %340 = vmatprep.subr.bf16.mxu0 0
  %341 = vmatpush1.bf16.msra.mxu0 0
  %342 = vmatprep.subr.bf16.mxu0 0
  %343 = vmatpush1.bf16.msra.mxu0 0
  %344 = vmatprep.subr.bf16.mxu0 0
  %345 = vmatpush1.bf16.msra.mxu0 0
  %346 = vmatprep.subr.bf16.mxu0 0
  %347 = vmatpush1.bf16.msra.mxu0 0
  %348 = vmatprep.mubr.bf16.mxu0 0
  %349 = vmatmul.mubr.bf16.gmra.mrb[0].mxu0 %v240
  %v350 = vpop.f32.mrb[0].mxu0
  %v351 = vadd.f32 %v286, %v350
  %v352 = vpop.f32.mrb[0].mxu0
  %v353 = vpop.f32.mrb[0].mxu0
  %v354 = vadd.f32 %v289, %v353
  %v355 = vpop.f32.mrb[0].mxu0
  %356 = vmatprep.mubr.bf16.mxu0 0
  %357 = vmatmul.mubr.bf16.gmra.mrb[0].mxu0 %v243
  %v358 = vpop.f32.mrb[0].mxu0
  %v359 = vadd.f32 %v294, %v358
  %v360 = vpop.f32.mrb[0].mxu0
  %v361 = vpop.f32.mrb[0].mxu0
  %v362 = vadd.f32 %v297, %v361
  %v363 = vpop.f32.mrb[0].mxu0
  %364 = vmatprep.mubr.bf16.mxu0 0
  %365 = vmatmul.mubr.bf16.gmra.mrb[0].mxu0 %v246
  %v366 = vpop.f32.mrb[0].mxu0
  %v367 = vadd.f32 %v302, %v366
  %v368 = vpop.f32.mrb[0].mxu0
  %v369 = vpop.f32.mrb[0].mxu0
  %v370 = vadd.f32 %v305, %v369
  %v371 = vpop.f32.mrb[0].mxu0
  %372 = vmatprep.mubr.bf16.mxu0 0
  %373 = vmatmul.mubr.bf16.gmra.mrb[0].mxu0 %v249
  %v374 = vpop.f32.mrb[0].mxu0
  %v375 = vadd.f32 %v310, %v374
  %v376 = vpop.f32.mrb[0].mxu0
  %v377 = vpop.f32.mrb[0].mxu0
  %v378 = vadd.f32 %v313, %v377
  %v379 = vpop.f32.mrb[0].mxu0
  %380 = vdwg.mxu0
  %v381 = vld [vmem:[%s2] sm:$0x1]
  %v383 = vlaneseq
  %v384 = vshrl.u32 %v383, 7
  %v385 = vsub.s32 0, %v384
  %v386 = vrot.slane %v381, %v385
  %v388 = vmul.f32 %v351, %v386
  %v389 = vmul.f32 %v354, %v386
  %v390 = vmul.f32 %v359, %v386
  %v391 = vmul.f32 %v362, %v386
  %v392 = vmul.f32 %v367, %v386
  %v393 = vmul.f32 %v370, %v386
  %v394 = vmul.f32 %v375, %v386
  %v395 = vmul.f32 %v378, %v386
  %v396 = vld [vmem:[%s3] sm:$0x1]
  %v398 = vlaneseq
  %v399 = vshrl.u32 %v398, 7
  %v400 = vsub.s32 0, %v399
  %v401 = vrot.slane %v396, %v400
  %v403 = vadd.f32 %v388, %v401
  %v404 = vadd.f32 %v389, %v401
  %v405 = vadd.f32 %v390, %v401
  %v406 = vadd.f32 %v391, %v401
  %v407 = vadd.f32 %v392, %v401
  %v408 = vadd.f32 %v393, %v401
  %v409 = vadd.f32 %v394, %v401
  %v410 = vadd.f32 %v395, %v401
  %v411 = vmax.f32 %v403, 0.0
  %v412 = vmax.f32 %v404, 0.0
  %v413 = vmax.f32 %v405, 0.0
  %v414 = vmax.f32 %v406, 0.0
  %v415 = vmax.f32 %v407, 0.0
  %v416 = vmax.f32 %v408, 0.0
  %v417 = vmax.f32 %v409, 0.0
  %v418 = vmax.f32 %v410, 0.0
  %v419 = vpack.c.bf16 %v412, %v411
  %v420 = vpack.c.bf16 %v414, %v413
  %v421 = vpack.c.bf16 %v416, %v415
  %v422 = vpack.c.bf16 %v418, %v417
  %v427 = vunpack.c.l.b16 %v419
  %v428 = vunpack.c.h.b16 %v419
  %v429 = vunpack.c.l.b16 %v420
  %v430 = vunpack.c.h.b16 %v420
  %v431 = vunpack.c.l.b16 %v421
  %v432 = vunpack.c.h.b16 %v421
  %v433 = vunpack.c.l.b16 %v422
  %v434 = vunpack.c.h.b16 %v422
  %v435 = vpack.c.b16 %v427, %v427
  %v436 = vpack.c.b16 %v428, %v428
  %v437 = vpack.c.b16 %v429, %v429
  %v438 = vpack.c.b16 %v430, %v430
  %v439 = vpack.c.b16 %v431, %v431
  %v440 = vpack.c.b16 %v432, %v432
  %v441 = vpack.c.b16 %v433, %v433
  %v442 = vpack.c.b16 %v434, %v434
  %vm451 = vcmask 257024
  %452 = vst.msk [vmem:[%s4] sm:$0xf] %vm451, %v435
  %453 = vst.msk [vmem:[%s4 + $0x4] sm:$0xf] %vm451, %v436
  %454 = vst.msk [vmem:[%s4 + $0x8] sm:$0xf] %vm451, %v437
  %455 = vst.msk [vmem:[%s4 + $0xc] sm:$0xf] %vm451, %v438
  %456 = vst.msk [vmem:[%s4 + $0x10] sm:$0xf] %vm451, %v439
  %457 = vst.msk [vmem:[%s4 + $0x14] sm:$0xf] %vm451, %v440
  %458 = vst.msk [vmem:[%s4 + $0x18] sm:$0xf] %vm451, %v441
  %459 = vst.msk [vmem:[%s4 + $0x1c] sm:$0xf] %vm451, %v442
  // Predicated region
  $region18: #{attention_decoder_forward.17} parent=0 // pred_check
    _
  $region19: #{attention_decoder_forward.17} parent=0 // pred_check_branch
    %461 = sbr.rel (0) target = $region21
  $region20: #{attention_decoder_forward.17} parent=0 // pred_region
    _
  $region21: #{attention_decoder_forward.17} parent=0 // pred_fallthru
    _
  // Predicated region
  $region22: #{attention_decoder_forward.17} parent=0 // pred_check
    _
  $region23: #{attention_decoder_forward.17} parent=0 // pred_check_branch
    %463 = sbr.rel (0) target = $region25
  $region24: #{attention_decoder_forward.17} parent=0 // pred_region
    _
  $region25: #{attention_decoder_forward.17} parent=0 // pred_fallthru
    _

// kernel: attention_decoder_forward.19
$region0: #{attention_decoder_forward.19}
  #allocation0 [shape = 'u32[]', space=smem, size = 0x4, offset = 0x4, fixed_abs, tag = 'smem constant byte address 0x4 - core index']
  #allocation1 [shape = 'u32[144,128]{1,0:T(1,128)}', space=vmem, size = 0x12000, scoped, tag = 'internal scratch']
  %s0 = inlined_call_operand.vmem [shape: bf16[2,2,8,32], index: 0, kind: input, shape index: {}]
  %s1 = inlined_call_operand.vmem [shape: bf16[2,2,8,32], index: 1, kind: input, shape index: {}]
  %s2 = inlined_call_operand.vmem [shape: bf16[2,2,8,32], index: 2, kind: output, shape index: {}]
  %s3 = sld [smem:[#allocation0]]
  $region18: #{attention_decoder_forward.19} parent=0
    _
  %s5 = ssub.s32 1, %s3
  %s6 = scalar_select 0, %s5, %s3
  // Predicated region
  $region2: #{attention_decoder_forward.19} parent=0 // pred_check
    _
  $region3: #{attention_decoder_forward.19} parent=0 // pred_check_branch
    %8 = sbr.rel (0) target = $region5
  $region4: #{attention_decoder_forward.19} parent=0 // pred_region
    _
  $region5: #{attention_decoder_forward.19} parent=0 // pred_fallthru
    _
  // Predicated region
  $region6: #{attention_decoder_forward.19} parent=0 // pred_check
    _
  $region7: #{attention_decoder_forward.19} parent=0 // pred_check_branch
    %10 = sbr.rel (0) target = $region9
  $region8: #{attention_decoder_forward.19} parent=0 // pred_region
    _
  $region9: #{attention_decoder_forward.19} parent=0 // pred_fallthru
    _
  %v11 = vld [vmem:[%s0] sm:$0xf]
  %v12 = vld [vmem:[%s0 + $0x4] sm:$0xf]
  %v13 = vld [vmem:[%s0 + $0x8] sm:$0xf]
  %v14 = vld [vmem:[%s0 + $0xc] sm:$0xf]
  %v15 = vld [vmem:[%s1] sm:$0xf]
  %v16 = vld [vmem:[%s1 + $0x4] sm:$0xf]
  %v17 = vld [vmem:[%s1 + $0x8] sm:$0xf]
  %v18 = vld [vmem:[%s1 + $0xc] sm:$0xf]
  %v19 = vmax.bf16 %v11, %v15
  %v20 = vmax.bf16 %v12, %v16
  %v21 = vmax.bf16 %v13, %v17
  %v22 = vmax.bf16 %v14, %v18
  %vm23 = vcmask 257024
  %24 = vst.msk [vmem:[%s2] sm:$0xf] %vm23, %v19
  %25 = vst.msk [vmem:[%s2 + $0x4] sm:$0xf] %vm23, %v20
  %26 = vst.msk [vmem:[%s2 + $0x8] sm:$0xf] %vm23, %v21
  %27 = vst.msk [vmem:[%s2 + $0xc] sm:$0xf] %vm23, %v22
  // Predicated region
  $region10: #{attention_decoder_forward.19} parent=0 // pred_check
    _
  $region11: #{attention_decoder_forward.19} parent=0 // pred_check_branch
    %29 = sbr.rel (0) target = $region13
  $region12: #{attention_decoder_forward.19} parent=0 // pred_region
    _
  $region13: #{attention_decoder_forward.19} parent=0 // pred_fallthru
    _
  // Predicated region
  $region14: #{attention_decoder_forward.19} parent=0 // pred_check
    _
  $region15: #{attention_decoder_forward.19} parent=0 // pred_check_branch
    %31 = sbr.rel (0) target = $region17
  $region16: #{attention_decoder_forward.19} parent=0 // pred_region
    _
  $region17: #{attention_decoder_forward.19} parent=0 // pred_fallthru
    _

// kernel: attention_decoder_forward.20
$region0: #{attention_decoder_forward.20}
  #allocation0 [shape = 'u32[]', space=smem, size = 0x4, offset = 0x4, fixed_abs, tag = 'smem constant byte address 0x4 - core index']
  #allocation1 [shape = 'u32[144,128]{1,0:T(1,128)}', space=vmem, size = 0x12000, scoped, tag = 'internal scratch']
  %s0 = inlined_call_operand.vmem [shape: bf16[16,192], index: 0, kind: input, shape index: {}]
  %s1 = inlined_call_operand.vmem [shape: bf16[192,32], index: 1, kind: input, shape index: {}]
  %s2 = inlined_call_operand.vmem [shape: f32[1,32], index: 2, kind: input, shape index: {}]
  %s3 = inlined_call_operand.vmem [shape: f32[1,32], index: 3, kind: input, shape index: {}]
  %s4 = inlined_call_operand.vmem [shape: bf16[16,32], index: 4, kind: output, shape index: {}]
  %s5 = sld [smem:[#allocation0]]
  $region26: #{attention_decoder_forward.20} parent=0
    _
  %s7 = ssub.s32 1, %s5
  %s8 = scalar_select 0, %s7, %s5
  // Predicated region
  $region2: #{attention_decoder_forward.20} parent=0 // pred_check
    _
  $region3: #{attention_decoder_forward.20} parent=0 // pred_check_branch
    %10 = sbr.rel (0) target = $region5
  $region4: #{attention_decoder_forward.20} parent=0 // pred_region
    _
  $region5: #{attention_decoder_forward.20} parent=0 // pred_fallthru
    _
  // Predicated region
  $region6: #{attention_decoder_forward.20} parent=0 // pred_check
    _
  $region7: #{attention_decoder_forward.20} parent=0 // pred_check_branch
    %12 = sbr.rel (0) target = $region9
  $region8: #{attention_decoder_forward.20} parent=0 // pred_region
    _
  $region9: #{attention_decoder_forward.20} parent=0 // pred_fallthru
    _
  // Predicated region
  $region10: #{attention_decoder_forward.20} parent=0 // pred_check
    _
  $region11: #{attention_decoder_forward.20} parent=0 // pred_check_branch
    %14 = sbr.rel (0) target = $region13
  $region12: #{attention_decoder_forward.20} parent=0 // pred_region
    _
  $region13: #{attention_decoder_forward.20} parent=0 // pred_fallthru
    _
  // Predicated region
  $region14: #{attention_decoder_forward.20} parent=0 // pred_check
    _
  $region15: #{attention_decoder_forward.20} parent=0 // pred_check_branch
    %16 = sbr.rel (0) target = $region17
  $region16: #{attention_decoder_forward.20} parent=0 // pred_region
    _
  $region17: #{attention_decoder_forward.20} parent=0 // pred_fallthru
    _
  %v18 = vld [vmem:[%s0] sm:$0xff]
  %v19 = vld [vmem:[%s0 + $0x8] sm:$0xff]
  %v20 = vld [vmem:[%s1] sm:$0xf]
  %v21 = vld [vmem:[%s1 + $0x4] sm:$0xf]
  %v22 = vld [vmem:[%s1 + $0x8] sm:$0xf]
  %v23 = vld [vmem:[%s1 + $0xc] sm:$0xf]
  %v24 = vld [vmem:[%s1 + $0x10] sm:$0xf]
  %v25 = vld [vmem:[%s1 + $0x14] sm:$0xf]
  %v26 = vld [vmem:[%s1 + $0x18] sm:$0xf]
  %v27 = vld [vmem:[%s1 + $0x1c] sm:$0xf]
  %v28 = vld [vmem:[%s1 + $0x20] sm:$0xf]
  %v29 = vld [vmem:[%s1 + $0x24] sm:$0xf]
  %v30 = vld [vmem:[%s1 + $0x28] sm:$0xf]
  %v31 = vld [vmem:[%s1 + $0x2c] sm:$0xf]
  %v32 = vld [vmem:[%s1 + $0x30] sm:$0xf]
  %v33 = vld [vmem:[%s1 + $0x34] sm:$0xf]
  %v34 = vld [vmem:[%s1 + $0x38] sm:$0xf]
  %v35 = vld [vmem:[%s1 + $0x3c] sm:$0xf]
  %v36 = vld [vmem:[%s1 + $0x40] sm:$0xf]
  %v37 = vld [vmem:[%s1 + $0x44] sm:$0xf]
  %v38 = vld [vmem:[%s1 + $0x48] sm:$0xf]
  %v39 = vld [vmem:[%s1 + $0x4c] sm:$0xf]
  %v40 = vld [vmem:[%s1 + $0x50] sm:$0xf]
  %v41 = vld [vmem:[%s1 + $0x54] sm:$0xf]
  %v42 = vld [vmem:[%s1 + $0x58] sm:$0xf]
  %v43 = vld [vmem:[%s1 + $0x5c] sm:$0xf]
  %v46 = vunpack.c.l.b16 %v18
  %v47 = vunpack.c.h.b16 %v18
  %v48 = vunpack.c.l.b16 %v19
  %v49 = vunpack.c.h.b16 %v19
  %v50 = vpack.c.b16 %v48, %v46
  %v51 = vpack.c.b16 %v49, %v47
  %v77 = vunpack.c.l.b16 %v20
  %v78 = vunpack.c.l.b16 %v21
  %v79 = vunpack.c.l.b16 %v22
  %v80 = vunpack.c.l.b16 %v23
  %v81 = vunpack.c.l.b16 %v24
  %v82 = vunpack.c.l.b16 %v25
  %v83 = vunpack.c.l.b16 %v26
  %v84 = vunpack.c.l.b16 %v27
  %v85 = vunpack.c.l.b16 %v28
  %v86 = vunpack.c.l.b16 %v29
  %v87 = vunpack.c.l.b16 %v30
  %v88 = vunpack.c.l.b16 %v31
  %v89 = vunpack.c.l.b16 %v32
  %v90 = vunpack.c.l.b16 %v33
  %v91 = vunpack.c.l.b16 %v34
  %v92 = vunpack.c.l.b16 %v35
  %v93 = vunpack.c.l.b16 %v36
  %v94 = vunpack.c.l.b16 %v37
  %v95 = vunpack.c.l.b16 %v38
  %v96 = vunpack.c.l.b16 %v39
  %v97 = vunpack.c.l.b16 %v40
  %v98 = vunpack.c.l.b16 %v41
  %v99 = vunpack.c.l.b16 %v42
  %v100 = vunpack.c.l.b16 %v43
  %v101 = vpack.c.b16 %v78, %v77
  %v102 = vpack.c.b16 %v80, %v79
  %v103 = vpack.c.b16 %v82, %v81
  %v104 = vpack.c.b16 %v84, %v83
  %v105 = vpack.c.b16 %v86, %v85
  %v106 = vpack.c.b16 %v88, %v87
  %v107 = vpack.c.b16 %v90, %v89
  %v108 = vpack.c.b16 %v92, %v91
  %v109 = vpack.c.b16 %v94, %v93
  %v110 = vpack.c.b16 %v96, %v95
  %v111 = vpack.c.b16 %v98, %v97
  %v112 = vpack.c.b16 %v100, %v99
  %vm125 = vcmask 523264
  %v127 = vsel %vm125, %v51, 0
  %129 = vmatprep.subr.bf16.mxu0 0
  %130 = vmatpush1.bf16.msra.mxu0 %v101
  %131 = vmatprep.subr.bf16.mxu0 0
  %132 = vmatpush1.bf16.msra.mxu0 %v102
  %133 = vmatprep.subr.bf16.mxu0 0
  %134 = vmatpush1.bf16.msra.mxu0 %v103
  %135 = vmatprep.subr.bf16.mxu0 0
  %136 = vmatpush1.bf16.msra.mxu0 %v104
  %137 = vmatprep.subr.bf16.mxu0 0
  %138 = vmatpush1.bf16.msra.mxu0 %v105
  %139 = vmatprep.subr.bf16.mxu0 0
  %140 = vmatpush1.bf16.msra.mxu0 %v106
  %141 = vmatprep.subr.bf16.mxu0 0
  %142 = vmatpush1.bf16.msra.mxu0 %v107
  %143 = vmatprep.subr.bf16.mxu0 0
  %144 = vmatpush1.bf16.msra.mxu0 %v108
  %145 = vmatprep.subr.bf16.mxu0 0
  %146 = vmatpush1.bf16.msra.mxu0 %v109
  %147 = vmatprep.subr.bf16.mxu0 0
  %148 = vmatpush1.bf16.msra.mxu0 %v110
  %149 = vmatprep.subr.bf16.mxu0 0
  %150 = vmatpush1.bf16.msra.mxu0 %v111
  %151 = vmatprep.subr.bf16.mxu0 0
  %152 = vmatpush1.bf16.msra.mxu0 %v112
  %153 = vmatprep.subr.bf16.mxu0 0
  %154 = vmatpush1.bf16.msra.mxu0 0
  %155 = vmatprep.subr.bf16.mxu0 0
  %156 = vmatpush1.bf16.msra.mxu0 0
  %157 = vmatprep.subr.bf16.mxu0 0
  %158 = vmatpush1.bf16.msra.mxu0 0
  %159 = vmatprep.subr.bf16.mxu0 0
  %160 = vmatpush1.bf16.msra.mxu0 0
  %161 = vmatprep.mubr.bf16.mxu0 %v127
  %162 = vmatmul.mubr.bf16.gmra.mrb[0].mxu0 %v50
  %v163 = vpop.f32.mrb[0].mxu0
  %v164 = vadd.f32 0.0, %v163
  %v165 = vpop.f32.mrb[0].mxu0
  %v166 = vpop.f32.mrb[0].mxu0
  %v167 = vadd.f32 0.0, %v166
  %v168 = vpop.f32.mrb[0].mxu0
  %169 = vdwg.mxu0
  %v170 = vld [vmem:[%s2] sm:$0x1]
  %v172 = vlaneseq
  %v173 = vshrl.u32 %v172, 7
  %v174 = vsub.s32 0, %v173
  %v175 = vrot.slane %v170, %v174
  %v177 = vmul.f32 %v164, %v175
  %v178 = vmul.f32 %v167, %v175
  %v179 = vld [vmem:[%s3] sm:$0x1]
  %v181 = vlaneseq
  %v182 = vshrl.u32 %v181, 7
  %v183 = vsub.s32 0, %v182
  %v184 = vrot.slane %v179, %v183
  %v186 = vadd.f32 %v177, %v184
  %v187 = vadd.f32 %v178, %v184
  %v188 = vmax.f32 %v186, 0.0
  %v189 = vmax.f32 %v187, 0.0
  %v190 = vpack.c.bf16 %v189, %v188
  %v192 = vunpack.c.l.b16 %v190
  %v193 = vunpack.c.h.b16 %v190
  %v194 = vpack.c.b16 %v192, %v192
  %v195 = vpack.c.b16 %v193, %v193
  %vm198 = vcmask 257024
  %199 = vst.msk [vmem:[%s4] sm:$0xf] %vm198, %v194
  %200 = vst.msk [vmem:[%s4 + $0x4] sm:$0xf] %vm198, %v195
  // Predicated region
  $region18: #{attention_decoder_forward.20} parent=0 // pred_check
    _
  $region19: #{attention_decoder_forward.20} parent=0 // pred_check_branch
    %202 = sbr.rel (0) target = $region21
  $region20: #{attention_decoder_forward.20} parent=0 // pred_region
    _
  $region21: #{attention_decoder_forward.20} parent=0 // pred_fallthru
    _
  // Predicated region
  $region22: #{attention_decoder_forward.20} parent=0 // pred_check
    _
  $region23: #{attention_decoder_forward.20} parent=0 // pred_check_branch
    %204 = sbr.rel (0) target = $region25
  $region24: #{attention_decoder_forward.20} parent=0 // pred_region
    _
  $region25: #{attention_decoder_forward.20} parent=0 // pred_fallthru
    _

// kernel: attention_decoder_forward.21
$region0: #{attention_decoder_forward.21}
  #allocation0 [shape = 'u32[]', space=smem, size = 0x4, offset = 0x4, fixed_abs, tag = 'smem constant byte address 0x4 - core index']
  #allocation1 [shape = 'u32[144,128]{1,0:T(1,128)}', space=vmem, size = 0x12000, scoped, tag = 'internal scratch']
  #allocation2 [shape = 'f32[2,32]{1,0:T(2,128)}', space=vmem, size = 0x400, scoped, tag = 'scratch operand']
  #allocation3 [shape = 'f32[2,12]{1,0:T(2,128)}', space=vmem, size = 0x400, scoped, tag = 'scratch operand']
  #allocation4 [shape = 's32[1]{0:T(128)}', space=smem, size = 0x200, scoped, tag = 'scratch operand']
  %s0 = inlined_call_operand.vmem [shape: bf16[2,8,41], index: 0, kind: input, shape index: {}]
  %s1 = inlined_call_operand.vmem [shape: bf16[2,8,32], index: 1, kind: input, shape index: {}]
  %s2 = inlined_call_operand.vmem [shape: bf16[32,128], index: 2, kind: input, shape index: {}]
  %s3 = inlined_call_operand.vmem [shape: f32[1,96], index: 3, kind: input, shape index: {}]
  %s4 = inlined_call_operand.vmem [shape: f32[1,32], index: 4, kind: input, shape index: {}]
  %s5 = inlined_call_operand.vmem [shape: f32[1,32], index: 5, kind: input, shape index: {}]
  %s6 = inlined_call_operand.vmem [shape: bf16[12,96], index: 6, kind: input, shape index: {}]
  %s7 = inlined_call_operand.vmem [shape: bf16[41,96], index: 7, kind: input, shape index: {}]
  %s8 = inlined_call_operand.vmem [shape: f32[1,96], index: 8, kind: input, shape index: {}]
  %s9 = inlined_call_operand.vmem [shape: bf16[32,12], index: 9, kind: input, shape index: {}]
  %s10 = inlined_call_operand.vmem [shape: f32[1,12], index: 10, kind: input, shape index: {}]
  %s11 = inlined_call_operand.hbm [shape: s32[2,8], index: 11, kind: output, shape index: {}]
  %s12 = sld [smem:[#allocation0]]
  $region86: #{attention_decoder_forward.21} parent=0
    _
  %s14 = ssub.s32 1, %s12
  %s15 = scalar_select 0, %s14, %s12
  $region1: #{attention_decoder_forward.21} parent=0
    #allocation5 [shape = 'u8[1024]{0}', space=vmem, size = 0x400, scoped, tag = 'output window, operand 0, single buffered']
    #allocation6 [shape = 's32[1]{0}', space=sflag, size = 0x4, scoped, tag = 'scoped memory for attention_decoder_forward.21']
    %16 = vsyncpa [#allocation6], 0
    // Predicated region
    $region2: #{attention_decoder_forward.21} parent=1 // pred_check
      _
    $region3: #{attention_decoder_forward.21} parent=1 // pred_check_branch
      %18 = sbr.rel (0) target = $region5
    $region4: #{attention_decoder_forward.21} parent=1 // pred_region
      _
    $region5: #{attention_decoder_forward.21} parent=1 // pred_fallthru
      _
    // Predicated region
    $region6: #{attention_decoder_forward.21} parent=1 // pred_check
      _
    $region7: #{attention_decoder_forward.21} parent=1 // pred_check_branch
      %20 = sbr.rel (0) target = $region9
    $region8: #{attention_decoder_forward.21} parent=1 // pred_region
      _
    $region9: #{attention_decoder_forward.21} parent=1 // pred_fallthru
      _
    // Predicated region
    $region10: #{attention_decoder_forward.21} parent=1 // pred_check
      _
    $region11: #{attention_decoder_forward.21} parent=1 // pred_check_branch
      %22 = sbr.rel (0) target = $region13
    $region12: #{attention_decoder_forward.21} parent=1 // pred_region
      _
    $region13: #{attention_decoder_forward.21} parent=1 // pred_fallthru
      _
    // Predicated region
    $region14: #{attention_decoder_forward.21} parent=1 // pred_check
      _
    $region15: #{attention_decoder_forward.21} parent=1 // pred_check_branch
      %24 = sbr.rel (0) target = $region17
    $region16: #{attention_decoder_forward.21} parent=1 // pred_region
      _
    $region17: #{attention_decoder_forward.21} parent=1 // pred_fallthru
      _
    // Predicated region
    $region18: #{attention_decoder_forward.21} parent=1 // pred_check
      _
    $region19: #{attention_decoder_forward.21} parent=1 // pred_check_branch
      %26 = sbr.rel (0) target = $region21
    $region20: #{attention_decoder_forward.21} parent=1 // pred_region
      _
    $region21: #{attention_decoder_forward.21} parent=1 // pred_fallthru
      _
    // Predicated region
    $region22: #{attention_decoder_forward.21} parent=1 // pred_check
      _
    $region23: #{attention_decoder_forward.21} parent=1 // pred_check_branch
      %28 = sbr.rel (0) target = $region25
    $region24: #{attention_decoder_forward.21} parent=1 // pred_region
      _
    $region25: #{attention_decoder_forward.21} parent=1 // pred_fallthru
      _
    // Predicated region
    $region26: #{attention_decoder_forward.21} parent=1 // pred_check
      _
    $region27: #{attention_decoder_forward.21} parent=1 // pred_check_branch
      %30 = sbr.rel (0) target = $region29
    $region28: #{attention_decoder_forward.21} parent=1 // pred_region
      _
    $region29: #{attention_decoder_forward.21} parent=1 // pred_fallthru
      _
    // Predicated region
    $region30: #{attention_decoder_forward.21} parent=1 // pred_check
      _
    $region31: #{attention_decoder_forward.21} parent=1 // pred_check_branch
      %32 = sbr.rel (0) target = $region33
    $region32: #{attention_decoder_forward.21} parent=1 // pred_region
      _
    $region33: #{attention_decoder_forward.21} parent=1 // pred_fallthru
      _
    // Predicated region
    $region34: #{attention_decoder_forward.21} parent=1 // pred_check
      _
    $region35: #{attention_decoder_forward.21} parent=1 // pred_check_branch
      %34 = sbr.rel (0) target = $region37
    $region36: #{attention_decoder_forward.21} parent=1 // pred_region
      _
    $region37: #{attention_decoder_forward.21} parent=1 // pred_fallthru
      _
    // Predicated region
    $region38: #{attention_decoder_forward.21} parent=1 // pred_check
      _
    $region39: #{attention_decoder_forward.21} parent=1 // pred_check_branch
      %36 = sbr.rel (0) target = $region41
    $region40: #{attention_decoder_forward.21} parent=1 // pred_region
      _
    $region41: #{attention_decoder_forward.21} parent=1 // pred_fallthru
      _
    // Predicated region
    $region42: #{attention_decoder_forward.21} parent=1 // pred_check
      _
    $region43: #{attention_decoder_forward.21} parent=1 // pred_check_branch
      %38 = sbr.rel (0) target = $region45
    $region44: #{attention_decoder_forward.21} parent=1 // pred_region
      _
    $region45: #{attention_decoder_forward.21} parent=1 // pred_fallthru
      _
    %vm40 = vcmask 254976
    %41 = vst.msk [vmem:[#allocation2] sm:$0x3] %vm40, 0.0
    %v42 = vlaneseq
    %v43 = vand.u32 %v42, 127
    %vm44 = vcmp.eq.s32.totalorder %v43, 0
    %v45 = vsel %vm44, 1.0, 0.0
    %vm46 = vcmask 91136
    %47 = vst.msk [vmem:[#allocation3] sm:$0x3] %vm46, %v45
    %s48 = scalar_lea.smem [#allocation4], 0
    %49 = sst [smem:[%s48]] 0
    %vm50 = vcmask 58368
    %51 = vst.msk [vmem:[#allocation5] sm:$0x3] %vm50, 0
    %v52 = vld [vmem:[%s0] sm:$0xf]
    %v53 = vld [vmem:[%s0 + $0x4] sm:$0xf]
    %v54 = vunpack.c.l.bf16 %v52
    %v55 = vunpack.c.l.bf16 %v53
    %v56 = vld [vmem:[%s1] sm:$0xf]
    %v57 = vld [vmem:[%s1 + $0x4] sm:$0xf]
    %v58 = vunpack.c.l.bf16 %v56
    %v59 = vunpack.c.l.bf16 %v57
    %v60 = vld [vmem:[%s5] sm:$0x1]
    %v61 = vld [vmem:[%s2] sm:$0xf]
    %v62 = vld [vmem:[%s2 + $0x4] sm:$0xf]
    %v63 = vld [vmem:[%s2 + $0x8] sm:$0xf]
    %v64 = vld [vmem:[%s2 + $0xc] sm:$0xf]
    %v65 = vld [vmem:[%s6] sm:$0xf]
    %v66 = vld [vmem:[%s6 + $0x4] sm:$0x3]
    %v67 = vld [vmem:[%s7] sm:$0xf]
    %v68 = vld [vmem:[%s7 + $0x4] sm:$0xf]
    %v69 = vld [vmem:[%s7 + $0x8] sm:$0xf]
    %v70 = vld [vmem:[%s7 + $0xc] sm:$0xf]
    %v71 = vld [vmem:[%s7 + $0x10] sm:$0xf]
    %v72 = vld [vmem:[%s7 + $0x14] sm:$0x1]
    %v73 = vld [vmem:[%s9] sm:$0xf]
    %v74 = vld [vmem:[%s9 + $0x4] sm:$0xf]
    %v75 = vld [vmem:[%s9 + $0x8] sm:$0xf]
    %v76 = vld [vmem:[%s9 + $0xc] sm:$0xf]
    %v77 = vld [vmem:[%s3] sm:$0x1]
    %v78 = vld [vmem:[%s4] sm:$0x1]
    %v79 = vld [vmem:[%s8] sm:$0x1]
    %v80 = vld [vmem:[%s10] sm:$0x1]
    %s81 = sld [smem:[#allocation4]]
    %p82 = scmp.eq.s32.totalorder %s81, 0
    // Predicated region
    $region46: #{attention_decoder_forward.21} parent=1 // pred_check
      %p83 = pneg %p82
    $region47: #{attention_decoder_forward.21} parent=1 // pred_check_branch
      %85 = sbr.rel (%p83) target = $region49
    $region48: #{attention_decoder_forward.21} parent=1 // pred_region
      %v86 = vld [vmem:[#allocation2] sm:$0x3]
      %v87 = vld [vmem:[#allocation3] sm:$0x3]
      %v88 = vpack.c.bf16 %v86, %v86
      %v93 = vunpack.c.l.b16 %v61
      %v94 = vunpack.c.l.b16 %v62
      %v95 = vunpack.c.l.b16 %v63
      %v96 = vunpack.c.l.b16 %v64
      %v97 = vpack.c.b16 %v94, %v93
      %v98 = vpack.c.b16 %v96, %v95
      %vm101 = vcmask 261120
      %v103 = vsel %vm101, %v88, 0
      %105 = vmatprep.subr.bf16.mxu0 0
      %106 = vmatpush1.bf16.msra.mxu0 %v97
      %107 = vmatprep.subr.bf16.mxu0 0
      %108 = vmatpush1.bf16.msra.mxu0 %v98
      %109 = vmatprep.subr.bf16.mxu0 0
      %110 = vmatpush1.bf16.msra.mxu0 0
      %111 = vmatprep.subr.bf16.mxu0 0
      %112 = vmatpush1.bf16.msra.mxu0 0
      %113 = vmatprep.subr.bf16.mxu0 0
      %114 = vmatpush1.bf16.msra.mxu0 0
      %115 = vmatprep.subr.bf16.mxu0 0
      %116 = vmatpush1.bf16.msra.mxu0 0
      %117 = vmatprep.subr.bf16.mxu0 0
      %118 = vmatpush1.bf16.msra.mxu0 0
      %119 = vmatprep.subr.bf16.mxu0 0
      %120 = vmatpush1.bf16.msra.mxu0 0
      %121 = vmatprep.subr.bf16.mxu0 0
      %122 = vmatpush1.bf16.msra.mxu0 0
      %123 = vmatprep.subr.bf16.mxu0 0
      %124 = vmatpush1.bf16.msra.mxu0 0
      %125 = vmatprep.subr.bf16.mxu0 0
      %126 = vmatpush1.bf16.msra.mxu0 0
      %127 = vmatprep.subr.bf16.mxu0 0
      %128 = vmatpush1.bf16.msra.mxu0 0
      %129 = vmatprep.subr.bf16.mxu0 0
      %130 = vmatpush1.bf16.msra.mxu0 0
      %131 = vmatprep.subr.bf16.mxu0 0
      %132 = vmatpush1.bf16.msra.mxu0 0
      %133 = vmatprep.subr.bf16.mxu0 0
      %134 = vmatpush1.bf16.msra.mxu0 0
      %135 = vmatprep.subr.bf16.mxu0 0
      %136 = vmatpush1.bf16.msra.mxu0 0
      %137 = vmatprep.mubr.bf16.mxu0 0
      %138 = vmatmul.mubr.bf16.gmra.mrb[0].mxu0 %v103
      %v139 = vpop.f32.mrb[0].mxu0
      %v140 = vadd.f32 0.0, %v139
      %v141 = vpop.f32.mrb[0].mxu0
      %v142 = vpop.f32.mrb[0].mxu0
      %v143 = vpop.f32.mrb[0].mxu0
      %144 = vdwg.mxu0
      %v146 = vlaneseq
      %v147 = vshrl.u32 %v146, 7
      %v148 = vsub.s32 0, %v147
      %v149 = vrot.slane %v77, %v148
      %v151 = vadd.f32 %v140, %v149
      %v153 = vlaneseq
      %v154 = vshrl.u32 %v153, 7
      %v155 = vsub.s32 0, %v154
      %v156 = vrot.slane %v78, %v155
      %157 = vrot.lane.b32.xlu0 %v156, 96
      %v158 = vpop.permute.xlu0 %157
      %v160 = vadd.f32 %v140, %v158
      %v163 = vunpack.c.l.s4 1966171168
      %v164 = vunpack.c.0.s8 %v163
      %v165 = vlaneseq
      %v166 = vshrl.u32 %v165, 7
      %v167 = vsub.s32 %v164, %v166
      %v168 = vrot.slane %v160, %v167
      %v169 = vcombine.high %v168, %v168
      %v171 = vunpack.c.l.s4 1966171168
      %v172 = vunpack.c.0.s8 %v171
      %v173 = vlaneseq
      %v174 = vshrl.u32 %v173, 7
      %v175 = vsub.s32 %v172, %v174
      %v176 = vrot.slane %v168, %v175
      %v178 = vunpack.c.l.s4 1966171168
      %v179 = vunpack.c.0.s8 %v178
      %v180 = vlaneseq
      %v181 = vshrl.u32 %v180, 7
      %v182 = vsub.s32 %v179, %v181
      %v183 = vrot.slane %v169, %v182
      %v184 = vlaneseq
      %v185 = vshrl.u32 %v184, 7
      %v186 = vsub.s32 0, %v185
      %v187 = vrot.slane %v176, %v186
      %v188 = vlaneseq
      %v189 = vshrl.u32 %v188, 7
      %v190 = vsub.s32 0, %v189
      %v191 = vrot.slane %v183, %v190
      %192 = vrot.lane.b32.xlu0 %v187, 32
      %v193 = vpop.permute.xlu0 %192
      %194 = vrot.lane.b32.xlu0 %v191, 32
      %v195 = vpop.permute.xlu0 %194
      %v198 = vadd.f32 %v58, %v193
      %v199 = vadd.f32 %v59, %v195
      %v200 = vtanh.pop %v198
      %v201 = vtanh.pop %v199
      %v203 = vlaneseq
      %v204 = vshrl.u32 %v203, 7
      %v205 = vsub.s32 0, %v204
      %v206 = vrot.slane %v60, %v205
      %v208 = vmul.f32 %v200, %v206
      %v209 = vmul.f32 %v201, %v206
      %v210 = vsel %vm101, %v208, 0.0
      %211 = vadd.xlane.f32.xlu0 %v210
      %v212 = vpop.xlane.xlu0 %211
      %v213 = vsel %vm101, %v209, 0.0
      %214 = vadd.xlane.f32.xlu0 %v213
      %v215 = vpop.xlane.xlu0 %214
      %v218 = vlaneseq
      %v219 = vshrl.u32 %v218, 7
      %v220 = vsub.s32 %v43, %v219
      %v221 = vrot.slane %v212, %v220
      %v222 = vlaneseq
      %v223 = vshrl.u32 %v222, 7
      %v224 = vsub.s32 %v43, %v223
      %v225 = vrot.slane %v215, %v224
      %vm226 = vcmask 1041409
      %v227 = vsel %vm226, %v225, %v221
      %v229 = vsel %vm50, %v227, -inf
      %230 = vmax.xlane.f32.xlu0 %v229
      %v231 = vpop.xlane.xlu0 %230
      %v233 = vlaneseq
      %v234 = vshrl.u32 %v233, 7
      %v235 = vsub.s32 0, %v234
      %v236 = vrot.slane %v231, %v235
      %v237 = vlaneseq
      %v238 = vshrl.u32 %v237, 7
      %v239 = vsub.s32 1, %v238
      %v240 = vrot.slane %v231, %v239
      %v243 = vsub.f32 %v212, %v236
      %v244 = vsub.f32 %v215, %v240
      %v245 = vmul.f32 %v243, 1.442695
      %v246 = vpow.pop %v245
      %v247 = vmul.f32 %v244, 1.442695
      %v248 = vpow.pop %v247
      %251 = vset.pattern.permute.xlu0 0
      %252 = vperm.xlu0 %251, %v246
      %v253 = vpop.permute.xlu0 %252
      %254 = vset.pattern.permute.xlu0 0
      %255 = vperm.xlu0 %254, %v248
      %v256 = vpop.permute.xlu0 %255
      %v257 = vlaneseq
      %v258 = vshrl.u32 %v257, 7
      %v259 = vsub.s32 %v43, %v258
      %v260 = vrot.slane %v253, %v259
      %v261 = vlaneseq
      %v262 = vshrl.u32 %v261, 7
      %v263 = vsub.s32 %v43, %v262
      %v264 = vrot.slane %v256, %v263
      %v265 = vsel %vm226, %v264, %v260
      %v267 = vsel %vm50, %v265, 0.0
      %268 = vadd.xlane.f32.xlu0 %v267
      %v269 = vpop.xlane.xlu0 %268
      %v271 = vlaneseq
      %v272 = vshrl.u32 %v271, 7
      %v273 = vsub.s32 0, %v272
      %v274 = vrot.slane %v269, %v273
      %v275 = vlaneseq
      %v276 = vshrl.u32 %v275, 7
      %v277 = vsub.s32 1, %v276
      %v278 = vrot.slane %v269, %v277
      %v281 = vrcp.pop %v274
      %v282 = vmul.f32 %v246, %v281
      %v283 = vrcp.pop %v278
      %v284 = vmul.f32 %v248, %v283
      %286 = vset.pattern.permute.xlu0 0
      %287 = vperm.xlu0 %286, %v282
      %v288 = vpop.permute.xlu0 %287
      %291 = vset.pattern.permute.xlu0 0
      %292 = vperm.xlu0 %291, %v284
      %v293 = vpop.permute.xlu0 %292
      %v295 = vmul.f32 %v288, %v54
      %v296 = vmul.f32 %v293, %v55
      %vm297 = vcmask 334848
      %v298 = vsel %vm297, %v295, 0.0
      %v299 = vrot.slane %v298, 4
      %v300 = vadd.f32 %v298, %v299
      %v301 = vrot.slane %v300, 2
      %v302 = vadd.f32 %v300, %v301
      %v303 = vrot.slane %v302, 1
      %v304 = vadd.f32 %v302, %v303
      %v305 = vsel %vm297, %v296, 0.0
      %v306 = vrot.slane %v305, 4
      %v307 = vadd.f32 %v305, %v306
      %v308 = vrot.slane %v307, 2
      %v309 = vadd.f32 %v307, %v308
      %v310 = vrot.slane %v309, 1
      %v311 = vadd.f32 %v309, %v310
      %v312 = vpack.c.bf16 %v87, %v87
      %v313 = vpack.c.bf16 %v304, %v304
      %v314 = vpack.c.bf16 %v311, %v311
      %v317 = vunpack.c.l.b16 %v313
      %v318 = vunpack.c.l.b16 %v314
      %v319 = vsel %vm226, %v318, %v317
      %v320 = vpack.c.b16 %v319, %v319
      %v327 = vunpack.c.l.b16 %v67
      %v328 = vunpack.c.l.b16 %v68
      %v329 = vunpack.c.l.b16 %v69
      %v330 = vunpack.c.l.b16 %v70
      %v331 = vunpack.c.l.b16 %v71
      %v332 = vunpack.c.l.b16 %v72
      %v333 = vpack.c.b16 %v328, %v327
      %v334 = vpack.c.b16 %v330, %v329
      %v335 = vpack.c.b16 %v332, %v331
      %v339 = vsel %vm297, %v320, 0
      %vm341 = vcmask 1043456
      %vm342 = vcmask 1044480
      %v343 = vsel %vm341, 4294967295, 65535
      %v344 = vsel %vm342, %v343, 0
      %v346 = vand.u32 %v335, %v344
      %348 = vmatprep.subr.bf16.mxu0 0
      %349 = vmatpush1.bf16.msra.mxu0 %v333
      %350 = vmatprep.subr.bf16.mxu0 0
      %351 = vmatpush1.bf16.msra.mxu0 %v334
      %352 = vmatprep.subr.bf16.mxu0 0
      %353 = vmatpush1.bf16.msra.mxu0 %v346
      %354 = vmatprep.subr.bf16.mxu0 0
      %355 = vmatpush1.bf16.msra.mxu0 0
      %356 = vmatprep.subr.bf16.mxu0 0
      %357 = vmatpush1.bf16.msra.mxu0 0
      %358 = vmatprep.subr.bf16.mxu0 0
      %359 = vmatpush1.bf16.msra.mxu0 0
      %360 = vmatprep.subr.bf16.mxu0 0
      %361 = vmatpush1.bf16.msra.mxu0 0
      %362 = vmatprep.subr.bf16.mxu0 0
      %363 = vmatpush1.bf16.msra.mxu0 0
      %364 = vmatprep.subr.bf16.mxu0 0
      %365 = vmatpush1.bf16.msra.mxu0 0
      %366 = vmatprep.subr.bf16.mxu0 0
      %367 = vmatpush1.bf16.msra.mxu0 0
      %368 = vmatprep.subr.bf16.mxu0 0
      %369 = vmatpush1.bf16.msra.mxu0 0
      %370 = vmatprep.subr.bf16.mxu0 0
      %371 = vmatpush1.bf16.msra.mxu0 0
      %372 = vmatprep.subr.bf16.mxu0 0
      %373 = vmatpush1.bf16.msra.mxu0 0
      %374 = vmatprep.subr.bf16.mxu0 0
      %375 = vmatpush1.bf16.msra.mxu0 0
      %376 = vmatprep.subr.bf16.mxu0 0
      %377 = vmatpush1.bf16.msra.mxu0 0
      %378 = vmatprep.subr.bf16.mxu0 0
      %379 = vmatpush1.bf16.msra.mxu0 0
      %380 = vmatprep.mubr.bf16.mxu0 0
      %381 = vmatmul.mubr.bf16.gmra.mrb[0].mxu0 %v339
      %v382 = vpop.f32.mrb[0].mxu0
      %v383 = vadd.f32 0.0, %v382
      %v384 = vpop.f32.mrb[0].mxu0
      %v385 = vpop.f32.mrb[0].mxu0
      %v386 = vpop.f32.mrb[0].mxu0
      %387 = vdwg.mxu0
      %v390 = vunpack.c.l.b16 %v65
      %v391 = vunpack.c.l.b16 %v66
      %v392 = vpack.c.b16 %v391, %v390
      %vm393 = vcmask 97280
      %v395 = vsel %vm393, %v312, 0
      %vm397 = vcmask 1045504
      %v399 = vsel %vm397, %v392, 0
      %401 = vmatprep.subr.bf16.mxu0 0
      %402 = vmatpush1.bf16.msra.mxu0 %v399
      %403 = vmatprep.subr.bf16.mxu0 0
      %404 = vmatpush1.bf16.msra.mxu0 0
      %405 = vmatprep.subr.bf16.mxu0 0
      %406 = vmatpush1.bf16.msra.mxu0 0
      %407 = vmatprep.subr.bf16.mxu0 0
      %408 = vmatpush1.bf16.msra.mxu0 0
      %409 = vmatprep.subr.bf16.mxu0 0
      %410 = vmatpush1.bf16.msra.mxu0 0
      %411 = vmatprep.subr.bf16.mxu0 0
      %412 = vmatpush1.bf16.msra.mxu0 0
      %413 = vmatprep.subr.bf16.mxu0 0
      %414 = vmatpush1.bf16.msra.mxu0 0
      %415 = vmatprep.subr.bf16.mxu0 0
      %416 = vmatpush1.bf16.msra.mxu0 0
      %417 = vmatprep.subr.bf16.mxu0 0
      %418 = vmatpush1.bf16.msra.mxu0 0
      %419 = vmatprep.subr.bf16.mxu0 0
      %420 = vmatpush1.bf16.msra.mxu0 0
      %421 = vmatprep.subr.bf16.mxu0 0
      %422 = vmatpush1.bf16.msra.mxu0 0
      %423 = vmatprep.subr.bf16.mxu0 0
      %424 = vmatpush1.bf16.msra.mxu0 0
      %425 = vmatprep.subr.bf16.mxu0 0
      %426 = vmatpush1.bf16.msra.mxu0 0
      %427 = vmatprep.subr.bf16.mxu0 0
      %428 = vmatpush1.bf16.msra.mxu0 0
      %429 = vmatprep.subr.bf16.mxu0 0
      %430 = vmatpush1.bf16.msra.mxu0 0
      %431 = vmatprep.subr.bf16.mxu0 0
      %432 = vmatpush1.bf16.msra.mxu0 0
      %433 = vmatprep.mubr.bf16.mxu0 0
      %434 = vmatmul.mubr.bf16.gmra.mrb[0].mxu0 %v395
      %v435 = vpop.f32.mrb[0].mxu0
      %v436 = vadd.f32 %v383, %v435
      %v437 = vpop.f32.mrb[0].mxu0
      %v438 = vpop.f32.mrb[0].mxu0
      %v439 = vpop.f32.mrb[0].mxu0
      %440 = vdwg.mxu0
      %v442 = vlaneseq
      %v443 = vshrl.u32 %v442, 7
      %v444 = vsub.s32 0, %v443
      %v445 = vrot.slane %v79, %v444
      %v447 = vadd.f32 %v436, %v445
      %v448 = vadd.f32 %v447, %v151
      %v449 = vxor.u32 %v448, 2147483648
      %v450 = vmul.f32 %v449, 1.442695
      %v451 = vpow.pop %v450
      %v452 = vadd.f32 %v451, 1.0
      %v453 = vrcp.pop %v452
      %v454 = vmul.f32 1.0, %v453
      %456 = vrot.lane.b32.xlu0 %v151, 64
      %v457 = vpop.permute.xlu0 %456
      %v459 = vmul.f32 %v454, %v457
      %461 = vrot.lane.b32.xlu0 %v459, 64
      %v462 = vpop.permute.xlu0 %461
      %v464 = vadd.f32 %v447, %v462
      %v465 = vtanh.pop %v464
      %v466 = vsub.f32 1.0, %v454
      %468 = vrot.lane.b32.xlu0 %v465, 96
      %v469 = vpop.permute.xlu0 %468
      %v471 = vmul.f32 %v466, %v469
      %473 = vrot.lane.b32.xlu0 %v86, 32
      %v474 = vpop.permute.xlu0 %473
      %v476 = vmul.f32 %v454, %v474
      %v477 = vadd.f32 %v471, %v476
      %v478 = vpack.c.bf16 %v477, %v477
      %v480 = vlaneseq
      %v481 = vshrl.u32 %v480, 7
      %v482 = vsub.s32 0, %v481
      %v483 = vrot.slane %v80, %v482
      %486 = vrot.lane.b32.xlu0 %v478, 96
      %v487 = vpop.permute.xlu0 %486
      %v492 = vunpack.c.l.b16 %v73
      %v493 = vunpack.c.l.b16 %v74
      %v494 = vunpack.c.l.b16 %v75
      %v495 = vunpack.c.l.b16 %v76
      %v496 = vpack.c.b16 %v493, %v492
      %v497 = vpack.c.b16 %v495, %v494
      %v501 = vsel %vm101, %v487, 0
      %503 = vmatprep.subr.bf16.mxu0 0
      %504 = vmatpush1.bf16.msra.mxu0 %v496
      %505 = vmatprep.subr.bf16.mxu0 0
      %506 = vmatpush1.bf16.msra.mxu0 %v497
      %507 = vmatprep.subr.bf16.mxu0 0
      %508 = vmatpush1.bf16.msra.mxu0 0
      %509 = vmatprep.subr.bf16.mxu0 0
      %510 = vmatpush1.bf16.msra.mxu0 0
      %511 = vmatprep.subr.bf16.mxu0 0
      %512 = vmatpush1.bf16.msra.mxu0 0
      %513 = vmatprep.subr.bf16.mxu0 0
      %514 = vmatpush1.bf16.msra.mxu0 0
      %515 = vmatprep.subr.bf16.mxu0 0
      %516 = vmatpush1.bf16.msra.mxu0 0
      %517 = vmatprep.subr.bf16.mxu0 0
      %518 = vmatpush1.bf16.msra.mxu0 0
      %519 = vmatprep.subr.bf16.mxu0 0
      %520 = vmatpush1.bf16.msra.mxu0 0
      %521 = vmatprep.subr.bf16.mxu0 0
      %522 = vmatpush1.bf16.msra.mxu0 0
      %523 = vmatprep.subr.bf16.mxu0 0
      %524 = vmatpush1.bf16.msra.mxu0 0
      %525 = vmatprep.subr.bf16.mxu0 0
      %526 = vmatpush1.bf16.msra.mxu0 0
      %527 = vmatprep.subr.bf16.mxu0 0
      %528 = vmatpush1.bf16.msra.mxu0 0
      %529 = vmatprep.subr.bf16.mxu0 0
      %530 = vmatpush1.bf16.msra.mxu0 0
      %531 = vmatprep.subr.bf16.mxu0 0
      %532 = vmatpush1.bf16.msra.mxu0 0
      %533 = vmatprep.subr.bf16.mxu0 0
      %534 = vmatpush1.bf16.msra.mxu0 0
      %535 = vmatprep.mubr.bf16.mxu0 0
      %536 = vmatmul.mubr.bf16.gmra.mrb[0].mxu0 %v501
      %v537 = vpop.f32.mrb[0].mxu0
      %v538 = vadd.f32 %v483, %v537
      %v539 = vpop.f32.mrb[0].mxu0
      %v540 = vpop.f32.mrb[0].mxu0
      %v541 = vpop.f32.mrb[0].mxu0
      %542 = vdwg.mxu0
      %v543 = vsel %vm46, %v538, -inf
      %544 = vmax.xlane.f32.xlu0 %v543
      %v545 = vpop.xlane.xlu0 %544
      %vm546 = vcmp.eq.f32.partialorder %v538, %v545
      %v547 = vsel %vm546, %v43, 12
      %v548 = vsel %vm46, %v547, 2147483647
      %v549 = vand.u32 %v548, 65535
      %v550 = vshra.s32 %v548, 16
      %v551 = vcvt.s32.f32 %v549
      %v552 = vcvt.s32.f32 %v550
      %553 = vmin.xlane.f32.xlu0 %v552
      %v554 = vpop.xlane.xlu0 %553
      %vm555 = vcmp.eq.f32.partialorder %v552, %v554
      %v556 = vsel %vm555, %v551, inf
      %557 = vmin.xlane.f32.xlu0 %v556
      %v558 = vpop.xlane.xlu0 %557
      %v559 = vcvt.f32.s32 %v558
      %v560 = vcvt.f32.s32 %v554
      %v561 = vshll.u32 %v560, 16
      %v562 = vadd.s32 %v561, %v559
      %v563 = vld [vmem:[#allocation5] sm:$0x3]
      %v564 = vsel %vm44, %v562, %v563
      %565 = vst.msk [vmem:[#allocation5] sm:$0x3] %vm50, %v564
      %vm566 = vcmp.eq.s32.totalorder %v562, 0
      %v567 = vsel %vm566, 0.0, 1.0
      %vm568 = vcmask 1024
      %v569 = vsel %vm568, %v567, 0.0
      %570 = vadd.xlane.f32.xlu0 %v569
      %v571 = vpop.xlane.xlu0 %570
      %v572 = vrot.slane %v571, 4
      %v573 = vadd.f32 %v571, %v572
      %v574 = vrot.slane %v573, 2
      %v575 = vadd.f32 %v573, %v574
      %v576 = vrot.slane %v575, 1
      %v577 = vadd.f32 %v575, %v576
      %s578 = vtos %v577
      %p579 = scmp.eq.f32.partialorder %s578, 0.0
      %s580 = scalar_select %p579, 1, 0
      %581 = sst [smem:[%s48]] %s580
      %583 = vrot.lane.b32.xlu0 %v477, 96
      %v584 = vpop.permute.xlu0 %583
      %586 = vst.msk [vmem:[#allocation2] sm:$0x3] %vm40, %v584
      %vm587 = vcmp.eq.s32.totalorder %v43, %v562
      %v588 = vsel %vm587, 1.0, 0.0
      %589 = vst.msk [vmem:[#allocation3] sm:$0x3] %vm46, %v588
    $region49: #{attention_decoder_forward.21} parent=1 // pred_fallthru
      _
    %s590 = sld [smem:[#allocation4]]
    %p591 = scmp.eq.s32.totalorder %s590, 0
    // Predicated region
    $region50: #{attention_decoder_forward.21} parent=1 // pred_check
      %p592 = pneg %p591
    $region51: #{attention_decoder_forward.21} parent=1 // pred_check_branch
      %594 = sbr.rel (%p592) target = $region53
    $region52: #{attention_decoder_forward.21} parent=1 // pred_region
      %v595 = vld [vmem:[#allocation2] sm:$0x3]
      %v596 = vld [vmem:[#allocation3] sm:$0x3]
      %v597 = vpack.c.bf16 %v595, %v595
      %v602 = vunpack.c.l.b16 %v61
      %v603 = vunpack.c.l.b16 %v62
      %v604 = vunpack.c.l.b16 %v63
      %v605 = vunpack.c.l.b16 %v64
      %v606 = vpack.c.b16 %v603, %v602
      %v607 = vpack.c.b16 %v605, %v604
      %vm610 = vcmask 261120
      %v612 = vsel %vm610, %v597, 0
      %614 = vmatprep.subr.bf16.mxu0 0
      %615 = vmatpush1.bf16.msra.mxu0 %v606
      %616 = vmatprep.subr.bf16.mxu0 0
      %617 = vmatpush1.bf16.msra.mxu0 %v607
      %618 = vmatprep.subr.bf16.mxu0 0
      %619 = vmatpush1.bf16.msra.mxu0 0
      %620 = vmatprep.subr.bf16.mxu0 0
      %621 = vmatpush1.bf16.msra.mxu0 0
      %622 = vmatprep.subr.bf16.mxu0 0
      %623 = vmatpush1.bf16.msra.mxu0 0
      %624 = vmatprep.subr.bf16.mxu0 0
      %625 = vmatpush1.bf16.msra.mxu0 0
      %626 = vmatprep.subr.bf16.mxu0 0
      %627 = vmatpush1.bf16.msra.mxu0 0
      %628 = vmatprep.subr.bf16.mxu0 0
      %629 = vmatpush1.bf16.msra.mxu0 0
      %630 = vmatprep.subr.bf16.mxu0 0
      %631 = vmatpush1.bf16.msra.mxu0 0
      %632 = vmatprep.subr.bf16.mxu0 0
      %633 = vmatpush1.bf16.msra.mxu0 0
      %634 = vmatprep.subr.bf16.mxu0 0
      %635 = vmatpush1.bf16.msra.mxu0 0
      %636 = vmatprep.subr.bf16.mxu0 0
      %637 = vmatpush1.bf16.msra.mxu0 0
      %638 = vmatprep.subr.bf16.mxu0 0
      %639 = vmatpush1.bf16.msra.mxu0 0
      %640 = vmatprep.subr.bf16.mxu0 0
      %641 = vmatpush1.bf16.msra.mxu0 0
      %642 = vmatprep.subr.bf16.mxu0 0
      %643 = vmatpush1.bf16.msra.mxu0 0
      %644 = vmatprep.subr.bf16.mxu0 0
      %645 = vmatpush1.bf16.msra.mxu0 0
      %646 = vmatprep.mubr.bf16.mxu0 0
      %647 = vmatmul.mubr.bf16.gmra.mrb[0].mxu0 %v612
      %v648 = vpop.f32.mrb[0].mxu0
      %v649 = vadd.f32 0.0, %v648
      %v650 = vpop.f32.mrb[0].mxu0
      %v651 = vpop.f32.mrb[0].mxu0
      %v652 = vpop.f32.mrb[0].mxu0
      %653 = vdwg.mxu0
      %v655 = vlaneseq
      %v656 = vshrl.u32 %v655, 7
      %v657 = vsub.s32 0, %v656
      %v658 = vrot.slane %v77, %v657
      %v660 = vadd.f32 %v649, %v658
      %v662 = vlaneseq
      %v663 = vshrl.u32 %v662, 7
      %v664 = vsub.s32 0, %v663
      %v665 = vrot.slane %v78, %v664
      %666 = vrot.lane.b32.xlu0 %v665, 96
      %v667 = vpop.permute.xlu0 %666
      %v669 = vadd.f32 %v649, %v667
      %v672 = vunpack.c.l.s4 1966171168
      %v673 = vunpack.c.0.s8 %v672
      %v674 = vlaneseq
      %v675 = vshrl.u32 %v674, 7
      %v676 = vsub.s32 %v673, %v675
      %v677 = vrot.slane %v669, %v676
      %v678 = vcombine.high %v677, %v677
      %v680 = vunpack.c.l.s4 1966171168
      %v681 = vunpack.c.0.s8 %v680
      %v682 = vlaneseq
      %v683 = vshrl.u32 %v682, 7
      %v684 = vsub.s32 %v681, %v683
      %v685 = vrot.slane %v677, %v684
      %v687 = vunpack.c.l.s4 1966171168
      %v688 = vunpack.c.0.s8 %v687
      %v689 = vlaneseq
      %v690 = vshrl.u32 %v689, 7
      %v691 = vsub.s32 %v688, %v690
      %v692 = vrot.slane %v678, %v691
      %v693 = vlaneseq
      %v694 = vshrl.u32 %v693, 7
      %v695 = vsub.s32 0, %v694
      %v696 = vrot.slane %v685, %v695
      %v697 = vlaneseq
      %v698 = vshrl.u32 %v697, 7
      %v699 = vsub.s32 0, %v698
      %v700 = vrot.slane %v692, %v699
      %701 = vrot.lane.b32.xlu0 %v696, 32
      %v702 = vpop.permute.xlu0 %701
      %703 = vrot.lane.b32.xlu0 %v700, 32
      %v704 = vpop.permute.xlu0 %703
      %v707 = vadd.f32 %v58, %v702
      %v708 = vadd.f32 %v59, %v704
      %v709 = vtanh.pop %v707
      %v710 = vtanh.pop %v708
      %v712 = vlaneseq
      %v713 = vshrl.u32 %v712, 7
      %v714 = vsub.s32 0, %v713
      %v715 = vrot.slane %v60, %v714
      %v717 = vmul.f32 %v709, %v715
      %v718 = vmul.f32 %v710, %v715
      %v719 = vsel %vm610, %v717, 0.0
      %720 = vadd.xlane.f32.xlu0 %v719
      %v721 = vpop.xlane.xlu0 %720
      %v722 = vsel %vm610, %v718, 0.0
      %723 = vadd.xlane.f32.xlu0 %v722
      %v724 = vpop.xlane.xlu0 %723
      %v727 = vlaneseq
      %v728 = vshrl.u32 %v727, 7
      %v729 = vsub.s32 %v43, %v728
      %v730 = vrot.slane %v721, %v729
      %v731 = vlaneseq
      %v732 = vshrl.u32 %v731, 7
      %v733 = vsub.s32 %v43, %v732
      %v734 = vrot.slane %v724, %v733
      %vm735 = vcmask 1041409
      %v736 = vsel %vm735, %v734, %v730
      %v738 = vsel %vm50, %v736, -inf
      %739 = vmax.xlane.f32.xlu0 %v738
      %v740 = vpop.xlane.xlu0 %739
      %v742 = vlaneseq
      %v743 = vshrl.u32 %v742, 7
      %v744 = vsub.s32 0, %v743
      %v745 = vrot.slane %v740, %v744
      %v746 = vlaneseq
      %v747 = vshrl.u32 %v746, 7
      %v748 = vsub.s32 1, %v747
      %v749 = vrot.slane %v740, %v748
      %v752 = vsub.f32 %v721, %v745
      %v753 = vsub.f32 %v724, %v749
      %v754 = vmul.f32 %v752, 1.442695
      %v755 = vpow.pop %v754
      %v756 = vmul.f32 %v753, 1.442695
      %v757 = vpow.pop %v756
      %760 = vset.pattern.permute.xlu0 0
      %761 = vperm.xlu0 %760, %v755
      %v762 = vpop.permute.xlu0 %761
      %763 = vset.pattern.permute.xlu0 0
      %764 = vperm.xlu0 %763, %v757
      %v765 = vpop.permute.xlu0 %764
      %v766 = vlaneseq
      %v767 = vshrl.u32 %v766, 7
      %v768 = vsub.s32 %v43, %v767
      %v769 = vrot.slane %v762, %v768
      %v770 = vlaneseq
      %v771 = vshrl.u32 %v770, 7
      %v772 = vsub.s32 %v43, %v771
      %v773 = vrot.slane %v765, %v772
      %v774 = vsel %vm735, %v773, %v769
      %v776 = vsel %vm50, %v774, 0.0
      %777 = vadd.xlane.f32.xlu0 %v776
      %v778 = vpop.xlane.xlu0 %777
      %v780 = vlaneseq
      %v781 = vshrl.u32 %v780, 7
      %v782 = vsub.s32 0, %v781
      %v783 = vrot.slane %v778, %v782
      %v784 = vlaneseq
      %v785 = vshrl.u32 %v784, 7
      %v786 = vsub.s32 1, %v785
      %v787 = vrot.slane %v778, %v786
      %v790 = vrcp.pop %v783
      %v791 = vmul.f32 %v755, %v790
      %v792 = vrcp.pop %v787
      %v793 = vmul.f32 %v757, %v792
      %795 = vset.pattern.permute.xlu0 0
      %796 = vperm.xlu0 %795, %v791
      %v797 = vpop.permute.xlu0 %796
      %800 = vset.pattern.permute.xlu0 0
      %801 = vperm.xlu0 %800, %v793
      %v802 = vpop.permute.xlu0 %801
      %v804 = vmul.f32 %v797, %v54
      %v805 = vmul.f32 %v802, %v55
      %vm806 = vcmask 334848
      %v807 = vsel %vm806, %v804, 0.0
      %v808 = vrot.slane %v807, 4
      %v809 = vadd.f32 %v807, %v808
      %v810 = vrot.slane %v809, 2
      %v811 = vadd.f32 %v809, %v810
      %v812 = vrot.slane %v811, 1
      %v813 = vadd.f32 %v811, %v812
      %v814 = vsel %vm806, %v805, 0.0
      %v815 = vrot.slane %v814, 4
      %v816 = vadd.f32 %v814, %v815
      %v817 = vrot.slane %v816, 2
      %v818 = vadd.f32 %v816, %v817
      %v819 = vrot.slane %v818, 1
      %v820 = vadd.f32 %v818, %v819
      %v821 = vpack.c.bf16 %v596, %v596
      %v822 = vpack.c.bf16 %v813, %v813
      %v823 = vpack.c.bf16 %v820, %v820
      %v826 = vunpack.c.l.b16 %v822
      %v827 = vunpack.c.l.b16 %v823
      %v828 = vsel %vm735, %v827, %v826
      %v829 = vpack.c.b16 %v828, %v828
      %v836 = vunpack.c.l.b16 %v67
      %v837 = vunpack.c.l.b16 %v68
      %v838 = vunpack.c.l.b16 %v69
      %v839 = vunpack.c.l.b16 %v70
      %v840 = vunpack.c.l.b16 %v71
      %v841 = vunpack.c.l.b16 %v72
      %v842 = vpack.c.b16 %v837, %v836
      %v843 = vpack.c.b16 %v839, %v838
      %v844 = vpack.c.b16 %v841, %v840
      %v848 = vsel %vm806, %v829, 0
      %vm850 = vcmask 1043456
      %vm851 = vcmask 1044480
      %v852 = vsel %vm850, 4294967295, 65535
      %v853 = vsel %vm851, %v852, 0
      %v855 = vand.u32 %v844, %v853
      %857 = vmatprep.subr.bf16.mxu0 0
      %858 = vmatpush1.bf16.msra.mxu0 %v842
      %859 = vmatprep.subr.bf16.mxu0 0
      %860 = vmatpush1.bf16.msra.mxu0 %v843
      %861 = vmatprep.subr.bf16.mxu0 0
      %862 = vmatpush1.bf16.msra.mxu0 %v855
      %863 = vmatprep.subr.bf16.mxu0 0
      %864 = vmatpush1.bf16.msra.mxu0 0
      %865 = vmatprep.subr.bf16.mxu0 0
      %866 = vmatpush1.bf16.msra.mxu0 0
      %867 = vmatprep.subr.bf16.mxu0 0
      %868 = vmatpush1.bf16.msra.mxu0 0
      %869 = vmatprep.subr.bf16.mxu0 0
      %870 = vmatpush1.bf16.msra.mxu0 0
      %871 = vmatprep.subr.bf16.mxu0 0
      %872 = vmatpush1.bf16.msra.mxu0 0
      %873 = vmatprep.subr.bf16.mxu0 0
      %874 = vmatpush1.bf16.msra.mxu0 0
      %875 = vmatprep.subr.bf16.mxu0 0
      %876 = vmatpush1.bf16.msra.mxu0 0
      %877 = vmatprep.subr.bf16.mxu0 0
      %878 = vmatpush1.bf16.msra.mxu0 0
      %879 = vmatprep.subr.bf16.mxu0 0
      %880 = vmatpush1.bf16.msra.mxu0 0
      %881 = vmatprep.subr.bf16.mxu0 0
      %882 = vmatpush1.bf16.msra.mxu0 0
      %883 = vmatprep.subr.bf16.mxu0 0
      %884 = vmatpush1.bf16.msra.mxu0 0
      %885 = vmatprep.subr.bf16.mxu0 0
      %886 = vmatpush1.bf16.msra.mxu0 0
      %887 = vmatprep.subr.bf16.mxu0 0
      %888 = vmatpush1.bf16.msra.mxu0 0
      %889 = vmatprep.mubr.bf16.mxu0 0
      %890 = vmatmul.mubr.bf16.gmra.mrb[0].mxu0 %v848
      %v891 = vpop.f32.mrb[0].mxu0
      %v892 = vadd.f32 0.0, %v891
      %v893 = vpop.f32.mrb[0].mxu0
      %v894 = vpop.f32.mrb[0].mxu0
      %v895 = vpop.f32.mrb[0].mxu0
      %896 = vdwg.mxu0
      %v899 = vunpack.c.l.b16 %v65
      %v900 = vunpack.c.l.b16 %v66
      %v901 = vpack.c.b16 %v900, %v899
      %vm902 = vcmask 97280
      %v904 = vsel %vm902, %v821, 0
      %vm906 = vcmask 1045504
      %v908 = vsel %vm906, %v901, 0
      %910 = vmatprep.subr.bf16.mxu0 0
      %911 = vmatpush1.bf16.msra.mxu0 %v908
      %912 = vmatprep.subr.bf16.mxu0 0
      %913 = vmatpush1.bf16.msra.mxu0 0
      %914 = vmatprep.subr.bf16.mxu0 0
      %915 = vmatpush1.bf16.msra.mxu0 0
      %916 = vmatprep.subr.bf16.mxu0 0
      %917 = vmatpush1.bf16.msra.mxu0 0
      %918 = vmatprep.subr.bf16.mxu0 0
      %919 = vmatpush1.bf16.msra.mxu0 0
      %920 = vmatprep.subr.bf16.mxu0 0
      %921 = vmatpush1.bf16.msra.mxu0 0
      %922 = vmatprep.subr.bf16.mxu0 0
      %923 = vmatpush1.bf16.msra.mxu0 0
      %924 = vmatprep.subr.bf16.mxu0 0
      %925 = vmatpush1.bf16.msra.mxu0 0
      %926 = vmatprep.subr.bf16.mxu0 0
      %927 = vmatpush1.bf16.msra.mxu0 0
      %928 = vmatprep.subr.bf16.mxu0 0
      %929 = vmatpush1.bf16.msra.mxu0 0
      %930 = vmatprep.subr.bf16.mxu0 0
      %931 = vmatpush1.bf16.msra.mxu0 0
      %932 = vmatprep.subr.bf16.mxu0 0
      %933 = vmatpush1.bf16.msra.mxu0 0
      %934 = vmatprep.subr.bf16.mxu0 0
      %935 = vmatpush1.bf16.msra.mxu0 0
      %936 = vmatprep.subr.bf16.mxu0 0
      %937 = vmatpush1.bf16.msra.mxu0 0
      %938 = vmatprep.subr.bf16.mxu0 0
      %939 = vmatpush1.bf16.msra.mxu0 0
      %940 = vmatprep.subr.bf16.mxu0 0
      %941 = vmatpush1.bf16.msra.mxu0 0
      %942 = vmatprep.mubr.bf16.mxu0 0
      %943 = vmatmul.mubr.bf16.gmra.mrb[0].mxu0 %v904
      %v944 = vpop.f32.mrb[0].mxu0
      %v945 = vadd.f32 %v892, %v944
      %v946 = vpop.f32.mrb[0].mxu0
      %v947 = vpop.f32.mrb[0].mxu0
      %v948 = vpop.f32.mrb[0].mxu0
      %949 = vdwg.mxu0
      %v951 = vlaneseq
      %v952 = vshrl.u32 %v951, 7
      %v953 = vsub.s32 0, %v952
      %v954 = vrot.slane %v79, %v953
      %v956 = vadd.f32 %v945, %v954
      %v957 = vadd.f32 %v956, %v660
      %v958 = vxor.u32 %v957, 2147483648
      %v959 = vmul.f32 %v958, 1.442695
      %v960 = vpow.pop %v959
      %v961 = vadd.f32 %v960, 1.0
      %v962 = vrcp.pop %v961
      %v963 = vmul.f32 1.0, %v962
      %965 = vrot.lane.b32.xlu0 %v660, 64
      %v966 = vpop.permute.xlu0 %965
      %v968 = vmul.f32 %v963, %v966
      %970 = vrot.lane.b32.xlu0 %v968, 64
      %v971 = vpop.permute.xlu0 %970
      %v973 = vadd.f32 %v956, %v971
      %v974 = vtanh.pop %v973
      %v975 = vsub.f32 1.0, %v963
      %977 = vrot.lane.b32.xlu0 %v974, 96
      %v978 = vpop.permute.xlu0 %977
      %v980 = vmul.f32 %v975, %v978
      %982 = vrot.lane.b32.xlu0 %v595, 32
      %v983 = vpop.permute.xlu0 %982
      %v985 = vmul.f32 %v963, %v983
      %v986 = vadd.f32 %v980, %v985
      %v987 = vpack.c.bf16 %v986, %v986
      %v989 = vlaneseq
      %v990 = vshrl.u32 %v989, 7
      %v991 = vsub.s32 0, %v990
      %v992 = vrot.slane %v80, %v991
      %995 = vrot.lane.b32.xlu0 %v987, 96
      %v996 = vpop.permute.xlu0 %995
      %v1001 = vunpack.c.l.b16 %v73
      %v1002 = vunpack.c.l.b16 %v74
      %v1003 = vunpack.c.l.b16 %v75
      %v1004 = vunpack.c.l.b16 %v76
      %v1005 = vpack.c.b16 %v1002, %v1001
      %v1006 = vpack.c.b16 %v1004, %v1003
      %v1010 = vsel %vm610, %v996, 0
      %1012 = vmatprep.subr.bf16.mxu0 0
      %1013 = vmatpush1.bf16.msra.mxu0 %v1005
      %1014 = vmatprep.subr.bf16.mxu0 0
      %1015 = vmatpush1.bf16.msra.mxu0 %v1006
      %1016 = vmatprep.subr.bf16.mxu0 0
      %1017 = vmatpush1.bf16.msra.mxu0 0
      %1018 = vmatprep.subr.bf16.mxu0 0
      %1019 = vmatpush1.bf16.msra.mxu0 0
      %1020 = vmatprep.subr.bf16.mxu0 0
      %1021 = vmatpush1.bf16.msra.mxu0 0
      %1022 = vmatprep.subr.bf16.mxu0 0
      %1023 = vmatpush1.bf16.msra.mxu0 0
      %1024 = vmatprep.subr.bf16.mxu0 0
      %1025 = vmatpush1.bf16.msra.mxu0 0
      %1026 = vmatprep.subr.bf16.mxu0 0
      %1027 = vmatpush1.bf16.msra.mxu0 0
      %1028 = vmatprep.subr.bf16.mxu0 0
      %1029 = vmatpush1.bf16.msra.mxu0 0
      %1030 = vmatprep.subr.bf16.mxu0 0
      %1031 = vmatpush1.bf16.msra.mxu0 0
      %1032 = vmatprep.subr.bf16.mxu0 0
      %1033 = vmatpush1.bf16.msra.mxu0 0
      %1034 = vmatprep.subr.bf16.mxu0 0
      %1035 = vmatpush1.bf16.msra.mxu0 0
      %1036 = vmatprep.subr.bf16.mxu0 0
      %1037 = vmatpush1.bf16.msra.mxu0 0
      %1038 = vmatprep.subr.bf16.mxu0 0
      %1039 = vmatpush1.bf16.msra.mxu0 0
      %1040 = vmatprep.subr.bf16.mxu0 0
      %1041 = vmatpush1.bf16.msra.mxu0 0
      %1042 = vmatprep.subr.bf16.mxu0 0
      %1043 = vmatpush1.bf16.msra.mxu0 0
      %1044 = vmatprep.mubr.bf16.mxu0 0
      %1045 = vmatmul.mubr.bf16.gmra.mrb[0].mxu0 %v1010
      %v1046 = vpop.f32.mrb[0].mxu0
      %v1047 = vadd.f32 %v992, %v1046
      %v1048 = vpop.f32.mrb[0].mxu0
      %v1049 = vpop.f32.mrb[0].mxu0
      %v1050 = vpop.f32.mrb[0].mxu0
      %1051 = vdwg.mxu0
      %v1052 = vsel %vm46, %v1047, -inf
      %1053 = vmax.xlane.f32.xlu0 %v1052
      %v1054 = vpop.xlane.xlu0 %1053
      %vm1055 = vcmp.eq.f32.partialorder %v1047, %v1054
      %v1056 = vsel %vm1055, %v43, 12
      %v1057 = vsel %vm46, %v1056, 2147483647
      %v1058 = vand.u32 %v1057, 65535
      %v1059 = vshra.s32 %v1057, 16
      %v1060 = vcvt.s32.f32 %v1058
      %v1061 = vcvt.s32.f32 %v1059
      %1062 = vmin.xlane.f32.xlu0 %v1061
      %v1063 = vpop.xlane.xlu0 %1062
      %vm1064 = vcmp.eq.f32.partialorder %v1061, %v1063
      %v1065 = vsel %vm1064, %v1060, inf
      %1066 = vmin.xlane.f32.xlu0 %v1065
      %v1067 = vpop.xlane.xlu0 %1066
      %v1068 = vcvt.f32.s32 %v1067
      %v1069 = vcvt.f32.s32 %v1063
      %v1070 = vshll.u32 %v1069, 16
      %v1071 = vadd.s32 %v1070, %v1068
      %vm1072 = vcmp.eq.s32.totalorder %v43, 1
      %v1073 = vld [vmem:[#allocation5] sm:$0x3]
      %v1074 = vsel %vm1072, %v1071, %v1073
      %1075 = vst.msk [vmem:[#allocation5] sm:$0x3] %vm50, %v1074
      %vm1076 = vcmp.eq.s32.totalorder %v1071, 0
      %v1077 = vsel %vm1076, 0.0, 1.0
      %vm1078 = vcmask 1024
      %v1079 = vsel %vm1078, %v1077, 0.0
      %1080 = vadd.xlane.f32.xlu0 %v1079
      %v1081 = vpop.xlane.xlu0 %1080
      %v1082 = vrot.slane %v1081, 4
      %v1083 = vadd.f32 %v1081, %v1082
      %v1084 = vrot.slane %v1083, 2
      %v1085 = vadd.f32 %v1083, %v1084
      %v1086 = vrot.slane %v1085, 1
      %v1087 = vadd.f32 %v1085, %v1086
      %s1088 = vtos %v1087
      %p1089 = scmp.eq.f32.partialorder %s1088, 0.0
      %s1090 = scalar_select %p1089, 1, 0
      %1091 = sst [smem:[%s48]] %s1090
      %1093 = vrot.lane.b32.xlu0 %v986, 96
      %v1094 = vpop.permute.xlu0 %1093
      %1096 = vst.msk [vmem:[#allocation2] sm:$0x3] %vm40, %v1094
      %vm1097 = vcmp.eq.s32.totalorder %v43, %v1071
      %v1098 = vsel %vm1097, 1.0, 0.0
      %1099 = vst.msk [vmem:[#allocation3] sm:$0x3] %vm46, %v1098
    $region53: #{attention_decoder_forward.21} parent=1 // pred_fallthru
      _
    %s1100 = sld [smem:[#allocation4]]
    %p1101 = scmp.eq.s32.totalorder %s1100, 0
    // Predicated region
    $region54: #{attention_decoder_forward.21} parent=1 // pred_check
      %p1102 = pneg %p1101
    $region55: #{attention_decoder_forward.21} parent=1 // pred_check_branch
      %1104 = sbr.rel (%p1102) target = $region57
    $region56: #{attention_decoder_forward.21} parent=1 // pred_region
      %v1105 = vld [vmem:[#allocation2] sm:$0x3]
      %v1106 = vld [vmem:[#allocation3] sm:$0x3]
      %v1107 = vpack.c.bf16 %v1105, %v1105
      %v1112 = vunpack.c.l.b16 %v61
      %v1113 = vunpack.c.l.b16 %v62
      %v1114 = vunpack.c.l.b16 %v63
      %v1115 = vunpack.c.l.b16 %v64
      %v1116 = vpack.c.b16 %v1113, %v1112
      %v1117 = vpack.c.b16 %v1115, %v1114
      %vm1120 = vcmask 261120
      %v1122 = vsel %vm1120, %v1107, 0
      %1124 = vmatprep.subr.bf16.mxu0 0
      %1125 = vmatpush1.bf16.msra.mxu0 %v1116
      %1126 = vmatprep.subr.bf16.mxu0 0
      %1127 = vmatpush1.bf16.msra.mxu0 %v1117
      %1128 = vmatprep.subr.bf16.mxu0 0
      %1129 = vmatpush1.bf16.msra.mxu0 0
      %1130 = vmatprep.subr.bf16.mxu0 0
      %1131 = vmatpush1.bf16.msra.mxu0 0
      %1132 = vmatprep.subr.bf16.mxu0 0
      %1133 = vmatpush1.bf16.msra.mxu0 0
      %1134 = vmatprep.subr.bf16.mxu0 0
      %1135 = vmatpush1.bf16.msra.mxu0 0
      %1136 = vmatprep.subr.bf16.mxu0 0
      %1137 = vmatpush1.bf16.msra.mxu0 0
      %1138 = vmatprep.subr.bf16.mxu0 0
      %1139 = vmatpush1.bf16.msra.mxu0 0
      %1140 = vmatprep.subr.bf16.mxu0 0
      %1141 = vmatpush1.bf16.msra.mxu0 0
      %1142 = vmatprep.subr.bf16.mxu0 0
      %1143 = vmatpush1.bf16.msra.mxu0 0
      %1144 = vmatprep.subr.bf16.mxu0 0
      %1145 = vmatpush1.bf16.msra.mxu0 0
      %1146 = vmatprep.subr.bf16.mxu0 0
      %1147 = vmatpush1.bf16.msra.mxu0 0
      %1148 = vmatprep.subr.bf16.mxu0 0
      %1149 = vmatpush1.bf16.msra.mxu0 0
      %1150 = vmatprep.subr.bf16.mxu0 0
      %1151 = vmatpush1.bf16.msra.mxu0 0
      %1152 = vmatprep.subr.bf16.mxu0 0
      %1153 = vmatpush1.bf16.msra.mxu0 0
      %1154 = vmatprep.subr.bf16.mxu0 0
      %1155 = vmatpush1.bf16.msra.mxu0 0
      %1156 = vmatprep.mubr.bf16.mxu0 0
      %1157 = vmatmul.mubr.bf16.gmra.mrb[0].mxu0 %v1122
      %v1158 = vpop.f32.mrb[0].mxu0
      %v1159 = vadd.f32 0.0, %v1158
      %v1160 = vpop.f32.mrb[0].mxu0
      %v1161 = vpop.f32.mrb[0].mxu0
      %v1162 = vpop.f32.mrb[0].mxu0
      %1163 = vdwg.mxu0
      %v1165 = vlaneseq
      %v1166 = vshrl.u32 %v1165, 7
      %v1167 = vsub.s32 0, %v1166
      %v1168 = vrot.slane %v77, %v1167
      %v1170 = vadd.f32 %v1159, %v1168
      %v1172 = vlaneseq
      %v1173 = vshrl.u32 %v1172, 7
      %v1174 = vsub.s32 0, %v1173
      %v1175 = vrot.slane %v78, %v1174
      %1176 = vrot.lane.b32.xlu0 %v1175, 96
      %v1177 = vpop.permute.xlu0 %1176
      %v1179 = vadd.f32 %v1159, %v1177
      %v1182 = vunpack.c.l.s4 1966171168
      %v1183 = vunpack.c.0.s8 %v1182
      %v1184 = vlaneseq
      %v1185 = vshrl.u32 %v1184, 7
      %v1186 = vsub.s32 %v1183, %v1185
      %v1187 = vrot.slane %v1179, %v1186
      %v1188 = vcombine.high %v1187, %v1187
      %v1190 = vunpack.c.l.s4 1966171168
      %v1191 = vunpack.c.0.s8 %v1190
      %v1192 = vlaneseq
      %v1193 = vshrl.u32 %v1192, 7
      %v1194 = vsub.s32 %v1191, %v1193
      %v1195 = vrot.slane %v1187, %v1194
      %v1197 = vunpack.c.l.s4 1966171168
      %v1198 = vunpack.c.0.s8 %v1197
      %v1199 = vlaneseq
      %v1200 = vshrl.u32 %v1199, 7
      %v1201 = vsub.s32 %v1198, %v1200
      %v1202 = vrot.slane %v1188, %v1201
      %v1203 = vlaneseq
      %v1204 = vshrl.u32 %v1203, 7
      %v1205 = vsub.s32 0, %v1204
      %v1206 = vrot.slane %v1195, %v1205
      %v1207 = vlaneseq
      %v1208 = vshrl.u32 %v1207, 7
      %v1209 = vsub.s32 0, %v1208
      %v1210 = vrot.slane %v1202, %v1209
      %1211 = vrot.lane.b32.xlu0 %v1206, 32
      %v1212 = vpop.permute.xlu0 %1211
      %1213 = vrot.lane.b32.xlu0 %v1210, 32
      %v1214 = vpop.permute.xlu0 %1213
      %v1217 = vadd.f32 %v58, %v1212
      %v1218 = vadd.f32 %v59, %v1214
      %v1219 = vtanh.pop %v1217
      %v1220 = vtanh.pop %v1218
      %v1222 = vlaneseq
      %v1223 = vshrl.u32 %v1222, 7
      %v1224 = vsub.s32 0, %v1223
      %v1225 = vrot.slane %v60, %v1224
      %v1227 = vmul.f32 %v1219, %v1225
      %v1228 = vmul.f32 %v1220, %v1225
      %v1229 = vsel %vm1120, %v1227, 0.0
      %1230 = vadd.xlane.f32.xlu0 %v1229
      %v1231 = vpop.xlane.xlu0 %1230
      %v1232 = vsel %vm1120, %v1228, 0.0
      %1233 = vadd.xlane.f32.xlu0 %v1232
      %v1234 = vpop.xlane.xlu0 %1233
      %v1237 = vlaneseq
      %v1238 = vshrl.u32 %v1237, 7
      %v1239 = vsub.s32 %v43, %v1238
      %v1240 = vrot.slane %v1231, %v1239
      %v1241 = vlaneseq
      %v1242 = vshrl.u32 %v1241, 7
      %v1243 = vsub.s32 %v43, %v1242
      %v1244 = vrot.slane %v1234, %v1243
      %vm1245 = vcmask 1041409
      %v1246 = vsel %vm1245, %v1244, %v1240
      %v1248 = vsel %vm50, %v1246, -inf
      %1249 = vmax.xlane.f32.xlu0 %v1248
      %v1250 = vpop.xlane.xlu0 %1249
      %v1252 = vlaneseq
      %v1253 = vshrl.u32 %v1252, 7
      %v1254 = vsub.s32 0, %v1253
      %v1255 = vrot.slane %v1250, %v1254
      %v1256 = vlaneseq
      %v1257 = vshrl.u32 %v1256, 7
      %v1258 = vsub.s32 1, %v1257
      %v1259 = vrot.slane %v1250, %v1258
      %v1262 = vsub.f32 %v1231, %v1255
      %v1263 = vsub.f32 %v1234, %v1259
      %v1264 = vmul.f32 %v1262, 1.442695
      %v1265 = vpow.pop %v1264
      %v1266 = vmul.f32 %v1263, 1.442695
      %v1267 = vpow.pop %v1266
      %1270 = vset.pattern.permute.xlu0 0
      %1271 = vperm.xlu0 %1270, %v1265
      %v1272 = vpop.permute.xlu0 %1271
      %1273 = vset.pattern.permute.xlu0 0
      %1274 = vperm.xlu0 %1273, %v1267
      %v1275 = vpop.permute.xlu0 %1274
      %v1276 = vlaneseq
      %v1277 = vshrl.u32 %v1276, 7
      %v1278 = vsub.s32 %v43, %v1277
      %v1279 = vrot.slane %v1272, %v1278
      %v1280 = vlaneseq
      %v1281 = vshrl.u32 %v1280, 7
      %v1282 = vsub.s32 %v43, %v1281
      %v1283 = vrot.slane %v1275, %v1282
      %v1284 = vsel %vm1245, %v1283, %v1279
      %v1286 = vsel %vm50, %v1284, 0.0
      %1287 = vadd.xlane.f32.xlu0 %v1286
      %v1288 = vpop.xlane.xlu0 %1287
      %v1290 = vlaneseq
      %v1291 = vshrl.u32 %v1290, 7
      %v1292 = vsub.s32 0, %v1291
      %v1293 = vrot.slane %v1288, %v1292
      %v1294 = vlaneseq
      %v1295 = vshrl.u32 %v1294, 7
      %v1296 = vsub.s32 1, %v1295
      %v1297 = vrot.slane %v1288, %v1296
      %v1300 = vrcp.pop %v1293
      %v1301 = vmul.f32 %v1265, %v1300
      %v1302 = vrcp.pop %v1297
      %v1303 = vmul.f32 %v1267, %v1302
      %1305 = vset.pattern.permute.xlu0 0
      %1306 = vperm.xlu0 %1305, %v1301
      %v1307 = vpop.permute.xlu0 %1306
      %1310 = vset.pattern.permute.xlu0 0
      %1311 = vperm.xlu0 %1310, %v1303
      %v1312 = vpop.permute.xlu0 %1311
      %v1314 = vmul.f32 %v1307, %v54
      %v1315 = vmul.f32 %v1312, %v55
      %vm1316 = vcmask 334848
      %v1317 = vsel %vm1316, %v1314, 0.0
      %v1318 = vrot.slane %v1317, 4
      %v1319 = vadd.f32 %v1317, %v1318
      %v1320 = vrot.slane %v1319, 2
      %v1321 = vadd.f32 %v1319, %v1320
      %v1322 = vrot.slane %v1321, 1
      %v1323 = vadd.f32 %v1321, %v1322
      %v1324 = vsel %vm1316, %v1315, 0.0
      %v1325 = vrot.slane %v1324, 4
      %v1326 = vadd.f32 %v1324, %v1325
      %v1327 = vrot.slane %v1326, 2
      %v1328 = vadd.f32 %v1326, %v1327
      %v1329 = vrot.slane %v1328, 1
      %v1330 = vadd.f32 %v1328, %v1329
      %v1331 = vpack.c.bf16 %v1106, %v1106
      %v1332 = vpack.c.bf16 %v1323, %v1323
      %v1333 = vpack.c.bf16 %v1330, %v1330
      %v1336 = vunpack.c.l.b16 %v1332
      %v1337 = vunpack.c.l.b16 %v1333
      %v1338 = vsel %vm1245, %v1337, %v1336
      %v1339 = vpack.c.b16 %v1338, %v1338
      %v1346 = vunpack.c.l.b16 %v67
      %v1347 = vunpack.c.l.b16 %v68
      %v1348 = vunpack.c.l.b16 %v69
      %v1349 = vunpack.c.l.b16 %v70
      %v1350 = vunpack.c.l.b16 %v71
      %v1351 = vunpack.c.l.b16 %v72
      %v1352 = vpack.c.b16 %v1347, %v1346
      %v1353 = vpack.c.b16 %v1349, %v1348
      %v1354 = vpack.c.b16 %v1351, %v1350
      %v1358 = vsel %vm1316, %v1339, 0
      %vm1360 = vcmask 1043456
      %vm1361 = vcmask 1044480
      %v1362 = vsel %vm1360, 4294967295, 65535
      %v1363 = vsel %vm1361, %v1362, 0
      %v1365 = vand.u32 %v1354, %v1363
      %1367 = vmatprep.subr.bf16.mxu0 0
      %1368 = vmatpush1.bf16.msra.mxu0 %v1352
      %1369 = vmatprep.subr.bf16.mxu0 0
      %1370 = vmatpush1.bf16.msra.mxu0 %v1353
      %1371 = vmatprep.subr.bf16.mxu0 0
      %1372 = vmatpush1.bf16.msra.mxu0 %v1365
      %1373 = vmatprep.subr.bf16.mxu0 0
      %1374 = vmatpush1.bf16.msra.mxu0 0
      %1375 = vmatprep.subr.bf16.mxu0 0
      %1376 = vmatpush1.bf16.msra.mxu0 0
      %1377 = vmatprep.subr.bf16.mxu0 0
      %1378 = vmatpush1.bf16.msra.mxu0 0
      %1379 = vmatprep.subr.bf16.mxu0 0
      %1380 = vmatpush1.bf16.msra.mxu0 0
      %1381 = vmatprep.subr.bf16.mxu0 0
      %1382 = vmatpush1.bf16.msra.mxu0 0
      %1383 = vmatprep.subr.bf16.mxu0 0
      %1384 = vmatpush1.bf16.msra.mxu0 0
      %1385 = vmatprep.subr.bf16.mxu0 0
      %1386 = vmatpush1.bf16.msra.mxu0 0
      %1387 = vmatprep.subr.bf16.mxu0 0
      %1388 = vmatpush1.bf16.msra.mxu0 0
      %1389 = vmatprep.subr.bf16.mxu0 0
      %1390 = vmatpush1.bf16.msra.mxu0 0
      %1391 = vmatprep.subr.bf16.mxu0 0
      %1392 = vmatpush1.bf16.msra.mxu0 0
      %1393 = vmatprep.subr.bf16.mxu0 0
      %1394 = vmatpush1.bf16.msra.mxu0 0
      %1395 = vmatprep.subr.bf16.mxu0 0
      %1396 = vmatpush1.bf16.msra.mxu0 0
      %1397 = vmatprep.subr.bf16.mxu0 0
      %1398 = vmatpush1.bf16.msra.mxu0 0
      %1399 = vmatprep.mubr.bf16.mxu0 0
      %1400 = vmatmul.mubr.bf16.gmra.mrb[0].mxu0 %v1358
      %v1401 = vpop.f32.mrb[0].mxu0
      %v1402 = vadd.f32 0.0, %v1401
      %v1403 = vpop.f32.mrb[0].mxu0
      %v1404 = vpop.f32.mrb[0].mxu0
      %v1405 = vpop.f32.mrb[0].mxu0
      %1406 = vdwg.mxu0
      %v1409 = vunpack.c.l.b16 %v65
      %v1410 = vunpack.c.l.b16 %v66
      %v1411 = vpack.c.b16 %v1410, %v1409
      %vm1412 = vcmask 97280
      %v1414 = vsel %vm1412, %v1331, 0
      %vm1416 = vcmask 1045504
      %v1418 = vsel %vm1416, %v1411, 0
      %1420 = vmatprep.subr.bf16.mxu0 0
      %1421 = vmatpush1.bf16.msra.mxu0 %v1418
      %1422 = vmatprep.subr.bf16.mxu0 0
      %1423 = vmatpush1.bf16.msra.mxu0 0
      %1424 = vmatprep.subr.bf16.mxu0 0
      %1425 = vmatpush1.bf16.msra.mxu0 0
      %1426 = vmatprep.subr.bf16.mxu0 0
      %1427 = vmatpush1.bf16.msra.mxu0 0
      %1428 = vmatprep.subr.bf16.mxu0 0
      %1429 = vmatpush1.bf16.msra.mxu0 0
      %1430 = vmatprep.subr.bf16.mxu0 0
      %1431 = vmatpush1.bf16.msra.mxu0 0
      %1432 = vmatprep.subr.bf16.mxu0 0
      %1433 = vmatpush1.bf16.msra.mxu0 0
      %1434 = vmatprep.subr.bf16.mxu0 0
      %1435 = vmatpush1.bf16.msra.mxu0 0
      %1436 = vmatprep.subr.bf16.mxu0 0
      %1437 = vmatpush1.bf16.msra.mxu0 0
      %1438 = vmatprep.subr.bf16.mxu0 0
      %1439 = vmatpush1.bf16.msra.mxu0 0
      %1440 = vmatprep.subr.bf16.mxu0 0
      %1441 = vmatpush1.bf16.msra.mxu0 0
      %1442 = vmatprep.subr.bf16.mxu0 0
      %1443 = vmatpush1.bf16.msra.mxu0 0
      %1444 = vmatprep.subr.bf16.mxu0 0
      %1445 = vmatpush1.bf16.msra.mxu0 0
      %1446 = vmatprep.subr.bf16.mxu0 0
      %1447 = vmatpush1.bf16.msra.mxu0 0
      %1448 = vmatprep.subr.bf16.mxu0 0
      %1449 = vmatpush1.bf16.msra.mxu0 0
      %1450 = vmatprep.subr.bf16.mxu0 0
      %1451 = vmatpush1.bf16.msra.mxu0 0
      %1452 = vmatprep.mubr.bf16.mxu0 0
      %1453 = vmatmul.mubr.bf16.gmra.mrb[0].mxu0 %v1414
      %v1454 = vpop.f32.mrb[0].mxu0
      %v1455 = vadd.f32 %v1402, %v1454
      %v1456 = vpop.f32.mrb[0].mxu0
      %v1457 = vpop.f32.mrb[0].mxu0
      %v1458 = vpop.f32.mrb[0].mxu0
      %1459 = vdwg.mxu0
      %v1461 = vlaneseq
      %v1462 = vshrl.u32 %v1461, 7
      %v1463 = vsub.s32 0, %v1462
      %v1464 = vrot.slane %v79, %v1463
      %v1466 = vadd.f32 %v1455, %v1464
      %v1467 = vadd.f32 %v1466, %v1170
      %v1468 = vxor.u32 %v1467, 2147483648
      %v1469 = vmul.f32 %v1468, 1.442695
      %v1470 = vpow.pop %v1469
      %v1471 = vadd.f32 %v1470, 1.0
      %v1472 = vrcp.pop %v1471
      %v1473 = vmul.f32 1.0, %v1472
      %1475 = vrot.lane.b32.xlu0 %v1170, 64
      %v1476 = vpop.permute.xlu0 %1475
      %v1478 = vmul.f32 %v1473, %v1476
      %1480 = vrot.lane.b32.xlu0 %v1478, 64
      %v1481 = vpop.permute.xlu0 %1480
      %v1483 = vadd.f32 %v1466, %v1481
      %v1484 = vtanh.pop %v1483
      %v1485 = vsub.f32 1.0, %v1473
      %1487 = vrot.lane.b32.xlu0 %v1484, 96
      %v1488 = vpop.permute.xlu0 %1487
      %v1490 = vmul.f32 %v1485, %v1488
      %1492 = vrot.lane.b32.xlu0 %v1105, 32
      %v1493 = vpop.permute.xlu0 %1492
      %v1495 = vmul.f32 %v1473, %v1493
      %v1496 = vadd.f32 %v1490, %v1495
      %v1497 = vpack.c.bf16 %v1496, %v1496
      %v1499 = vlaneseq
      %v1500 = vshrl.u32 %v1499, 7
      %v1501 = vsub.s32 0, %v1500
      %v1502 = vrot.slane %v80, %v1501
      %1505 = vrot.lane.b32.xlu0 %v1497, 96
      %v1506 = vpop.permute.xlu0 %1505
      %v1511 = vunpack.c.l.b16 %v73
      %v1512 = vunpack.c.l.b16 %v74
      %v1513 = vunpack.c.l.b16 %v75
      %v1514 = vunpack.c.l.b16 %v76
      %v1515 = vpack.c.b16 %v1512, %v1511
      %v1516 = vpack.c.b16 %v1514, %v1513
      %v1520 = vsel %vm1120, %v1506, 0
      %1522 = vmatprep.subr.bf16.mxu0 0
      %1523 = vmatpush1.bf16.msra.mxu0 %v1515
      %1524 = vmatprep.subr.bf16.mxu0 0
      %1525 = vmatpush1.bf16.msra.mxu0 %v1516
      %1526 = vmatprep.subr.bf16.mxu0 0
      %1527 = vmatpush1.bf16.msra.mxu0 0
      %1528 = vmatprep.subr.bf16.mxu0 0
      %1529 = vmatpush1.bf16.msra.mxu0 0
      %1530 = vmatprep.subr.bf16.mxu0 0
      %1531 = vmatpush1.bf16.msra.mxu0 0
      %1532 = vmatprep.subr.bf16.mxu0 0
      %1533 = vmatpush1.bf16.msra.mxu0 0
      %1534 = vmatprep.subr.bf16.mxu0 0
      %1535 = vmatpush1.bf16.msra.mxu0 0
      %1536 = vmatprep.subr.bf16.mxu0 0
      %1537 = vmatpush1.bf16.msra.mxu0 0
      %1538 = vmatprep.subr.bf16.mxu0 0
      %1539 = vmatpush1.bf16.msra.mxu0 0
      %1540 = vmatprep.subr.bf16.mxu0 0
      %1541 = vmatpush1.bf16.msra.mxu0 0
      %1542 = vmatprep.subr.bf16.mxu0 0
      %1543 = vmatpush1.bf16.msra.mxu0 0
      %1544 = vmatprep.subr.bf16.mxu0 0
      %1545 = vmatpush1.bf16.msra.mxu0 0
      %1546 = vmatprep.subr.bf16.mxu0 0
      %1547 = vmatpush1.bf16.msra.mxu0 0
      %1548 = vmatprep.subr.bf16.mxu0 0
      %1549 = vmatpush1.bf16.msra.mxu0 0
      %1550 = vmatprep.subr.bf16.mxu0 0
      %1551 = vmatpush1.bf16.msra.mxu0 0
      %1552 = vmatprep.subr.bf16.mxu0 0
      %1553 = vmatpush1.bf16.msra.mxu0 0
      %1554 = vmatprep.mubr.bf16.mxu0 0
      %1555 = vmatmul.mubr.bf16.gmra.mrb[0].mxu0 %v1520
      %v1556 = vpop.f32.mrb[0].mxu0
      %v1557 = vadd.f32 %v1502, %v1556
      %v1558 = vpop.f32.mrb[0].mxu0
      %v1559 = vpop.f32.mrb[0].mxu0
      %v1560 = vpop.f32.mrb[0].mxu0
      %1561 = vdwg.mxu0
      %v1562 = vsel %vm46, %v1557, -inf
      %1563 = vmax.xlane.f32.xlu0 %v1562
      %v1564 = vpop.xlane.xlu0 %1563
      %vm1565 = vcmp.eq.f32.partialorder %v1557, %v1564
      %v1566 = vsel %vm1565, %v43, 12
      %v1567 = vsel %vm46, %v1566, 2147483647
      %v1568 = vand.u32 %v1567, 65535
      %v1569 = vshra.s32 %v1567, 16
      %v1570 = vcvt.s32.f32 %v1568
      %v1571 = vcvt.s32.f32 %v1569
      %1572 = vmin.xlane.f32.xlu0 %v1571
      %v1573 = vpop.xlane.xlu0 %1572
      %vm1574 = vcmp.eq.f32.partialorder %v1571, %v1573
      %v1575 = vsel %vm1574, %v1570, inf
      %1576 = vmin.xlane.f32.xlu0 %v1575
      %v1577 = vpop.xlane.xlu0 %1576
      %v1578 = vcvt.f32.s32 %v1577
      %v1579 = vcvt.f32.s32 %v1573
      %v1580 = vshll.u32 %v1579, 16
      %v1581 = vadd.s32 %v1580, %v1578
      %vm1582 = vcmp.eq.s32.totalorder %v43, 2
      %v1583 = vld [vmem:[#allocation5] sm:$0x3]
      %v1584 = vsel %vm1582, %v1581, %v1583
      %1585 = vst.msk [vmem:[#allocation5] sm:$0x3] %vm50, %v1584
      %vm1586 = vcmp.eq.s32.totalorder %v1581, 0
      %v1587 = vsel %vm1586, 0.0, 1.0
      %vm1588 = vcmask 1024
      %v1589 = vsel %vm1588, %v1587, 0.0
      %1590 = vadd.xlane.f32.xlu0 %v1589
      %v1591 = vpop.xlane.xlu0 %1590
      %v1592 = vrot.slane %v1591, 4
      %v1593 = vadd.f32 %v1591, %v1592
      %v1594 = vrot.slane %v1593, 2
      %v1595 = vadd.f32 %v1593, %v1594
      %v1596 = vrot.slane %v1595, 1
      %v1597 = vadd.f32 %v1595, %v1596
      %s1598 = vtos %v1597
      %p1599 = scmp.eq.f32.partialorder %s1598, 0.0
      %s1600 = scalar_select %p1599, 1, 0
      %1601 = sst [smem:[%s48]] %s1600
      %1603 = vrot.lane.b32.xlu0 %v1496, 96
      %v1604 = vpop.permute.xlu0 %1603
      %1606 = vst.msk [vmem:[#allocation2] sm:$0x3] %vm40, %v1604
      %vm1607 = vcmp.eq.s32.totalorder %v43, %v1581
      %v1608 = vsel %vm1607, 1.0, 0.0
      %1609 = vst.msk [vmem:[#allocation3] sm:$0x3] %vm46, %v1608
    $region57: #{attention_decoder_forward.21} parent=1 // pred_fallthru
      _
    %s1610 = sld [smem:[#allocation4]]
    %p1611 = scmp.eq.s32.totalorder %s1610, 0
    // Predicated region
    $region58: #{attention_decoder_forward.21} parent=1 // pred_check
      %p1612 = pneg %p1611
    $region59: #{attention_decoder_forward.21} parent=1 // pred_check_branch
      %1614 = sbr.rel (%p1612) target = $region61
    $region60: #{attention_decoder_forward.21} parent=1 // pred_region
      %v1615 = vld [vmem:[#allocation2] sm:$0x3]
      %v1616 = vld [vmem:[#allocation3] sm:$0x3]
      %v1617 = vpack.c.bf16 %v1615, %v1615
      %v1622 = vunpack.c.l.b16 %v61
      %v1623 = vunpack.c.l.b16 %v62
      %v1624 = vunpack.c.l.b16 %v63
      %v1625 = vunpack.c.l.b16 %v64
      %v1626 = vpack.c.b16 %v1623, %v1622
      %v1627 = vpack.c.b16 %v1625, %v1624
      %vm1630 = vcmask 261120
      %v1632 = vsel %vm1630, %v1617, 0
      %1634 = vmatprep.subr.bf16.mxu0 0
      %1635 = vmatpush1.bf16.msra.mxu0 %v1626
      %1636 = vmatprep.subr.bf16.mxu0 0
      %1637 = vmatpush1.bf16.msra.mxu0 %v1627
      %1638 = vmatprep.subr.bf16.mxu0 0
      %1639 = vmatpush1.bf16.msra.mxu0 0
      %1640 = vmatprep.subr.bf16.mxu0 0
      %1641 = vmatpush1.bf16.msra.mxu0 0
      %1642 = vmatprep.subr.bf16.mxu0 0
      %1643 = vmatpush1.bf16.msra.mxu0 0
      %1644 = vmatprep.subr.bf16.mxu0 0
      %1645 = vmatpush1.bf16.msra.mxu0 0
      %1646 = vmatprep.subr.bf16.mxu0 0
      %1647 = vmatpush1.bf16.msra.mxu0 0
      %1648 = vmatprep.subr.bf16.mxu0 0
      %1649 = vmatpush1.bf16.msra.mxu0 0
      %1650 = vmatprep.subr.bf16.mxu0 0
      %1651 = vmatpush1.bf16.msra.mxu0 0
      %1652 = vmatprep.subr.bf16.mxu0 0
      %1653 = vmatpush1.bf16.msra.mxu0 0
      %1654 = vmatprep.subr.bf16.mxu0 0
      %1655 = vmatpush1.bf16.msra.mxu0 0
      %1656 = vmatprep.subr.bf16.mxu0 0
      %1657 = vmatpush1.bf16.msra.mxu0 0
      %1658 = vmatprep.subr.bf16.mxu0 0
      %1659 = vmatpush1.bf16.msra.mxu0 0
      %1660 = vmatprep.subr.bf16.mxu0 0
      %1661 = vmatpush1.bf16.msra.mxu0 0
      %1662 = vmatprep.subr.bf16.mxu0 0
      %1663 = vmatpush1.bf16.msra.mxu0 0
      %1664 = vmatprep.subr.bf16.mxu0 0
      %1665 = vmatpush1.bf16.msra.mxu0 0
      %1666 = vmatprep.mubr.bf16.mxu0 0
      %1667 = vmatmul.mubr.bf16.gmra.mrb[0].mxu0 %v1632
      %v1668 = vpop.f32.mrb[0].mxu0
      %v1669 = vadd.f32 0.0, %v1668
      %v1670 = vpop.f32.mrb[0].mxu0
      %v1671 = vpop.f32.mrb[0].mxu0
      %v1672 = vpop.f32.mrb[0].mxu0
      %1673 = vdwg.mxu0
      %v1675 = vlaneseq
      %v1676 = vshrl.u32 %v1675, 7
      %v1677 = vsub.s32 0, %v1676
      %v1678 = vrot.slane %v77, %v1677
      %v1680 = vadd.f32 %v1669, %v1678
      %v1682 = vlaneseq
      %v1683 = vshrl.u32 %v1682, 7
      %v1684 = vsub.s32 0, %v1683
      %v1685 = vrot.slane %v78, %v1684
      %1686 = vrot.lane.b32.xlu0 %v1685, 96
      %v1687 = vpop.permute.xlu0 %1686
      %v1689 = vadd.f32 %v1669, %v1687
      %v1692 = vunpack.c.l.s4 1966171168
      %v1693 = vunpack.c.0.s8 %v1692
      %v1694 = vlaneseq
      %v1695 = vshrl.u32 %v1694, 7
      %v1696 = vsub.s32 %v1693, %v1695
      %v1697 = vrot.slane %v1689, %v1696
      %v1698 = vcombine.high %v1697, %v1697
      %v1700 = vunpack.c.l.s4 1966171168
      %v1701 = vunpack.c.0.s8 %v1700
      %v1702 = vlaneseq
      %v1703 = vshrl.u32 %v1702, 7
      %v1704 = vsub.s32 %v1701, %v1703
      %v1705 = vrot.slane %v1697, %v1704
      %v1707 = vunpack.c.l.s4 1966171168
      %v1708 = vunpack.c.0.s8 %v1707
      %v1709 = vlaneseq
      %v1710 = vshrl.u32 %v1709, 7
      %v1711 = vsub.s32 %v1708, %v1710
      %v1712 = vrot.slane %v1698, %v1711
      %v1713 = vlaneseq
      %v1714 = vshrl.u32 %v1713, 7
      %v1715 = vsub.s32 0, %v1714
      %v1716 = vrot.slane %v1705, %v1715
      %v1717 = vlaneseq
      %v1718 = vshrl.u32 %v1717, 7
      %v1719 = vsub.s32 0, %v1718
      %v1720 = vrot.slane %v1712, %v1719
      %1721 = vrot.lane.b32.xlu0 %v1716, 32
      %v1722 = vpop.permute.xlu0 %1721
      %1723 = vrot.lane.b32.xlu0 %v1720, 32
      %v1724 = vpop.permute.xlu0 %1723
      %v1727 = vadd.f32 %v58, %v1722
      %v1728 = vadd.f32 %v59, %v1724
      %v1729 = vtanh.pop %v1727
      %v1730 = vtanh.pop %v1728
      %v1732 = vlaneseq
      %v1733 = vshrl.u32 %v1732, 7
      %v1734 = vsub.s32 0, %v1733
      %v1735 = vrot.slane %v60, %v1734
      %v1737 = vmul.f32 %v1729, %v1735
      %v1738 = vmul.f32 %v1730, %v1735
      %v1739 = vsel %vm1630, %v1737, 0.0
      %1740 = vadd.xlane.f32.xlu0 %v1739
      %v1741 = vpop.xlane.xlu0 %1740
      %v1742 = vsel %vm1630, %v1738, 0.0
      %1743 = vadd.xlane.f32.xlu0 %v1742
      %v1744 = vpop.xlane.xlu0 %1743
      %v1747 = vlaneseq
      %v1748 = vshrl.u32 %v1747, 7
      %v1749 = vsub.s32 %v43, %v1748
      %v1750 = vrot.slane %v1741, %v1749
      %v1751 = vlaneseq
      %v1752 = vshrl.u32 %v1751, 7
      %v1753 = vsub.s32 %v43, %v1752
      %v1754 = vrot.slane %v1744, %v1753
      %vm1755 = vcmask 1041409
      %v1756 = vsel %vm1755, %v1754, %v1750
      %v1758 = vsel %vm50, %v1756, -inf
      %1759 = vmax.xlane.f32.xlu0 %v1758
      %v1760 = vpop.xlane.xlu0 %1759
      %v1762 = vlaneseq
      %v1763 = vshrl.u32 %v1762, 7
      %v1764 = vsub.s32 0, %v1763
      %v1765 = vrot.slane %v1760, %v1764
      %v1766 = vlaneseq
      %v1767 = vshrl.u32 %v1766, 7
      %v1768 = vsub.s32 1, %v1767
      %v1769 = vrot.slane %v1760, %v1768
      %v1772 = vsub.f32 %v1741, %v1765
      %v1773 = vsub.f32 %v1744, %v1769
      %v1774 = vmul.f32 %v1772, 1.442695
      %v1775 = vpow.pop %v1774
      %v1776 = vmul.f32 %v1773, 1.442695
      %v1777 = vpow.pop %v1776
      %1780 = vset.pattern.permute.xlu0 0
      %1781 = vperm.xlu0 %1780, %v1775
      %v1782 = vpop.permute.xlu0 %1781
      %1783 = vset.pattern.permute.xlu0 0
      %1784 = vperm.xlu0 %1783, %v1777
      %v1785 = vpop.permute.xlu0 %1784
      %v1786 = vlaneseq
      %v1787 = vshrl.u32 %v1786, 7
      %v1788 = vsub.s32 %v43, %v1787
      %v1789 = vrot.slane %v1782, %v1788
      %v1790 = vlaneseq
      %v1791 = vshrl.u32 %v1790, 7
      %v1792 = vsub.s32 %v43, %v1791
      %v1793 = vrot.slane %v1785, %v1792
      %v1794 = vsel %vm1755, %v1793, %v1789
      %v1796 = vsel %vm50, %v1794, 0.0
      %1797 = vadd.xlane.f32.xlu0 %v1796
      %v1798 = vpop.xlane.xlu0 %1797
      %v1800 = vlaneseq
      %v1801 = vshrl.u32 %v1800, 7
      %v1802 = vsub.s32 0, %v1801
      %v1803 = vrot.slane %v1798, %v1802
      %v1804 = vlaneseq
      %v1805 = vshrl.u32 %v1804, 7
      %v1806 = vsub.s32 1, %v1805
      %v1807 = vrot.slane %v1798, %v1806
      %v1810 = vrcp.pop %v1803
      %v1811 = vmul.f32 %v1775, %v1810
      %v1812 = vrcp.pop %v1807
      %v1813 = vmul.f32 %v1777, %v1812
      %1815 = vset.pattern.permute.xlu0 0
      %1816 = vperm.xlu0 %1815, %v1811
      %v1817 = vpop.permute.xlu0 %1816
      %1820 = vset.pattern.permute.xlu0 0
      %1821 = vperm.xlu0 %1820, %v1813
      %v1822 = vpop.permute.xlu0 %1821
      %v1824 = vmul.f32 %v1817, %v54
      %v1825 = vmul.f32 %v1822, %v55
      %vm1826 = vcmask 334848
      %v1827 = vsel %vm1826, %v1824, 0.0
      %v1828 = vrot.slane %v1827, 4
      %v1829 = vadd.f32 %v1827, %v1828
      %v1830 = vrot.slane %v1829, 2
      %v1831 = vadd.f32 %v1829, %v1830
      %v1832 = vrot.slane %v1831, 1
      %v1833 = vadd.f32 %v1831, %v1832
      %v1834 = vsel %vm1826, %v1825, 0.0
      %v1835 = vrot.slane %v1834, 4
      %v1836 = vadd.f32 %v1834, %v1835
      %v1837 = vrot.slane %v1836, 2
      %v1838 = vadd.f32 %v1836, %v1837
      %v1839 = vrot.slane %v1838, 1
      %v1840 = vadd.f32 %v1838, %v1839
      %v1841 = vpack.c.bf16 %v1616, %v1616
      %v1842 = vpack.c.bf16 %v1833, %v1833
      %v1843 = vpack.c.bf16 %v1840, %v1840
      %v1846 = vunpack.c.l.b16 %v1842
      %v1847 = vunpack.c.l.b16 %v1843
      %v1848 = vsel %vm1755, %v1847, %v1846
      %v1849 = vpack.c.b16 %v1848, %v1848
      %v1856 = vunpack.c.l.b16 %v67
      %v1857 = vunpack.c.l.b16 %v68
      %v1858 = vunpack.c.l.b16 %v69
      %v1859 = vunpack.c.l.b16 %v70
      %v1860 = vunpack.c.l.b16 %v71
      %v1861 = vunpack.c.l.b16 %v72
      %v1862 = vpack.c.b16 %v1857, %v1856
      %v1863 = vpack.c.b16 %v1859, %v1858
      %v1864 = vpack.c.b16 %v1861, %v1860
      %v1868 = vsel %vm1826, %v1849, 0
      %vm1870 = vcmask 1043456
      %vm1871 = vcmask 1044480
      %v1872 = vsel %vm1870, 4294967295, 65535
      %v1873 = vsel %vm1871, %v1872, 0
      %v1875 = vand.u32 %v1864, %v1873
      %1877 = vmatprep.subr.bf16.mxu0 0
      %1878 = vmatpush1.bf16.msra.mxu0 %v1862
      %1879 = vmatprep.subr.bf16.mxu0 0
      %1880 = vmatpush1.bf16.msra.mxu0 %v1863
      %1881 = vmatprep.subr.bf16.mxu0 0
      %1882 = vmatpush1.bf16.msra.mxu0 %v1875
      %1883 = vmatprep.subr.bf16.mxu0 0
      %1884 = vmatpush1.bf16.msra.mxu0 0
      %1885 = vmatprep.subr.bf16.mxu0 0
      %1886 = vmatpush1.bf16.msra.mxu0 0
      %1887 = vmatprep.subr.bf16.mxu0 0
      %1888 = vmatpush1.bf16.msra.mxu0 0
      %1889 = vmatprep.subr.bf16.mxu0 0
      %1890 = vmatpush1.bf16.msra.mxu0 0
      %1891 = vmatprep.subr.bf16.mxu0 0
      %1892 = vmatpush1.bf16.msra.mxu0 0
      %1893 = vmatprep.subr.bf16.mxu0 0
      %1894 = vmatpush1.bf16.msra.mxu0 0
      %1895 = vmatprep.subr.bf16.mxu0 0
      %1896 = vmatpush1.bf16.msra.mxu0 0
      %1897 = vmatprep.subr.bf16.mxu0 0
      %1898 = vmatpush1.bf16.msra.mxu0 0
      %1899 = vmatprep.subr.bf16.mxu0 0
      %1900 = vmatpush1.bf16.msra.mxu0 0
      %1901 = vmatprep.subr.bf16.mxu0 0
      %1902 = vmatpush1.bf16.msra.mxu0 0
      %1903 = vmatprep.subr.bf16.mxu0 0
      %1904 = vmatpush1.bf16.msra.mxu0 0
      %1905 = vmatprep.subr.bf16.mxu0 0
      %1906 = vmatpush1.bf16.msra.mxu0 0
      %1907 = vmatprep.subr.bf16.mxu0 0
      %1908 = vmatpush1.bf16.msra.mxu0 0
      %1909 = vmatprep.mubr.bf16.mxu0 0
      %1910 = vmatmul.mubr.bf16.gmra.mrb[0].mxu0 %v1868
      %v1911 = vpop.f32.mrb[0].mxu0
      %v1912 = vadd.f32 0.0, %v1911
      %v1913 = vpop.f32.mrb[0].mxu0
      %v1914 = vpop.f32.mrb[0].mxu0
      %v1915 = vpop.f32.mrb[0].mxu0
      %1916 = vdwg.mxu0
      %v1919 = vunpack.c.l.b16 %v65
      %v1920 = vunpack.c.l.b16 %v66
      %v1921 = vpack.c.b16 %v1920, %v1919
      %vm1922 = vcmask 97280
      %v1924 = vsel %vm1922, %v1841, 0
      %vm1926 = vcmask 1045504
      %v1928 = vsel %vm1926, %v1921, 0
      %1930 = vmatprep.subr.bf16.mxu0 0
      %1931 = vmatpush1.bf16.msra.mxu0 %v1928
      %1932 = vmatprep.subr.bf16.mxu0 0
      %1933 = vmatpush1.bf16.msra.mxu0 0
      %1934 = vmatprep.subr.bf16.mxu0 0
      %1935 = vmatpush1.bf16.msra.mxu0 0
      %1936 = vmatprep.subr.bf16.mxu0 0
      %1937 = vmatpush1.bf16.msra.mxu0 0
      %1938 = vmatprep.subr.bf16.mxu0 0
      %1939 = vmatpush1.bf16.msra.mxu0 0
      %1940 = vmatprep.subr.bf16.mxu0 0
      %1941 = vmatpush1.bf16.msra.mxu0 0
      %1942 = vmatprep.subr.bf16.mxu0 0
      %1943 = vmatpush1.bf16.msra.mxu0 0
      %1944 = vmatprep.subr.bf16.mxu0 0
      %1945 = vmatpush1.bf16.msra.mxu0 0
      %1946 = vmatprep.subr.bf16.mxu0 0
      %1947 = vmatpush1.bf16.msra.mxu0 0
      %1948 = vmatprep.subr.bf16.mxu0 0
      %1949 = vmatpush1.bf16.msra.mxu0 0
      %1950 = vmatprep.subr.bf16.mxu0 0
      %1951 = vmatpush1.bf16.msra.mxu0 0
      %1952 = vmatprep.subr.bf16.mxu0 0
      %1953 = vmatpush1.bf16.msra.mxu0 0
      %1954 = vmatprep.subr.bf16.mxu0 0
      %1955 = vmatpush1.bf16.msra.mxu0 0
      %1956 = vmatprep.subr.bf16.mxu0 0
      %1957 = vmatpush1.bf16.msra.mxu0 0
      %1958 = vmatprep.subr.bf16.mxu0 0
      %1959 = vmatpush1.bf16.msra.mxu0 0
      %1960 = vmatprep.subr.bf16.mxu0 0
      %1961 = vmatpush1.bf16.msra.mxu0 0
      %1962 = vmatprep.mubr.bf16.mxu0 0
      %1963 = vmatmul.mubr.bf16.gmra.mrb[0].mxu0 %v1924
      %v1964 = vpop.f32.mrb[0].mxu0
      %v1965 = vadd.f32 %v1912, %v1964
      %v1966 = vpop.f32.mrb[0].mxu0
      %v1967 = vpop.f32.mrb[0].mxu0
      %v1968 = vpop.f32.mrb[0].mxu0
      %1969 = vdwg.mxu0
      %v1971 = vlaneseq
      %v1972 = vshrl.u32 %v1971, 7
      %v1973 = vsub.s32 0, %v1972
      %v1974 = vrot.slane %v79, %v1973
      %v1976 = vadd.f32 %v1965, %v1974
      %v1977 = vadd.f32 %v1976, %v1680
      %v1978 = vxor.u32 %v1977, 2147483648
      %v1979 = vmul.f32 %v1978, 1.442695
      %v1980 = vpow.pop %v1979
      %v1981 = vadd.f32 %v1980, 1.0
      %v1982 = vrcp.pop %v1981
      %v1983 = vmul.f32 1.0, %v1982
      %1985 = vrot.lane.b32.xlu0 %v1680, 64
      %v1986 = vpop.permute.xlu0 %1985
      %v1988 = vmul.f32 %v1983, %v1986
      %1990 = vrot.lane.b32.xlu0 %v1988, 64
      %v1991 = vpop.permute.xlu0 %1990
      %v1993 = vadd.f32 %v1976, %v1991
      %v1994 = vtanh.pop %v1993
      %v1995 = vsub.f32 1.0, %v1983
      %1997 = vrot.lane.b32.xlu0 %v1994, 96
      %v1998 = vpop.permute.xlu0 %1997
      %v2000 = vmul.f32 %v1995, %v1998
      %2002 = vrot.lane.b32.xlu0 %v1615, 32
      %v2003 = vpop.permute.xlu0 %2002
      %v2005 = vmul.f32 %v1983, %v2003
      %v2006 = vadd.f32 %v2000, %v2005
      %v2007 = vpack.c.bf16 %v2006, %v2006
      %v2009 = vlaneseq
      %v2010 = vshrl.u32 %v2009, 7
      %v2011 = vsub.s32 0, %v2010
      %v2012 = vrot.slane %v80, %v2011
      %2015 = vrot.lane.b32.xlu0 %v2007, 96
      %v2016 = vpop.permute.xlu0 %2015
      %v2021 = vunpack.c.l.b16 %v73
      %v2022 = vunpack.c.l.b16 %v74
      %v2023 = vunpack.c.l.b16 %v75
      %v2024 = vunpack.c.l.b16 %v76
      %v2025 = vpack.c.b16 %v2022, %v2021
      %v2026 = vpack.c.b16 %v2024, %v2023
      %v2030 = vsel %vm1630, %v2016, 0
      %2032 = vmatprep.subr.bf16.mxu0 0
      %2033 = vmatpush1.bf16.msra.mxu0 %v2025
      %2034 = vmatprep.subr.bf16.mxu0 0
      %2035 = vmatpush1.bf16.msra.mxu0 %v2026
      %2036 = vmatprep.subr.bf16.mxu0 0
      %2037 = vmatpush1.bf16.msra.mxu0 0
      %2038 = vmatprep.subr.bf16.mxu0 0
      %2039 = vmatpush1.bf16.msra.mxu0 0
      %2040 = vmatprep.subr.bf16.mxu0 0
      %2041 = vmatpush1.bf16.msra.mxu0 0
      %2042 = vmatprep.subr.bf16.mxu0 0
      %2043 = vmatpush1.bf16.msra.mxu0 0
      %2044 = vmatprep.subr.bf16.mxu0 0
      %2045 = vmatpush1.bf16.msra.mxu0 0
      %2046 = vmatprep.subr.bf16.mxu0 0
      %2047 = vmatpush1.bf16.msra.mxu0 0
      %2048 = vmatprep.subr.bf16.mxu0 0
      %2049 = vmatpush1.bf16.msra.mxu0 0
      %2050 = vmatprep.subr.bf16.mxu0 0
      %2051 = vmatpush1.bf16.msra.mxu0 0
      %2052 = vmatprep.subr.bf16.mxu0 0
      %2053 = vmatpush1.bf16.msra.mxu0 0
      %2054 = vmatprep.subr.bf16.mxu0 0
      %2055 = vmatpush1.bf16.msra.mxu0 0
      %2056 = vmatprep.subr.bf16.mxu0 0
      %2057 = vmatpush1.bf16.msra.mxu0 0
      %2058 = vmatprep.subr.bf16.mxu0 0
      %2059 = vmatpush1.bf16.msra.mxu0 0
      %2060 = vmatprep.subr.bf16.mxu0 0
      %2061 = vmatpush1.bf16.msra.mxu0 0
      %2062 = vmatprep.subr.bf16.mxu0 0
      %2063 = vmatpush1.bf16.msra.mxu0 0
      %2064 = vmatprep.mubr.bf16.mxu0 0
      %2065 = vmatmul.mubr.bf16.gmra.mrb[0].mxu0 %v2030
      %v2066 = vpop.f32.mrb[0].mxu0
      %v2067 = vadd.f32 %v2012, %v2066
      %v2068 = vpop.f32.mrb[0].mxu0
      %v2069 = vpop.f32.mrb[0].mxu0
      %v2070 = vpop.f32.mrb[0].mxu0
      %2071 = vdwg.mxu0
      %v2072 = vsel %vm46, %v2067, -inf
      %2073 = vmax.xlane.f32.xlu0 %v2072
      %v2074 = vpop.xlane.xlu0 %2073
      %vm2075 = vcmp.eq.f32.partialorder %v2067, %v2074
      %v2076 = vsel %vm2075, %v43, 12
      %v2077 = vsel %vm46, %v2076, 2147483647
      %v2078 = vand.u32 %v2077, 65535
      %v2079 = vshra.s32 %v2077, 16
      %v2080 = vcvt.s32.f32 %v2078
      %v2081 = vcvt.s32.f32 %v2079
      %2082 = vmin.xlane.f32.xlu0 %v2081
      %v2083 = vpop.xlane.xlu0 %2082
      %vm2084 = vcmp.eq.f32.partialorder %v2081, %v2083
      %v2085 = vsel %vm2084, %v2080, inf
      %2086 = vmin.xlane.f32.xlu0 %v2085
      %v2087 = vpop.xlane.xlu0 %2086
      %v2088 = vcvt.f32.s32 %v2087
      %v2089 = vcvt.f32.s32 %v2083
      %v2090 = vshll.u32 %v2089, 16
      %v2091 = vadd.s32 %v2090, %v2088
      %vm2092 = vcmp.eq.s32.totalorder %v43, 3
      %v2093 = vld [vmem:[#allocation5] sm:$0x3]
      %v2094 = vsel %vm2092, %v2091, %v2093
      %2095 = vst.msk [vmem:[#allocation5] sm:$0x3] %vm50, %v2094
      %vm2096 = vcmp.eq.s32.totalorder %v2091, 0
      %v2097 = vsel %vm2096, 0.0, 1.0
      %vm2098 = vcmask 1024
      %v2099 = vsel %vm2098, %v2097, 0.0
      %2100 = vadd.xlane.f32.xlu0 %v2099
      %v2101 = vpop.xlane.xlu0 %2100
      %v2102 = vrot.slane %v2101, 4
      %v2103 = vadd.f32 %v2101, %v2102
      %v2104 = vrot.slane %v2103, 2
      %v2105 = vadd.f32 %v2103, %v2104
      %v2106 = vrot.slane %v2105, 1
      %v2107 = vadd.f32 %v2105, %v2106
      %s2108 = vtos %v2107
      %p2109 = scmp.eq.f32.partialorder %s2108, 0.0
      %s2110 = scalar_select %p2109, 1, 0
      %2111 = sst [smem:[%s48]] %s2110
      %2113 = vrot.lane.b32.xlu0 %v2006, 96
      %v2114 = vpop.permute.xlu0 %2113
      %2116 = vst.msk [vmem:[#allocation2] sm:$0x3] %vm40, %v2114
      %vm2117 = vcmp.eq.s32.totalorder %v43, %v2091
      %v2118 = vsel %vm2117, 1.0, 0.0
      %2119 = vst.msk [vmem:[#allocation3] sm:$0x3] %vm46, %v2118
    $region61: #{attention_decoder_forward.21} parent=1 // pred_fallthru
      _
    %s2120 = sld [smem:[#allocation4]]
    %p2121 = scmp.eq.s32.totalorder %s2120, 0
    // Predicated region
    $region62: #{attention_decoder_forward.21} parent=1 // pred_check
      %p2122 = pneg %p2121
    $region63: #{attention_decoder_forward.21} parent=1 // pred_check_branch
      %2124 = sbr.rel (%p2122) target = $region65
    $region64: #{attention_decoder_forward.21} parent=1 // pred_region
      %v2125 = vld [vmem:[#allocation2] sm:$0x3]
      %v2126 = vld [vmem:[#allocation3] sm:$0x3]
      %v2127 = vpack.c.bf16 %v2125, %v2125
      %v2132 = vunpack.c.l.b16 %v61
      %v2133 = vunpack.c.l.b16 %v62
      %v2134 = vunpack.c.l.b16 %v63
      %v2135 = vunpack.c.l.b16 %v64
      %v2136 = vpack.c.b16 %v2133, %v2132
      %v2137 = vpack.c.b16 %v2135, %v2134
      %vm2140 = vcmask 261120
      %v2142 = vsel %vm2140, %v2127, 0
      %2144 = vmatprep.subr.bf16.mxu0 0
      %2145 = vmatpush1.bf16.msra.mxu0 %v2136
      %2146 = vmatprep.subr.bf16.mxu0 0
      %2147 = vmatpush1.bf16.msra.mxu0 %v2137
      %2148 = vmatprep.subr.bf16.mxu0 0
      %2149 = vmatpush1.bf16.msra.mxu0 0
      %2150 = vmatprep.subr.bf16.mxu0 0
      %2151 = vmatpush1.bf16.msra.mxu0 0
      %2152 = vmatprep.subr.bf16.mxu0 0
      %2153 = vmatpush1.bf16.msra.mxu0 0
      %2154 = vmatprep.subr.bf16.mxu0 0
      %2155 = vmatpush1.bf16.msra.mxu0 0
      %2156 = vmatprep.subr.bf16.mxu0 0
      %2157 = vmatpush1.bf16.msra.mxu0 0
      %2158 = vmatprep.subr.bf16.mxu0 0
      %2159 = vmatpush1.bf16.msra.mxu0 0
      %2160 = vmatprep.subr.bf16.mxu0 0
      %2161 = vmatpush1.bf16.msra.mxu0 0
      %2162 = vmatprep.subr.bf16.mxu0 0
      %2163 = vmatpush1.bf16.msra.mxu0 0
      %2164 = vmatprep.subr.bf16.mxu0 0
      %2165 = vmatpush1.bf16.msra.mxu0 0
      %2166 = vmatprep.subr.bf16.mxu0 0
      %2167 = vmatpush1.bf16.msra.mxu0 0
      %2168 = vmatprep.subr.bf16.mxu0 0
      %2169 = vmatpush1.bf16.msra.mxu0 0
      %2170 = vmatprep.subr.bf16.mxu0 0
      %2171 = vmatpush1.bf16.msra.mxu0 0
      %2172 = vmatprep.subr.bf16.mxu0 0
      %2173 = vmatpush1.bf16.msra.mxu0 0
      %2174 = vmatprep.subr.bf16.mxu0 0
      %2175 = vmatpush1.bf16.msra.mxu0 0
      %2176 = vmatprep.mubr.bf16.mxu0 0
      %2177 = vmatmul.mubr.bf16.gmra.mrb[0].mxu0 %v2142
      %v2178 = vpop.f32.mrb[0].mxu0
      %v2179 = vadd.f32 0.0, %v2178
      %v2180 = vpop.f32.mrb[0].mxu0
      %v2181 = vpop.f32.mrb[0].mxu0
      %v2182 = vpop.f32.mrb[0].mxu0
      %2183 = vdwg.mxu0
      %v2185 = vlaneseq
      %v2186 = vshrl.u32 %v2185, 7
      %v2187 = vsub.s32 0, %v2186
      %v2188 = vrot.slane %v77, %v2187
      %v2190 = vadd.f32 %v2179, %v2188
      %v2192 = vlaneseq
      %v2193 = vshrl.u32 %v2192, 7
      %v2194 = vsub.s32 0, %v2193
      %v2195 = vrot.slane %v78, %v2194
      %2196 = vrot.lane.b32.xlu0 %v2195, 96
      %v2197 = vpop.permute.xlu0 %2196
      %v2199 = vadd.f32 %v2179, %v2197
      %v2202 = vunpack.c.l.s4 1966171168
      %v2203 = vunpack.c.0.s8 %v2202
      %v2204 = vlaneseq
      %v2205 = vshrl.u32 %v2204, 7
      %v2206 = vsub.s32 %v2203, %v2205
      %v2207 = vrot.slane %v2199, %v2206
      %v2208 = vcombine.high %v2207, %v2207
      %v2210 = vunpack.c.l.s4 1966171168
      %v2211 = vunpack.c.0.s8 %v2210
      %v2212 = vlaneseq
      %v2213 = vshrl.u32 %v2212, 7
      %v2214 = vsub.s32 %v2211, %v2213
      %v2215 = vrot.slane %v2207, %v2214
      %v2217 = vunpack.c.l.s4 1966171168
      %v2218 = vunpack.c.0.s8 %v2217
      %v2219 = vlaneseq
      %v2220 = vshrl.u32 %v2219, 7
      %v2221 = vsub.s32 %v2218, %v2220
      %v2222 = vrot.slane %v2208, %v2221
      %v2223 = vlaneseq
      %v2224 = vshrl.u32 %v2223, 7
      %v2225 = vsub.s32 0, %v2224
      %v2226 = vrot.slane %v2215, %v2225
      %v2227 = vlaneseq
      %v2228 = vshrl.u32 %v2227, 7
      %v2229 = vsub.s32 0, %v2228
      %v2230 = vrot.slane %v2222, %v2229
      %2231 = vrot.lane.b32.xlu0 %v2226, 32
      %v2232 = vpop.permute.xlu0 %2231
      %2233 = vrot.lane.b32.xlu0 %v2230, 32
      %v2234 = vpop.permute.xlu0 %2233
      %v2237 = vadd.f32 %v58, %v2232
      %v2238 = vadd.f32 %v59, %v2234
      %v2239 = vtanh.pop %v2237
      %v2240 = vtanh.pop %v2238
      %v2242 = vlaneseq
      %v2243 = vshrl.u32 %v2242, 7
      %v2244 = vsub.s32 0, %v2243
      %v2245 = vrot.slane %v60, %v2244
      %v2247 = vmul.f32 %v2239, %v2245
      %v2248 = vmul.f32 %v2240, %v2245
      %v2249 = vsel %vm2140, %v2247, 0.0
      %2250 = vadd.xlane.f32.xlu0 %v2249
      %v2251 = vpop.xlane.xlu0 %2250
      %v2252 = vsel %vm2140, %v2248, 0.0
      %2253 = vadd.xlane.f32.xlu0 %v2252
      %v2254 = vpop.xlane.xlu0 %2253
      %v2257 = vlaneseq
      %v2258 = vshrl.u32 %v2257, 7
      %v2259 = vsub.s32 %v43, %v2258
      %v2260 = vrot.slane %v2251, %v2259
      %v2261 = vlaneseq
      %v2262 = vshrl.u32 %v2261, 7
      %v2263 = vsub.s32 %v43, %v2262
      %v2264 = vrot.slane %v2254, %v2263
      %vm2265 = vcmask 1041409
      %v2266 = vsel %vm2265, %v2264, %v2260
      %v2268 = vsel %vm50, %v2266, -inf
      %2269 = vmax.xlane.f32.xlu0 %v2268
      %v2270 = vpop.xlane.xlu0 %2269
      %v2272 = vlaneseq
      %v2273 = vshrl.u32 %v2272, 7
      %v2274 = vsub.s32 0, %v2273
      %v2275 = vrot.slane %v2270, %v2274
      %v2276 = vlaneseq
      %v2277 = vshrl.u32 %v2276, 7
      %v2278 = vsub.s32 1, %v2277
      %v2279 = vrot.slane %v2270, %v2278
      %v2282 = vsub.f32 %v2251, %v2275
      %v2283 = vsub.f32 %v2254, %v2279
      %v2284 = vmul.f32 %v2282, 1.442695
      %v2285 = vpow.pop %v2284
      %v2286 = vmul.f32 %v2283, 1.442695
      %v2287 = vpow.pop %v2286
      %2290 = vset.pattern.permute.xlu0 0
      %2291 = vperm.xlu0 %2290, %v2285
      %v2292 = vpop.permute.xlu0 %2291
      %2293 = vset.pattern.permute.xlu0 0
      %2294 = vperm.xlu0 %2293, %v2287
      %v2295 = vpop.permute.xlu0 %2294
      %v2296 = vlaneseq
      %v2297 = vshrl.u32 %v2296, 7
      %v2298 = vsub.s32 %v43, %v2297
      %v2299 = vrot.slane %v2292, %v2298
      %v2300 = vlaneseq
      %v2301 = vshrl.u32 %v2300, 7
      %v2302 = vsub.s32 %v43, %v2301
      %v2303 = vrot.slane %v2295, %v2302
      %v2304 = vsel %vm2265, %v2303, %v2299
      %v2306 = vsel %vm50, %v2304, 0.0
      %2307 = vadd.xlane.f32.xlu0 %v2306
      %v2308 = vpop.xlane.xlu0 %2307
      %v2310 = vlaneseq
      %v2311 = vshrl.u32 %v2310, 7
      %v2312 = vsub.s32 0, %v2311
      %v2313 = vrot.slane %v2308, %v2312
      %v2314 = vlaneseq
      %v2315 = vshrl.u32 %v2314, 7
      %v2316 = vsub.s32 1, %v2315
      %v2317 = vrot.slane %v2308, %v2316
      %v2320 = vrcp.pop %v2313
      %v2321 = vmul.f32 %v2285, %v2320
      %v2322 = vrcp.pop %v2317
      %v2323 = vmul.f32 %v2287, %v2322
      %2325 = vset.pattern.permute.xlu0 0
      %2326 = vperm.xlu0 %2325, %v2321
      %v2327 = vpop.permute.xlu0 %2326
      %2330 = vset.pattern.permute.xlu0 0
      %2331 = vperm.xlu0 %2330, %v2323
      %v2332 = vpop.permute.xlu0 %2331
      %v2334 = vmul.f32 %v2327, %v54
      %v2335 = vmul.f32 %v2332, %v55
      %vm2336 = vcmask 334848
      %v2337 = vsel %vm2336, %v2334, 0.0
      %v2338 = vrot.slane %v2337, 4
      %v2339 = vadd.f32 %v2337, %v2338
      %v2340 = vrot.slane %v2339, 2
      %v2341 = vadd.f32 %v2339, %v2340
      %v2342 = vrot.slane %v2341, 1
      %v2343 = vadd.f32 %v2341, %v2342
      %v2344 = vsel %vm2336, %v2335, 0.0
      %v2345 = vrot.slane %v2344, 4
      %v2346 = vadd.f32 %v2344, %v2345
      %v2347 = vrot.slane %v2346, 2
      %v2348 = vadd.f32 %v2346, %v2347
      %v2349 = vrot.slane %v2348, 1
      %v2350 = vadd.f32 %v2348, %v2349
      %v2351 = vpack.c.bf16 %v2126, %v2126
      %v2352 = vpack.c.bf16 %v2343, %v2343
      %v2353 = vpack.c.bf16 %v2350, %v2350
      %v2356 = vunpack.c.l.b16 %v2352
      %v2357 = vunpack.c.l.b16 %v2353
      %v2358 = vsel %vm2265, %v2357, %v2356
      %v2359 = vpack.c.b16 %v2358, %v2358
      %v2366 = vunpack.c.l.b16 %v67
      %v2367 = vunpack.c.l.b16 %v68
      %v2368 = vunpack.c.l.b16 %v69
      %v2369 = vunpack.c.l.b16 %v70
      %v2370 = vunpack.c.l.b16 %v71
      %v2371 = vunpack.c.l.b16 %v72
      %v2372 = vpack.c.b16 %v2367, %v2366
      %v2373 = vpack.c.b16 %v2369, %v2368
      %v2374 = vpack.c.b16 %v2371, %v2370
      %v2378 = vsel %vm2336, %v2359, 0
      %vm2380 = vcmask 1043456
      %vm2381 = vcmask 1044480
      %v2382 = vsel %vm2380, 4294967295, 65535
      %v2383 = vsel %vm2381, %v2382, 0
      %v2385 = vand.u32 %v2374, %v2383
      %2387 = vmatprep.subr.bf16.mxu0 0
      %2388 = vmatpush1.bf16.msra.mxu0 %v2372
      %2389 = vmatprep.subr.bf16.mxu0 0
      %2390 = vmatpush1.bf16.msra.mxu0 %v2373
      %2391 = vmatprep.subr.bf16.mxu0 0
      %2392 = vmatpush1.bf16.msra.mxu0 %v2385
      %2393 = vmatprep.subr.bf16.mxu0 0
      %2394 = vmatpush1.bf16.msra.mxu0 0
      %2395 = vmatprep.subr.bf16.mxu0 0
      %2396 = vmatpush1.bf16.msra.mxu0 0
      %2397 = vmatprep.subr.bf16.mxu0 0
      %2398 = vmatpush1.bf16.msra.mxu0 0
      %2399 = vmatprep.subr.bf16.mxu0 0
      %2400 = vmatpush1.bf16.msra.mxu0 0
      %2401 = vmatprep.subr.bf16.mxu0 0
      %2402 = vmatpush1.bf16.msra.mxu0 0
      %2403 = vmatprep.subr.bf16.mxu0 0
      %2404 = vmatpush1.bf16.msra.mxu0 0
      %2405 = vmatprep.subr.bf16.mxu0 0
      %2406 = vmatpush1.bf16.msra.mxu0 0
      %2407 = vmatprep.subr.bf16.mxu0 0
      %2408 = vmatpush1.bf16.msra.mxu0 0
      %2409 = vmatprep.subr.bf16.mxu0 0
      %2410 = vmatpush1.bf16.msra.mxu0 0
      %2411 = vmatprep.subr.bf16.mxu0 0
      %2412 = vmatpush1.bf16.msra.mxu0 0
      %2413 = vmatprep.subr.bf16.mxu0 0
      %2414 = vmatpush1.bf16.msra.mxu0 0
      %2415 = vmatprep.subr.bf16.mxu0 0
      %2416 = vmatpush1.bf16.msra.mxu0 0
      %2417 = vmatprep.subr.bf16.mxu0 0
      %2418 = vmatpush1.bf16.msra.mxu0 0
      %2419 = vmatprep.mubr.bf16.mxu0 0
      %2420 = vmatmul.mubr.bf16.gmra.mrb[0].mxu0 %v2378
      %v2421 = vpop.f32.mrb[0].mxu0
      %v2422 = vadd.f32 0.0, %v2421
      %v2423 = vpop.f32.mrb[0].mxu0
      %v2424 = vpop.f32.mrb[0].mxu0
      %v2425 = vpop.f32.mrb[0].mxu0
      %2426 = vdwg.mxu0
      %v2429 = vunpack.c.l.b16 %v65
      %v2430 = vunpack.c.l.b16 %v66
      %v2431 = vpack.c.b16 %v2430, %v2429
      %vm2432 = vcmask 97280
      %v2434 = vsel %vm2432, %v2351, 0
      %vm2436 = vcmask 1045504
      %v2438 = vsel %vm2436, %v2431, 0
      %2440 = vmatprep.subr.bf16.mxu0 0
      %2441 = vmatpush1.bf16.msra.mxu0 %v2438
      %2442 = vmatprep.subr.bf16.mxu0 0
      %2443 = vmatpush1.bf16.msra.mxu0 0
      %2444 = vmatprep.subr.bf16.mxu0 0
      %2445 = vmatpush1.bf16.msra.mxu0 0
      %2446 = vmatprep.subr.bf16.mxu0 0
      %2447 = vmatpush1.bf16.msra.mxu0 0
      %2448 = vmatprep.subr.bf16.mxu0 0
      %2449 = vmatpush1.bf16.msra.mxu0 0
      %2450 = vmatprep.subr.bf16.mxu0 0
      %2451 = vmatpush1.bf16.msra.mxu0 0
      %2452 = vmatprep.subr.bf16.mxu0 0
      %2453 = vmatpush1.bf16.msra.mxu0 0
      %2454 = vmatprep.subr.bf16.mxu0 0
      %2455 = vmatpush1.bf16.msra.mxu0 0
      %2456 = vmatprep.subr.bf16.mxu0 0
      %2457 = vmatpush1.bf16.msra.mxu0 0
      %2458 = vmatprep.subr.bf16.mxu0 0
      %2459 = vmatpush1.bf16.msra.mxu0 0
      %2460 = vmatprep.subr.bf16.mxu0 0
      %2461 = vmatpush1.bf16.msra.mxu0 0
      %2462 = vmatprep.subr.bf16.mxu0 0
      %2463 = vmatpush1.bf16.msra.mxu0 0
      %2464 = vmatprep.subr.bf16.mxu0 0
      %2465 = vmatpush1.bf16.msra.mxu0 0
      %2466 = vmatprep.subr.bf16.mxu0 0
      %2467 = vmatpush1.bf16.msra.mxu0 0
      %2468 = vmatprep.subr.bf16.mxu0 0
      %2469 = vmatpush1.bf16.msra.mxu0 0
      %2470 = vmatprep.subr.bf16.mxu0 0
      %2471 = vmatpush1.bf16.msra.mxu0 0
      %2472 = vmatprep.mubr.bf16.mxu0 0
      %2473 = vmatmul.mubr.bf16.gmra.mrb[0].mxu0 %v2434
      %v2474 = vpop.f32.mrb[0].mxu0
      %v2475 = vadd.f32 %v2422, %v2474
      %v2476 = vpop.f32.mrb[0].mxu0
      %v2477 = vpop.f32.mrb[0].mxu0
      %v2478 = vpop.f32.mrb[0].mxu0
      %2479 = vdwg.mxu0
      %v2481 = vlaneseq
      %v2482 = vshrl.u32 %v2481, 7
      %v2483 = vsub.s32 0, %v2482
      %v2484 = vrot.slane %v79, %v2483
      %v2486 = vadd.f32 %v2475, %v2484
      %v2487 = vadd.f32 %v2486, %v2190
      %v2488 = vxor.u32 %v2487, 2147483648
      %v2489 = vmul.f32 %v2488, 1.442695
      %v2490 = vpow.pop %v2489
      %v2491 = vadd.f32 %v2490, 1.0
      %v2492 = vrcp.pop %v2491
      %v2493 = vmul.f32 1.0, %v2492
      %2495 = vrot.lane.b32.xlu0 %v2190, 64
      %v2496 = vpop.permute.xlu0 %2495
      %v2498 = vmul.f32 %v2493, %v2496
      %2500 = vrot.lane.b32.xlu0 %v2498, 64
      %v2501 = vpop.permute.xlu0 %2500
      %v2503 = vadd.f32 %v2486, %v2501
      %v2504 = vtanh.pop %v2503
      %v2505 = vsub.f32 1.0, %v2493
      %2507 = vrot.lane.b32.xlu0 %v2504, 96
      %v2508 = vpop.permute.xlu0 %2507
      %v2510 = vmul.f32 %v2505, %v2508
      %2512 = vrot.lane.b32.xlu0 %v2125, 32
      %v2513 = vpop.permute.xlu0 %2512
      %v2515 = vmul.f32 %v2493, %v2513
      %v2516 = vadd.f32 %v2510, %v2515
      %v2517 = vpack.c.bf16 %v2516, %v2516
      %v2519 = vlaneseq
      %v2520 = vshrl.u32 %v2519, 7
      %v2521 = vsub.s32 0, %v2520
      %v2522 = vrot.slane %v80, %v2521
      %2525 = vrot.lane.b32.xlu0 %v2517, 96
      %v2526 = vpop.permute.xlu0 %2525
      %v2531 = vunpack.c.l.b16 %v73
      %v2532 = vunpack.c.l.b16 %v74
      %v2533 = vunpack.c.l.b16 %v75
      %v2534 = vunpack.c.l.b16 %v76
      %v2535 = vpack.c.b16 %v2532, %v2531
      %v2536 = vpack.c.b16 %v2534, %v2533
      %v2540 = vsel %vm2140, %v2526, 0
      %2542 = vmatprep.subr.bf16.mxu0 0
      %2543 = vmatpush1.bf16.msra.mxu0 %v2535
      %2544 = vmatprep.subr.bf16.mxu0 0
      %2545 = vmatpush1.bf16.msra.mxu0 %v2536
      %2546 = vmatprep.subr.bf16.mxu0 0
      %2547 = vmatpush1.bf16.msra.mxu0 0
      %2548 = vmatprep.subr.bf16.mxu0 0
      %2549 = vmatpush1.bf16.msra.mxu0 0
      %2550 = vmatprep.subr.bf16.mxu0 0
      %2551 = vmatpush1.bf16.msra.mxu0 0
      %2552 = vmatprep.subr.bf16.mxu0 0
      %2553 = vmatpush1.bf16.msra.mxu0 0
      %2554 = vmatprep.subr.bf16.mxu0 0
      %2555 = vmatpush1.bf16.msra.mxu0 0
      %2556 = vmatprep.subr.bf16.mxu0 0
      %2557 = vmatpush1.bf16.msra.mxu0 0
      %2558 = vmatprep.subr.bf16.mxu0 0
      %2559 = vmatpush1.bf16.msra.mxu0 0
      %2560 = vmatprep.subr.bf16.mxu0 0
      %2561 = vmatpush1.bf16.msra.mxu0 0
      %2562 = vmatprep.subr.bf16.mxu0 0
      %2563 = vmatpush1.bf16.msra.mxu0 0
      %2564 = vmatprep.subr.bf16.mxu0 0
      %2565 = vmatpush1.bf16.msra.mxu0 0
      %2566 = vmatprep.subr.bf16.mxu0 0
      %2567 = vmatpush1.bf16.msra.mxu0 0
      %2568 = vmatprep.subr.bf16.mxu0 0
      %2569 = vmatpush1.bf16.msra.mxu0 0
      %2570 = vmatprep.subr.bf16.mxu0 0
      %2571 = vmatpush1.bf16.msra.mxu0 0
      %2572 = vmatprep.subr.bf16.mxu0 0
      %2573 = vmatpush1.bf16.msra.mxu0 0
      %2574 = vmatprep.mubr.bf16.mxu0 0
      %2575 = vmatmul.mubr.bf16.gmra.mrb[0].mxu0 %v2540
      %v2576 = vpop.f32.mrb[0].mxu0
      %v2577 = vadd.f32 %v2522, %v2576
      %v2578 = vpop.f32.mrb[0].mxu0
      %v2579 = vpop.f32.mrb[0].mxu0
      %v2580 = vpop.f32.mrb[0].mxu0
      %2581 = vdwg.mxu0
      %v2582 = vsel %vm46, %v2577, -inf
      %2583 = vmax.xlane.f32.xlu0 %v2582
      %v2584 = vpop.xlane.xlu0 %2583
      %vm2585 = vcmp.eq.f32.partialorder %v2577, %v2584
      %v2586 = vsel %vm2585, %v43, 12
      %v2587 = vsel %vm46, %v2586, 2147483647
      %v2588 = vand.u32 %v2587, 65535
      %v2589 = vshra.s32 %v2587, 16
      %v2590 = vcvt.s32.f32 %v2588
      %v2591 = vcvt.s32.f32 %v2589
      %2592 = vmin.xlane.f32.xlu0 %v2591
      %v2593 = vpop.xlane.xlu0 %2592
      %vm2594 = vcmp.eq.f32.partialorder %v2591, %v2593
      %v2595 = vsel %vm2594, %v2590, inf
      %2596 = vmin.xlane.f32.xlu0 %v2595
      %v2597 = vpop.xlane.xlu0 %2596
      %v2598 = vcvt.f32.s32 %v2597
      %v2599 = vcvt.f32.s32 %v2593
      %v2600 = vshll.u32 %v2599, 16
      %v2601 = vadd.s32 %v2600, %v2598
      %vm2602 = vcmp.eq.s32.totalorder %v43, 4
      %v2603 = vld [vmem:[#allocation5] sm:$0x3]
      %v2604 = vsel %vm2602, %v2601, %v2603
      %2605 = vst.msk [vmem:[#allocation5] sm:$0x3] %vm50, %v2604
      %vm2606 = vcmp.eq.s32.totalorder %v2601, 0
      %v2607 = vsel %vm2606, 0.0, 1.0
      %vm2608 = vcmask 1024
      %v2609 = vsel %vm2608, %v2607, 0.0
      %2610 = vadd.xlane.f32.xlu0 %v2609
      %v2611 = vpop.xlane.xlu0 %2610
      %v2612 = vrot.slane %v2611, 4
      %v2613 = vadd.f32 %v2611, %v2612
      %v2614 = vrot.slane %v2613, 2
      %v2615 = vadd.f32 %v2613, %v2614
      %v2616 = vrot.slane %v2615, 1
      %v2617 = vadd.f32 %v2615, %v2616
      %s2618 = vtos %v2617
      %p2619 = scmp.eq.f32.partialorder %s2618, 0.0
      %s2620 = scalar_select %p2619, 1, 0
      %2621 = sst [smem:[%s48]] %s2620
      %2623 = vrot.lane.b32.xlu0 %v2516, 96
      %v2624 = vpop.permute.xlu0 %2623
      %2626 = vst.msk [vmem:[#allocation2] sm:$0x3] %vm40, %v2624
      %vm2627 = vcmp.eq.s32.totalorder %v43, %v2601
      %v2628 = vsel %vm2627, 1.0, 0.0
      %2629 = vst.msk [vmem:[#allocation3] sm:$0x3] %vm46, %v2628
    $region65: #{attention_decoder_forward.21} parent=1 // pred_fallthru
      _
    %s2630 = sld [smem:[#allocation4]]
    %p2631 = scmp.eq.s32.totalorder %s2630, 0
    // Predicated region
    $region66: #{attention_decoder_forward.21} parent=1 // pred_check
      %p2632 = pneg %p2631
    $region67: #{attention_decoder_forward.21} parent=1 // pred_check_branch
      %2634 = sbr.rel (%p2632) target = $region69
    $region68: #{attention_decoder_forward.21} parent=1 // pred_region
      %v2635 = vld [vmem:[#allocation2] sm:$0x3]
      %v2636 = vld [vmem:[#allocation3] sm:$0x3]
      %v2637 = vpack.c.bf16 %v2635, %v2635
      %v2642 = vunpack.c.l.b16 %v61
      %v2643 = vunpack.c.l.b16 %v62
      %v2644 = vunpack.c.l.b16 %v63
      %v2645 = vunpack.c.l.b16 %v64
      %v2646 = vpack.c.b16 %v2643, %v2642
      %v2647 = vpack.c.b16 %v2645, %v2644
      %vm2650 = vcmask 261120
      %v2652 = vsel %vm2650, %v2637, 0
      %2654 = vmatprep.subr.bf16.mxu0 0
      %2655 = vmatpush1.bf16.msra.mxu0 %v2646
      %2656 = vmatprep.subr.bf16.mxu0 0
      %2657 = vmatpush1.bf16.msra.mxu0 %v2647
      %2658 = vmatprep.subr.bf16.mxu0 0
      %2659 = vmatpush1.bf16.msra.mxu0 0
      %2660 = vmatprep.subr.bf16.mxu0 0
      %2661 = vmatpush1.bf16.msra.mxu0 0
      %2662 = vmatprep.subr.bf16.mxu0 0
      %2663 = vmatpush1.bf16.msra.mxu0 0
      %2664 = vmatprep.subr.bf16.mxu0 0
      %2665 = vmatpush1.bf16.msra.mxu0 0
      %2666 = vmatprep.subr.bf16.mxu0 0
      %2667 = vmatpush1.bf16.msra.mxu0 0
      %2668 = vmatprep.subr.bf16.mxu0 0
      %2669 = vmatpush1.bf16.msra.mxu0 0
      %2670 = vmatprep.subr.bf16.mxu0 0
      %2671 = vmatpush1.bf16.msra.mxu0 0
      %2672 = vmatprep.subr.bf16.mxu0 0
      %2673 = vmatpush1.bf16.msra.mxu0 0
      %2674 = vmatprep.subr.bf16.mxu0 0
      %2675 = vmatpush1.bf16.msra.mxu0 0
      %2676 = vmatprep.subr.bf16.mxu0 0
      %2677 = vmatpush1.bf16.msra.mxu0 0
      %2678 = vmatprep.subr.bf16.mxu0 0
      %2679 = vmatpush1.bf16.msra.mxu0 0
      %2680 = vmatprep.subr.bf16.mxu0 0
      %2681 = vmatpush1.bf16.msra.mxu0 0
      %2682 = vmatprep.subr.bf16.mxu0 0
      %2683 = vmatpush1.bf16.msra.mxu0 0
      %2684 = vmatprep.subr.bf16.mxu0 0
      %2685 = vmatpush1.bf16.msra.mxu0 0
      %2686 = vmatprep.mubr.bf16.mxu0 0
      %2687 = vmatmul.mubr.bf16.gmra.mrb[0].mxu0 %v2652
      %v2688 = vpop.f32.mrb[0].mxu0
      %v2689 = vadd.f32 0.0, %v2688
      %v2690 = vpop.f32.mrb[0].mxu0
      %v2691 = vpop.f32.mrb[0].mxu0
      %v2692 = vpop.f32.mrb[0].mxu0
      %2693 = vdwg.mxu0
      %v2695 = vlaneseq
      %v2696 = vshrl.u32 %v2695, 7
      %v2697 = vsub.s32 0, %v2696
      %v2698 = vrot.slane %v77, %v2697
      %v2700 = vadd.f32 %v2689, %v2698
      %v2702 = vlaneseq
      %v2703 = vshrl.u32 %v2702, 7
      %v2704 = vsub.s32 0, %v2703
      %v2705 = vrot.slane %v78, %v2704
      %2706 = vrot.lane.b32.xlu0 %v2705, 96
      %v2707 = vpop.permute.xlu0 %2706
      %v2709 = vadd.f32 %v2689, %v2707
      %v2712 = vunpack.c.l.s4 1966171168
      %v2713 = vunpack.c.0.s8 %v2712
      %v2714 = vlaneseq
      %v2715 = vshrl.u32 %v2714, 7
      %v2716 = vsub.s32 %v2713, %v2715
      %v2717 = vrot.slane %v2709, %v2716
      %v2718 = vcombine.high %v2717, %v2717
      %v2720 = vunpack.c.l.s4 1966171168
      %v2721 = vunpack.c.0.s8 %v2720
      %v2722 = vlaneseq
      %v2723 = vshrl.u32 %v2722, 7
      %v2724 = vsub.s32 %v2721, %v2723
      %v2725 = vrot.slane %v2717, %v2724
      %v2727 = vunpack.c.l.s4 1966171168
      %v2728 = vunpack.c.0.s8 %v2727
      %v2729 = vlaneseq
      %v2730 = vshrl.u32 %v2729, 7
      %v2731 = vsub.s32 %v2728, %v2730
      %v2732 = vrot.slane %v2718, %v2731
      %v2733 = vlaneseq
      %v2734 = vshrl.u32 %v2733, 7
      %v2735 = vsub.s32 0, %v2734
      %v2736 = vrot.slane %v2725, %v2735
      %v2737 = vlaneseq
      %v2738 = vshrl.u32 %v2737, 7
      %v2739 = vsub.s32 0, %v2738
      %v2740 = vrot.slane %v2732, %v2739
      %2741 = vrot.lane.b32.xlu0 %v2736, 32
      %v2742 = vpop.permute.xlu0 %2741
      %2743 = vrot.lane.b32.xlu0 %v2740, 32
      %v2744 = vpop.permute.xlu0 %2743
      %v2747 = vadd.f32 %v58, %v2742
      %v2748 = vadd.f32 %v59, %v2744
      %v2749 = vtanh.pop %v2747
      %v2750 = vtanh.pop %v2748
      %v2752 = vlaneseq
      %v2753 = vshrl.u32 %v2752, 7
      %v2754 = vsub.s32 0, %v2753
      %v2755 = vrot.slane %v60, %v2754
      %v2757 = vmul.f32 %v2749, %v2755
      %v2758 = vmul.f32 %v2750, %v2755
      %v2759 = vsel %vm2650, %v2757, 0.0
      %2760 = vadd.xlane.f32.xlu0 %v2759
      %v2761 = vpop.xlane.xlu0 %2760
      %v2762 = vsel %vm2650, %v2758, 0.0
      %2763 = vadd.xlane.f32.xlu0 %v2762
      %v2764 = vpop.xlane.xlu0 %2763
      %v2767 = vlaneseq
      %v2768 = vshrl.u32 %v2767, 7
      %v2769 = vsub.s32 %v43, %v2768
      %v2770 = vrot.slane %v2761, %v2769
      %v2771 = vlaneseq
      %v2772 = vshrl.u32 %v2771, 7
      %v2773 = vsub.s32 %v43, %v2772
      %v2774 = vrot.slane %v2764, %v2773
      %vm2775 = vcmask 1041409
      %v2776 = vsel %vm2775, %v2774, %v2770
      %v2778 = vsel %vm50, %v2776, -inf
      %2779 = vmax.xlane.f32.xlu0 %v2778
      %v2780 = vpop.xlane.xlu0 %2779
      %v2782 = vlaneseq
      %v2783 = vshrl.u32 %v2782, 7
      %v2784 = vsub.s32 0, %v2783
      %v2785 = vrot.slane %v2780, %v2784
      %v2786 = vlaneseq
      %v2787 = vshrl.u32 %v2786, 7
      %v2788 = vsub.s32 1, %v2787
      %v2789 = vrot.slane %v2780, %v2788
      %v2792 = vsub.f32 %v2761, %v2785
      %v2793 = vsub.f32 %v2764, %v2789
      %v2794 = vmul.f32 %v2792, 1.442695
      %v2795 = vpow.pop %v2794
      %v2796 = vmul.f32 %v2793, 1.442695
      %v2797 = vpow.pop %v2796
      %2800 = vset.pattern.permute.xlu0 0
      %2801 = vperm.xlu0 %2800, %v2795
      %v2802 = vpop.permute.xlu0 %2801
      %2803 = vset.pattern.permute.xlu0 0
      %2804 = vperm.xlu0 %2803, %v2797
      %v2805 = vpop.permute.xlu0 %2804
      %v2806 = vlaneseq
      %v2807 = vshrl.u32 %v2806, 7
      %v2808 = vsub.s32 %v43, %v2807
      %v2809 = vrot.slane %v2802, %v2808
      %v2810 = vlaneseq
      %v2811 = vshrl.u32 %v2810, 7
      %v2812 = vsub.s32 %v43, %v2811
      %v2813 = vrot.slane %v2805, %v2812
      %v2814 = vsel %vm2775, %v2813, %v2809
      %v2816 = vsel %vm50, %v2814, 0.0
      %2817 = vadd.xlane.f32.xlu0 %v2816
      %v2818 = vpop.xlane.xlu0 %2817
      %v2820 = vlaneseq
      %v2821 = vshrl.u32 %v2820, 7
      %v2822 = vsub.s32 0, %v2821
      %v2823 = vrot.slane %v2818, %v2822
      %v2824 = vlaneseq
      %v2825 = vshrl.u32 %v2824, 7
      %v2826 = vsub.s32 1, %v2825
      %v2827 = vrot.slane %v2818, %v2826
      %v2830 = vrcp.pop %v2823
      %v2831 = vmul.f32 %v2795, %v2830
      %v2832 = vrcp.pop %v2827
      %v2833 = vmul.f32 %v2797, %v2832
      %2835 = vset.pattern.permute.xlu0 0
      %2836 = vperm.xlu0 %2835, %v2831
      %v2837 = vpop.permute.xlu0 %2836
      %2840 = vset.pattern.permute.xlu0 0
      %2841 = vperm.xlu0 %2840, %v2833
      %v2842 = vpop.permute.xlu0 %2841
      %v2844 = vmul.f32 %v2837, %v54
      %v2845 = vmul.f32 %v2842, %v55
      %vm2846 = vcmask 334848
      %v2847 = vsel %vm2846, %v2844, 0.0
      %v2848 = vrot.slane %v2847, 4
      %v2849 = vadd.f32 %v2847, %v2848
      %v2850 = vrot.slane %v2849, 2
      %v2851 = vadd.f32 %v2849, %v2850
      %v2852 = vrot.slane %v2851, 1
      %v2853 = vadd.f32 %v2851, %v2852
      %v2854 = vsel %vm2846, %v2845, 0.0
      %v2855 = vrot.slane %v2854, 4
      %v2856 = vadd.f32 %v2854, %v2855
      %v2857 = vrot.slane %v2856, 2
      %v2858 = vadd.f32 %v2856, %v2857
      %v2859 = vrot.slane %v2858, 1
      %v2860 = vadd.f32 %v2858, %v2859
      %v2861 = vpack.c.bf16 %v2636, %v2636
      %v2862 = vpack.c.bf16 %v2853, %v2853
      %v2863 = vpack.c.bf16 %v2860, %v2860
      %v2866 = vunpack.c.l.b16 %v2862
      %v2867 = vunpack.c.l.b16 %v2863
      %v2868 = vsel %vm2775, %v2867, %v2866
      %v2869 = vpack.c.b16 %v2868, %v2868
      %v2876 = vunpack.c.l.b16 %v67
      %v2877 = vunpack.c.l.b16 %v68
      %v2878 = vunpack.c.l.b16 %v69
      %v2879 = vunpack.c.l.b16 %v70
      %v2880 = vunpack.c.l.b16 %v71
      %v2881 = vunpack.c.l.b16 %v72
      %v2882 = vpack.c.b16 %v2877, %v2876
      %v2883 = vpack.c.b16 %v2879, %v2878
      %v2884 = vpack.c.b16 %v2881, %v2880
      %v2888 = vsel %vm2846, %v2869, 0
      %vm2890 = vcmask 1043456
      %vm2891 = vcmask 1044480
      %v2892 = vsel %vm2890, 4294967295, 65535
      %v2893 = vsel %vm2891, %v2892, 0
      %v2895 = vand.u32 %v2884, %v2893
      %2897 = vmatprep.subr.bf16.mxu0 0
      %2898 = vmatpush1.bf16.msra.mxu0 %v2882
      %2899 = vmatprep.subr.bf16.mxu0 0
      %2900 = vmatpush1.bf16.msra.mxu0 %v2883
      %2901 = vmatprep.subr.bf16.mxu0 0
      %2902 = vmatpush1.bf16.msra.mxu0 %v2895
      %2903 = vmatprep.subr.bf16.mxu0 0
      %2904 = vmatpush1.bf16.msra.mxu0 0
      %2905 = vmatprep.subr.bf16.mxu0 0
      %2906 = vmatpush1.bf16.msra.mxu0 0
      %2907 = vmatprep.subr.bf16.mxu0 0
      %2908 = vmatpush1.bf16.msra.mxu0 0
      %2909 = vmatprep.subr.bf16.mxu0 0
      %2910 = vmatpush1.bf16.msra.mxu0 0
      %2911 = vmatprep.subr.bf16.mxu0 0
      %2912 = vmatpush1.bf16.msra.mxu0 0
      %2913 = vmatprep.subr.bf16.mxu0 0
      %2914 = vmatpush1.bf16.msra.mxu0 0
      %2915 = vmatprep.subr.bf16.mxu0 0
      %2916 = vmatpush1.bf16.msra.mxu0 0
      %2917 = vmatprep.subr.bf16.mxu0 0
      %2918 = vmatpush1.bf16.msra.mxu0 0
      %2919 = vmatprep.subr.bf16.mxu0 0
      %2920 = vmatpush1.bf16.msra.mxu0 0
      %2921 = vmatprep.subr.bf16.mxu0 0
      %2922 = vmatpush1.bf16.msra.mxu0 0
      %2923 = vmatprep.subr.bf16.mxu0 0
      %2924 = vmatpush1.bf16.msra.mxu0 0
      %2925 = vmatprep.subr.bf16.mxu0 0
      %2926 = vmatpush1.bf16.msra.mxu0 0
      %2927 = vmatprep.subr.bf16.mxu0 0
      %2928 = vmatpush1.bf16.msra.mxu0 0
      %2929 = vmatprep.mubr.bf16.mxu0 0
      %2930 = vmatmul.mubr.bf16.gmra.mrb[0].mxu0 %v2888
      %v2931 = vpop.f32.mrb[0].mxu0
      %v2932 = vadd.f32 0.0, %v2931
      %v2933 = vpop.f32.mrb[0].mxu0
      %v2934 = vpop.f32.mrb[0].mxu0
      %v2935 = vpop.f32.mrb[0].mxu0
      %2936 = vdwg.mxu0
      %v2939 = vunpack.c.l.b16 %v65
      %v2940 = vunpack.c.l.b16 %v66
      %v2941 = vpack.c.b16 %v2940, %v2939
      %vm2942 = vcmask 97280
      %v2944 = vsel %vm2942, %v2861, 0
      %vm2946 = vcmask 1045504
      %v2948 = vsel %vm2946, %v2941, 0
      %2950 = vmatprep.subr.bf16.mxu0 0
      %2951 = vmatpush1.bf16.msra.mxu0 %v2948
      %2952 = vmatprep.subr.bf16.mxu0 0
      %2953 = vmatpush1.bf16.msra.mxu0 0
      %2954 = vmatprep.subr.bf16.mxu0 0
      %2955 = vmatpush1.bf16.msra.mxu0 0
      %2956 = vmatprep.subr.bf16.mxu0 0
      %2957 = vmatpush1.bf16.msra.mxu0 0
      %2958 = vmatprep.subr.bf16.mxu0 0
      %2959 = vmatpush1.bf16.msra.mxu0 0
      %2960 = vmatprep.subr.bf16.mxu0 0
      %2961 = vmatpush1.bf16.msra.mxu0 0
      %2962 = vmatprep.subr.bf16.mxu0 0
      %2963 = vmatpush1.bf16.msra.mxu0 0
      %2964 = vmatprep.subr.bf16.mxu0 0
      %2965 = vmatpush1.bf16.msra.mxu0 0
      %2966 = vmatprep.subr.bf16.mxu0 0
      %2967 = vmatpush1.bf16.msra.mxu0 0
      %2968 = vmatprep.subr.bf16.mxu0 0
      %2969 = vmatpush1.bf16.msra.mxu0 0
      %2970 = vmatprep.subr.bf16.mxu0 0
      %2971 = vmatpush1.bf16.msra.mxu0 0
      %2972 = vmatprep.subr.bf16.mxu0 0
      %2973 = vmatpush1.bf16.msra.mxu0 0
      %2974 = vmatprep.subr.bf16.mxu0 0
      %2975 = vmatpush1.bf16.msra.mxu0 0
      %2976 = vmatprep.subr.bf16.mxu0 0
      %2977 = vmatpush1.bf16.msra.mxu0 0
      %2978 = vmatprep.subr.bf16.mxu0 0
      %2979 = vmatpush1.bf16.msra.mxu0 0
      %2980 = vmatprep.subr.bf16.mxu0 0
      %2981 = vmatpush1.bf16.msra.mxu0 0
      %2982 = vmatprep.mubr.bf16.mxu0 0
      %2983 = vmatmul.mubr.bf16.gmra.mrb[0].mxu0 %v2944
      %v2984 = vpop.f32.mrb[0].mxu0
      %v2985 = vadd.f32 %v2932, %v2984
      %v2986 = vpop.f32.mrb[0].mxu0
      %v2987 = vpop.f32.mrb[0].mxu0
      %v2988 = vpop.f32.mrb[0].mxu0
      %2989 = vdwg.mxu0
      %v2991 = vlaneseq
      %v2992 = vshrl.u32 %v2991, 7
      %v2993 = vsub.s32 0, %v2992
      %v2994 = vrot.slane %v79, %v2993
      %v2996 = vadd.f32 %v2985, %v2994
      %v2997 = vadd.f32 %v2996, %v2700
      %v2998 = vxor.u32 %v2997, 2147483648
      %v2999 = vmul.f32 %v2998, 1.442695
      %v3000 = vpow.pop %v2999
      %v3001 = vadd.f32 %v3000, 1.0
      %v3002 = vrcp.pop %v3001
      %v3003 = vmul.f32 1.0, %v3002
      %3005 = vrot.lane.b32.xlu0 %v2700, 64
      %v3006 = vpop.permute.xlu0 %3005
      %v3008 = vmul.f32 %v3003, %v3006
      %3010 = vrot.lane.b32.xlu0 %v3008, 64
      %v3011 = vpop.permute.xlu0 %3010
      %v3013 = vadd.f32 %v2996, %v3011
      %v3014 = vtanh.pop %v3013
      %v3015 = vsub.f32 1.0, %v3003
      %3017 = vrot.lane.b32.xlu0 %v3014, 96
      %v3018 = vpop.permute.xlu0 %3017
      %v3020 = vmul.f32 %v3015, %v3018
      %3022 = vrot.lane.b32.xlu0 %v2635, 32
      %v3023 = vpop.permute.xlu0 %3022
      %v3025 = vmul.f32 %v3003, %v3023
      %v3026 = vadd.f32 %v3020, %v3025
      %v3027 = vpack.c.bf16 %v3026, %v3026
      %v3029 = vlaneseq
      %v3030 = vshrl.u32 %v3029, 7
      %v3031 = vsub.s32 0, %v3030
      %v3032 = vrot.slane %v80, %v3031
      %3035 = vrot.lane.b32.xlu0 %v3027, 96
      %v3036 = vpop.permute.xlu0 %3035
      %v3041 = vunpack.c.l.b16 %v73
      %v3042 = vunpack.c.l.b16 %v74
      %v3043 = vunpack.c.l.b16 %v75
      %v3044 = vunpack.c.l.b16 %v76
      %v3045 = vpack.c.b16 %v3042, %v3041
      %v3046 = vpack.c.b16 %v3044, %v3043
      %v3050 = vsel %vm2650, %v3036, 0
      %3052 = vmatprep.subr.bf16.mxu0 0
      %3053 = vmatpush1.bf16.msra.mxu0 %v3045
      %3054 = vmatprep.subr.bf16.mxu0 0
      %3055 = vmatpush1.bf16.msra.mxu0 %v3046
      %3056 = vmatprep.subr.bf16.mxu0 0
      %3057 = vmatpush1.bf16.msra.mxu0 0
      %3058 = vmatprep.subr.bf16.mxu0 0
      %3059 = vmatpush1.bf16.msra.mxu0 0
      %3060 = vmatprep.subr.bf16.mxu0 0
      %3061 = vmatpush1.bf16.msra.mxu0 0
      %3062 = vmatprep.subr.bf16.mxu0 0
      %3063 = vmatpush1.bf16.msra.mxu0 0
      %3064 = vmatprep.subr.bf16.mxu0 0
      %3065 = vmatpush1.bf16.msra.mxu0 0
      %3066 = vmatprep.subr.bf16.mxu0 0
      %3067 = vmatpush1.bf16.msra.mxu0 0
      %3068 = vmatprep.subr.bf16.mxu0 0
      %3069 = vmatpush1.bf16.msra.mxu0 0
      %3070 = vmatprep.subr.bf16.mxu0 0
      %3071 = vmatpush1.bf16.msra.mxu0 0
      %3072 = vmatprep.subr.bf16.mxu0 0
      %3073 = vmatpush1.bf16.msra.mxu0 0
      %3074 = vmatprep.subr.bf16.mxu0 0
      %3075 = vmatpush1.bf16.msra.mxu0 0
      %3076 = vmatprep.subr.bf16.mxu0 0
      %3077 = vmatpush1.bf16.msra.mxu0 0
      %3078 = vmatprep.subr.bf16.mxu0 0
      %3079 = vmatpush1.bf16.msra.mxu0 0
      %3080 = vmatprep.subr.bf16.mxu0 0
      %3081 = vmatpush1.bf16.msra.mxu0 0
      %3082 = vmatprep.subr.bf16.mxu0 0
      %3083 = vmatpush1.bf16.msra.mxu0 0
      %3084 = vmatprep.mubr.bf16.mxu0 0
      %3085 = vmatmul.mubr.bf16.gmra.mrb[0].mxu0 %v3050
      %v3086 = vpop.f32.mrb[0].mxu0
      %v3087 = vadd.f32 %v3032, %v3086
      %v3088 = vpop.f32.mrb[0].mxu0
      %v3089 = vpop.f32.mrb[0].mxu0
      %v3090 = vpop.f32.mrb[0].mxu0
      %3091 = vdwg.mxu0
      %v3092 = vsel %vm46, %v3087, -inf
      %3093 = vmax.xlane.f32.xlu0 %v3092
      %v3094 = vpop.xlane.xlu0 %3093
      %vm3095 = vcmp.eq.f32.partialorder %v3087, %v3094
      %v3096 = vsel %vm3095, %v43, 12
      %v3097 = vsel %vm46, %v3096, 2147483647
      %v3098 = vand.u32 %v3097, 65535
      %v3099 = vshra.s32 %v3097, 16
      %v3100 = vcvt.s32.f32 %v3098
      %v3101 = vcvt.s32.f32 %v3099
      %3102 = vmin.xlane.f32.xlu0 %v3101
      %v3103 = vpop.xlane.xlu0 %3102
      %vm3104 = vcmp.eq.f32.partialorder %v3101, %v3103
      %v3105 = vsel %vm3104, %v3100, inf
      %3106 = vmin.xlane.f32.xlu0 %v3105
      %v3107 = vpop.xlane.xlu0 %3106
      %v3108 = vcvt.f32.s32 %v3107
      %v3109 = vcvt.f32.s32 %v3103
      %v3110 = vshll.u32 %v3109, 16
      %v3111 = vadd.s32 %v3110, %v3108
      %vm3112 = vcmp.eq.s32.totalorder %v43, 5
      %v3113 = vld [vmem:[#allocation5] sm:$0x3]
      %v3114 = vsel %vm3112, %v3111, %v3113
      %3115 = vst.msk [vmem:[#allocation5] sm:$0x3] %vm50, %v3114
      %vm3116 = vcmp.eq.s32.totalorder %v3111, 0
      %v3117 = vsel %vm3116, 0.0, 1.0
      %vm3118 = vcmask 1024
      %v3119 = vsel %vm3118, %v3117, 0.0
      %3120 = vadd.xlane.f32.xlu0 %v3119
      %v3121 = vpop.xlane.xlu0 %3120
      %v3122 = vrot.slane %v3121, 4
      %v3123 = vadd.f32 %v3121, %v3122
      %v3124 = vrot.slane %v3123, 2
      %v3125 = vadd.f32 %v3123, %v3124
      %v3126 = vrot.slane %v3125, 1
      %v3127 = vadd.f32 %v3125, %v3126
      %s3128 = vtos %v3127
      %p3129 = scmp.eq.f32.partialorder %s3128, 0.0
      %s3130 = scalar_select %p3129, 1, 0
      %3131 = sst [smem:[%s48]] %s3130
      %3133 = vrot.lane.b32.xlu0 %v3026, 96
      %v3134 = vpop.permute.xlu0 %3133
      %3136 = vst.msk [vmem:[#allocation2] sm:$0x3] %vm40, %v3134
      %vm3137 = vcmp.eq.s32.totalorder %v43, %v3111
      %v3138 = vsel %vm3137, 1.0, 0.0
      %3139 = vst.msk [vmem:[#allocation3] sm:$0x3] %vm46, %v3138
    $region69: #{attention_decoder_forward.21} parent=1 // pred_fallthru
      _
    %s3140 = sld [smem:[#allocation4]]
    %p3141 = scmp.eq.s32.totalorder %s3140, 0
    // Predicated region
    $region70: #{attention_decoder_forward.21} parent=1 // pred_check
      %p3142 = pneg %p3141
    $region71: #{attention_decoder_forward.21} parent=1 // pred_check_branch
      %3144 = sbr.rel (%p3142) target = $region73
    $region72: #{attention_decoder_forward.21} parent=1 // pred_region
      %v3145 = vld [vmem:[#allocation2] sm:$0x3]
      %v3146 = vld [vmem:[#allocation3] sm:$0x3]
      %v3147 = vpack.c.bf16 %v3145, %v3145
      %v3152 = vunpack.c.l.b16 %v61
      %v3153 = vunpack.c.l.b16 %v62
      %v3154 = vunpack.c.l.b16 %v63
      %v3155 = vunpack.c.l.b16 %v64
      %v3156 = vpack.c.b16 %v3153, %v3152
      %v3157 = vpack.c.b16 %v3155, %v3154
      %vm3160 = vcmask 261120
      %v3162 = vsel %vm3160, %v3147, 0
      %3164 = vmatprep.subr.bf16.mxu0 0
      %3165 = vmatpush1.bf16.msra.mxu0 %v3156
      %3166 = vmatprep.subr.bf16.mxu0 0
      %3167 = vmatpush1.bf16.msra.mxu0 %v3157
      %3168 = vmatprep.subr.bf16.mxu0 0
      %3169 = vmatpush1.bf16.msra.mxu0 0
      %3170 = vmatprep.subr.bf16.mxu0 0
      %3171 = vmatpush1.bf16.msra.mxu0 0
      %3172 = vmatprep.subr.bf16.mxu0 0
      %3173 = vmatpush1.bf16.msra.mxu0 0
      %3174 = vmatprep.subr.bf16.mxu0 0
      %3175 = vmatpush1.bf16.msra.mxu0 0
      %3176 = vmatprep.subr.bf16.mxu0 0
      %3177 = vmatpush1.bf16.msra.mxu0 0
      %3178 = vmatprep.subr.bf16.mxu0 0
      %3179 = vmatpush1.bf16.msra.mxu0 0
      %3180 = vmatprep.subr.bf16.mxu0 0
      %3181 = vmatpush1.bf16.msra.mxu0 0
      %3182 = vmatprep.subr.bf16.mxu0 0
      %3183 = vmatpush1.bf16.msra.mxu0 0
      %3184 = vmatprep.subr.bf16.mxu0 0
      %3185 = vmatpush1.bf16.msra.mxu0 0
      %3186 = vmatprep.subr.bf16.mxu0 0
      %3187 = vmatpush1.bf16.msra.mxu0 0
      %3188 = vmatprep.subr.bf16.mxu0 0
      %3189 = vmatpush1.bf16.msra.mxu0 0
      %3190 = vmatprep.subr.bf16.mxu0 0
      %3191 = vmatpush1.bf16.msra.mxu0 0
      %3192 = vmatprep.subr.bf16.mxu0 0
      %3193 = vmatpush1.bf16.msra.mxu0 0
      %3194 = vmatprep.subr.bf16.mxu0 0
      %3195 = vmatpush1.bf16.msra.mxu0 0
      %3196 = vmatprep.mubr.bf16.mxu0 0
      %3197 = vmatmul.mubr.bf16.gmra.mrb[0].mxu0 %v3162
      %v3198 = vpop.f32.mrb[0].mxu0
      %v3199 = vadd.f32 0.0, %v3198
      %v3200 = vpop.f32.mrb[0].mxu0
      %v3201 = vpop.f32.mrb[0].mxu0
      %v3202 = vpop.f32.mrb[0].mxu0
      %3203 = vdwg.mxu0
      %v3205 = vlaneseq
      %v3206 = vshrl.u32 %v3205, 7
      %v3207 = vsub.s32 0, %v3206
      %v3208 = vrot.slane %v77, %v3207
      %v3210 = vadd.f32 %v3199, %v3208
      %v3212 = vlaneseq
      %v3213 = vshrl.u32 %v3212, 7
      %v3214 = vsub.s32 0, %v3213
      %v3215 = vrot.slane %v78, %v3214
      %3216 = vrot.lane.b32.xlu0 %v3215, 96
      %v3217 = vpop.permute.xlu0 %3216
      %v3219 = vadd.f32 %v3199, %v3217
      %v3222 = vunpack.c.l.s4 1966171168
      %v3223 = vunpack.c.0.s8 %v3222
      %v3224 = vlaneseq
      %v3225 = vshrl.u32 %v3224, 7
      %v3226 = vsub.s32 %v3223, %v3225
      %v3227 = vrot.slane %v3219, %v3226
      %v3228 = vcombine.high %v3227, %v3227
      %v3230 = vunpack.c.l.s4 1966171168
      %v3231 = vunpack.c.0.s8 %v3230
      %v3232 = vlaneseq
      %v3233 = vshrl.u32 %v3232, 7
      %v3234 = vsub.s32 %v3231, %v3233
      %v3235 = vrot.slane %v3227, %v3234
      %v3237 = vunpack.c.l.s4 1966171168
      %v3238 = vunpack.c.0.s8 %v3237
      %v3239 = vlaneseq
      %v3240 = vshrl.u32 %v3239, 7
      %v3241 = vsub.s32 %v3238, %v3240
      %v3242 = vrot.slane %v3228, %v3241
      %v3243 = vlaneseq
      %v3244 = vshrl.u32 %v3243, 7
      %v3245 = vsub.s32 0, %v3244
      %v3246 = vrot.slane %v3235, %v3245
      %v3247 = vlaneseq
      %v3248 = vshrl.u32 %v3247, 7
      %v3249 = vsub.s32 0, %v3248
      %v3250 = vrot.slane %v3242, %v3249
      %3251 = vrot.lane.b32.xlu0 %v3246, 32
      %v3252 = vpop.permute.xlu0 %3251
      %3253 = vrot.lane.b32.xlu0 %v3250, 32
      %v3254 = vpop.permute.xlu0 %3253
      %v3257 = vadd.f32 %v58, %v3252
      %v3258 = vadd.f32 %v59, %v3254
      %v3259 = vtanh.pop %v3257
      %v3260 = vtanh.pop %v3258
      %v3262 = vlaneseq
      %v3263 = vshrl.u32 %v3262, 7
      %v3264 = vsub.s32 0, %v3263
      %v3265 = vrot.slane %v60, %v3264
      %v3267 = vmul.f32 %v3259, %v3265
      %v3268 = vmul.f32 %v3260, %v3265
      %v3269 = vsel %vm3160, %v3267, 0.0
      %3270 = vadd.xlane.f32.xlu0 %v3269
      %v3271 = vpop.xlane.xlu0 %3270
      %v3272 = vsel %vm3160, %v3268, 0.0
      %3273 = vadd.xlane.f32.xlu0 %v3272
      %v3274 = vpop.xlane.xlu0 %3273
      %v3277 = vlaneseq
      %v3278 = vshrl.u32 %v3277, 7
      %v3279 = vsub.s32 %v43, %v3278
      %v3280 = vrot.slane %v3271, %v3279
      %v3281 = vlaneseq
      %v3282 = vshrl.u32 %v3281, 7
      %v3283 = vsub.s32 %v43, %v3282
      %v3284 = vrot.slane %v3274, %v3283
      %vm3285 = vcmask 1041409
      %v3286 = vsel %vm3285, %v3284, %v3280
      %v3288 = vsel %vm50, %v3286, -inf
      %3289 = vmax.xlane.f32.xlu0 %v3288
      %v3290 = vpop.xlane.xlu0 %3289
      %v3292 = vlaneseq
      %v3293 = vshrl.u32 %v3292, 7
      %v3294 = vsub.s32 0, %v3293
      %v3295 = vrot.slane %v3290, %v3294
      %v3296 = vlaneseq
      %v3297 = vshrl.u32 %v3296, 7
      %v3298 = vsub.s32 1, %v3297
      %v3299 = vrot.slane %v3290, %v3298
      %v3302 = vsub.f32 %v3271, %v3295
      %v3303 = vsub.f32 %v3274, %v3299
      %v3304 = vmul.f32 %v3302, 1.442695
      %v3305 = vpow.pop %v3304
      %v3306 = vmul.f32 %v3303, 1.442695
      %v3307 = vpow.pop %v3306
      %3310 = vset.pattern.permute.xlu0 0
      %3311 = vperm.xlu0 %3310, %v3305
      %v3312 = vpop.permute.xlu0 %3311
      %3313 = vset.pattern.permute.xlu0 0
      %3314 = vperm.xlu0 %3313, %v3307
      %v3315 = vpop.permute.xlu0 %3314
      %v3316 = vlaneseq
      %v3317 = vshrl.u32 %v3316, 7
      %v3318 = vsub.s32 %v43, %v3317
      %v3319 = vrot.slane %v3312, %v3318
      %v3320 = vlaneseq
      %v3321 = vshrl.u32 %v3320, 7
      %v3322 = vsub.s32 %v43, %v3321
      %v3323 = vrot.slane %v3315, %v3322
      %v3324 = vsel %vm3285, %v3323, %v3319
      %v3326 = vsel %vm50, %v3324, 0.0
      %3327 = vadd.xlane.f32.xlu0 %v3326
      %v3328 = vpop.xlane.xlu0 %3327
      %v3330 = vlaneseq
      %v3331 = vshrl.u32 %v3330, 7
      %v3332 = vsub.s32 0, %v3331
      %v3333 = vrot.slane %v3328, %v3332
      %v3334 = vlaneseq
      %v3335 = vshrl.u32 %v3334, 7
      %v3336 = vsub.s32 1, %v3335
      %v3337 = vrot.slane %v3328, %v3336
      %v3340 = vrcp.pop %v3333
      %v3341 = vmul.f32 %v3305, %v3340
      %v3342 = vrcp.pop %v3337
      %v3343 = vmul.f32 %v3307, %v3342
      %3345 = vset.pattern.permute.xlu0 0
      %3346 = vperm.xlu0 %3345, %v3341
      %v3347 = vpop.permute.xlu0 %3346
      %3350 = vset.pattern.permute.xlu0 0
      %3351 = vperm.xlu0 %3350, %v3343
      %v3352 = vpop.permute.xlu0 %3351
      %v3354 = vmul.f32 %v3347, %v54
      %v3355 = vmul.f32 %v3352, %v55
      %vm3356 = vcmask 334848
      %v3357 = vsel %vm3356, %v3354, 0.0
      %v3358 = vrot.slane %v3357, 4
      %v3359 = vadd.f32 %v3357, %v3358
      %v3360 = vrot.slane %v3359, 2
      %v3361 = vadd.f32 %v3359, %v3360
      %v3362 = vrot.slane %v3361, 1
      %v3363 = vadd.f32 %v3361, %v3362
      %v3364 = vsel %vm3356, %v3355, 0.0
      %v3365 = vrot.slane %v3364, 4
      %v3366 = vadd.f32 %v3364, %v3365
      %v3367 = vrot.slane %v3366, 2
      %v3368 = vadd.f32 %v3366, %v3367
      %v3369 = vrot.slane %v3368, 1
      %v3370 = vadd.f32 %v3368, %v3369
      %v3371 = vpack.c.bf16 %v3146, %v3146
      %v3372 = vpack.c.bf16 %v3363, %v3363
      %v3373 = vpack.c.bf16 %v3370, %v3370
      %v3376 = vunpack.c.l.b16 %v3372
      %v3377 = vunpack.c.l.b16 %v3373
      %v3378 = vsel %vm3285, %v3377, %v3376
      %v3379 = vpack.c.b16 %v3378, %v3378
      %v3386 = vunpack.c.l.b16 %v67
      %v3387 = vunpack.c.l.b16 %v68
      %v3388 = vunpack.c.l.b16 %v69
      %v3389 = vunpack.c.l.b16 %v70
      %v3390 = vunpack.c.l.b16 %v71
      %v3391 = vunpack.c.l.b16 %v72
      %v3392 = vpack.c.b16 %v3387, %v3386
      %v3393 = vpack.c.b16 %v3389, %v3388
      %v3394 = vpack.c.b16 %v3391, %v3390
      %v3398 = vsel %vm3356, %v3379, 0
      %vm3400 = vcmask 1043456
      %vm3401 = vcmask 1044480
      %v3402 = vsel %vm3400, 4294967295, 65535
      %v3403 = vsel %vm3401, %v3402, 0
      %v3405 = vand.u32 %v3394, %v3403
      %3407 = vmatprep.subr.bf16.mxu0 0
      %3408 = vmatpush1.bf16.msra.mxu0 %v3392
      %3409 = vmatprep.subr.bf16.mxu0 0
      %3410 = vmatpush1.bf16.msra.mxu0 %v3393
      %3411 = vmatprep.subr.bf16.mxu0 0
      %3412 = vmatpush1.bf16.msra.mxu0 %v3405
      %3413 = vmatprep.subr.bf16.mxu0 0
      %3414 = vmatpush1.bf16.msra.mxu0 0
      %3415 = vmatprep.subr.bf16.mxu0 0
      %3416 = vmatpush1.bf16.msra.mxu0 0
      %3417 = vmatprep.subr.bf16.mxu0 0
      %3418 = vmatpush1.bf16.msra.mxu0 0
      %3419 = vmatprep.subr.bf16.mxu0 0
      %3420 = vmatpush1.bf16.msra.mxu0 0
      %3421 = vmatprep.subr.bf16.mxu0 0
      %3422 = vmatpush1.bf16.msra.mxu0 0
      %3423 = vmatprep.subr.bf16.mxu0 0
      %3424 = vmatpush1.bf16.msra.mxu0 0
      %3425 = vmatprep.subr.bf16.mxu0 0
      %3426 = vmatpush1.bf16.msra.mxu0 0
      %3427 = vmatprep.subr.bf16.mxu0 0
      %3428 = vmatpush1.bf16.msra.mxu0 0
      %3429 = vmatprep.subr.bf16.mxu0 0
      %3430 = vmatpush1.bf16.msra.mxu0 0
      %3431 = vmatprep.subr.bf16.mxu0 0
      %3432 = vmatpush1.bf16.msra.mxu0 0
      %3433 = vmatprep.subr.bf16.mxu0 0
      %3434 = vmatpush1.bf16.msra.mxu0 0
      %3435 = vmatprep.subr.bf16.mxu0 0
      %3436 = vmatpush1.bf16.msra.mxu0 0
      %3437 = vmatprep.subr.bf16.mxu0 0
      %3438 = vmatpush1.bf16.msra.mxu0 0
      %3439 = vmatprep.mubr.bf16.mxu0 0
      %3440 = vmatmul.mubr.bf16.gmra.mrb[0].mxu0 %v3398
      %v3441 = vpop.f32.mrb[0].mxu0
      %v3442 = vadd.f32 0.0, %v3441
      %v3443 = vpop.f32.mrb[0].mxu0
      %v3444 = vpop.f32.mrb[0].mxu0
      %v3445 = vpop.f32.mrb[0].mxu0
      %3446 = vdwg.mxu0
      %v3449 = vunpack.c.l.b16 %v65
      %v3450 = vunpack.c.l.b16 %v66
      %v3451 = vpack.c.b16 %v3450, %v3449
      %vm3452 = vcmask 97280
      %v3454 = vsel %vm3452, %v3371, 0
      %vm3456 = vcmask 1045504
      %v3458 = vsel %vm3456, %v3451, 0
      %3460 = vmatprep.subr.bf16.mxu0 0
      %3461 = vmatpush1.bf16.msra.mxu0 %v3458
      %3462 = vmatprep.subr.bf16.mxu0 0
      %3463 = vmatpush1.bf16.msra.mxu0 0
      %3464 = vmatprep.subr.bf16.mxu0 0
      %3465 = vmatpush1.bf16.msra.mxu0 0
      %3466 = vmatprep.subr.bf16.mxu0 0
      %3467 = vmatpush1.bf16.msra.mxu0 0
      %3468 = vmatprep.subr.bf16.mxu0 0
      %3469 = vmatpush1.bf16.msra.mxu0 0
      %3470 = vmatprep.subr.bf16.mxu0 0
      %3471 = vmatpush1.bf16.msra.mxu0 0
      %3472 = vmatprep.subr.bf16.mxu0 0
      %3473 = vmatpush1.bf16.msra.mxu0 0
      %3474 = vmatprep.subr.bf16.mxu0 0
      %3475 = vmatpush1.bf16.msra.mxu0 0
      %3476 = vmatprep.subr.bf16.mxu0 0
      %3477 = vmatpush1.bf16.msra.mxu0 0
      %3478 = vmatprep.subr.bf16.mxu0 0
      %3479 = vmatpush1.bf16.msra.mxu0 0
      %3480 = vmatprep.subr.bf16.mxu0 0
      %3481 = vmatpush1.bf16.msra.mxu0 0
      %3482 = vmatprep.subr.bf16.mxu0 0
      %3483 = vmatpush1.bf16.msra.mxu0 0
      %3484 = vmatprep.subr.bf16.mxu0 0
      %3485 = vmatpush1.bf16.msra.mxu0 0
      %3486 = vmatprep.subr.bf16.mxu0 0
      %3487 = vmatpush1.bf16.msra.mxu0 0
      %3488 = vmatprep.subr.bf16.mxu0 0
      %3489 = vmatpush1.bf16.msra.mxu0 0
      %3490 = vmatprep.subr.bf16.mxu0 0
      %3491 = vmatpush1.bf16.msra.mxu0 0
      %3492 = vmatprep.mubr.bf16.mxu0 0
      %3493 = vmatmul.mubr.bf16.gmra.mrb[0].mxu0 %v3454
      %v3494 = vpop.f32.mrb[0].mxu0
      %v3495 = vadd.f32 %v3442, %v3494
      %v3496 = vpop.f32.mrb[0].mxu0
      %v3497 = vpop.f32.mrb[0].mxu0
      %v3498 = vpop.f32.mrb[0].mxu0
      %3499 = vdwg.mxu0
      %v3501 = vlaneseq
      %v3502 = vshrl.u32 %v3501, 7
      %v3503 = vsub.s32 0, %v3502
      %v3504 = vrot.slane %v79, %v3503
      %v3506 = vadd.f32 %v3495, %v3504
      %v3507 = vadd.f32 %v3506, %v3210
      %v3508 = vxor.u32 %v3507, 2147483648
      %v3509 = vmul.f32 %v3508, 1.442695
      %v3510 = vpow.pop %v3509
      %v3511 = vadd.f32 %v3510, 1.0
      %v3512 = vrcp.pop %v3511
      %v3513 = vmul.f32 1.0, %v3512
      %3515 = vrot.lane.b32.xlu0 %v3210, 64
      %v3516 = vpop.permute.xlu0 %3515
      %v3518 = vmul.f32 %v3513, %v3516
      %3520 = vrot.lane.b32.xlu0 %v3518, 64
      %v3521 = vpop.permute.xlu0 %3520
      %v3523 = vadd.f32 %v3506, %v3521
      %v3524 = vtanh.pop %v3523
      %v3525 = vsub.f32 1.0, %v3513
      %3527 = vrot.lane.b32.xlu0 %v3524, 96
      %v3528 = vpop.permute.xlu0 %3527
      %v3530 = vmul.f32 %v3525, %v3528
      %3532 = vrot.lane.b32.xlu0 %v3145, 32
      %v3533 = vpop.permute.xlu0 %3532
      %v3535 = vmul.f32 %v3513, %v3533
      %v3536 = vadd.f32 %v3530, %v3535
      %v3537 = vpack.c.bf16 %v3536, %v3536
      %v3539 = vlaneseq
      %v3540 = vshrl.u32 %v3539, 7
      %v3541 = vsub.s32 0, %v3540
      %v3542 = vrot.slane %v80, %v3541
      %3545 = vrot.lane.b32.xlu0 %v3537, 96
      %v3546 = vpop.permute.xlu0 %3545
      %v3551 = vunpack.c.l.b16 %v73
      %v3552 = vunpack.c.l.b16 %v74
      %v3553 = vunpack.c.l.b16 %v75
      %v3554 = vunpack.c.l.b16 %v76
      %v3555 = vpack.c.b16 %v3552, %v3551
      %v3556 = vpack.c.b16 %v3554, %v3553
      %v3560 = vsel %vm3160, %v3546, 0
      %3562 = vmatprep.subr.bf16.mxu0 0
      %3563 = vmatpush1.bf16.msra.mxu0 %v3555
      %3564 = vmatprep.subr.bf16.mxu0 0
      %3565 = vmatpush1.bf16.msra.mxu0 %v3556
      %3566 = vmatprep.subr.bf16.mxu0 0
      %3567 = vmatpush1.bf16.msra.mxu0 0
      %3568 = vmatprep.subr.bf16.mxu0 0
      %3569 = vmatpush1.bf16.msra.mxu0 0
      %3570 = vmatprep.subr.bf16.mxu0 0
      %3571 = vmatpush1.bf16.msra.mxu0 0
      %3572 = vmatprep.subr.bf16.mxu0 0
      %3573 = vmatpush1.bf16.msra.mxu0 0
      %3574 = vmatprep.subr.bf16.mxu0 0
      %3575 = vmatpush1.bf16.msra.mxu0 0
      %3576 = vmatprep.subr.bf16.mxu0 0
      %3577 = vmatpush1.bf16.msra.mxu0 0
      %3578 = vmatprep.subr.bf16.mxu0 0
      %3579 = vmatpush1.bf16.msra.mxu0 0
      %3580 = vmatprep.subr.bf16.mxu0 0
      %3581 = vmatpush1.bf16.msra.mxu0 0
      %3582 = vmatprep.subr.bf16.mxu0 0
      %3583 = vmatpush1.bf16.msra.mxu0 0
      %3584 = vmatprep.subr.bf16.mxu0 0
      %3585 = vmatpush1.bf16.msra.mxu0 0
      %3586 = vmatprep.subr.bf16.mxu0 0
      %3587 = vmatpush1.bf16.msra.mxu0 0
      %3588 = vmatprep.subr.bf16.mxu0 0
      %3589 = vmatpush1.bf16.msra.mxu0 0
      %3590 = vmatprep.subr.bf16.mxu0 0
      %3591 = vmatpush1.bf16.msra.mxu0 0
      %3592 = vmatprep.subr.bf16.mxu0 0
      %3593 = vmatpush1.bf16.msra.mxu0 0
      %3594 = vmatprep.mubr.bf16.mxu0 0
      %3595 = vmatmul.mubr.bf16.gmra.mrb[0].mxu0 %v3560
      %v3596 = vpop.f32.mrb[0].mxu0
      %v3597 = vadd.f32 %v3542, %v3596
      %v3598 = vpop.f32.mrb[0].mxu0
      %v3599 = vpop.f32.mrb[0].mxu0
      %v3600 = vpop.f32.mrb[0].mxu0
      %3601 = vdwg.mxu0
      %v3602 = vsel %vm46, %v3597, -inf
      %3603 = vmax.xlane.f32.xlu0 %v3602
      %v3604 = vpop.xlane.xlu0 %3603
      %vm3605 = vcmp.eq.f32.partialorder %v3597, %v3604
      %v3606 = vsel %vm3605, %v43, 12
      %v3607 = vsel %vm46, %v3606, 2147483647
      %v3608 = vand.u32 %v3607, 65535
      %v3609 = vshra.s32 %v3607, 16
      %v3610 = vcvt.s32.f32 %v3608
      %v3611 = vcvt.s32.f32 %v3609
      %3612 = vmin.xlane.f32.xlu0 %v3611
      %v3613 = vpop.xlane.xlu0 %3612
      %vm3614 = vcmp.eq.f32.partialorder %v3611, %v3613
      %v3615 = vsel %vm3614, %v3610, inf
      %3616 = vmin.xlane.f32.xlu0 %v3615
      %v3617 = vpop.xlane.xlu0 %3616
      %v3618 = vcvt.f32.s32 %v3617
      %v3619 = vcvt.f32.s32 %v3613
      %v3620 = vshll.u32 %v3619, 16
      %v3621 = vadd.s32 %v3620, %v3618
      %vm3622 = vcmp.eq.s32.totalorder %v43, 6
      %v3623 = vld [vmem:[#allocation5] sm:$0x3]
      %v3624 = vsel %vm3622, %v3621, %v3623
      %3625 = vst.msk [vmem:[#allocation5] sm:$0x3] %vm50, %v3624
      %vm3626 = vcmp.eq.s32.totalorder %v3621, 0
      %v3627 = vsel %vm3626, 0.0, 1.0
      %vm3628 = vcmask 1024
      %v3629 = vsel %vm3628, %v3627, 0.0
      %3630 = vadd.xlane.f32.xlu0 %v3629
      %v3631 = vpop.xlane.xlu0 %3630
      %v3632 = vrot.slane %v3631, 4
      %v3633 = vadd.f32 %v3631, %v3632
      %v3634 = vrot.slane %v3633, 2
      %v3635 = vadd.f32 %v3633, %v3634
      %v3636 = vrot.slane %v3635, 1
      %v3637 = vadd.f32 %v3635, %v3636
      %s3638 = vtos %v3637
      %p3639 = scmp.eq.f32.partialorder %s3638, 0.0
      %s3640 = scalar_select %p3639, 1, 0
      %3641 = sst [smem:[%s48]] %s3640
      %3643 = vrot.lane.b32.xlu0 %v3536, 96
      %v3644 = vpop.permute.xlu0 %3643
      %3646 = vst.msk [vmem:[#allocation2] sm:$0x3] %vm40, %v3644
      %vm3647 = vcmp.eq.s32.totalorder %v43, %v3621
      %v3648 = vsel %vm3647, 1.0, 0.0
      %3649 = vst.msk [vmem:[#allocation3] sm:$0x3] %vm46, %v3648
    $region73: #{attention_decoder_forward.21} parent=1 // pred_fallthru
      _
    %s3650 = sld [smem:[#allocation4]]
    %p3651 = scmp.eq.s32.totalorder %s3650, 0
    // Predicated region
    $region74: #{attention_decoder_forward.21} parent=1 // pred_check
      %p3652 = pneg %p3651
    $region75: #{attention_decoder_forward.21} parent=1 // pred_check_branch
      %3654 = sbr.rel (%p3652) target = $region77
    $region76: #{attention_decoder_forward.21} parent=1 // pred_region
      %v3655 = vld [vmem:[#allocation2] sm:$0x3]
      %v3656 = vld [vmem:[#allocation3] sm:$0x3]
      %v3657 = vpack.c.bf16 %v3655, %v3655
      %v3662 = vunpack.c.l.b16 %v61
      %v3663 = vunpack.c.l.b16 %v62
      %v3664 = vunpack.c.l.b16 %v63
      %v3665 = vunpack.c.l.b16 %v64
      %v3666 = vpack.c.b16 %v3663, %v3662
      %v3667 = vpack.c.b16 %v3665, %v3664
      %vm3670 = vcmask 261120
      %v3672 = vsel %vm3670, %v3657, 0
      %3674 = vmatprep.subr.bf16.mxu0 0
      %3675 = vmatpush1.bf16.msra.mxu0 %v3666
      %3676 = vmatprep.subr.bf16.mxu0 0
      %3677 = vmatpush1.bf16.msra.mxu0 %v3667
      %3678 = vmatprep.subr.bf16.mxu0 0
      %3679 = vmatpush1.bf16.msra.mxu0 0
      %3680 = vmatprep.subr.bf16.mxu0 0
      %3681 = vmatpush1.bf16.msra.mxu0 0
      %3682 = vmatprep.subr.bf16.mxu0 0
      %3683 = vmatpush1.bf16.msra.mxu0 0
      %3684 = vmatprep.subr.bf16.mxu0 0
      %3685 = vmatpush1.bf16.msra.mxu0 0
      %3686 = vmatprep.subr.bf16.mxu0 0
      %3687 = vmatpush1.bf16.msra.mxu0 0
      %3688 = vmatprep.subr.bf16.mxu0 0
      %3689 = vmatpush1.bf16.msra.mxu0 0
      %3690 = vmatprep.subr.bf16.mxu0 0
      %3691 = vmatpush1.bf16.msra.mxu0 0
      %3692 = vmatprep.subr.bf16.mxu0 0
      %3693 = vmatpush1.bf16.msra.mxu0 0
      %3694 = vmatprep.subr.bf16.mxu0 0
      %3695 = vmatpush1.bf16.msra.mxu0 0
      %3696 = vmatprep.subr.bf16.mxu0 0
      %3697 = vmatpush1.bf16.msra.mxu0 0
      %3698 = vmatprep.subr.bf16.mxu0 0
      %3699 = vmatpush1.bf16.msra.mxu0 0
      %3700 = vmatprep.subr.bf16.mxu0 0
      %3701 = vmatpush1.bf16.msra.mxu0 0
      %3702 = vmatprep.subr.bf16.mxu0 0
      %3703 = vmatpush1.bf16.msra.mxu0 0
      %3704 = vmatprep.subr.bf16.mxu0 0
      %3705 = vmatpush1.bf16.msra.mxu0 0
      %3706 = vmatprep.mubr.bf16.mxu0 0
      %3707 = vmatmul.mubr.bf16.gmra.mrb[0].mxu0 %v3672
      %v3708 = vpop.f32.mrb[0].mxu0
      %v3709 = vadd.f32 0.0, %v3708
      %v3710 = vpop.f32.mrb[0].mxu0
      %v3711 = vpop.f32.mrb[0].mxu0
      %v3712 = vpop.f32.mrb[0].mxu0
      %3713 = vdwg.mxu0
      %v3715 = vlaneseq
      %v3716 = vshrl.u32 %v3715, 7
      %v3717 = vsub.s32 0, %v3716
      %v3718 = vrot.slane %v77, %v3717
      %v3720 = vadd.f32 %v3709, %v3718
      %v3722 = vlaneseq
      %v3723 = vshrl.u32 %v3722, 7
      %v3724 = vsub.s32 0, %v3723
      %v3725 = vrot.slane %v78, %v3724
      %3726 = vrot.lane.b32.xlu0 %v3725, 96
      %v3727 = vpop.permute.xlu0 %3726
      %v3729 = vadd.f32 %v3709, %v3727
      %v3732 = vunpack.c.l.s4 1966171168
      %v3733 = vunpack.c.0.s8 %v3732
      %v3734 = vlaneseq
      %v3735 = vshrl.u32 %v3734, 7
      %v3736 = vsub.s32 %v3733, %v3735
      %v3737 = vrot.slane %v3729, %v3736
      %v3738 = vcombine.high %v3737, %v3737
      %v3740 = vunpack.c.l.s4 1966171168
      %v3741 = vunpack.c.0.s8 %v3740
      %v3742 = vlaneseq
      %v3743 = vshrl.u32 %v3742, 7
      %v3744 = vsub.s32 %v3741, %v3743
      %v3745 = vrot.slane %v3737, %v3744
      %v3747 = vunpack.c.l.s4 1966171168
      %v3748 = vunpack.c.0.s8 %v3747
      %v3749 = vlaneseq
      %v3750 = vshrl.u32 %v3749, 7
      %v3751 = vsub.s32 %v3748, %v3750
      %v3752 = vrot.slane %v3738, %v3751
      %v3753 = vlaneseq
      %v3754 = vshrl.u32 %v3753, 7
      %v3755 = vsub.s32 0, %v3754
      %v3756 = vrot.slane %v3745, %v3755
      %v3757 = vlaneseq
      %v3758 = vshrl.u32 %v3757, 7
      %v3759 = vsub.s32 0, %v3758
      %v3760 = vrot.slane %v3752, %v3759
      %3761 = vrot.lane.b32.xlu0 %v3756, 32
      %v3762 = vpop.permute.xlu0 %3761
      %3763 = vrot.lane.b32.xlu0 %v3760, 32
      %v3764 = vpop.permute.xlu0 %3763
      %v3767 = vadd.f32 %v58, %v3762
      %v3768 = vadd.f32 %v59, %v3764
      %v3769 = vtanh.pop %v3767
      %v3770 = vtanh.pop %v3768
      %v3772 = vlaneseq
      %v3773 = vshrl.u32 %v3772, 7
      %v3774 = vsub.s32 0, %v3773
      %v3775 = vrot.slane %v60, %v3774
      %v3777 = vmul.f32 %v3769, %v3775
      %v3778 = vmul.f32 %v3770, %v3775
      %v3779 = vsel %vm3670, %v3777, 0.0
      %3780 = vadd.xlane.f32.xlu0 %v3779
      %v3781 = vpop.xlane.xlu0 %3780
      %v3782 = vsel %vm3670, %v3778, 0.0
      %3783 = vadd.xlane.f32.xlu0 %v3782
      %v3784 = vpop.xlane.xlu0 %3783
      %v3787 = vlaneseq
      %v3788 = vshrl.u32 %v3787, 7
      %v3789 = vsub.s32 %v43, %v3788
      %v3790 = vrot.slane %v3781, %v3789
      %v3791 = vlaneseq
      %v3792 = vshrl.u32 %v3791, 7
      %v3793 = vsub.s32 %v43, %v3792
      %v3794 = vrot.slane %v3784, %v3793
      %vm3795 = vcmask 1041409
      %v3796 = vsel %vm3795, %v3794, %v3790
      %v3798 = vsel %vm50, %v3796, -inf
      %3799 = vmax.xlane.f32.xlu0 %v3798
      %v3800 = vpop.xlane.xlu0 %3799
      %v3802 = vlaneseq
      %v3803 = vshrl.u32 %v3802, 7
      %v3804 = vsub.s32 0, %v3803
      %v3805 = vrot.slane %v3800, %v3804
      %v3806 = vlaneseq
      %v3807 = vshrl.u32 %v3806, 7
      %v3808 = vsub.s32 1, %v3807
      %v3809 = vrot.slane %v3800, %v3808
      %v3812 = vsub.f32 %v3781, %v3805
      %v3813 = vsub.f32 %v3784, %v3809
      %v3814 = vmul.f32 %v3812, 1.442695
      %v3815 = vpow.pop %v3814
      %v3816 = vmul.f32 %v3813, 1.442695
      %v3817 = vpow.pop %v3816
      %3820 = vset.pattern.permute.xlu0 0
      %3821 = vperm.xlu0 %3820, %v3815
      %v3822 = vpop.permute.xlu0 %3821
      %3823 = vset.pattern.permute.xlu0 0
      %3824 = vperm.xlu0 %3823, %v3817
      %v3825 = vpop.permute.xlu0 %3824
      %v3826 = vlaneseq
      %v3827 = vshrl.u32 %v3826, 7
      %v3828 = vsub.s32 %v43, %v3827
      %v3829 = vrot.slane %v3822, %v3828
      %v3830 = vlaneseq
      %v3831 = vshrl.u32 %v3830, 7
      %v3832 = vsub.s32 %v43, %v3831
      %v3833 = vrot.slane %v3825, %v3832
      %v3834 = vsel %vm3795, %v3833, %v3829
      %v3836 = vsel %vm50, %v3834, 0.0
      %3837 = vadd.xlane.f32.xlu0 %v3836
      %v3838 = vpop.xlane.xlu0 %3837
      %v3840 = vlaneseq
      %v3841 = vshrl.u32 %v3840, 7
      %v3842 = vsub.s32 0, %v3841
      %v3843 = vrot.slane %v3838, %v3842
      %v3844 = vlaneseq
      %v3845 = vshrl.u32 %v3844, 7
      %v3846 = vsub.s32 1, %v3845
      %v3847 = vrot.slane %v3838, %v3846
      %v3850 = vrcp.pop %v3843
      %v3851 = vmul.f32 %v3815, %v3850
      %v3852 = vrcp.pop %v3847
      %v3853 = vmul.f32 %v3817, %v3852
      %3855 = vset.pattern.permute.xlu0 0
      %3856 = vperm.xlu0 %3855, %v3851
      %v3857 = vpop.permute.xlu0 %3856
      %3860 = vset.pattern.permute.xlu0 0
      %3861 = vperm.xlu0 %3860, %v3853
      %v3862 = vpop.permute.xlu0 %3861
      %v3864 = vmul.f32 %v3857, %v54
      %v3865 = vmul.f32 %v3862, %v55
      %vm3866 = vcmask 334848
      %v3867 = vsel %vm3866, %v3864, 0.0
      %v3868 = vrot.slane %v3867, 4
      %v3869 = vadd.f32 %v3867, %v3868
      %v3870 = vrot.slane %v3869, 2
      %v3871 = vadd.f32 %v3869, %v3870
      %v3872 = vrot.slane %v3871, 1
      %v3873 = vadd.f32 %v3871, %v3872
      %v3874 = vsel %vm3866, %v3865, 0.0
      %v3875 = vrot.slane %v3874, 4
      %v3876 = vadd.f32 %v3874, %v3875
      %v3877 = vrot.slane %v3876, 2
      %v3878 = vadd.f32 %v3876, %v3877
      %v3879 = vrot.slane %v3878, 1
      %v3880 = vadd.f32 %v3878, %v3879
      %v3881 = vpack.c.bf16 %v3656, %v3656
      %v3882 = vpack.c.bf16 %v3873, %v3873
      %v3883 = vpack.c.bf16 %v3880, %v3880
      %v3886 = vunpack.c.l.b16 %v3882
      %v3887 = vunpack.c.l.b16 %v3883
      %v3888 = vsel %vm3795, %v3887, %v3886
      %v3889 = vpack.c.b16 %v3888, %v3888
      %v3896 = vunpack.c.l.b16 %v67
      %v3897 = vunpack.c.l.b16 %v68
      %v3898 = vunpack.c.l.b16 %v69
      %v3899 = vunpack.c.l.b16 %v70
      %v3900 = vunpack.c.l.b16 %v71
      %v3901 = vunpack.c.l.b16 %v72
      %v3902 = vpack.c.b16 %v3897, %v3896
      %v3903 = vpack.c.b16 %v3899, %v3898
      %v3904 = vpack.c.b16 %v3901, %v3900
      %v3908 = vsel %vm3866, %v3889, 0
      %vm3910 = vcmask 1043456
      %vm3911 = vcmask 1044480
      %v3912 = vsel %vm3910, 4294967295, 65535
      %v3913 = vsel %vm3911, %v3912, 0
      %v3915 = vand.u32 %v3904, %v3913
      %3917 = vmatprep.subr.bf16.mxu0 0
      %3918 = vmatpush1.bf16.msra.mxu0 %v3902
      %3919 = vmatprep.subr.bf16.mxu0 0
      %3920 = vmatpush1.bf16.msra.mxu0 %v3903
      %3921 = vmatprep.subr.bf16.mxu0 0
      %3922 = vmatpush1.bf16.msra.mxu0 %v3915
      %3923 = vmatprep.subr.bf16.mxu0 0
      %3924 = vmatpush1.bf16.msra.mxu0 0
      %3925 = vmatprep.subr.bf16.mxu0 0
      %3926 = vmatpush1.bf16.msra.mxu0 0
      %3927 = vmatprep.subr.bf16.mxu0 0
      %3928 = vmatpush1.bf16.msra.mxu0 0
      %3929 = vmatprep.subr.bf16.mxu0 0
      %3930 = vmatpush1.bf16.msra.mxu0 0
      %3931 = vmatprep.subr.bf16.mxu0 0
      %3932 = vmatpush1.bf16.msra.mxu0 0
      %3933 = vmatprep.subr.bf16.mxu0 0
      %3934 = vmatpush1.bf16.msra.mxu0 0
      %3935 = vmatprep.subr.bf16.mxu0 0
      %3936 = vmatpush1.bf16.msra.mxu0 0
      %3937 = vmatprep.subr.bf16.mxu0 0
      %3938 = vmatpush1.bf16.msra.mxu0 0
      %3939 = vmatprep.subr.bf16.mxu0 0
      %3940 = vmatpush1.bf16.msra.mxu0 0
      %3941 = vmatprep.subr.bf16.mxu0 0
      %3942 = vmatpush1.bf16.msra.mxu0 0
      %3943 = vmatprep.subr.bf16.mxu0 0
      %3944 = vmatpush1.bf16.msra.mxu0 0
      %3945 = vmatprep.subr.bf16.mxu0 0
      %3946 = vmatpush1.bf16.msra.mxu0 0
      %3947 = vmatprep.subr.bf16.mxu0 0
      %3948 = vmatpush1.bf16.msra.mxu0 0
      %3949 = vmatprep.mubr.bf16.mxu0 0
      %3950 = vmatmul.mubr.bf16.gmra.mrb[0].mxu0 %v3908
      %v3951 = vpop.f32.mrb[0].mxu0
      %v3952 = vadd.f32 0.0, %v3951
      %v3953 = vpop.f32.mrb[0].mxu0
      %v3954 = vpop.f32.mrb[0].mxu0
      %v3955 = vpop.f32.mrb[0].mxu0
      %3956 = vdwg.mxu0
      %v3959 = vunpack.c.l.b16 %v65
      %v3960 = vunpack.c.l.b16 %v66
      %v3961 = vpack.c.b16 %v3960, %v3959
      %vm3962 = vcmask 97280
      %v3964 = vsel %vm3962, %v3881, 0
      %vm3966 = vcmask 1045504
      %v3968 = vsel %vm3966, %v3961, 0
      %3970 = vmatprep.subr.bf16.mxu0 0
      %3971 = vmatpush1.bf16.msra.mxu0 %v3968
      %3972 = vmatprep.subr.bf16.mxu0 0
      %3973 = vmatpush1.bf16.msra.mxu0 0
      %3974 = vmatprep.subr.bf16.mxu0 0
      %3975 = vmatpush1.bf16.msra.mxu0 0
      %3976 = vmatprep.subr.bf16.mxu0 0
      %3977 = vmatpush1.bf16.msra.mxu0 0
      %3978 = vmatprep.subr.bf16.mxu0 0
      %3979 = vmatpush1.bf16.msra.mxu0 0
      %3980 = vmatprep.subr.bf16.mxu0 0
      %3981 = vmatpush1.bf16.msra.mxu0 0
      %3982 = vmatprep.subr.bf16.mxu0 0
      %3983 = vmatpush1.bf16.msra.mxu0 0
      %3984 = vmatprep.subr.bf16.mxu0 0
      %3985 = vmatpush1.bf16.msra.mxu0 0
      %3986 = vmatprep.subr.bf16.mxu0 0
      %3987 = vmatpush1.bf16.msra.mxu0 0
      %3988 = vmatprep.subr.bf16.mxu0 0
      %3989 = vmatpush1.bf16.msra.mxu0 0
      %3990 = vmatprep.subr.bf16.mxu0 0
      %3991 = vmatpush1.bf16.msra.mxu0 0
      %3992 = vmatprep.subr.bf16.mxu0 0
      %3993 = vmatpush1.bf16.msra.mxu0 0
      %3994 = vmatprep.subr.bf16.mxu0 0
      %3995 = vmatpush1.bf16.msra.mxu0 0
      %3996 = vmatprep.subr.bf16.mxu0 0
      %3997 = vmatpush1.bf16.msra.mxu0 0
      %3998 = vmatprep.subr.bf16.mxu0 0
      %3999 = vmatpush1.bf16.msra.mxu0 0
      %4000 = vmatprep.subr.bf16.mxu0 0
      %4001 = vmatpush1.bf16.msra.mxu0 0
      %4002 = vmatprep.mubr.bf16.mxu0 0
      %4003 = vmatmul.mubr.bf16.gmra.mrb[0].mxu0 %v3964
      %v4004 = vpop.f32.mrb[0].mxu0
      %v4005 = vadd.f32 %v3952, %v4004
      %v4006 = vpop.f32.mrb[0].mxu0
      %v4007 = vpop.f32.mrb[0].mxu0
      %v4008 = vpop.f32.mrb[0].mxu0
      %4009 = vdwg.mxu0
      %v4011 = vlaneseq
      %v4012 = vshrl.u32 %v4011, 7
      %v4013 = vsub.s32 0, %v4012
      %v4014 = vrot.slane %v79, %v4013
      %v4016 = vadd.f32 %v4005, %v4014
      %v4017 = vadd.f32 %v4016, %v3720
      %v4018 = vxor.u32 %v4017, 2147483648
      %v4019 = vmul.f32 %v4018, 1.442695
      %v4020 = vpow.pop %v4019
      %v4021 = vadd.f32 %v4020, 1.0
      %v4022 = vrcp.pop %v4021
      %v4023 = vmul.f32 1.0, %v4022
      %4025 = vrot.lane.b32.xlu0 %v3720, 64
      %v4026 = vpop.permute.xlu0 %4025
      %v4028 = vmul.f32 %v4023, %v4026
      %4030 = vrot.lane.b32.xlu0 %v4028, 64
      %v4031 = vpop.permute.xlu0 %4030
      %v4033 = vadd.f32 %v4016, %v4031
      %v4034 = vtanh.pop %v4033
      %v4035 = vsub.f32 1.0, %v4023
      %4037 = vrot.lane.b32.xlu0 %v4034, 96
      %v4038 = vpop.permute.xlu0 %4037
      %v4040 = vmul.f32 %v4035, %v4038
      %4042 = vrot.lane.b32.xlu0 %v3655, 32
      %v4043 = vpop.permute.xlu0 %4042
      %v4045 = vmul.f32 %v4023, %v4043
      %v4046 = vadd.f32 %v4040, %v4045
      %v4047 = vpack.c.bf16 %v4046, %v4046
      %v4049 = vlaneseq
      %v4050 = vshrl.u32 %v4049, 7
      %v4051 = vsub.s32 0, %v4050
      %v4052 = vrot.slane %v80, %v4051
      %4055 = vrot.lane.b32.xlu0 %v4047, 96
      %v4056 = vpop.permute.xlu0 %4055
      %v4061 = vunpack.c.l.b16 %v73
      %v4062 = vunpack.c.l.b16 %v74
      %v4063 = vunpack.c.l.b16 %v75
      %v4064 = vunpack.c.l.b16 %v76
      %v4065 = vpack.c.b16 %v4062, %v4061
      %v4066 = vpack.c.b16 %v4064, %v4063
      %v4070 = vsel %vm3670, %v4056, 0
      %4072 = vmatprep.subr.bf16.mxu0 0
      %4073 = vmatpush1.bf16.msra.mxu0 %v4065
      %4074 = vmatprep.subr.bf16.mxu0 0
      %4075 = vmatpush1.bf16.msra.mxu0 %v4066
      %4076 = vmatprep.subr.bf16.mxu0 0
      %4077 = vmatpush1.bf16.msra.mxu0 0
      %4078 = vmatprep.subr.bf16.mxu0 0
      %4079 = vmatpush1.bf16.msra.mxu0 0
      %4080 = vmatprep.subr.bf16.mxu0 0
      %4081 = vmatpush1.bf16.msra.mxu0 0
      %4082 = vmatprep.subr.bf16.mxu0 0
      %4083 = vmatpush1.bf16.msra.mxu0 0
      %4084 = vmatprep.subr.bf16.mxu0 0
      %4085 = vmatpush1.bf16.msra.mxu0 0
      %4086 = vmatprep.subr.bf16.mxu0 0
      %4087 = vmatpush1.bf16.msra.mxu0 0
      %4088 = vmatprep.subr.bf16.mxu0 0
      %4089 = vmatpush1.bf16.msra.mxu0 0
      %4090 = vmatprep.subr.bf16.mxu0 0
      %4091 = vmatpush1.bf16.msra.mxu0 0
      %4092 = vmatprep.subr.bf16.mxu0 0
      %4093 = vmatpush1.bf16.msra.mxu0 0
      %4094 = vmatprep.subr.bf16.mxu0 0
      %4095 = vmatpush1.bf16.msra.mxu0 0
      %4096 = vmatprep.subr.bf16.mxu0 0
      %4097 = vmatpush1.bf16.msra.mxu0 0
      %4098 = vmatprep.subr.bf16.mxu0 0
      %4099 = vmatpush1.bf16.msra.mxu0 0
      %4100 = vmatprep.subr.bf16.mxu0 0
      %4101 = vmatpush1.bf16.msra.mxu0 0
      %4102 = vmatprep.subr.bf16.mxu0 0
      %4103 = vmatpush1.bf16.msra.mxu0 0
      %4104 = vmatprep.mubr.bf16.mxu0 0
      %4105 = vmatmul.mubr.bf16.gmra.mrb[0].mxu0 %v4070
      %v4106 = vpop.f32.mrb[0].mxu0
      %v4107 = vadd.f32 %v4052, %v4106
      %v4108 = vpop.f32.mrb[0].mxu0
      %v4109 = vpop.f32.mrb[0].mxu0
      %v4110 = vpop.f32.mrb[0].mxu0
      %4111 = vdwg.mxu0
      %v4112 = vsel %vm46, %v4107, -inf
      %4113 = vmax.xlane.f32.xlu0 %v4112
      %v4114 = vpop.xlane.xlu0 %4113
      %vm4115 = vcmp.eq.f32.partialorder %v4107, %v4114
      %v4116 = vsel %vm4115, %v43, 12
      %v4117 = vsel %vm46, %v4116, 2147483647
      %v4118 = vand.u32 %v4117, 65535
      %v4119 = vshra.s32 %v4117, 16
      %v4120 = vcvt.s32.f32 %v4118
      %v4121 = vcvt.s32.f32 %v4119
      %4122 = vmin.xlane.f32.xlu0 %v4121
      %v4123 = vpop.xlane.xlu0 %4122
      %vm4124 = vcmp.eq.f32.partialorder %v4121, %v4123
      %v4125 = vsel %vm4124, %v4120, inf
      %4126 = vmin.xlane.f32.xlu0 %v4125
      %v4127 = vpop.xlane.xlu0 %4126
      %v4128 = vcvt.f32.s32 %v4127
      %v4129 = vcvt.f32.s32 %v4123
      %v4130 = vshll.u32 %v4129, 16
      %v4131 = vadd.s32 %v4130, %v4128
      %vm4132 = vcmp.eq.s32.totalorder %v43, 7
      %v4133 = vld [vmem:[#allocation5] sm:$0x3]
      %v4134 = vsel %vm4132, %v4131, %v4133
      %4135 = vst.msk [vmem:[#allocation5] sm:$0x3] %vm50, %v4134
      %vm4136 = vcmp.eq.s32.totalorder %v4131, 0
      %v4137 = vsel %vm4136, 0.0, 1.0
      %vm4138 = vcmask 1024
      %v4139 = vsel %vm4138, %v4137, 0.0
      %4140 = vadd.xlane.f32.xlu0 %v4139
      %v4141 = vpop.xlane.xlu0 %4140
      %v4142 = vrot.slane %v4141, 4
      %v4143 = vadd.f32 %v4141, %v4142
      %v4144 = vrot.slane %v4143, 2
      %v4145 = vadd.f32 %v4143, %v4144
      %v4146 = vrot.slane %v4145, 1
      %v4147 = vadd.f32 %v4145, %v4146
      %s4148 = vtos %v4147
      %p4149 = scmp.eq.f32.partialorder %s4148, 0.0
      %s4150 = scalar_select %p4149, 1, 0
      %4151 = sst [smem:[%s48]] %s4150
      %4153 = vrot.lane.b32.xlu0 %v4046, 96
      %v4154 = vpop.permute.xlu0 %4153
      %4156 = vst.msk [vmem:[#allocation2] sm:$0x3] %vm40, %v4154
      %vm4157 = vcmp.eq.s32.totalorder %v43, %v4131
      %v4158 = vsel %vm4157, 1.0, 0.0
      %4159 = vst.msk [vmem:[#allocation3] sm:$0x3] %vm46, %v4158
    $region77: #{attention_decoder_forward.21} parent=1 // pred_fallthru
      _
    // Predicated region
    $region78: #{attention_decoder_forward.21} parent=1 // pred_check
      _
    $region79: #{attention_decoder_forward.21} parent=1 // pred_check_branch
      %4161 = sbr.rel (0) target = $region81
    $region80: #{attention_decoder_forward.21} parent=1 // pred_region
      %s4163 = ssub.s32 32, 32
      %4164 = vsyncadd [#allocation6], %s4163
      %s4166 = sshll.u32 [#allocation5], 4
      %s4167 = int_to_ptr.vmem [resolvable:$true] %s4166
      %4169 = dma.vmem_to_hbm [thread:$0]  %s4167, 32, %s11, [#allocation6]
    $region81: #{attention_decoder_forward.21} parent=1 // pred_fallthru
      _
    // Predicated region
    $region82: #{attention_decoder_forward.21} parent=1 // pred_check
      _
    $region83: #{attention_decoder_forward.21} parent=1 // pred_check_branch
      %4171 = sbr.rel (0) target = $region85
    $region84: #{attention_decoder_forward.21} parent=1 // pred_region
      %4172 = dma.done [#allocation6], 32
    $region85: #{attention_decoder_forward.21} parent=1 // pred_fallthru
      _
    %4173 = vsyncpa [#allocation6], 1

</llo_original>
